<compile_context>
chip_gen: v5e
topology: v5e:2x2
jax: 0.10.0
libtpu: 0.0.40
codegen_flags: <defaults>
</compile_context>

<pallas_src>
import jax
import jax.numpy as jnp
from jax.experimental import pallas as pl
from jax.experimental.pallas import tpu as pltpu

# Geometry forced by the module: fc1 takes 32*32 flattened features and cnn2 has a
# single output channel, so the spatial size must be 32x32.
H = W = 32
HW = H * W
C1 = 32   # cnn1 output channels
KS = 3    # conv kernel size


def _tap_offsets():
    """(dh, dw, shift) per tap in row-major (kh, kw) order."""
    taps = []
    for kh in range(KS):
        for kw in range(KS):
            dh, dw = kh - 1, kw - 1
            taps.append((dh, dw, dh * W + dw))
    return taps


def cnn_kernel(x_ref, w1_ref, b1_ref, w2_ref, b2_ref,
               fc1w_ref, fc1b_ref, fc2w_ref, fc2b_ref, out_ref, stack_ref):
    """One grid step = b_tile images side-by-side on the 128-lane axis."""
    x = x_ref[...]                                   # (cin_pad, N), N = b_tile*HW
    cin_pad, n = x.shape
    b_tile = n // HW

    # Per-lane (h, w) within each 32x32 image; pattern repeats every HW lanes.
    q = jax.lax.broadcasted_iota(jnp.int32, (1, n), 1)
    hh = (q >> 5) & (H - 1)                          # (q // W) % H
    ww = q & (W - 1)                                 # q % W

    # 4 elementary edge predicates, AND-ed at most pairwise per tap.
    h_lo, h_hi = hh > 0, hh < H - 1                  # valid for dh = -1 / +1
    w_lo, w_hi = ww > 0, ww < W - 1                  # valid for dw = -1 / +1

    taps = []
    for dh, dw, s in _tap_offsets():
        mask = None
        for hit, pred in ((dh == -1, h_lo), (dh == 1, h_hi),
                          (dw == -1, w_lo), (dw == 1, w_hi)):
            if hit:
                mask = pred if mask is None else (mask & pred)
        taps.append((s, mask))                       # centre tap: mask is None

    # ---- conv1 + tanh: write the 9 shifted/masked input pieces straight into a
    # VMEM scratch, then one fused (C1, 9*cin_pad) @ (9*cin_pad, N) MXU matmul.
    for t, (s, mask) in enumerate(taps):
        y = x if s == 0 else pltpu.roll(x, (-s) % n, axis=1)   # y[q] = x[(q+s) % n]
        if mask is not None:
            y = jnp.where(mask, y, 0.0)
        stack_ref[t * cin_pad:(t + 1) * cin_pad, :] = y
    a1 = jnp.tanh(jnp.dot(w1_ref[...], stack_ref[...],
                          preferred_element_type=jnp.float32) + b1_ref[...])    # (C1, N)

    # ---- conv2 + tanh: contract channels FIRST ((9, C1) @ (C1, N)), then
    # roll/mask/sum the nine (1, N) tap rows (mask AFTER roll).
    rows = jnp.dot(w2_ref[...], a1, preferred_element_type=jnp.float32)         # (9, N)
    acc = None
    for t, (s, mask) in enumerate(taps):
        r = rows[t:t + 1, :]
        if s != 0:
            r = pltpu.roll(r, (-s) % n, axis=1)
        if mask is not None:
            r = jnp.where(mask, r, 0.0)
        acc = r if acc is None else acc + r
    a2 = jnp.tanh(acc + b2_ref[...])                                            # (1, N)

    # ---- FC layers with dense weights.  Relayout a2 lane-major -> per-image
    # rows (b_tile, HW) via aligned lane-slices + a sublane concat (tiny), so the
    # fc1 matmul carries no structural zeros and no kron weight traffic.
    # a2's lane order b*HW + p matches PyTorch's x.view(B, -1) since C_out == 1.
    a2_img = jnp.concatenate(
        [a2[:, b * HW:(b + 1) * HW] for b in range(b_tile)], axis=0)            # (b_tile, HW)
    h1 = jnp.tanh(jnp.dot(a2_img, fc1w_ref[...],
                          preferred_element_type=jnp.float32) + fc1b_ref[...])  # (b_tile, hidden)
    out = jnp.dot(h1, fc2w_ref[...],
                  preferred_element_type=jnp.float32) + fc2b_ref[...]           # (b_tile, out_f)
    out_ref[0] = out.astype(out_ref.dtype)


def cnn_forward(x_nchw, params, *, b_tile=None):
    """Pallas forward matching CNNModel.forward; NCHW input -> (B, out_features)."""
    w1, b1, w2, b2, fc1_w, fc1_b, fc2_w, fc2_b = params
    B, cin, h, w = x_nchw.shape
    assert (h, w) == (H, W), "fc1 = Linear(32*32, ...) requires 32x32 inputs"
    hidden = fc1_w.shape[0]
    out_f = fc2_w.shape[0]
    f32 = jnp.float32

    if b_tile is None:
        # >= 2 grid steps when B allows (even count keeps both v7x TCs busy under
        # "parallel"); cap at 8 images/step (~6 MiB working set).  On v5e/v6e the
        # same cap is fine — per-step overhead (~0.35 us) is negligible here.
        b_tile = max(1, min(8, B // 2)) if B >= 2 else 1
    b_tile = max(1, min(b_tile, B))
    n_steps = pl.cdiv(B, b_tile)
    b_pad = n_steps * b_tile
    cin_pad = max(8, -(-cin // 8) * 8)        # full f32 sublane tile per conv1 tap
    lane_n = b_tile * HW

    # ---- glue: input & parameter re-layout (plain JAX, outside the kernel) ----
    xp = jnp.pad(x_nchw.astype(f32), ((0, b_pad - B), (0, 0), (0, 0), (0, 0)))
    # (cin_pad, B_pad*HW): lane index = b*HW + h*W + w; channels on sublanes.
    x_flat = jnp.pad(
        jnp.transpose(xp.reshape(b_pad, cin, HW), (1, 0, 2)).reshape(cin, b_pad * HW),
        ((0, cin_pad - cin), (0, 0)))

    # conv1 weight: row o, column t*cin_pad + c  <->  stack_ref row order.
    w1p = jnp.pad(w1.astype(f32), ((0, 0), (0, cin_pad - cin), (0, 0), (0, 0)))
    w1r = jnp.transpose(w1p, (0, 2, 3, 1)).reshape(C1, 9 * cin_pad)          # (32, 72)
    # conv2 weight: row t = kh*3+kw, column c (channels contracted first).
    w2r = jnp.transpose(w2.astype(f32), (2, 3, 1, 0)).reshape(9, C1)         # (9, 32)
    b1r = b1.astype(f32).reshape(C1, 1)
    b2r = b2.astype(f32).reshape(1, 1)

    # Dense FC weights (no block-diagonal kron): ~5x less HBM traffic and no
    # quadratic-in-b_tile VMEM term.
    fc1wT = fc1_w.astype(f32).T                                              # (HW, hidden)
    fc1br = fc1_b.astype(f32).reshape(1, hidden)
    fc2wT = fc2_w.astype(f32).T                                              # (hidden, out_f)
    fc2br = fc2_b.astype(f32).reshape(1, out_f)

    def full(shape):
        return pl.BlockSpec(shape, lambda b: (0,) * len(shape))

    grid_spec = pltpu.PrefetchScalarGridSpec(
        num_scalar_prefetch=0,
        grid=(n_steps,),
        in_specs=[
            pl.BlockSpec((cin_pad, lane_n), lambda b: (0, b)),   # b_tile images/step
            full((C1, 9 * cin_pad)),
            full((C1, 1)),
            full((9, C1)),
            full((1, 1)),
            full((HW, hidden)),
            full((1, hidden)),
            full((hidden, out_f)),
            full((1, out_f)),
        ],
        out_specs=pl.BlockSpec((1, b_tile, out_f), lambda b: (b, 0, 0)),
        scratch_shapes=[pltpu.VMEM((9 * cin_pad, lane_n), f32)],
    )

    # Advisory cost estimate (logical model FLOPs) for XLA's scheduler.
    flops = 2 * b_pad * (C1 * 9 * cin_pad * HW + 9 * C1 * HW
                         + HW * hidden + hidden * out_f)
    transcendentals = b_pad * ((C1 + 1) * HW + hidden)
    bytes_accessed = 4 * (x_flat.size + b_pad * out_f + w1r.size + w2r.size
                          + b1r.size + b2r.size + fc1wT.size + fc1br.size
                          + fc2wT.size + fc2br.size)

    out = pl.pallas_call(
        cnn_kernel,
        out_shape=jax.ShapeDtypeStruct((n_steps, b_tile, out_f), f32),
        grid_spec=grid_spec,
        compiler_params=pltpu.CompilerParams(
            dimension_semantics=("parallel",),       # shards steps across v7x's 2 TCs
            vmem_limit_bytes=32 * 1024 * 1024,       # ~3-6 MiB actually used; safe on all gens
        ),
        cost_estimate=pl.CostEstimate(flops=flops,
                                      transcendentals=transcendentals,
                                      bytes_accessed=bytes_accessed),
    )(x_flat, w1r, b1r, w2r, b2r, fc1wT, fc1br, fc2wT, fc2br)

    return out.reshape(b_pad, out_f)[:B]


def ref_forward(x, params):
    """Pure-JAX reference matching the PyTorch forward (NCHW)."""
    w1, b1, w2, b2, fc1_w, fc1_b, fc2_w, fc2_b = params
    dn = ("NCHW", "OIHW", "NCHW")
    y = jax.lax.conv_general_dilated(x, w1, (1, 1), "SAME", dimension_numbers=dn)
    y = jnp.tanh(y + b1[None, :, None, None])
    y = jax.lax.conv_general_dilated(y, w2, (1, 1), "SAME", dimension_numbers=dn)
    y = jnp.tanh(y + b2[None, :, None, None])
    y = y.reshape(y.shape[0], -1)
    y = jnp.tanh(y @ fc1_w.T + fc1_b)
    return y @ fc2_w.T + fc2_b


if __name__ == "__main__":
    # Small shapes consistent with the module (fc1 forces 32x32 spatial).
    B, in_features, hidden_dim, out_features = 8, 4, 32, 8

    key = jax.random.PRNGKey(0)
    ks = jax.random.split(key, 9)
    x = jax.random.normal(ks[0], (B, in_features, H, W), jnp.float32)
    # Deterministic synthetic parameters (shapes per the PyTorch __init__).
    w1 = jax.random.normal(ks[1], (32, in_features, 3, 3), jnp.float32) * 0.1
    b1 = jax.random.normal(ks[2], (32,), jnp.float32) * 0.1
    w2 = jax.random.normal(ks[3], (1, 32, 3, 3), jnp.float32) * 0.1
    b2 = jax.random.normal(ks[4], (1,), jnp.float32) * 0.1
    fc1_w = jax.random.normal(ks[5], (hidden_dim, 32 * 32), jnp.float32) * 0.05
    fc1_b = jax.random.normal(ks[6], (hidden_dim,), jnp.float32) * 0.05
    fc2_w = jax.random.normal(ks[7], (out_features, hidden_dim), jnp.float32) * 0.05
    fc2_b = jax.random.normal(ks[8], (out_features,), jnp.float32) * 0.05
    params = (w1, b1, w2, b2, fc1_w, fc1_b, fc2_w, fc2_b)

    out = cnn_forward(x, params)      # default b_tile heuristic -> 4 images/step, 2 steps
    jax.block_until_ready(out)

    ref = ref_forward(x, params)
    assert out.shape == (B, out_features)
    max_err = float(jnp.max(jnp.abs(out - ref)))
    assert jnp.allclose(out, ref, atol=2e-4, rtol=2e-4), max_err
    print("KERNEL_OK")
</pallas_src>

<mosaic_0001>
module attributes {stable_mosaic.version = 11 : i64} {
  func.func @cnn_kernel(%arg0: i32, %arg1: memref<8x4096xf32, #tpu.memory_space<vmem>>, %arg2: memref<32x72xf32, #tpu.memory_space<vmem>>, %arg3: memref<32x1xf32, #tpu.memory_space<vmem>>, %arg4: memref<9x32xf32, #tpu.memory_space<vmem>>, %arg5: memref<1x1xf32, #tpu.memory_space<vmem>>, %arg6: memref<1024x32xf32, #tpu.memory_space<vmem>>, %arg7: memref<1x32xf32, #tpu.memory_space<vmem>>, %arg8: memref<32x8xf32, #tpu.memory_space<vmem>>, %arg9: memref<1x8xf32, #tpu.memory_space<vmem>>, %arg10: memref<1x4x8xf32, #tpu.memory_space<vmem>>, %arg11: memref<72x4096xf32, #tpu.memory_space<vmem>>) attributes {dimension_semantics = [#tpu.dimension_semantics<parallel>], iteration_bounds = array<i64: 2>, scalar_prefetch = 0 : i64, scratch_operands = 1 : i64, tpu.core_type = #tpu.core_type<tc>, window_params = [{transform_indices = @transform_0, window_bounds = array<i64: 8, 4096>}, {pipeline_mode = #tpu.pipeline_mode<synchronous>, transform_indices = @transform_1, window_bounds = array<i64: 32, 72>}, {pipeline_mode = #tpu.pipeline_mode<synchronous>, transform_indices = @transform_2, window_bounds = array<i64: 32, 1>}, {pipeline_mode = #tpu.pipeline_mode<synchronous>, transform_indices = @transform_3, window_bounds = array<i64: 9, 32>}, {pipeline_mode = #tpu.pipeline_mode<synchronous>, transform_indices = @transform_4, window_bounds = array<i64: 1, 1>}, {pipeline_mode = #tpu.pipeline_mode<synchronous>, transform_indices = @transform_5, window_bounds = array<i64: 1024, 32>}, {pipeline_mode = #tpu.pipeline_mode<synchronous>, transform_indices = @transform_6, window_bounds = array<i64: 1, 32>}, {pipeline_mode = #tpu.pipeline_mode<synchronous>, transform_indices = @transform_7, window_bounds = array<i64: 32, 8>}, {pipeline_mode = #tpu.pipeline_mode<synchronous>, transform_indices = @transform_8, window_bounds = array<i64: 1, 8>}, {transform_indices = @transform_9, window_bounds = array<i64: 1, 4, 8>}]} {
    %c0 = arith.constant 0 : index
    %c0_0 = arith.constant 0 : index
    %0 = vector.load %arg1[%c0, %c0_0] : memref<8x4096xf32, #tpu.memory_space<vmem>>, vector<8x4096xf32>
    %1 = tpu.iota {dimensions = array<i32: 1>} : vector<1x4096xi32>
    %c5_i32 = arith.constant 5 : i32
    %2 = vector.broadcast %c5_i32 : i32 to vector<1x4096xi32>
    %3 = arith.shrsi %1, %2 : vector<1x4096xi32>
    %c31_i32 = arith.constant 31 : i32
    %4 = vector.broadcast %c31_i32 : i32 to vector<1x4096xi32>
    %5 = arith.andi %3, %4 : vector<1x4096xi32>
    %c31_i32_1 = arith.constant 31 : i32
    %6 = vector.broadcast %c31_i32_1 : i32 to vector<1x4096xi32>
    %7 = arith.andi %1, %6 : vector<1x4096xi32>
    %c0_i32 = arith.constant 0 : i32
    %8 = vector.broadcast %c0_i32 : i32 to vector<1x4096xi32>
    %9 = arith.cmpi sgt, %5, %8 : vector<1x4096xi32>
    %c31_i32_2 = arith.constant 31 : i32
    %10 = vector.broadcast %c31_i32_2 : i32 to vector<1x4096xi32>
    %11 = arith.cmpi slt, %5, %10 : vector<1x4096xi32>
    %c0_i32_3 = arith.constant 0 : i32
    %12 = vector.broadcast %c0_i32_3 : i32 to vector<1x4096xi32>
    %13 = arith.cmpi sgt, %7, %12 : vector<1x4096xi32>
    %c31_i32_4 = arith.constant 31 : i32
    %14 = vector.broadcast %c31_i32_4 : i32 to vector<1x4096xi32>
    %15 = arith.cmpi slt, %7, %14 : vector<1x4096xi32>
    %16 = arith.andi %9, %13 : vector<1x4096xi1>
    %17 = arith.andi %9, %15 : vector<1x4096xi1>
    %18 = arith.andi %11, %13 : vector<1x4096xi1>
    %19 = arith.andi %11, %15 : vector<1x4096xi1>
    %c33_i32 = arith.constant 33 : i32
    %20 = tpu.dynamic_rotate %0 by %c33_i32 dim 1 : vector<8x4096xf32>, i32 -> vector<8x4096xf32>
    %cst = arith.constant 0.000000e+00 : f32
    %21 = vector.shape_cast %16 : vector<1x4096xi1> to vector<1x4096xi1>
    %22 = vector.broadcast %21 : vector<1x4096xi1> to vector<8x4096xi1>
    %23 = vector.broadcast %cst : f32 to vector<8x4096xf32>
    %24 = arith.select %22, %20, %23 : vector<8x4096xi1>, vector<8x4096xf32>
    %c0_5 = arith.constant 0 : index
    %c0_6 = arith.constant 0 : index
    %25 = vector.load %arg11[%c0_5, %c0_6] : memref<72x4096xf32, #tpu.memory_space<vmem>>, vector<8x4096xf32>
    tpu.vector_store %arg11[%c0_5, %c0_6], %24 {strides = array<i32>} : memref<72x4096xf32, #tpu.memory_space<vmem>>, vector<8x4096xf32>,
    %c32_i32 = arith.constant 32 : i32
    %26 = tpu.dynamic_rotate %0 by %c32_i32 dim 1 : vector<8x4096xf32>, i32 -> vector<8x4096xf32>
    %cst_7 = arith.constant 0.000000e+00 : f32
    %27 = vector.shape_cast %9 : vector<1x4096xi1> to vector<1x4096xi1>
    %28 = vector.broadcast %27 : vector<1x4096xi1> to vector<8x4096xi1>
    %29 = vector.broadcast %cst_7 : f32 to vector<8x4096xf32>
    %30 = arith.select %28, %26, %29 : vector<8x4096xi1>, vector<8x4096xf32>
    %c8 = arith.constant 8 : index
    %c0_8 = arith.constant 0 : index
    %31 = vector.load %arg11[%c8, %c0_8] : memref<72x4096xf32, #tpu.memory_space<vmem>>, vector<8x4096xf32>
    tpu.vector_store %arg11[%c8, %c0_8], %30 {strides = array<i32>} : memref<72x4096xf32, #tpu.memory_space<vmem>>, vector<8x4096xf32>,
    %c31_i32_9 = arith.constant 31 : i32
    %32 = tpu.dynamic_rotate %0 by %c31_i32_9 dim 1 : vector<8x4096xf32>, i32 -> vector<8x4096xf32>
    %cst_10 = arith.constant 0.000000e+00 : f32
    %33 = vector.shape_cast %17 : vector<1x4096xi1> to vector<1x4096xi1>
    %34 = vector.broadcast %33 : vector<1x4096xi1> to vector<8x4096xi1>
    %35 = vector.broadcast %cst_10 : f32 to vector<8x4096xf32>
    %36 = arith.select %34, %32, %35 : vector<8x4096xi1>, vector<8x4096xf32>
    %c16 = arith.constant 16 : index
    %c0_11 = arith.constant 0 : index
    %37 = vector.load %arg11[%c16, %c0_11] : memref<72x4096xf32, #tpu.memory_space<vmem>>, vector<8x4096xf32>
    tpu.vector_store %arg11[%c16, %c0_11], %36 {strides = array<i32>} : memref<72x4096xf32, #tpu.memory_space<vmem>>, vector<8x4096xf32>,
    %c1_i32 = arith.constant 1 : i32
    %38 = tpu.dynamic_rotate %0 by %c1_i32 dim 1 : vector<8x4096xf32>, i32 -> vector<8x4096xf32>
    %cst_12 = arith.constant 0.000000e+00 : f32
    %39 = vector.shape_cast %13 : vector<1x4096xi1> to vector<1x4096xi1>
    %40 = vector.broadcast %39 : vector<1x4096xi1> to vector<8x4096xi1>
    %41 = vector.broadcast %cst_12 : f32 to vector<8x4096xf32>
    %42 = arith.select %40, %38, %41 : vector<8x4096xi1>, vector<8x4096xf32>
    %c24 = arith.constant 24 : index
    %c0_13 = arith.constant 0 : index
    %43 = vector.load %arg11[%c24, %c0_13] : memref<72x4096xf32, #tpu.memory_space<vmem>>, vector<8x4096xf32>
    tpu.vector_store %arg11[%c24, %c0_13], %42 {strides = array<i32>} : memref<72x4096xf32, #tpu.memory_space<vmem>>, vector<8x4096xf32>,
    %c32 = arith.constant 32 : index
    %c0_14 = arith.constant 0 : index
    %44 = vector.load %arg11[%c32, %c0_14] : memref<72x4096xf32, #tpu.memory_space<vmem>>, vector<8x4096xf32>
    tpu.vector_store %arg11[%c32, %c0_14], %0 {strides = array<i32>} : memref<72x4096xf32, #tpu.memory_space<vmem>>, vector<8x4096xf32>,
    %c4095_i32 = arith.constant 4095 : i32
    %45 = tpu.dynamic_rotate %0 by %c4095_i32 dim 1 : vector<8x4096xf32>, i32 -> vector<8x4096xf32>
    %cst_15 = arith.constant 0.000000e+00 : f32
    %46 = vector.shape_cast %15 : vector<1x4096xi1> to vector<1x4096xi1>
    %47 = vector.broadcast %46 : vector<1x4096xi1> to vector<8x4096xi1>
    %48 = vector.broadcast %cst_15 : f32 to vector<8x4096xf32>
    %49 = arith.select %47, %45, %48 : vector<8x4096xi1>, vector<8x4096xf32>
    %c40 = arith.constant 40 : index
    %c0_16 = arith.constant 0 : index
    %50 = vector.load %arg11[%c40, %c0_16] : memref<72x4096xf32, #tpu.memory_space<vmem>>, vector<8x4096xf32>
    tpu.vector_store %arg11[%c40, %c0_16], %49 {strides = array<i32>} : memref<72x4096xf32, #tpu.memory_space<vmem>>, vector<8x4096xf32>,
    %c4065_i32 = arith.constant 4065 : i32
    %51 = tpu.dynamic_rotate %0 by %c4065_i32 dim 1 : vector<8x4096xf32>, i32 -> vector<8x4096xf32>
    %cst_17 = arith.constant 0.000000e+00 : f32
    %52 = vector.shape_cast %18 : vector<1x4096xi1> to vector<1x4096xi1>
    %53 = vector.broadcast %52 : vector<1x4096xi1> to vector<8x4096xi1>
    %54 = vector.broadcast %cst_17 : f32 to vector<8x4096xf32>
    %55 = arith.select %53, %51, %54 : vector<8x4096xi1>, vector<8x4096xf32>
    %c48 = arith.constant 48 : index
    %c0_18 = arith.constant 0 : index
    %56 = vector.load %arg11[%c48, %c0_18] : memref<72x4096xf32, #tpu.memory_space<vmem>>, vector<8x4096xf32>
    tpu.vector_store %arg11[%c48, %c0_18], %55 {strides = array<i32>} : memref<72x4096xf32, #tpu.memory_space<vmem>>, vector<8x4096xf32>,
    %c4064_i32 = arith.constant 4064 : i32
    %57 = tpu.dynamic_rotate %0 by %c4064_i32 dim 1 : vector<8x4096xf32>, i32 -> vector<8x4096xf32>
    %cst_19 = arith.constant 0.000000e+00 : f32
    %58 = vector.shape_cast %11 : vector<1x4096xi1> to vector<1x4096xi1>
    %59 = vector.broadcast %58 : vector<1x4096xi1> to vector<8x4096xi1>
    %60 = vector.broadcast %cst_19 : f32 to vector<8x4096xf32>
    %61 = arith.select %59, %57, %60 : vector<8x4096xi1>, vector<8x4096xf32>
    %c56 = arith.constant 56 : index
    %c0_20 = arith.constant 0 : index
    %62 = vector.load %arg11[%c56, %c0_20] : memref<72x4096xf32, #tpu.memory_space<vmem>>, vector<8x4096xf32>
    tpu.vector_store %arg11[%c56, %c0_20], %61 {strides = array<i32>} : memref<72x4096xf32, #tpu.memory_space<vmem>>, vector<8x4096xf32>,
    %c4063_i32 = arith.constant 4063 : i32
    %63 = tpu.dynamic_rotate %0 by %c4063_i32 dim 1 : vector<8x4096xf32>, i32 -> vector<8x4096xf32>
    %cst_21 = arith.constant 0.000000e+00 : f32
    %64 = vector.shape_cast %19 : vector<1x4096xi1> to vector<1x4096xi1>
    %65 = vector.broadcast %64 : vector<1x4096xi1> to vector<8x4096xi1>
    %66 = vector.broadcast %cst_21 : f32 to vector<8x4096xf32>
    %67 = arith.select %65, %63, %66 : vector<8x4096xi1>, vector<8x4096xf32>
    %c64 = arith.constant 64 : index
    %c0_22 = arith.constant 0 : index
    %68 = vector.load %arg11[%c64, %c0_22] : memref<72x4096xf32, #tpu.memory_space<vmem>>, vector<8x4096xf32>
    tpu.vector_store %arg11[%c64, %c0_22], %67 {strides = array<i32>} : memref<72x4096xf32, #tpu.memory_space<vmem>>, vector<8x4096xf32>,
    %c0_23 = arith.constant 0 : index
    %c0_24 = arith.constant 0 : index
    %69 = vector.load %arg2[%c0_23, %c0_24] : memref<32x72xf32, #tpu.memory_space<vmem>>, vector<32x72xf32>
    %c0_25 = arith.constant 0 : index
    %c0_26 = arith.constant 0 : index
    %70 = vector.load %arg11[%c0_25, %c0_26] : memref<72x4096xf32, #tpu.memory_space<vmem>>, vector<72x4096xf32>
    %cst_27 = arith.constant dense<0.000000e+00> : vector<32x4096xf32>
    %71 = tpu.matmul %69, %70, %cst_27 {dimension_numbers = #tpu.dot_dimension_numbers<[1], [0], [0], [1], [0, 0, 1, 1], [], []>} : vector<32x72xf32>, vector<72x4096xf32>, vector<32x4096xf32> -> vector<32x4096xf32>
    %c0_28 = arith.constant 0 : index
    %c0_29 = arith.constant 0 : index
    %72 = vector.load %arg3[%c0_28, %c0_29] : memref<32x1xf32, #tpu.memory_space<vmem>>, vector<32x1xf32>
    %73 = vector.broadcast %72 : vector<32x1xf32> to vector<32x4096xf32>
    %74 = arith.addf %71, %73 : vector<32x4096xf32>
    %75 = math.tanh %74 : vector<32x4096xf32>
    %c0_30 = arith.constant 0 : index
    %c0_31 = arith.constant 0 : index
    %76 = vector.load %arg4[%c0_30, %c0_31] : memref<9x32xf32, #tpu.memory_space<vmem>>, vector<9x32xf32>
    %cst_32 = arith.constant dense<0.000000e+00> : vector<9x4096xf32>
    %77 = tpu.matmul %76, %75, %cst_32 {dimension_numbers = #tpu.dot_dimension_numbers<[1], [0], [0], [1], [0, 0, 1, 1], [], []>} : vector<9x32xf32>, vector<32x4096xf32>, vector<9x4096xf32> -> vector<9x4096xf32>
    %78 = vector.extract_strided_slice %77 {offsets = [0, 0], sizes = [1, 4096], strides = [1, 1]} : vector<9x4096xf32> to vector<1x4096xf32>
    %c33_i32_33 = arith.constant 33 : i32
    %79 = tpu.dynamic_rotate %78 by %c33_i32_33 dim 1 : vector<1x4096xf32>, i32 -> vector<1x4096xf32>
    %cst_34 = arith.constant 0.000000e+00 : f32
    %80 = vector.broadcast %cst_34 : f32 to vector<1x4096xf32>
    %81 = arith.select %16, %79, %80 : vector<1x4096xi1>, vector<1x4096xf32>
    %82 = vector.extract_strided_slice %77 {offsets = [1, 0], sizes = [1, 4096], strides = [1, 1]} : vector<9x4096xf32> to vector<1x4096xf32>
    %c32_i32_35 = arith.constant 32 : i32
    %83 = tpu.dynamic_rotate %82 by %c32_i32_35 dim 1 : vector<1x4096xf32>, i32 -> vector<1x4096xf32>
    %cst_36 = arith.constant 0.000000e+00 : f32
    %84 = vector.broadcast %cst_36 : f32 to vector<1x4096xf32>
    %85 = arith.select %9, %83, %84 : vector<1x4096xi1>, vector<1x4096xf32>
    %86 = arith.addf %81, %85 : vector<1x4096xf32>
    %87 = vector.extract_strided_slice %77 {offsets = [2, 0], sizes = [1, 4096], strides = [1, 1]} : vector<9x4096xf32> to vector<1x4096xf32>
    %c31_i32_37 = arith.constant 31 : i32
    %88 = tpu.dynamic_rotate %87 by %c31_i32_37 dim 1 : vector<1x4096xf32>, i32 -> vector<1x4096xf32>
    %cst_38 = arith.constant 0.000000e+00 : f32
    %89 = vector.broadcast %cst_38 : f32 to vector<1x4096xf32>
    %90 = arith.select %17, %88, %89 : vector<1x4096xi1>, vector<1x4096xf32>
    %91 = arith.addf %86, %90 : vector<1x4096xf32>
    %92 = vector.extract_strided_slice %77 {offsets = [3, 0], sizes = [1, 4096], strides = [1, 1]} : vector<9x4096xf32> to vector<1x4096xf32>
    %c1_i32_39 = arith.constant 1 : i32
    %93 = tpu.dynamic_rotate %92 by %c1_i32_39 dim 1 : vector<1x4096xf32>, i32 -> vector<1x4096xf32>
    %cst_40 = arith.constant 0.000000e+00 : f32
    %94 = vector.broadcast %cst_40 : f32 to vector<1x4096xf32>
    %95 = arith.select %13, %93, %94 : vector<1x4096xi1>, vector<1x4096xf32>
    %96 = arith.addf %91, %95 : vector<1x4096xf32>
    %97 = vector.extract_strided_slice %77 {offsets = [4, 0], sizes = [1, 4096], strides = [1, 1]} : vector<9x4096xf32> to vector<1x4096xf32>
    %98 = arith.addf %96, %97 : vector<1x4096xf32>
    %99 = vector.extract_strided_slice %77 {offsets = [5, 0], sizes = [1, 4096], strides = [1, 1]} : vector<9x4096xf32> to vector<1x4096xf32>
    %c4095_i32_41 = arith.constant 4095 : i32
    %100 = tpu.dynamic_rotate %99 by %c4095_i32_41 dim 1 : vector<1x4096xf32>, i32 -> vector<1x4096xf32>
    %cst_42 = arith.constant 0.000000e+00 : f32
    %101 = vector.broadcast %cst_42 : f32 to vector<1x4096xf32>
    %102 = arith.select %15, %100, %101 : vector<1x4096xi1>, vector<1x4096xf32>
    %103 = arith.addf %98, %102 : vector<1x4096xf32>
    %104 = vector.extract_strided_slice %77 {offsets = [6, 0], sizes = [1, 4096], strides = [1, 1]} : vector<9x4096xf32> to vector<1x4096xf32>
    %c4065_i32_43 = arith.constant 4065 : i32
    %105 = tpu.dynamic_rotate %104 by %c4065_i32_43 dim 1 : vector<1x4096xf32>, i32 -> vector<1x4096xf32>
    %cst_44 = arith.constant 0.000000e+00 : f32
    %106 = vector.broadcast %cst_44 : f32 to vector<1x4096xf32>
    %107 = arith.select %18, %105, %106 : vector<1x4096xi1>, vector<1x4096xf32>
    %108 = arith.addf %103, %107 : vector<1x4096xf32>
    %109 = vector.extract_strided_slice %77 {offsets = [7, 0], sizes = [1, 4096], strides = [1, 1]} : vector<9x4096xf32> to vector<1x4096xf32>
    %c4064_i32_45 = arith.constant 4064 : i32
    %110 = tpu.dynamic_rotate %109 by %c4064_i32_45 dim 1 : vector<1x4096xf32>, i32 -> vector<1x4096xf32>
    %cst_46 = arith.constant 0.000000e+00 : f32
    %111 = vector.broadcast %cst_46 : f32 to vector<1x4096xf32>
    %112 = arith.select %11, %110, %111 : vector<1x4096xi1>, vector<1x4096xf32>
    %113 = arith.addf %108, %112 : vector<1x4096xf32>
    %114 = vector.extract_strided_slice %77 {offsets = [8, 0], sizes = [1, 4096], strides = [1, 1]} : vector<9x4096xf32> to vector<1x4096xf32>
    %c4063_i32_47 = arith.constant 4063 : i32
    %115 = tpu.dynamic_rotate %114 by %c4063_i32_47 dim 1 : vector<1x4096xf32>, i32 -> vector<1x4096xf32>
    %cst_48 = arith.constant 0.000000e+00 : f32
    %116 = vector.broadcast %cst_48 : f32 to vector<1x4096xf32>
    %117 = arith.select %19, %115, %116 : vector<1x4096xi1>, vector<1x4096xf32>
    %118 = arith.addf %113, %117 : vector<1x4096xf32>
    %c0_49 = arith.constant 0 : index
    %c0_50 = arith.constant 0 : index
    %119 = vector.load %arg5[%c0_49, %c0_50] : memref<1x1xf32, #tpu.memory_space<vmem>>, vector<1x1xf32>
    %120 = vector.broadcast %119 : vector<1x1xf32> to vector<1x4096xf32>
    %121 = arith.addf %118, %120 : vector<1x4096xf32>
    %122 = math.tanh %121 : vector<1x4096xf32>
    %123 = vector.extract_strided_slice %122 {offsets = [0, 0], sizes = [1, 1024], strides = [1, 1]} : vector<1x4096xf32> to vector<1x1024xf32>
    %124 = vector.extract_strided_slice %122 {offsets = [0, 1024], sizes = [1, 1024], strides = [1, 1]} : vector<1x4096xf32> to vector<1x1024xf32>
    %125 = vector.extract_strided_slice %122 {offsets = [0, 2048], sizes = [1, 1024], strides = [1, 1]} : vector<1x4096xf32> to vector<1x1024xf32>
    %126 = vector.extract_strided_slice %122 {offsets = [0, 3072], sizes = [1, 1024], strides = [1, 1]} : vector<1x4096xf32> to vector<1x1024xf32>
    %127 = tpu.concatenate %123, %124, %125, %126 in 0 : vector<1x1024xf32>, vector<1x1024xf32>, vector<1x1024xf32>, vector<1x1024xf32> -> vector<4x1024xf32>
    %c0_51 = arith.constant 0 : index
    %c0_52 = arith.constant 0 : index
    %128 = vector.load %arg6[%c0_51, %c0_52] : memref<1024x32xf32, #tpu.memory_space<vmem>>, vector<1024x32xf32>
    %cst_53 = arith.constant dense<0.000000e+00> : vector<4x32xf32>
    %129 = tpu.matmul %127, %128, %cst_53 {dimension_numbers = #tpu.dot_dimension_numbers<[1], [0], [0], [1], [0, 0, 1, 1], [], []>} : vector<4x1024xf32>, vector<1024x32xf32>, vector<4x32xf32> -> vector<4x32xf32>
    %c0_54 = arith.constant 0 : index
    %c0_55 = arith.constant 0 : index
    %130 = vector.load %arg7[%c0_54, %c0_55] : memref<1x32xf32, #tpu.memory_space<vmem>>, vector<1x32xf32>
    %131 = vector.broadcast %130 : vector<1x32xf32> to vector<4x32xf32>
    %132 = arith.addf %129, %131 : vector<4x32xf32>
    %133 = math.tanh %132 : vector<4x32xf32>
    %c0_56 = arith.constant 0 : index
    %c0_57 = arith.constant 0 : index
    %134 = vector.load %arg8[%c0_56, %c0_57] : memref<32x8xf32, #tpu.memory_space<vmem>>, vector<32x8xf32>
    %cst_58 = arith.constant dense<0.000000e+00> : vector<4x8xf32>
    %135 = tpu.matmul %133, %134, %cst_58 {dimension_numbers = #tpu.dot_dimension_numbers<[1], [0], [0], [1], [0, 0, 1, 1], [], []>} : vector<4x32xf32>, vector<32x8xf32>, vector<4x8xf32> -> vector<4x8xf32>
    %c0_59 = arith.constant 0 : index
    %c0_60 = arith.constant 0 : index
    %136 = vector.load %arg9[%c0_59, %c0_60] : memref<1x8xf32, #tpu.memory_space<vmem>>, vector<1x8xf32>
    %137 = vector.broadcast %136 : vector<1x8xf32> to vector<4x8xf32>
    %138 = arith.addf %135, %137 : vector<4x8xf32>
    %c0_61 = arith.constant 0 : index
    %c0_62 = arith.constant 0 : index
    %c0_63 = arith.constant 0 : index
    %139 = vector.load %arg10[%c0_61, %c0_62, %c0_63] : memref<1x4x8xf32, #tpu.memory_space<vmem>>, vector<1x4x8xf32>
    %140 = vector.shape_cast %139 : vector<1x4x8xf32> to vector<4x8xf32>
    %141 = vector.shape_cast %138 : vector<4x8xf32> to vector<1x4x8xf32>
    tpu.vector_store %arg10[%c0_61, %c0_62, %c0_63], %141 {strides = array<i32>} : memref<1x4x8xf32, #tpu.memory_space<vmem>>, vector<1x4x8xf32>,
    return
  }
  func.func @transform_0(%arg0: i32) -> (i32, i32) {
    %c0_i32 = arith.constant 0 : i32
    %c0_i32_0 = arith.constant 0 : i32
    return %c0_i32, %arg0 : i32, i32
  }
  func.func @transform_1(%arg0: i32) -> (i32, i32) {
    %c0_i32 = arith.constant 0 : i32
    %c0_i32_0 = arith.constant 0 : i32
    %c0_i32_1 = arith.constant 0 : i32
    return %c0_i32, %c0_i32_0 : i32, i32
  }
  func.func @transform_2(%arg0: i32) -> (i32, i32) {
    %c0_i32 = arith.constant 0 : i32
    %c0_i32_0 = arith.constant 0 : i32
    %c0_i32_1 = arith.constant 0 : i32
    return %c0_i32, %c0_i32_0 : i32, i32
  }
  func.func @transform_3(%arg0: i32) -> (i32, i32) {
    %c0_i32 = arith.constant 0 : i32
    %c0_i32_0 = arith.constant 0 : i32
    %c0_i32_1 = arith.constant 0 : i32
    return %c0_i32, %c0_i32_0 : i32, i32
  }
  func.func @transform_4(%arg0: i32) -> (i32, i32) {
    %c0_i32 = arith.constant 0 : i32
    %c0_i32_0 = arith.constant 0 : i32
    %c0_i32_1 = arith.constant 0 : i32
    return %c0_i32, %c0_i32_0 : i32, i32
  }
  func.func @transform_5(%arg0: i32) -> (i32, i32) {
    %c0_i32 = arith.constant 0 : i32
    %c0_i32_0 = arith.constant 0 : i32
    %c0_i32_1 = arith.constant 0 : i32
    return %c0_i32, %c0_i32_0 : i32, i32
  }
  func.func @transform_6(%arg0: i32) -> (i32, i32) {
    %c0_i32 = arith.constant 0 : i32
    %c0_i32_0 = arith.constant 0 : i32
    %c0_i32_1 = arith.constant 0 : i32
    return %c0_i32, %c0_i32_0 : i32, i32
  }
  func.func @transform_7(%arg0: i32) -> (i32, i32) {
    %c0_i32 = arith.constant 0 : i32
    %c0_i32_0 = arith.constant 0 : i32
    %c0_i32_1 = arith.constant 0 : i32
    return %c0_i32, %c0_i32_0 : i32, i32
  }
  func.func @transform_8(%arg0: i32) -> (i32, i32) {
    %c0_i32 = arith.constant 0 : i32
    %c0_i32_0 = arith.constant 0 : i32
    %c0_i32_1 = arith.constant 0 : i32
    return %c0_i32, %c0_i32_0 : i32, i32
  }
  func.func @transform_9(%arg0: i32) -> (i32, i32, i32) {
    %c0_i32 = arith.constant 0 : i32
    %c0_i32_0 = arith.constant 0 : i32
    %c0_i32_1 = arith.constant 0 : i32
    return %arg0, %c0_i32, %c0_i32_0 : i32, i32, i32
  }
}

</mosaic_0001>

<llo_original>
// kernel: tpu_custom_call.1
$region0: #{tpu_custom_call.1}
  #allocation0 [shape = 'u32[]', space=smem, size = 0x4, offset = 0x4, fixed_abs, tag = 'smem constant byte address 0x4 - core index']
  #allocation1 [shape = 'u32[72,128]{1,0:T(1,128)}', space=vmem, size = 0x9000, scoped, tag = 'internal scratch']
  #allocation2 [shape = 'f32[72,4096]{1,0:T(8,128)}', space=vmem, size = 0x120000, scoped, tag = 'scratch operand']
  #allocation3 [shape = 'f32[1,1]{1,0:T(1,128)S(1)}', space=vmem, size = 0x200, scoped, tag = 'scoped memory for tpu_custom_call.1']
  %s0 = inlined_call_operand.vmem [shape: f32[8,8192], index: 0, kind: input, shape index: {}]
  %s1 = inlined_call_operand.vmem [shape: f32[32,72], index: 1, kind: input, shape index: {}]
  %s2 = inlined_call_operand.vmem [shape: f32[32,1], index: 2, kind: input, shape index: {}]
  %s3 = inlined_call_operand.vmem [shape: f32[9,32], index: 3, kind: input, shape index: {}]
  %s4 = inlined_call_operand.<no memory space> [shape: f32[1,1], index: 4, kind: input, shape index: {}]
  %s5 = inlined_call_operand.vmem [shape: f32[1024,32], index: 5, kind: input, shape index: {}]
  %s6 = inlined_call_operand.vmem [shape: f32[1,32], index: 6, kind: input, shape index: {}]
  %s7 = inlined_call_operand.vmem [shape: f32[32,8], index: 7, kind: input, shape index: {}]
  %s8 = inlined_call_operand.vmem [shape: f32[1,8], index: 8, kind: input, shape index: {}]
  %s9 = inlined_call_operand.hbm [shape: f32[2,4,8], index: 9, kind: output, shape index: {}]
  %s10 = sld [smem:[#allocation0]]
  $region69: #{tpu_custom_call.1} parent=0
    _
  %s12 = ssub.s32 1, %s10
  %s13 = scalar_select 0, %s12, %s10
  %v14 = vstv %s4
  %15 = vst [vmem:[#allocation3] sm:$0x1] %v14
  $region1: #{tpu_custom_call.1} parent=0
    #allocation4 [shape = 'u8[4096]{0}', space=vmem, size = 0x1000, scoped, tag = 'output window, operand 0']
    #allocation5 [shape = 's32[2]{0}', space=sflag, size = 0x8, scoped, tag = 'scoped memory for tpu_custom_call.1']
    %16 = vsyncpa [#allocation5], 0
    %s17 = scalar_lea.sflag [#allocation5], 1
    %18 = vsyncpa %s17, 0
    loop: start=0, step=1, limit=4
    $region2: #{tpu_custom_call.1} parent=1 // loop_pre_header
      _
    $region3: #{tpu_custom_call.1} parent=1 // loop_header
      %s20 = sphi 0, %s24
      %p21 = scmp.ge.s32.totalorder %s20, 4
      %s30 = sphi 0, %s32
      %s33 = sphi 0, %s30
      %s34 = sphi 0, %s33
      %s50 = sphi 0, %s34
      %s54 = sphi 0, %s54
      %s56 = sphi 0, %s54
      %s57 = sphi 0, %s56
      %s71 = sphi 0, %s57
      %s75 = sphi 0, %s75
      %s77 = sphi 0, %s75
      %s78 = sphi 0, %s77
      %s92 = sphi 0, %s78
      %s96 = sphi 0, %s96
      %s98 = sphi 0, %s96
      %s99 = sphi 0, %s98
      %s113 = sphi 0, %s99
      %s117 = sphi 0, %s117
      %s119 = sphi 0, %s117
      %s120 = sphi 0, %s119
      %s134 = sphi 0, %s120
      %s138 = sphi 0, %s138
      %s140 = sphi 0, %s138
      %s141 = sphi 0, %s140
      %s155 = sphi 0, %s141
      %s159 = sphi 0, %s159
      %s161 = sphi 0, %s159
      %s162 = sphi 0, %s161
      %s176 = sphi 0, %s162
      %s180 = sphi 0, %s180
      %s182 = sphi 0, %s180
      %s183 = sphi 0, %s182
      %s197 = sphi 0, %s183
      %s201 = sphi 0, %s201
      %s203 = sphi 0, %s201
      %s204 = sphi 0, %s203
      %s218 = sphi 0, %s204
      %s224 = sphi 0, %s226
      %s227 = sphi 0, %s224
      %s228 = sphi 0, %s227
      %s244 = sphi 0, %s228
    $region4: #{tpu_custom_call.1} parent=1 // loop_header_branch
      %23 = sbr.rel (%p21) target = $region8
    $region5: #{tpu_custom_call.1} parent=1 // loop_body
      %s25 = ssub.s32 %s20, 1
      %s26 = ssub.s32 %s20, 2
      %s27 = sadd.s32 %s20, 1
      %s28 = ssub.s32 %s20, %s27
      %p29 = scmp.eq.s32.totalorder %s28, 0
      %s31 = sadd.s32 %s30, 1
      %s32 = scalar_select %p29, %s30, %s31
      %p35 = pneg %p29
      %p36 = scmp.eq.s32.totalorder %s20, 1
      %p37 = por %p35, %p36
      %p38 = scmp.ne.s32.totalorder %s30, %s33
      %p39 = scmp.eq.s32.totalorder %s20, 0
      %p40 = por %p38, %p39
      %p41 = scmp.ne.s32.totalorder %s30, %s33
      %p42 = scmp.eq.s32.totalorder %s25, 1
      %p43 = por %p41, %p42
      %p44 = scmp.ne.s32.totalorder %s33, %s34
      %p45 = scmp.eq.s32.totalorder %s25, 0
      %p46 = por %p44, %p45
      %p47 = scmp.ne.s32.totalorder %s33, %s34
      %p48 = scmp.eq.s32.totalorder %s26, 1
      %p49 = por %p47, %p48
      %p51 = scmp.ne.s32.totalorder %s34, %s50
      %p52 = scmp.eq.s32.totalorder %s26, 0
      %p53 = por %p51, %p52
      %s55 = sadd.s32 %s54, 1
      %p58 = scmp.eq.s32.totalorder %s20, 1
      %p59 = scmp.ne.s32.totalorder %s54, %s56
      %p60 = scmp.eq.s32.totalorder %s20, 0
      %p61 = por %p59, %p60
      %p62 = scmp.ne.s32.totalorder %s54, %s56
      %p63 = scmp.eq.s32.totalorder %s25, 1
      %p64 = por %p62, %p63
      %p65 = scmp.ne.s32.totalorder %s56, %s57
      %p66 = scmp.eq.s32.totalorder %s25, 0
      %p67 = por %p65, %p66
      %p68 = scmp.ne.s32.totalorder %s56, %s57
      %p69 = scmp.eq.s32.totalorder %s26, 1
      %p70 = por %p68, %p69
      %p72 = scmp.ne.s32.totalorder %s57, %s71
      %p73 = scmp.eq.s32.totalorder %s26, 0
      %p74 = por %p72, %p73
      %s76 = sadd.s32 %s75, 1
      %p79 = scmp.eq.s32.totalorder %s20, 1
      %p80 = scmp.ne.s32.totalorder %s75, %s77
      %p81 = scmp.eq.s32.totalorder %s20, 0
      %p82 = por %p80, %p81
      %p83 = scmp.ne.s32.totalorder %s75, %s77
      %p84 = scmp.eq.s32.totalorder %s25, 1
      %p85 = por %p83, %p84
      %p86 = scmp.ne.s32.totalorder %s77, %s78
      %p87 = scmp.eq.s32.totalorder %s25, 0
      %p88 = por %p86, %p87
      %p89 = scmp.ne.s32.totalorder %s77, %s78
      %p90 = scmp.eq.s32.totalorder %s26, 1
      %p91 = por %p89, %p90
      %p93 = scmp.ne.s32.totalorder %s78, %s92
      %p94 = scmp.eq.s32.totalorder %s26, 0
      %p95 = por %p93, %p94
      %s97 = sadd.s32 %s96, 1
      %p100 = scmp.eq.s32.totalorder %s20, 1
      %p101 = scmp.ne.s32.totalorder %s96, %s98
      %p102 = scmp.eq.s32.totalorder %s20, 0
      %p103 = por %p101, %p102
      %p104 = scmp.ne.s32.totalorder %s96, %s98
      %p105 = scmp.eq.s32.totalorder %s25, 1
      %p106 = por %p104, %p105
      %p107 = scmp.ne.s32.totalorder %s98, %s99
      %p108 = scmp.eq.s32.totalorder %s25, 0
      %p109 = por %p107, %p108
      %p110 = scmp.ne.s32.totalorder %s98, %s99
      %p111 = scmp.eq.s32.totalorder %s26, 1
      %p112 = por %p110, %p111
      %p114 = scmp.ne.s32.totalorder %s99, %s113
      %p115 = scmp.eq.s32.totalorder %s26, 0
      %p116 = por %p114, %p115
      %s118 = sadd.s32 %s117, 1
      %p121 = scmp.eq.s32.totalorder %s20, 1
      %p122 = scmp.ne.s32.totalorder %s117, %s119
      %p123 = scmp.eq.s32.totalorder %s20, 0
      %p124 = por %p122, %p123
      %p125 = scmp.ne.s32.totalorder %s117, %s119
      %p126 = scmp.eq.s32.totalorder %s25, 1
      %p127 = por %p125, %p126
      %p128 = scmp.ne.s32.totalorder %s119, %s120
      %p129 = scmp.eq.s32.totalorder %s25, 0
      %p130 = por %p128, %p129
      %p131 = scmp.ne.s32.totalorder %s119, %s120
      %p132 = scmp.eq.s32.totalorder %s26, 1
      %p133 = por %p131, %p132
      %p135 = scmp.ne.s32.totalorder %s120, %s134
      %p136 = scmp.eq.s32.totalorder %s26, 0
      %p137 = por %p135, %p136
      %s139 = sadd.s32 %s138, 1
      %p142 = scmp.eq.s32.totalorder %s20, 1
      %p143 = scmp.ne.s32.totalorder %s138, %s140
      %p144 = scmp.eq.s32.totalorder %s20, 0
      %p145 = por %p143, %p144
      %p146 = scmp.ne.s32.totalorder %s138, %s140
      %p147 = scmp.eq.s32.totalorder %s25, 1
      %p148 = por %p146, %p147
      %p149 = scmp.ne.s32.totalorder %s140, %s141
      %p150 = scmp.eq.s32.totalorder %s25, 0
      %p151 = por %p149, %p150
      %p152 = scmp.ne.s32.totalorder %s140, %s141
      %p153 = scmp.eq.s32.totalorder %s26, 1
      %p154 = por %p152, %p153
      %p156 = scmp.ne.s32.totalorder %s141, %s155
      %p157 = scmp.eq.s32.totalorder %s26, 0
      %p158 = por %p156, %p157
      %s160 = sadd.s32 %s159, 1
      %p163 = scmp.eq.s32.totalorder %s20, 1
      %p164 = scmp.ne.s32.totalorder %s159, %s161
      %p165 = scmp.eq.s32.totalorder %s20, 0
      %p166 = por %p164, %p165
      %p167 = scmp.ne.s32.totalorder %s159, %s161
      %p168 = scmp.eq.s32.totalorder %s25, 1
      %p169 = por %p167, %p168
      %p170 = scmp.ne.s32.totalorder %s161, %s162
      %p171 = scmp.eq.s32.totalorder %s25, 0
      %p172 = por %p170, %p171
      %p173 = scmp.ne.s32.totalorder %s161, %s162
      %p174 = scmp.eq.s32.totalorder %s26, 1
      %p175 = por %p173, %p174
      %p177 = scmp.ne.s32.totalorder %s162, %s176
      %p178 = scmp.eq.s32.totalorder %s26, 0
      %p179 = por %p177, %p178
      %s181 = sadd.s32 %s180, 1
      %p184 = scmp.eq.s32.totalorder %s20, 1
      %p185 = scmp.ne.s32.totalorder %s180, %s182
      %p186 = scmp.eq.s32.totalorder %s20, 0
      %p187 = por %p185, %p186
      %p188 = scmp.ne.s32.totalorder %s180, %s182
      %p189 = scmp.eq.s32.totalorder %s25, 1
      %p190 = por %p188, %p189
      %p191 = scmp.ne.s32.totalorder %s182, %s183
      %p192 = scmp.eq.s32.totalorder %s25, 0
      %p193 = por %p191, %p192
      %p194 = scmp.ne.s32.totalorder %s182, %s183
      %p195 = scmp.eq.s32.totalorder %s26, 1
      %p196 = por %p194, %p195
      %p198 = scmp.ne.s32.totalorder %s183, %s197
      %p199 = scmp.eq.s32.totalorder %s26, 0
      %p200 = por %p198, %p199
      %s202 = sadd.s32 %s201, 1
      %p205 = scmp.eq.s32.totalorder %s20, 1
      %p206 = scmp.ne.s32.totalorder %s201, %s203
      %p207 = scmp.eq.s32.totalorder %s20, 0
      %p208 = por %p206, %p207
      %p209 = scmp.ne.s32.totalorder %s201, %s203
      %p210 = scmp.eq.s32.totalorder %s25, 1
      %p211 = por %p209, %p210
      %p212 = scmp.ne.s32.totalorder %s203, %s204
      %p213 = scmp.eq.s32.totalorder %s25, 0
      %p214 = por %p212, %p213
      %p215 = scmp.ne.s32.totalorder %s203, %s204
      %p216 = scmp.eq.s32.totalorder %s26, 1
      %p217 = por %p215, %p216
      %p219 = scmp.ne.s32.totalorder %s204, %s218
      %p220 = scmp.eq.s32.totalorder %s26, 0
      %p221 = por %p219, %p220
      %s222 = ssub.s32 %s20, %s27
      %p223 = scmp.eq.s32.totalorder %s222, 0
      %s225 = sadd.s32 %s224, 1
      %s226 = scalar_select %p223, %s224, %s225
      %p229 = pneg %p223
      %p230 = scmp.eq.s32.totalorder %s20, 1
      %p231 = por %p229, %p230
      %p232 = scmp.ne.s32.totalorder %s224, %s227
      %p233 = scmp.eq.s32.totalorder %s20, 0
      %p234 = por %p232, %p233
      %p235 = scmp.ne.s32.totalorder %s224, %s227
      %p236 = scmp.eq.s32.totalorder %s25, 1
      %p237 = por %p235, %p236
      %p238 = scmp.ne.s32.totalorder %s227, %s228
      %p239 = scmp.eq.s32.totalorder %s25, 0
      %p240 = por %p238, %p239
      %p241 = scmp.ne.s32.totalorder %s227, %s228
      %p242 = scmp.eq.s32.totalorder %s26, 1
      %p243 = por %p241, %p242
      %p245 = scmp.ne.s32.totalorder %s228, %s244
      %p246 = scmp.eq.s32.totalorder %s26, 0
      %p247 = por %p245, %p246
      %p248 = scmp.le.s32.totalorder 1, %s20
      %p249 = scmp.lt.s32.totalorder %s20, 3
      %p250 = pnand %p248, %p249
      %p251 = pneg %p250
      // Predicated region
      $region9: #{tpu_custom_call.1} parent=5 // pred_check
        _
      $region10: #{tpu_custom_call.1} parent=5 // pred_check_branch
        %253 = sbr.rel (%p250) target = $region12
      $region11: #{tpu_custom_call.1} parent=5 // pred_region
        %s254 = ssub.s32 %s20, 1
        // Predicated region
        $region13: #{tpu_custom_call.1} parent=11 // pred_check
          %p255 = pneg %p67
        $region14: #{tpu_custom_call.1} parent=11 // pred_check_branch
          %257 = sbr.rel (%p255) target = $region16
        $region15: #{tpu_custom_call.1} parent=11 // pred_region
          _
        $region16: #{tpu_custom_call.1} parent=11 // pred_fallthru
          _
        // Predicated region
        $region17: #{tpu_custom_call.1} parent=11 // pred_check
          %p258 = pneg %p88
        $region18: #{tpu_custom_call.1} parent=11 // pred_check_branch
          %260 = sbr.rel (%p258) target = $region20
        $region19: #{tpu_custom_call.1} parent=11 // pred_region
          _
        $region20: #{tpu_custom_call.1} parent=11 // pred_fallthru
          _
        // Predicated region
        $region21: #{tpu_custom_call.1} parent=11 // pred_check
          %p261 = pneg %p109
        $region22: #{tpu_custom_call.1} parent=11 // pred_check_branch
          %263 = sbr.rel (%p261) target = $region24
        $region23: #{tpu_custom_call.1} parent=11 // pred_region
          _
        $region24: #{tpu_custom_call.1} parent=11 // pred_fallthru
          _
        // Predicated region
        $region25: #{tpu_custom_call.1} parent=11 // pred_check
          %p264 = pneg %p130
        $region26: #{tpu_custom_call.1} parent=11 // pred_check_branch
          %266 = sbr.rel (%p264) target = $region28
        $region27: #{tpu_custom_call.1} parent=11 // pred_region
          _
        $region28: #{tpu_custom_call.1} parent=11 // pred_fallthru
          _
        // Predicated region
        $region29: #{tpu_custom_call.1} parent=11 // pred_check
          %p267 = pneg %p151
        $region30: #{tpu_custom_call.1} parent=11 // pred_check_branch
          %269 = sbr.rel (%p267) target = $region32
        $region31: #{tpu_custom_call.1} parent=11 // pred_region
          _
        $region32: #{tpu_custom_call.1} parent=11 // pred_fallthru
          _
        // Predicated region
        $region33: #{tpu_custom_call.1} parent=11 // pred_check
          %p270 = pneg %p172
        $region34: #{tpu_custom_call.1} parent=11 // pred_check_branch
          %272 = sbr.rel (%p270) target = $region36
        $region35: #{tpu_custom_call.1} parent=11 // pred_region
          _
        $region36: #{tpu_custom_call.1} parent=11 // pred_fallthru
          _
        // Predicated region
        $region37: #{tpu_custom_call.1} parent=11 // pred_check
          %p273 = pneg %p193
        $region38: #{tpu_custom_call.1} parent=11 // pred_check_branch
          %275 = sbr.rel (%p273) target = $region40
        $region39: #{tpu_custom_call.1} parent=11 // pred_region
          _
        $region40: #{tpu_custom_call.1} parent=11 // pred_fallthru
          _
        // Predicated region
        $region41: #{tpu_custom_call.1} parent=11 // pred_check
          %p276 = pneg %p214
        $region42: #{tpu_custom_call.1} parent=11 // pred_check_branch
          %278 = sbr.rel (%p276) target = $region44
        $region43: #{tpu_custom_call.1} parent=11 // pred_region
          _
        $region44: #{tpu_custom_call.1} parent=11 // pred_fallthru
          _
      $region12: #{tpu_custom_call.1} parent=5 // pred_fallthru
        _
      %p279 = scmp.lt.s32.totalorder %s20, 2
      // Predicated region
      $region45: #{tpu_custom_call.1} parent=5 // pred_check
        %p280 = pneg %p279
      $region46: #{tpu_custom_call.1} parent=5 // pred_check_branch
        %282 = sbr.rel (%p280) target = $region48
      $region47: #{tpu_custom_call.1} parent=5 // pred_region
        // Predicated region
        $region49: #{tpu_custom_call.1} parent=47 // pred_check
          %p283 = pneg %p40
        $region50: #{tpu_custom_call.1} parent=47 // pred_check_branch
          %285 = sbr.rel (%p283) target = $region52
        $region51: #{tpu_custom_call.1} parent=47 // pred_region
          %s286 = smul.u32 32, %s20
          %p287 = scmp.lt.s32.totalorder %s286, 63
          %s288 = scalar_select %p287, %s286, 63
          %s289 = smul.addr %s288, 8
          %s290 = scalar_lea.vmem %s0, %s289
          %s291 = smul.u32 32, %s20
        $region52: #{tpu_custom_call.1} parent=47 // pred_fallthru
          _
      $region48: #{tpu_custom_call.1} parent=5 // pred_fallthru
        _
      %p292 = scmp.le.s32.totalorder 1, %s20
      %p293 = scmp.lt.s32.totalorder %s20, 3
      %p294 = pnand %p292, %p293
      %p295 = pneg %p294
      // Predicated region
      $region53: #{tpu_custom_call.1} parent=5 // pred_check
        _
      $region54: #{tpu_custom_call.1} parent=5 // pred_check_branch
        %297 = sbr.rel (%p294) target = $region56
      $region55: #{tpu_custom_call.1} parent=5 // pred_region
        %s298 = ssub.s32 %s20, 1
        %s299 = smul.u32 32, %s25
        %p300 = scmp.lt.s32.totalorder %s299, 63
        %s301 = scalar_select %p300, %s299, 63
        %s302 = smul.addr %s301, 8
        %s303 = scalar_lea.vmem %s0, %s302
        %p304 = pneg %p46
        %p305 = pneg %p43
        %p306 = pneg %p67
        %p307 = pneg %p64
        %p308 = pneg %p88
        %p309 = pneg %p85
        %p310 = pneg %p109
        %p311 = pneg %p106
        %p312 = pneg %p130
        %p313 = pneg %p127
        %p314 = pneg %p151
        %p315 = pneg %p148
        %p316 = pneg %p172
        %p317 = pneg %p169
        %p318 = pneg %p193
        %p319 = pneg %p190
        %p320 = pneg %p214
        %p321 = pneg %p211
        %p322 = pneg %p240
        %p323 = pneg %p237
        %s324 = sand.u32 %s227, 1
        %s325 = scalar_lea.sflag [#allocation5], %s324
        %s326 = sand.u32 %s227, 1
        %s327 = smul.addr %s326, 4
        %s328 = scalar_lea.vmem [#allocation4], %s327
        %s329 = smul.u32 32, %s25
        %p330 = scmp.lt.s32.totalorder %s329, 63
        %s331 = scalar_select %p330, %s329, 63
        %s332 = smul.addr %s331, 8
        %s333 = scalar_lea.vmem %s0, %s332
        %s334 = smul.u32 32, %s25
        %v335 = vld [vmem:[%s333] sm:$0xff]
        %v336 = vld [vmem:[%s333 + $0x8] sm:$0xff]
        %v337 = vld [vmem:[%s333 + $0x10] sm:$0xff]
        %v338 = vld [vmem:[%s333 + $0x18] sm:$0xff]
        %v339 = vld [vmem:[%s333 + $0x20] sm:$0xff]
        %v340 = vld [vmem:[%s333 + $0x28] sm:$0xff]
        %v341 = vld [vmem:[%s333 + $0x30] sm:$0xff]
        %v342 = vld [vmem:[%s333 + $0x38] sm:$0xff]
        %v343 = vld [vmem:[%s333 + $0x40] sm:$0xff]
        %v344 = vld [vmem:[%s333 + $0x48] sm:$0xff]
        %v345 = vld [vmem:[%s333 + $0x50] sm:$0xff]
        %v346 = vld [vmem:[%s333 + $0x58] sm:$0xff]
        %v347 = vld [vmem:[%s333 + $0x60] sm:$0xff]
        %v348 = vld [vmem:[%s333 + $0x68] sm:$0xff]
        %v349 = vld [vmem:[%s333 + $0x70] sm:$0xff]
        %v350 = vld [vmem:[%s333 + $0x78] sm:$0xff]
        %v351 = vld [vmem:[%s333 + $0x80] sm:$0xff]
        %v352 = vld [vmem:[%s333 + $0x88] sm:$0xff]
        %v353 = vld [vmem:[%s333 + $0x90] sm:$0xff]
        %v354 = vld [vmem:[%s333 + $0x98] sm:$0xff]
        %v355 = vld [vmem:[%s333 + $0xa0] sm:$0xff]
        %v356 = vld [vmem:[%s333 + $0xa8] sm:$0xff]
        %v357 = vld [vmem:[%s333 + $0xb0] sm:$0xff]
        %v358 = vld [vmem:[%s333 + $0xb8] sm:$0xff]
        %v359 = vld [vmem:[%s333 + $0xc0] sm:$0xff]
        %v360 = vld [vmem:[%s333 + $0xc8] sm:$0xff]
        %v361 = vld [vmem:[%s333 + $0xd0] sm:$0xff]
        %v362 = vld [vmem:[%s333 + $0xd8] sm:$0xff]
        %v363 = vld [vmem:[%s333 + $0xe0] sm:$0xff]
        %v364 = vld [vmem:[%s333 + $0xe8] sm:$0xff]
        %v365 = vld [vmem:[%s333 + $0xf0] sm:$0xff]
        %v366 = vld [vmem:[%s333 + $0xf8] sm:$0xff]
        %v367 = vlaneseq
        %v368 = vand.u32 %v367, 127
        %v369 = vadd.s32 %v368, 128
        %v370 = vadd.s32 %v368, 256
        %v371 = vadd.s32 %v368, 384
        %v372 = vadd.s32 %v368, 512
        %v373 = vadd.s32 %v368, 640
        %v374 = vadd.s32 %v368, 768
        %v375 = vadd.s32 %v368, 896
        %v376 = vadd.s32 %v368, 1024
        %v377 = vadd.s32 %v368, 1152
        %v378 = vadd.s32 %v368, 1280
        %v379 = vadd.s32 %v368, 1408
        %v380 = vadd.s32 %v368, 1536
        %v381 = vadd.s32 %v368, 1664
        %v382 = vadd.s32 %v368, 1792
        %v383 = vadd.s32 %v368, 1920
        %v384 = vadd.s32 %v368, 2048
        %v385 = vadd.s32 %v368, 2176
        %v386 = vadd.s32 %v368, 2304
        %v387 = vadd.s32 %v368, 2432
        %v388 = vadd.s32 %v368, 2560
        %v389 = vadd.s32 %v368, 2688
        %v390 = vadd.s32 %v368, 2816
        %v391 = vadd.s32 %v368, 2944
        %v392 = vadd.s32 %v368, 3072
        %v393 = vadd.s32 %v368, 3200
        %v394 = vadd.s32 %v368, 3328
        %v395 = vadd.s32 %v368, 3456
        %v396 = vadd.s32 %v368, 3584
        %v397 = vadd.s32 %v368, 3712
        %v398 = vadd.s32 %v368, 3840
        %v399 = vadd.s32 %v368, 3968
        %v400 = vshra.s32 %v368, 5
        %v401 = vshra.s32 %v369, 5
        %v402 = vshra.s32 %v370, 5
        %v403 = vshra.s32 %v371, 5
        %v404 = vshra.s32 %v372, 5
        %v405 = vshra.s32 %v373, 5
        %v406 = vshra.s32 %v374, 5
        %v407 = vshra.s32 %v375, 5
        %v408 = vshra.s32 %v376, 5
        %v409 = vshra.s32 %v377, 5
        %v410 = vshra.s32 %v378, 5
        %v411 = vshra.s32 %v379, 5
        %v412 = vshra.s32 %v380, 5
        %v413 = vshra.s32 %v381, 5
        %v414 = vshra.s32 %v382, 5
        %v415 = vshra.s32 %v383, 5
        %v416 = vshra.s32 %v384, 5
        %v417 = vshra.s32 %v385, 5
        %v418 = vshra.s32 %v386, 5
        %v419 = vshra.s32 %v387, 5
        %v420 = vshra.s32 %v388, 5
        %v421 = vshra.s32 %v389, 5
        %v422 = vshra.s32 %v390, 5
        %v423 = vshra.s32 %v391, 5
        %v424 = vshra.s32 %v392, 5
        %v425 = vshra.s32 %v393, 5
        %v426 = vshra.s32 %v394, 5
        %v427 = vshra.s32 %v395, 5
        %v428 = vshra.s32 %v396, 5
        %v429 = vshra.s32 %v397, 5
        %v430 = vshra.s32 %v398, 5
        %v431 = vshra.s32 %v399, 5
        %v432 = vand.u32 %v400, 31
        %v433 = vand.u32 %v401, 31
        %v434 = vand.u32 %v402, 31
        %v435 = vand.u32 %v403, 31
        %v436 = vand.u32 %v404, 31
        %v437 = vand.u32 %v405, 31
        %v438 = vand.u32 %v406, 31
        %v439 = vand.u32 %v407, 31
        %v440 = vand.u32 %v408, 31
        %v441 = vand.u32 %v409, 31
        %v442 = vand.u32 %v410, 31
        %v443 = vand.u32 %v411, 31
        %v444 = vand.u32 %v412, 31
        %v445 = vand.u32 %v413, 31
        %v446 = vand.u32 %v414, 31
        %v447 = vand.u32 %v415, 31
        %v448 = vand.u32 %v416, 31
        %v449 = vand.u32 %v417, 31
        %v450 = vand.u32 %v418, 31
        %v451 = vand.u32 %v419, 31
        %v452 = vand.u32 %v420, 31
        %v453 = vand.u32 %v421, 31
        %v454 = vand.u32 %v422, 31
        %v455 = vand.u32 %v423, 31
        %v456 = vand.u32 %v424, 31
        %v457 = vand.u32 %v425, 31
        %v458 = vand.u32 %v426, 31
        %v459 = vand.u32 %v427, 31
        %v460 = vand.u32 %v428, 31
        %v461 = vand.u32 %v429, 31
        %v462 = vand.u32 %v430, 31
        %v463 = vand.u32 %v431, 31
        %v464 = vand.u32 %v368, 31
        %v465 = vand.u32 %v369, 31
        %v466 = vand.u32 %v370, 31
        %v467 = vand.u32 %v371, 31
        %v468 = vand.u32 %v372, 31
        %v469 = vand.u32 %v373, 31
        %v470 = vand.u32 %v374, 31
        %v471 = vand.u32 %v375, 31
        %v472 = vand.u32 %v376, 31
        %v473 = vand.u32 %v377, 31
        %v474 = vand.u32 %v378, 31
        %v475 = vand.u32 %v379, 31
        %v476 = vand.u32 %v380, 31
        %v477 = vand.u32 %v381, 31
        %v478 = vand.u32 %v382, 31
        %v479 = vand.u32 %v383, 31
        %v480 = vand.u32 %v384, 31
        %v481 = vand.u32 %v385, 31
        %v482 = vand.u32 %v386, 31
        %v483 = vand.u32 %v387, 31
        %v484 = vand.u32 %v388, 31
        %v485 = vand.u32 %v389, 31
        %v486 = vand.u32 %v390, 31
        %v487 = vand.u32 %v391, 31
        %v488 = vand.u32 %v392, 31
        %v489 = vand.u32 %v393, 31
        %v490 = vand.u32 %v394, 31
        %v491 = vand.u32 %v395, 31
        %v492 = vand.u32 %v396, 31
        %v493 = vand.u32 %v397, 31
        %v494 = vand.u32 %v398, 31
        %v495 = vand.u32 %v399, 31
        %vm496 = vcmp.gt.s32.totalorder %v432, 0
        %vm497 = vcmp.gt.s32.totalorder %v433, 0
        %vm498 = vcmp.gt.s32.totalorder %v434, 0
        %vm499 = vcmp.gt.s32.totalorder %v435, 0
        %vm500 = vcmp.gt.s32.totalorder %v436, 0
        %vm501 = vcmp.gt.s32.totalorder %v437, 0
        %vm502 = vcmp.gt.s32.totalorder %v438, 0
        %vm503 = vcmp.gt.s32.totalorder %v439, 0
        %vm504 = vcmp.gt.s32.totalorder %v440, 0
        %vm505 = vcmp.gt.s32.totalorder %v441, 0
        %vm506 = vcmp.gt.s32.totalorder %v442, 0
        %vm507 = vcmp.gt.s32.totalorder %v443, 0
        %vm508 = vcmp.gt.s32.totalorder %v444, 0
        %vm509 = vcmp.gt.s32.totalorder %v445, 0
        %vm510 = vcmp.gt.s32.totalorder %v446, 0
        %vm511 = vcmp.gt.s32.totalorder %v447, 0
        %vm512 = vcmp.gt.s32.totalorder %v448, 0
        %vm513 = vcmp.gt.s32.totalorder %v449, 0
        %vm514 = vcmp.gt.s32.totalorder %v450, 0
        %vm515 = vcmp.gt.s32.totalorder %v451, 0
        %vm516 = vcmp.gt.s32.totalorder %v452, 0
        %vm517 = vcmp.gt.s32.totalorder %v453, 0
        %vm518 = vcmp.gt.s32.totalorder %v454, 0
        %vm519 = vcmp.gt.s32.totalorder %v455, 0
        %vm520 = vcmp.gt.s32.totalorder %v456, 0
        %vm521 = vcmp.gt.s32.totalorder %v457, 0
        %vm522 = vcmp.gt.s32.totalorder %v458, 0
        %vm523 = vcmp.gt.s32.totalorder %v459, 0
        %vm524 = vcmp.gt.s32.totalorder %v460, 0
        %vm525 = vcmp.gt.s32.totalorder %v461, 0
        %vm526 = vcmp.gt.s32.totalorder %v462, 0
        %vm527 = vcmp.gt.s32.totalorder %v463, 0
        %vm528 = vcmp.lt.s32.totalorder %v432, 31
        %vm529 = vcmp.lt.s32.totalorder %v433, 31
        %vm530 = vcmp.lt.s32.totalorder %v434, 31
        %vm531 = vcmp.lt.s32.totalorder %v435, 31
        %vm532 = vcmp.lt.s32.totalorder %v436, 31
        %vm533 = vcmp.lt.s32.totalorder %v437, 31
        %vm534 = vcmp.lt.s32.totalorder %v438, 31
        %vm535 = vcmp.lt.s32.totalorder %v439, 31
        %vm536 = vcmp.lt.s32.totalorder %v440, 31
        %vm537 = vcmp.lt.s32.totalorder %v441, 31
        %vm538 = vcmp.lt.s32.totalorder %v442, 31
        %vm539 = vcmp.lt.s32.totalorder %v443, 31
        %vm540 = vcmp.lt.s32.totalorder %v444, 31
        %vm541 = vcmp.lt.s32.totalorder %v445, 31
        %vm542 = vcmp.lt.s32.totalorder %v446, 31
        %vm543 = vcmp.lt.s32.totalorder %v447, 31
        %vm544 = vcmp.lt.s32.totalorder %v448, 31
        %vm545 = vcmp.lt.s32.totalorder %v449, 31
        %vm546 = vcmp.lt.s32.totalorder %v450, 31
        %vm547 = vcmp.lt.s32.totalorder %v451, 31
        %vm548 = vcmp.lt.s32.totalorder %v452, 31
        %vm549 = vcmp.lt.s32.totalorder %v453, 31
        %vm550 = vcmp.lt.s32.totalorder %v454, 31
        %vm551 = vcmp.lt.s32.totalorder %v455, 31
        %vm552 = vcmp.lt.s32.totalorder %v456, 31
        %vm553 = vcmp.lt.s32.totalorder %v457, 31
        %vm554 = vcmp.lt.s32.totalorder %v458, 31
        %vm555 = vcmp.lt.s32.totalorder %v459, 31
        %vm556 = vcmp.lt.s32.totalorder %v460, 31
        %vm557 = vcmp.lt.s32.totalorder %v461, 31
        %vm558 = vcmp.lt.s32.totalorder %v462, 31
        %vm559 = vcmp.lt.s32.totalorder %v463, 31
        %vm560 = vcmp.gt.s32.totalorder %v464, 0
        %vm561 = vcmp.gt.s32.totalorder %v465, 0
        %vm562 = vcmp.gt.s32.totalorder %v466, 0
        %vm563 = vcmp.gt.s32.totalorder %v467, 0
        %vm564 = vcmp.gt.s32.totalorder %v468, 0
        %vm565 = vcmp.gt.s32.totalorder %v469, 0
        %vm566 = vcmp.gt.s32.totalorder %v470, 0
        %vm567 = vcmp.gt.s32.totalorder %v471, 0
        %vm568 = vcmp.gt.s32.totalorder %v472, 0
        %vm569 = vcmp.gt.s32.totalorder %v473, 0
        %vm570 = vcmp.gt.s32.totalorder %v474, 0
        %vm571 = vcmp.gt.s32.totalorder %v475, 0
        %vm572 = vcmp.gt.s32.totalorder %v476, 0
        %vm573 = vcmp.gt.s32.totalorder %v477, 0
        %vm574 = vcmp.gt.s32.totalorder %v478, 0
        %vm575 = vcmp.gt.s32.totalorder %v479, 0
        %vm576 = vcmp.gt.s32.totalorder %v480, 0
        %vm577 = vcmp.gt.s32.totalorder %v481, 0
        %vm578 = vcmp.gt.s32.totalorder %v482, 0
        %vm579 = vcmp.gt.s32.totalorder %v483, 0
        %vm580 = vcmp.gt.s32.totalorder %v484, 0
        %vm581 = vcmp.gt.s32.totalorder %v485, 0
        %vm582 = vcmp.gt.s32.totalorder %v486, 0
        %vm583 = vcmp.gt.s32.totalorder %v487, 0
        %vm584 = vcmp.gt.s32.totalorder %v488, 0
        %vm585 = vcmp.gt.s32.totalorder %v489, 0
        %vm586 = vcmp.gt.s32.totalorder %v490, 0
        %vm587 = vcmp.gt.s32.totalorder %v491, 0
        %vm588 = vcmp.gt.s32.totalorder %v492, 0
        %vm589 = vcmp.gt.s32.totalorder %v493, 0
        %vm590 = vcmp.gt.s32.totalorder %v494, 0
        %vm591 = vcmp.gt.s32.totalorder %v495, 0
        %vm592 = vcmp.lt.s32.totalorder %v464, 31
        %vm593 = vcmp.lt.s32.totalorder %v465, 31
        %vm594 = vcmp.lt.s32.totalorder %v466, 31
        %vm595 = vcmp.lt.s32.totalorder %v467, 31
        %vm596 = vcmp.lt.s32.totalorder %v468, 31
        %vm597 = vcmp.lt.s32.totalorder %v469, 31
        %vm598 = vcmp.lt.s32.totalorder %v470, 31
        %vm599 = vcmp.lt.s32.totalorder %v471, 31
        %vm600 = vcmp.lt.s32.totalorder %v472, 31
        %vm601 = vcmp.lt.s32.totalorder %v473, 31
        %vm602 = vcmp.lt.s32.totalorder %v474, 31
        %vm603 = vcmp.lt.s32.totalorder %v475, 31
        %vm604 = vcmp.lt.s32.totalorder %v476, 31
        %vm605 = vcmp.lt.s32.totalorder %v477, 31
        %vm606 = vcmp.lt.s32.totalorder %v478, 31
        %vm607 = vcmp.lt.s32.totalorder %v479, 31
        %vm608 = vcmp.lt.s32.totalorder %v480, 31
        %vm609 = vcmp.lt.s32.totalorder %v481, 31
        %vm610 = vcmp.lt.s32.totalorder %v482, 31
        %vm611 = vcmp.lt.s32.totalorder %v483, 31
        %vm612 = vcmp.lt.s32.totalorder %v484, 31
        %vm613 = vcmp.lt.s32.totalorder %v485, 31
        %vm614 = vcmp.lt.s32.totalorder %v486, 31
        %vm615 = vcmp.lt.s32.totalorder %v487, 31
        %vm616 = vcmp.lt.s32.totalorder %v488, 31
        %vm617 = vcmp.lt.s32.totalorder %v489, 31
        %vm618 = vcmp.lt.s32.totalorder %v490, 31
        %vm619 = vcmp.lt.s32.totalorder %v491, 31
        %vm620 = vcmp.lt.s32.totalorder %v492, 31
        %vm621 = vcmp.lt.s32.totalorder %v493, 31
        %vm622 = vcmp.lt.s32.totalorder %v494, 31
        %vm623 = vcmp.lt.s32.totalorder %v495, 31
        %vm624 = vmand %vm496, %vm560
        %vm625 = vmand %vm497, %vm561
        %vm626 = vmand %vm498, %vm562
        %vm627 = vmand %vm499, %vm563
        %vm628 = vmand %vm500, %vm564
        %vm629 = vmand %vm501, %vm565
        %vm630 = vmand %vm502, %vm566
        %vm631 = vmand %vm503, %vm567
        %vm632 = vmand %vm504, %vm568
        %vm633 = vmand %vm505, %vm569
        %vm634 = vmand %vm506, %vm570
        %vm635 = vmand %vm507, %vm571
        %vm636 = vmand %vm508, %vm572
        %vm637 = vmand %vm509, %vm573
        %vm638 = vmand %vm510, %vm574
        %vm639 = vmand %vm511, %vm575
        %vm640 = vmand %vm512, %vm576
        %vm641 = vmand %vm513, %vm577
        %vm642 = vmand %vm514, %vm578
        %vm643 = vmand %vm515, %vm579
        %vm644 = vmand %vm516, %vm580
        %vm645 = vmand %vm517, %vm581
        %vm646 = vmand %vm518, %vm582
        %vm647 = vmand %vm519, %vm583
        %vm648 = vmand %vm520, %vm584
        %vm649 = vmand %vm521, %vm585
        %vm650 = vmand %vm522, %vm586
        %vm651 = vmand %vm523, %vm587
        %vm652 = vmand %vm524, %vm588
        %vm653 = vmand %vm525, %vm589
        %vm654 = vmand %vm526, %vm590
        %vm655 = vmand %vm527, %vm591
        %vm656 = vmand %vm496, %vm592
        %vm657 = vmand %vm497, %vm593
        %vm658 = vmand %vm498, %vm594
        %vm659 = vmand %vm499, %vm595
        %vm660 = vmand %vm500, %vm596
        %vm661 = vmand %vm501, %vm597
        %vm662 = vmand %vm502, %vm598
        %vm663 = vmand %vm503, %vm599
        %vm664 = vmand %vm504, %vm600
        %vm665 = vmand %vm505, %vm601
        %vm666 = vmand %vm506, %vm602
        %vm667 = vmand %vm507, %vm603
        %vm668 = vmand %vm508, %vm604
        %vm669 = vmand %vm509, %vm605
        %vm670 = vmand %vm510, %vm606
        %vm671 = vmand %vm511, %vm607
        %vm672 = vmand %vm512, %vm608
        %vm673 = vmand %vm513, %vm609
        %vm674 = vmand %vm514, %vm610
        %vm675 = vmand %vm515, %vm611
        %vm676 = vmand %vm516, %vm612
        %vm677 = vmand %vm517, %vm613
        %vm678 = vmand %vm518, %vm614
        %vm679 = vmand %vm519, %vm615
        %vm680 = vmand %vm520, %vm616
        %vm681 = vmand %vm521, %vm617
        %vm682 = vmand %vm522, %vm618
        %vm683 = vmand %vm523, %vm619
        %vm684 = vmand %vm524, %vm620
        %vm685 = vmand %vm525, %vm621
        %vm686 = vmand %vm526, %vm622
        %vm687 = vmand %vm527, %vm623
        %vm688 = vmand %vm528, %vm560
        %vm689 = vmand %vm529, %vm561
        %vm690 = vmand %vm530, %vm562
        %vm691 = vmand %vm531, %vm563
        %vm692 = vmand %vm532, %vm564
        %vm693 = vmand %vm533, %vm565
        %vm694 = vmand %vm534, %vm566
        %vm695 = vmand %vm535, %vm567
        %vm696 = vmand %vm536, %vm568
        %vm697 = vmand %vm537, %vm569
        %vm698 = vmand %vm538, %vm570
        %vm699 = vmand %vm539, %vm571
        %vm700 = vmand %vm540, %vm572
        %vm701 = vmand %vm541, %vm573
        %vm702 = vmand %vm542, %vm574
        %vm703 = vmand %vm543, %vm575
        %vm704 = vmand %vm544, %vm576
        %vm705 = vmand %vm545, %vm577
        %vm706 = vmand %vm546, %vm578
        %vm707 = vmand %vm547, %vm579
        %vm708 = vmand %vm548, %vm580
        %vm709 = vmand %vm549, %vm581
        %vm710 = vmand %vm550, %vm582
        %vm711 = vmand %vm551, %vm583
        %vm712 = vmand %vm552, %vm584
        %vm713 = vmand %vm553, %vm585
        %vm714 = vmand %vm554, %vm586
        %vm715 = vmand %vm555, %vm587
        %vm716 = vmand %vm556, %vm588
        %vm717 = vmand %vm557, %vm589
        %vm718 = vmand %vm558, %vm590
        %vm719 = vmand %vm559, %vm591
        %vm720 = vmand %vm528, %vm592
        %vm721 = vmand %vm529, %vm593
        %vm722 = vmand %vm530, %vm594
        %vm723 = vmand %vm531, %vm595
        %vm724 = vmand %vm532, %vm596
        %vm725 = vmand %vm533, %vm597
        %vm726 = vmand %vm534, %vm598
        %vm727 = vmand %vm535, %vm599
        %vm728 = vmand %vm536, %vm600
        %vm729 = vmand %vm537, %vm601
        %vm730 = vmand %vm538, %vm602
        %vm731 = vmand %vm539, %vm603
        %vm732 = vmand %vm540, %vm604
        %vm733 = vmand %vm541, %vm605
        %vm734 = vmand %vm542, %vm606
        %vm735 = vmand %vm543, %vm607
        %vm736 = vmand %vm544, %vm608
        %vm737 = vmand %vm545, %vm609
        %vm738 = vmand %vm546, %vm610
        %vm739 = vmand %vm547, %vm611
        %vm740 = vmand %vm548, %vm612
        %vm741 = vmand %vm549, %vm613
        %vm742 = vmand %vm550, %vm614
        %vm743 = vmand %vm551, %vm615
        %vm744 = vmand %vm552, %vm616
        %vm745 = vmand %vm553, %vm617
        %vm746 = vmand %vm554, %vm618
        %vm747 = vmand %vm555, %vm619
        %vm748 = vmand %vm556, %vm620
        %vm749 = vmand %vm557, %vm621
        %vm750 = vmand %vm558, %vm622
        %vm751 = vmand %vm559, %vm623
        %752 = vrot.lane.b32.xlu0 %v335, 33
        %v753 = vpop.permute.xlu0 %752
        %754 = vrot.lane.b32.xlu0 %v336, 33
        %v755 = vpop.permute.xlu0 %754
        %756 = vrot.lane.b32.xlu0 %v337, 33
        %v757 = vpop.permute.xlu0 %756
        %758 = vrot.lane.b32.xlu0 %v338, 33
        %v759 = vpop.permute.xlu0 %758
        %760 = vrot.lane.b32.xlu0 %v339, 33
        %v761 = vpop.permute.xlu0 %760
        %762 = vrot.lane.b32.xlu0 %v340, 33
        %v763 = vpop.permute.xlu0 %762
        %764 = vrot.lane.b32.xlu0 %v341, 33
        %v765 = vpop.permute.xlu0 %764
        %766 = vrot.lane.b32.xlu0 %v342, 33
        %v767 = vpop.permute.xlu0 %766
        %768 = vrot.lane.b32.xlu0 %v343, 33
        %v769 = vpop.permute.xlu0 %768
        %770 = vrot.lane.b32.xlu0 %v344, 33
        %v771 = vpop.permute.xlu0 %770
        %772 = vrot.lane.b32.xlu0 %v345, 33
        %v773 = vpop.permute.xlu0 %772
        %774 = vrot.lane.b32.xlu0 %v346, 33
        %v775 = vpop.permute.xlu0 %774
        %776 = vrot.lane.b32.xlu0 %v347, 33
        %v777 = vpop.permute.xlu0 %776
        %778 = vrot.lane.b32.xlu0 %v348, 33
        %v779 = vpop.permute.xlu0 %778
        %780 = vrot.lane.b32.xlu0 %v349, 33
        %v781 = vpop.permute.xlu0 %780
        %782 = vrot.lane.b32.xlu0 %v350, 33
        %v783 = vpop.permute.xlu0 %782
        %784 = vrot.lane.b32.xlu0 %v351, 33
        %v785 = vpop.permute.xlu0 %784
        %786 = vrot.lane.b32.xlu0 %v352, 33
        %v787 = vpop.permute.xlu0 %786
        %788 = vrot.lane.b32.xlu0 %v353, 33
        %v789 = vpop.permute.xlu0 %788
        %790 = vrot.lane.b32.xlu0 %v354, 33
        %v791 = vpop.permute.xlu0 %790
        %792 = vrot.lane.b32.xlu0 %v355, 33
        %v793 = vpop.permute.xlu0 %792
        %794 = vrot.lane.b32.xlu0 %v356, 33
        %v795 = vpop.permute.xlu0 %794
        %796 = vrot.lane.b32.xlu0 %v357, 33
        %v797 = vpop.permute.xlu0 %796
        %798 = vrot.lane.b32.xlu0 %v358, 33
        %v799 = vpop.permute.xlu0 %798
        %800 = vrot.lane.b32.xlu0 %v359, 33
        %v801 = vpop.permute.xlu0 %800
        %802 = vrot.lane.b32.xlu0 %v360, 33
        %v803 = vpop.permute.xlu0 %802
        %804 = vrot.lane.b32.xlu0 %v361, 33
        %v805 = vpop.permute.xlu0 %804
        %806 = vrot.lane.b32.xlu0 %v362, 33
        %v807 = vpop.permute.xlu0 %806
        %808 = vrot.lane.b32.xlu0 %v363, 33
        %v809 = vpop.permute.xlu0 %808
        %810 = vrot.lane.b32.xlu0 %v364, 33
        %v811 = vpop.permute.xlu0 %810
        %812 = vrot.lane.b32.xlu0 %v365, 33
        %v813 = vpop.permute.xlu0 %812
        %814 = vrot.lane.b32.xlu0 %v366, 33
        %v815 = vpop.permute.xlu0 %814
        %vm816 = vcmp.lt.s32.totalorder %v368, 33
        %v817 = vsel %vm816, %v813, %v815
        %v818 = vsel %vm816, %v811, %v813
        %v819 = vsel %vm816, %v809, %v811
        %v820 = vsel %vm816, %v807, %v809
        %v821 = vsel %vm816, %v805, %v807
        %v822 = vsel %vm816, %v803, %v805
        %v823 = vsel %vm816, %v801, %v803
        %v824 = vsel %vm816, %v799, %v801
        %v825 = vsel %vm816, %v797, %v799
        %v826 = vsel %vm816, %v795, %v797
        %v827 = vsel %vm816, %v793, %v795
        %v828 = vsel %vm816, %v791, %v793
        %v829 = vsel %vm816, %v789, %v791
        %v830 = vsel %vm816, %v787, %v789
        %v831 = vsel %vm816, %v785, %v787
        %v832 = vsel %vm816, %v783, %v785
        %v833 = vsel %vm816, %v781, %v783
        %v834 = vsel %vm816, %v779, %v781
        %v835 = vsel %vm816, %v777, %v779
        %v836 = vsel %vm816, %v775, %v777
        %v837 = vsel %vm816, %v773, %v775
        %v838 = vsel %vm816, %v771, %v773
        %v839 = vsel %vm816, %v769, %v771
        %v840 = vsel %vm816, %v767, %v769
        %v841 = vsel %vm816, %v765, %v767
        %v842 = vsel %vm816, %v763, %v765
        %v843 = vsel %vm816, %v761, %v763
        %v844 = vsel %vm816, %v759, %v761
        %v845 = vsel %vm816, %v757, %v759
        %v846 = vsel %vm816, %v755, %v757
        %v847 = vsel %vm816, %v753, %v755
        %v848 = vsel %vm816, %v815, %v753
        %v849 = vsel %vm624, 1, 0
        %v850 = vsel %vm625, 1, 0
        %v851 = vsel %vm626, 1, 0
        %v852 = vsel %vm627, 1, 0
        %v853 = vsel %vm628, 1, 0
        %v854 = vsel %vm629, 1, 0
        %v855 = vsel %vm630, 1, 0
        %v856 = vsel %vm631, 1, 0
        %v857 = vsel %vm632, 1, 0
        %v858 = vsel %vm633, 1, 0
        %v859 = vsel %vm634, 1, 0
        %v860 = vsel %vm635, 1, 0
        %v861 = vsel %vm636, 1, 0
        %v862 = vsel %vm637, 1, 0
        %v863 = vsel %vm638, 1, 0
        %v864 = vsel %vm639, 1, 0
        %v865 = vsel %vm640, 1, 0
        %v866 = vsel %vm641, 1, 0
        %v867 = vsel %vm642, 1, 0
        %v868 = vsel %vm643, 1, 0
        %v869 = vsel %vm644, 1, 0
        %v870 = vsel %vm645, 1, 0
        %v871 = vsel %vm646, 1, 0
        %v872 = vsel %vm647, 1, 0
        %v873 = vsel %vm648, 1, 0
        %v874 = vsel %vm649, 1, 0
        %v875 = vsel %vm650, 1, 0
        %v876 = vsel %vm651, 1, 0
        %v877 = vsel %vm652, 1, 0
        %v878 = vsel %vm653, 1, 0
        %v879 = vsel %vm654, 1, 0
        %v880 = vsel %vm655, 1, 0
        %vm881 = vcmp.eq.s32.totalorder %v849, 1
        %vm882 = vcmp.eq.s32.totalorder %v850, 1
        %vm883 = vcmp.eq.s32.totalorder %v851, 1
        %vm884 = vcmp.eq.s32.totalorder %v852, 1
        %vm885 = vcmp.eq.s32.totalorder %v853, 1
        %vm886 = vcmp.eq.s32.totalorder %v854, 1
        %vm887 = vcmp.eq.s32.totalorder %v855, 1
        %vm888 = vcmp.eq.s32.totalorder %v856, 1
        %vm889 = vcmp.eq.s32.totalorder %v857, 1
        %vm890 = vcmp.eq.s32.totalorder %v858, 1
        %vm891 = vcmp.eq.s32.totalorder %v859, 1
        %vm892 = vcmp.eq.s32.totalorder %v860, 1
        %vm893 = vcmp.eq.s32.totalorder %v861, 1
        %vm894 = vcmp.eq.s32.totalorder %v862, 1
        %vm895 = vcmp.eq.s32.totalorder %v863, 1
        %vm896 = vcmp.eq.s32.totalorder %v864, 1
        %vm897 = vcmp.eq.s32.totalorder %v865, 1
        %vm898 = vcmp.eq.s32.totalorder %v866, 1
        %vm899 = vcmp.eq.s32.totalorder %v867, 1
        %vm900 = vcmp.eq.s32.totalorder %v868, 1
        %vm901 = vcmp.eq.s32.totalorder %v869, 1
        %vm902 = vcmp.eq.s32.totalorder %v870, 1
        %vm903 = vcmp.eq.s32.totalorder %v871, 1
        %vm904 = vcmp.eq.s32.totalorder %v872, 1
        %vm905 = vcmp.eq.s32.totalorder %v873, 1
        %vm906 = vcmp.eq.s32.totalorder %v874, 1
        %vm907 = vcmp.eq.s32.totalorder %v875, 1
        %vm908 = vcmp.eq.s32.totalorder %v876, 1
        %vm909 = vcmp.eq.s32.totalorder %v877, 1
        %vm910 = vcmp.eq.s32.totalorder %v878, 1
        %vm911 = vcmp.eq.s32.totalorder %v879, 1
        %vm912 = vcmp.eq.s32.totalorder %v880, 1
        %v913 = vsel %vm881, %v848, 0.0
        %v914 = vsel %vm882, %v847, 0.0
        %v915 = vsel %vm883, %v846, 0.0
        %v916 = vsel %vm884, %v845, 0.0
        %v917 = vsel %vm885, %v844, 0.0
        %v918 = vsel %vm886, %v843, 0.0
        %v919 = vsel %vm887, %v842, 0.0
        %v920 = vsel %vm888, %v841, 0.0
        %v921 = vsel %vm889, %v840, 0.0
        %v922 = vsel %vm890, %v839, 0.0
        %v923 = vsel %vm891, %v838, 0.0
        %v924 = vsel %vm892, %v837, 0.0
        %v925 = vsel %vm893, %v836, 0.0
        %v926 = vsel %vm894, %v835, 0.0
        %v927 = vsel %vm895, %v834, 0.0
        %v928 = vsel %vm896, %v833, 0.0
        %v929 = vsel %vm897, %v832, 0.0
        %v930 = vsel %vm898, %v831, 0.0
        %v931 = vsel %vm899, %v830, 0.0
        %v932 = vsel %vm900, %v829, 0.0
        %v933 = vsel %vm901, %v828, 0.0
        %v934 = vsel %vm902, %v827, 0.0
        %v935 = vsel %vm903, %v826, 0.0
        %v936 = vsel %vm904, %v825, 0.0
        %v937 = vsel %vm905, %v824, 0.0
        %v938 = vsel %vm906, %v823, 0.0
        %v939 = vsel %vm907, %v822, 0.0
        %v940 = vsel %vm908, %v821, 0.0
        %v941 = vsel %vm909, %v820, 0.0
        %v942 = vsel %vm910, %v819, 0.0
        %v943 = vsel %vm911, %v818, 0.0
        %v944 = vsel %vm912, %v817, 0.0
        %945 = vst [vmem:[#allocation2] sm:$0xff] %v913
        %946 = vst [vmem:[#allocation2 + $0x8] sm:$0xff] %v914
        %947 = vst [vmem:[#allocation2 + $0x10] sm:$0xff] %v915
        %948 = vst [vmem:[#allocation2 + $0x18] sm:$0xff] %v916
        %949 = vst [vmem:[#allocation2 + $0x20] sm:$0xff] %v917
        %950 = vst [vmem:[#allocation2 + $0x28] sm:$0xff] %v918
        %951 = vst [vmem:[#allocation2 + $0x30] sm:$0xff] %v919
        %952 = vst [vmem:[#allocation2 + $0x38] sm:$0xff] %v920
        %953 = vst [vmem:[#allocation2 + $0x40] sm:$0xff] %v921
        %954 = vst [vmem:[#allocation2 + $0x48] sm:$0xff] %v922
        %955 = vst [vmem:[#allocation2 + $0x50] sm:$0xff] %v923
        %956 = vst [vmem:[#allocation2 + $0x58] sm:$0xff] %v924
        %957 = vst [vmem:[#allocation2 + $0x60] sm:$0xff] %v925
        %958 = vst [vmem:[#allocation2 + $0x68] sm:$0xff] %v926
        %959 = vst [vmem:[#allocation2 + $0x70] sm:$0xff] %v927
        %960 = vst [vmem:[#allocation2 + $0x78] sm:$0xff] %v928
        %961 = vst [vmem:[#allocation2 + $0x80] sm:$0xff] %v929
        %962 = vst [vmem:[#allocation2 + $0x88] sm:$0xff] %v930
        %963 = vst [vmem:[#allocation2 + $0x90] sm:$0xff] %v931
        %964 = vst [vmem:[#allocation2 + $0x98] sm:$0xff] %v932
        %965 = vst [vmem:[#allocation2 + $0xa0] sm:$0xff] %v933
        %966 = vst [vmem:[#allocation2 + $0xa8] sm:$0xff] %v934
        %967 = vst [vmem:[#allocation2 + $0xb0] sm:$0xff] %v935
        %968 = vst [vmem:[#allocation2 + $0xb8] sm:$0xff] %v936
        %969 = vst [vmem:[#allocation2 + $0xc0] sm:$0xff] %v937
        %970 = vst [vmem:[#allocation2 + $0xc8] sm:$0xff] %v938
        %971 = vst [vmem:[#allocation2 + $0xd0] sm:$0xff] %v939
        %972 = vst [vmem:[#allocation2 + $0xd8] sm:$0xff] %v940
        %973 = vst [vmem:[#allocation2 + $0xe0] sm:$0xff] %v941
        %974 = vst [vmem:[#allocation2 + $0xe8] sm:$0xff] %v942
        %975 = vst [vmem:[#allocation2 + $0xf0] sm:$0xff] %v943
        %976 = vst [vmem:[#allocation2 + $0xf8] sm:$0xff] %v944
        %977 = vrot.lane.b32.xlu0 %v335, 32
        %v978 = vpop.permute.xlu0 %977
        %979 = vrot.lane.b32.xlu0 %v336, 32
        %v980 = vpop.permute.xlu0 %979
        %981 = vrot.lane.b32.xlu0 %v337, 32
        %v982 = vpop.permute.xlu0 %981
        %983 = vrot.lane.b32.xlu0 %v338, 32
        %v984 = vpop.permute.xlu0 %983
        %985 = vrot.lane.b32.xlu0 %v339, 32
        %v986 = vpop.permute.xlu0 %985
        %987 = vrot.lane.b32.xlu0 %v340, 32
        %v988 = vpop.permute.xlu0 %987
        %989 = vrot.lane.b32.xlu0 %v341, 32
        %v990 = vpop.permute.xlu0 %989
        %991 = vrot.lane.b32.xlu0 %v342, 32
        %v992 = vpop.permute.xlu0 %991
        %993 = vrot.lane.b32.xlu0 %v343, 32
        %v994 = vpop.permute.xlu0 %993
        %995 = vrot.lane.b32.xlu0 %v344, 32
        %v996 = vpop.permute.xlu0 %995
        %997 = vrot.lane.b32.xlu0 %v345, 32
        %v998 = vpop.permute.xlu0 %997
        %999 = vrot.lane.b32.xlu0 %v346, 32
        %v1000 = vpop.permute.xlu0 %999
        %1001 = vrot.lane.b32.xlu0 %v347, 32
        %v1002 = vpop.permute.xlu0 %1001
        %1003 = vrot.lane.b32.xlu0 %v348, 32
        %v1004 = vpop.permute.xlu0 %1003
        %1005 = vrot.lane.b32.xlu0 %v349, 32
        %v1006 = vpop.permute.xlu0 %1005
        %1007 = vrot.lane.b32.xlu0 %v350, 32
        %v1008 = vpop.permute.xlu0 %1007
        %1009 = vrot.lane.b32.xlu0 %v351, 32
        %v1010 = vpop.permute.xlu0 %1009
        %1011 = vrot.lane.b32.xlu0 %v352, 32
        %v1012 = vpop.permute.xlu0 %1011
        %1013 = vrot.lane.b32.xlu0 %v353, 32
        %v1014 = vpop.permute.xlu0 %1013
        %1015 = vrot.lane.b32.xlu0 %v354, 32
        %v1016 = vpop.permute.xlu0 %1015
        %1017 = vrot.lane.b32.xlu0 %v355, 32
        %v1018 = vpop.permute.xlu0 %1017
        %1019 = vrot.lane.b32.xlu0 %v356, 32
        %v1020 = vpop.permute.xlu0 %1019
        %1021 = vrot.lane.b32.xlu0 %v357, 32
        %v1022 = vpop.permute.xlu0 %1021
        %1023 = vrot.lane.b32.xlu0 %v358, 32
        %v1024 = vpop.permute.xlu0 %1023
        %1025 = vrot.lane.b32.xlu0 %v359, 32
        %v1026 = vpop.permute.xlu0 %1025
        %1027 = vrot.lane.b32.xlu0 %v360, 32
        %v1028 = vpop.permute.xlu0 %1027
        %1029 = vrot.lane.b32.xlu0 %v361, 32
        %v1030 = vpop.permute.xlu0 %1029
        %1031 = vrot.lane.b32.xlu0 %v362, 32
        %v1032 = vpop.permute.xlu0 %1031
        %1033 = vrot.lane.b32.xlu0 %v363, 32
        %v1034 = vpop.permute.xlu0 %1033
        %1035 = vrot.lane.b32.xlu0 %v364, 32
        %v1036 = vpop.permute.xlu0 %1035
        %1037 = vrot.lane.b32.xlu0 %v365, 32
        %v1038 = vpop.permute.xlu0 %1037
        %1039 = vrot.lane.b32.xlu0 %v366, 32
        %v1040 = vpop.permute.xlu0 %1039
        %vm1041 = vcmp.lt.s32.totalorder %v368, 32
        %v1042 = vsel %vm1041, %v1038, %v1040
        %v1043 = vsel %vm1041, %v1036, %v1038
        %v1044 = vsel %vm1041, %v1034, %v1036
        %v1045 = vsel %vm1041, %v1032, %v1034
        %v1046 = vsel %vm1041, %v1030, %v1032
        %v1047 = vsel %vm1041, %v1028, %v1030
        %v1048 = vsel %vm1041, %v1026, %v1028
        %v1049 = vsel %vm1041, %v1024, %v1026
        %v1050 = vsel %vm1041, %v1022, %v1024
        %v1051 = vsel %vm1041, %v1020, %v1022
        %v1052 = vsel %vm1041, %v1018, %v1020
        %v1053 = vsel %vm1041, %v1016, %v1018
        %v1054 = vsel %vm1041, %v1014, %v1016
        %v1055 = vsel %vm1041, %v1012, %v1014
        %v1056 = vsel %vm1041, %v1010, %v1012
        %v1057 = vsel %vm1041, %v1008, %v1010
        %v1058 = vsel %vm1041, %v1006, %v1008
        %v1059 = vsel %vm1041, %v1004, %v1006
        %v1060 = vsel %vm1041, %v1002, %v1004
        %v1061 = vsel %vm1041, %v1000, %v1002
        %v1062 = vsel %vm1041, %v998, %v1000
        %v1063 = vsel %vm1041, %v996, %v998
        %v1064 = vsel %vm1041, %v994, %v996
        %v1065 = vsel %vm1041, %v992, %v994
        %v1066 = vsel %vm1041, %v990, %v992
        %v1067 = vsel %vm1041, %v988, %v990
        %v1068 = vsel %vm1041, %v986, %v988
        %v1069 = vsel %vm1041, %v984, %v986
        %v1070 = vsel %vm1041, %v982, %v984
        %v1071 = vsel %vm1041, %v980, %v982
        %v1072 = vsel %vm1041, %v978, %v980
        %v1073 = vsel %vm1041, %v1040, %v978
        %v1074 = vsel %vm496, 1, 0
        %v1075 = vsel %vm497, 1, 0
        %v1076 = vsel %vm498, 1, 0
        %v1077 = vsel %vm499, 1, 0
        %v1078 = vsel %vm500, 1, 0
        %v1079 = vsel %vm501, 1, 0
        %v1080 = vsel %vm502, 1, 0
        %v1081 = vsel %vm503, 1, 0
        %v1082 = vsel %vm504, 1, 0
        %v1083 = vsel %vm505, 1, 0
        %v1084 = vsel %vm506, 1, 0
        %v1085 = vsel %vm507, 1, 0
        %v1086 = vsel %vm508, 1, 0
        %v1087 = vsel %vm509, 1, 0
        %v1088 = vsel %vm510, 1, 0
        %v1089 = vsel %vm511, 1, 0
        %v1090 = vsel %vm512, 1, 0
        %v1091 = vsel %vm513, 1, 0
        %v1092 = vsel %vm514, 1, 0
        %v1093 = vsel %vm515, 1, 0
        %v1094 = vsel %vm516, 1, 0
        %v1095 = vsel %vm517, 1, 0
        %v1096 = vsel %vm518, 1, 0
        %v1097 = vsel %vm519, 1, 0
        %v1098 = vsel %vm520, 1, 0
        %v1099 = vsel %vm521, 1, 0
        %v1100 = vsel %vm522, 1, 0
        %v1101 = vsel %vm523, 1, 0
        %v1102 = vsel %vm524, 1, 0
        %v1103 = vsel %vm525, 1, 0
        %v1104 = vsel %vm526, 1, 0
        %v1105 = vsel %vm527, 1, 0
        %vm1106 = vcmp.eq.s32.totalorder %v1074, 1
        %vm1107 = vcmp.eq.s32.totalorder %v1075, 1
        %vm1108 = vcmp.eq.s32.totalorder %v1076, 1
        %vm1109 = vcmp.eq.s32.totalorder %v1077, 1
        %vm1110 = vcmp.eq.s32.totalorder %v1078, 1
        %vm1111 = vcmp.eq.s32.totalorder %v1079, 1
        %vm1112 = vcmp.eq.s32.totalorder %v1080, 1
        %vm1113 = vcmp.eq.s32.totalorder %v1081, 1
        %vm1114 = vcmp.eq.s32.totalorder %v1082, 1
        %vm1115 = vcmp.eq.s32.totalorder %v1083, 1
        %vm1116 = vcmp.eq.s32.totalorder %v1084, 1
        %vm1117 = vcmp.eq.s32.totalorder %v1085, 1
        %vm1118 = vcmp.eq.s32.totalorder %v1086, 1
        %vm1119 = vcmp.eq.s32.totalorder %v1087, 1
        %vm1120 = vcmp.eq.s32.totalorder %v1088, 1
        %vm1121 = vcmp.eq.s32.totalorder %v1089, 1
        %vm1122 = vcmp.eq.s32.totalorder %v1090, 1
        %vm1123 = vcmp.eq.s32.totalorder %v1091, 1
        %vm1124 = vcmp.eq.s32.totalorder %v1092, 1
        %vm1125 = vcmp.eq.s32.totalorder %v1093, 1
        %vm1126 = vcmp.eq.s32.totalorder %v1094, 1
        %vm1127 = vcmp.eq.s32.totalorder %v1095, 1
        %vm1128 = vcmp.eq.s32.totalorder %v1096, 1
        %vm1129 = vcmp.eq.s32.totalorder %v1097, 1
        %vm1130 = vcmp.eq.s32.totalorder %v1098, 1
        %vm1131 = vcmp.eq.s32.totalorder %v1099, 1
        %vm1132 = vcmp.eq.s32.totalorder %v1100, 1
        %vm1133 = vcmp.eq.s32.totalorder %v1101, 1
        %vm1134 = vcmp.eq.s32.totalorder %v1102, 1
        %vm1135 = vcmp.eq.s32.totalorder %v1103, 1
        %vm1136 = vcmp.eq.s32.totalorder %v1104, 1
        %vm1137 = vcmp.eq.s32.totalorder %v1105, 1
        %v1138 = vsel %vm1106, %v1073, 0.0
        %v1139 = vsel %vm1107, %v1072, 0.0
        %v1140 = vsel %vm1108, %v1071, 0.0
        %v1141 = vsel %vm1109, %v1070, 0.0
        %v1142 = vsel %vm1110, %v1069, 0.0
        %v1143 = vsel %vm1111, %v1068, 0.0
        %v1144 = vsel %vm1112, %v1067, 0.0
        %v1145 = vsel %vm1113, %v1066, 0.0
        %v1146 = vsel %vm1114, %v1065, 0.0
        %v1147 = vsel %vm1115, %v1064, 0.0
        %v1148 = vsel %vm1116, %v1063, 0.0
        %v1149 = vsel %vm1117, %v1062, 0.0
        %v1150 = vsel %vm1118, %v1061, 0.0
        %v1151 = vsel %vm1119, %v1060, 0.0
        %v1152 = vsel %vm1120, %v1059, 0.0
        %v1153 = vsel %vm1121, %v1058, 0.0
        %v1154 = vsel %vm1122, %v1057, 0.0
        %v1155 = vsel %vm1123, %v1056, 0.0
        %v1156 = vsel %vm1124, %v1055, 0.0
        %v1157 = vsel %vm1125, %v1054, 0.0
        %v1158 = vsel %vm1126, %v1053, 0.0
        %v1159 = vsel %vm1127, %v1052, 0.0
        %v1160 = vsel %vm1128, %v1051, 0.0
        %v1161 = vsel %vm1129, %v1050, 0.0
        %v1162 = vsel %vm1130, %v1049, 0.0
        %v1163 = vsel %vm1131, %v1048, 0.0
        %v1164 = vsel %vm1132, %v1047, 0.0
        %v1165 = vsel %vm1133, %v1046, 0.0
        %v1166 = vsel %vm1134, %v1045, 0.0
        %v1167 = vsel %vm1135, %v1044, 0.0
        %v1168 = vsel %vm1136, %v1043, 0.0
        %v1169 = vsel %vm1137, %v1042, 0.0
        %1170 = vst [vmem:[#allocation2 + $0x100] sm:$0xff] %v1138
        %1171 = vst [vmem:[#allocation2 + $0x108] sm:$0xff] %v1139
        %1172 = vst [vmem:[#allocation2 + $0x110] sm:$0xff] %v1140
        %1173 = vst [vmem:[#allocation2 + $0x118] sm:$0xff] %v1141
        %1174 = vst [vmem:[#allocation2 + $0x120] sm:$0xff] %v1142
        %1175 = vst [vmem:[#allocation2 + $0x128] sm:$0xff] %v1143
        %1176 = vst [vmem:[#allocation2 + $0x130] sm:$0xff] %v1144
        %1177 = vst [vmem:[#allocation2 + $0x138] sm:$0xff] %v1145
        %1178 = vst [vmem:[#allocation2 + $0x140] sm:$0xff] %v1146
        %1179 = vst [vmem:[#allocation2 + $0x148] sm:$0xff] %v1147
        %1180 = vst [vmem:[#allocation2 + $0x150] sm:$0xff] %v1148
        %1181 = vst [vmem:[#allocation2 + $0x158] sm:$0xff] %v1149
        %1182 = vst [vmem:[#allocation2 + $0x160] sm:$0xff] %v1150
        %1183 = vst [vmem:[#allocation2 + $0x168] sm:$0xff] %v1151
        %1184 = vst [vmem:[#allocation2 + $0x170] sm:$0xff] %v1152
        %1185 = vst [vmem:[#allocation2 + $0x178] sm:$0xff] %v1153
        %1186 = vst [vmem:[#allocation2 + $0x180] sm:$0xff] %v1154
        %1187 = vst [vmem:[#allocation2 + $0x188] sm:$0xff] %v1155
        %1188 = vst [vmem:[#allocation2 + $0x190] sm:$0xff] %v1156
        %1189 = vst [vmem:[#allocation2 + $0x198] sm:$0xff] %v1157
        %1190 = vst [vmem:[#allocation2 + $0x1a0] sm:$0xff] %v1158
        %1191 = vst [vmem:[#allocation2 + $0x1a8] sm:$0xff] %v1159
        %1192 = vst [vmem:[#allocation2 + $0x1b0] sm:$0xff] %v1160
        %1193 = vst [vmem:[#allocation2 + $0x1b8] sm:$0xff] %v1161
        %1194 = vst [vmem:[#allocation2 + $0x1c0] sm:$0xff] %v1162
        %1195 = vst [vmem:[#allocation2 + $0x1c8] sm:$0xff] %v1163
        %1196 = vst [vmem:[#allocation2 + $0x1d0] sm:$0xff] %v1164
        %1197 = vst [vmem:[#allocation2 + $0x1d8] sm:$0xff] %v1165
        %1198 = vst [vmem:[#allocation2 + $0x1e0] sm:$0xff] %v1166
        %1199 = vst [vmem:[#allocation2 + $0x1e8] sm:$0xff] %v1167
        %1200 = vst [vmem:[#allocation2 + $0x1f0] sm:$0xff] %v1168
        %1201 = vst [vmem:[#allocation2 + $0x1f8] sm:$0xff] %v1169
        %1202 = vrot.lane.b32.xlu0 %v335, 31
        %v1203 = vpop.permute.xlu0 %1202
        %1204 = vrot.lane.b32.xlu0 %v336, 31
        %v1205 = vpop.permute.xlu0 %1204
        %1206 = vrot.lane.b32.xlu0 %v337, 31
        %v1207 = vpop.permute.xlu0 %1206
        %1208 = vrot.lane.b32.xlu0 %v338, 31
        %v1209 = vpop.permute.xlu0 %1208
        %1210 = vrot.lane.b32.xlu0 %v339, 31
        %v1211 = vpop.permute.xlu0 %1210
        %1212 = vrot.lane.b32.xlu0 %v340, 31
        %v1213 = vpop.permute.xlu0 %1212
        %1214 = vrot.lane.b32.xlu0 %v341, 31
        %v1215 = vpop.permute.xlu0 %1214
        %1216 = vrot.lane.b32.xlu0 %v342, 31
        %v1217 = vpop.permute.xlu0 %1216
        %1218 = vrot.lane.b32.xlu0 %v343, 31
        %v1219 = vpop.permute.xlu0 %1218
        %1220 = vrot.lane.b32.xlu0 %v344, 31
        %v1221 = vpop.permute.xlu0 %1220
        %1222 = vrot.lane.b32.xlu0 %v345, 31
        %v1223 = vpop.permute.xlu0 %1222
        %1224 = vrot.lane.b32.xlu0 %v346, 31
        %v1225 = vpop.permute.xlu0 %1224
        %1226 = vrot.lane.b32.xlu0 %v347, 31
        %v1227 = vpop.permute.xlu0 %1226
        %1228 = vrot.lane.b32.xlu0 %v348, 31
        %v1229 = vpop.permute.xlu0 %1228
        %1230 = vrot.lane.b32.xlu0 %v349, 31
        %v1231 = vpop.permute.xlu0 %1230
        %1232 = vrot.lane.b32.xlu0 %v350, 31
        %v1233 = vpop.permute.xlu0 %1232
        %1234 = vrot.lane.b32.xlu0 %v351, 31
        %v1235 = vpop.permute.xlu0 %1234
        %1236 = vrot.lane.b32.xlu0 %v352, 31
        %v1237 = vpop.permute.xlu0 %1236
        %1238 = vrot.lane.b32.xlu0 %v353, 31
        %v1239 = vpop.permute.xlu0 %1238
        %1240 = vrot.lane.b32.xlu0 %v354, 31
        %v1241 = vpop.permute.xlu0 %1240
        %1242 = vrot.lane.b32.xlu0 %v355, 31
        %v1243 = vpop.permute.xlu0 %1242
        %1244 = vrot.lane.b32.xlu0 %v356, 31
        %v1245 = vpop.permute.xlu0 %1244
        %1246 = vrot.lane.b32.xlu0 %v357, 31
        %v1247 = vpop.permute.xlu0 %1246
        %1248 = vrot.lane.b32.xlu0 %v358, 31
        %v1249 = vpop.permute.xlu0 %1248
        %1250 = vrot.lane.b32.xlu0 %v359, 31
        %v1251 = vpop.permute.xlu0 %1250
        %1252 = vrot.lane.b32.xlu0 %v360, 31
        %v1253 = vpop.permute.xlu0 %1252
        %1254 = vrot.lane.b32.xlu0 %v361, 31
        %v1255 = vpop.permute.xlu0 %1254
        %1256 = vrot.lane.b32.xlu0 %v362, 31
        %v1257 = vpop.permute.xlu0 %1256
        %1258 = vrot.lane.b32.xlu0 %v363, 31
        %v1259 = vpop.permute.xlu0 %1258
        %1260 = vrot.lane.b32.xlu0 %v364, 31
        %v1261 = vpop.permute.xlu0 %1260
        %1262 = vrot.lane.b32.xlu0 %v365, 31
        %v1263 = vpop.permute.xlu0 %1262
        %1264 = vrot.lane.b32.xlu0 %v366, 31
        %v1265 = vpop.permute.xlu0 %1264
        %vm1266 = vcmp.lt.s32.totalorder %v368, 31
        %v1267 = vsel %vm1266, %v1263, %v1265
        %v1268 = vsel %vm1266, %v1261, %v1263
        %v1269 = vsel %vm1266, %v1259, %v1261
        %v1270 = vsel %vm1266, %v1257, %v1259
        %v1271 = vsel %vm1266, %v1255, %v1257
        %v1272 = vsel %vm1266, %v1253, %v1255
        %v1273 = vsel %vm1266, %v1251, %v1253
        %v1274 = vsel %vm1266, %v1249, %v1251
        %v1275 = vsel %vm1266, %v1247, %v1249
        %v1276 = vsel %vm1266, %v1245, %v1247
        %v1277 = vsel %vm1266, %v1243, %v1245
        %v1278 = vsel %vm1266, %v1241, %v1243
        %v1279 = vsel %vm1266, %v1239, %v1241
        %v1280 = vsel %vm1266, %v1237, %v1239
        %v1281 = vsel %vm1266, %v1235, %v1237
        %v1282 = vsel %vm1266, %v1233, %v1235
        %v1283 = vsel %vm1266, %v1231, %v1233
        %v1284 = vsel %vm1266, %v1229, %v1231
        %v1285 = vsel %vm1266, %v1227, %v1229
        %v1286 = vsel %vm1266, %v1225, %v1227
        %v1287 = vsel %vm1266, %v1223, %v1225
        %v1288 = vsel %vm1266, %v1221, %v1223
        %v1289 = vsel %vm1266, %v1219, %v1221
        %v1290 = vsel %vm1266, %v1217, %v1219
        %v1291 = vsel %vm1266, %v1215, %v1217
        %v1292 = vsel %vm1266, %v1213, %v1215
        %v1293 = vsel %vm1266, %v1211, %v1213
        %v1294 = vsel %vm1266, %v1209, %v1211
        %v1295 = vsel %vm1266, %v1207, %v1209
        %v1296 = vsel %vm1266, %v1205, %v1207
        %v1297 = vsel %vm1266, %v1203, %v1205
        %v1298 = vsel %vm1266, %v1265, %v1203
        %v1299 = vsel %vm656, 1, 0
        %v1300 = vsel %vm657, 1, 0
        %v1301 = vsel %vm658, 1, 0
        %v1302 = vsel %vm659, 1, 0
        %v1303 = vsel %vm660, 1, 0
        %v1304 = vsel %vm661, 1, 0
        %v1305 = vsel %vm662, 1, 0
        %v1306 = vsel %vm663, 1, 0
        %v1307 = vsel %vm664, 1, 0
        %v1308 = vsel %vm665, 1, 0
        %v1309 = vsel %vm666, 1, 0
        %v1310 = vsel %vm667, 1, 0
        %v1311 = vsel %vm668, 1, 0
        %v1312 = vsel %vm669, 1, 0
        %v1313 = vsel %vm670, 1, 0
        %v1314 = vsel %vm671, 1, 0
        %v1315 = vsel %vm672, 1, 0
        %v1316 = vsel %vm673, 1, 0
        %v1317 = vsel %vm674, 1, 0
        %v1318 = vsel %vm675, 1, 0
        %v1319 = vsel %vm676, 1, 0
        %v1320 = vsel %vm677, 1, 0
        %v1321 = vsel %vm678, 1, 0
        %v1322 = vsel %vm679, 1, 0
        %v1323 = vsel %vm680, 1, 0
        %v1324 = vsel %vm681, 1, 0
        %v1325 = vsel %vm682, 1, 0
        %v1326 = vsel %vm683, 1, 0
        %v1327 = vsel %vm684, 1, 0
        %v1328 = vsel %vm685, 1, 0
        %v1329 = vsel %vm686, 1, 0
        %v1330 = vsel %vm687, 1, 0
        %vm1331 = vcmp.eq.s32.totalorder %v1299, 1
        %vm1332 = vcmp.eq.s32.totalorder %v1300, 1
        %vm1333 = vcmp.eq.s32.totalorder %v1301, 1
        %vm1334 = vcmp.eq.s32.totalorder %v1302, 1
        %vm1335 = vcmp.eq.s32.totalorder %v1303, 1
        %vm1336 = vcmp.eq.s32.totalorder %v1304, 1
        %vm1337 = vcmp.eq.s32.totalorder %v1305, 1
        %vm1338 = vcmp.eq.s32.totalorder %v1306, 1
        %vm1339 = vcmp.eq.s32.totalorder %v1307, 1
        %vm1340 = vcmp.eq.s32.totalorder %v1308, 1
        %vm1341 = vcmp.eq.s32.totalorder %v1309, 1
        %vm1342 = vcmp.eq.s32.totalorder %v1310, 1
        %vm1343 = vcmp.eq.s32.totalorder %v1311, 1
        %vm1344 = vcmp.eq.s32.totalorder %v1312, 1
        %vm1345 = vcmp.eq.s32.totalorder %v1313, 1
        %vm1346 = vcmp.eq.s32.totalorder %v1314, 1
        %vm1347 = vcmp.eq.s32.totalorder %v1315, 1
        %vm1348 = vcmp.eq.s32.totalorder %v1316, 1
        %vm1349 = vcmp.eq.s32.totalorder %v1317, 1
        %vm1350 = vcmp.eq.s32.totalorder %v1318, 1
        %vm1351 = vcmp.eq.s32.totalorder %v1319, 1
        %vm1352 = vcmp.eq.s32.totalorder %v1320, 1
        %vm1353 = vcmp.eq.s32.totalorder %v1321, 1
        %vm1354 = vcmp.eq.s32.totalorder %v1322, 1
        %vm1355 = vcmp.eq.s32.totalorder %v1323, 1
        %vm1356 = vcmp.eq.s32.totalorder %v1324, 1
        %vm1357 = vcmp.eq.s32.totalorder %v1325, 1
        %vm1358 = vcmp.eq.s32.totalorder %v1326, 1
        %vm1359 = vcmp.eq.s32.totalorder %v1327, 1
        %vm1360 = vcmp.eq.s32.totalorder %v1328, 1
        %vm1361 = vcmp.eq.s32.totalorder %v1329, 1
        %vm1362 = vcmp.eq.s32.totalorder %v1330, 1
        %v1363 = vsel %vm1331, %v1298, 0.0
        %v1364 = vsel %vm1332, %v1297, 0.0
        %v1365 = vsel %vm1333, %v1296, 0.0
        %v1366 = vsel %vm1334, %v1295, 0.0
        %v1367 = vsel %vm1335, %v1294, 0.0
        %v1368 = vsel %vm1336, %v1293, 0.0
        %v1369 = vsel %vm1337, %v1292, 0.0
        %v1370 = vsel %vm1338, %v1291, 0.0
        %v1371 = vsel %vm1339, %v1290, 0.0
        %v1372 = vsel %vm1340, %v1289, 0.0
        %v1373 = vsel %vm1341, %v1288, 0.0
        %v1374 = vsel %vm1342, %v1287, 0.0
        %v1375 = vsel %vm1343, %v1286, 0.0
        %v1376 = vsel %vm1344, %v1285, 0.0
        %v1377 = vsel %vm1345, %v1284, 0.0
        %v1378 = vsel %vm1346, %v1283, 0.0
        %v1379 = vsel %vm1347, %v1282, 0.0
        %v1380 = vsel %vm1348, %v1281, 0.0
        %v1381 = vsel %vm1349, %v1280, 0.0
        %v1382 = vsel %vm1350, %v1279, 0.0
        %v1383 = vsel %vm1351, %v1278, 0.0
        %v1384 = vsel %vm1352, %v1277, 0.0
        %v1385 = vsel %vm1353, %v1276, 0.0
        %v1386 = vsel %vm1354, %v1275, 0.0
        %v1387 = vsel %vm1355, %v1274, 0.0
        %v1388 = vsel %vm1356, %v1273, 0.0
        %v1389 = vsel %vm1357, %v1272, 0.0
        %v1390 = vsel %vm1358, %v1271, 0.0
        %v1391 = vsel %vm1359, %v1270, 0.0
        %v1392 = vsel %vm1360, %v1269, 0.0
        %v1393 = vsel %vm1361, %v1268, 0.0
        %v1394 = vsel %vm1362, %v1267, 0.0
        %1395 = vst [vmem:[#allocation2 + $0x200] sm:$0xff] %v1363
        %1396 = vst [vmem:[#allocation2 + $0x208] sm:$0xff] %v1364
        %1397 = vst [vmem:[#allocation2 + $0x210] sm:$0xff] %v1365
        %1398 = vst [vmem:[#allocation2 + $0x218] sm:$0xff] %v1366
        %1399 = vst [vmem:[#allocation2 + $0x220] sm:$0xff] %v1367
        %1400 = vst [vmem:[#allocation2 + $0x228] sm:$0xff] %v1368
        %1401 = vst [vmem:[#allocation2 + $0x230] sm:$0xff] %v1369
        %1402 = vst [vmem:[#allocation2 + $0x238] sm:$0xff] %v1370
        %1403 = vst [vmem:[#allocation2 + $0x240] sm:$0xff] %v1371
        %1404 = vst [vmem:[#allocation2 + $0x248] sm:$0xff] %v1372
        %1405 = vst [vmem:[#allocation2 + $0x250] sm:$0xff] %v1373
        %1406 = vst [vmem:[#allocation2 + $0x258] sm:$0xff] %v1374
        %1407 = vst [vmem:[#allocation2 + $0x260] sm:$0xff] %v1375
        %1408 = vst [vmem:[#allocation2 + $0x268] sm:$0xff] %v1376
        %1409 = vst [vmem:[#allocation2 + $0x270] sm:$0xff] %v1377
        %1410 = vst [vmem:[#allocation2 + $0x278] sm:$0xff] %v1378
        %1411 = vst [vmem:[#allocation2 + $0x280] sm:$0xff] %v1379
        %1412 = vst [vmem:[#allocation2 + $0x288] sm:$0xff] %v1380
        %1413 = vst [vmem:[#allocation2 + $0x290] sm:$0xff] %v1381
        %1414 = vst [vmem:[#allocation2 + $0x298] sm:$0xff] %v1382
        %1415 = vst [vmem:[#allocation2 + $0x2a0] sm:$0xff] %v1383
        %1416 = vst [vmem:[#allocation2 + $0x2a8] sm:$0xff] %v1384
        %1417 = vst [vmem:[#allocation2 + $0x2b0] sm:$0xff] %v1385
        %1418 = vst [vmem:[#allocation2 + $0x2b8] sm:$0xff] %v1386
        %1419 = vst [vmem:[#allocation2 + $0x2c0] sm:$0xff] %v1387
        %1420 = vst [vmem:[#allocation2 + $0x2c8] sm:$0xff] %v1388
        %1421 = vst [vmem:[#allocation2 + $0x2d0] sm:$0xff] %v1389
        %1422 = vst [vmem:[#allocation2 + $0x2d8] sm:$0xff] %v1390
        %1423 = vst [vmem:[#allocation2 + $0x2e0] sm:$0xff] %v1391
        %1424 = vst [vmem:[#allocation2 + $0x2e8] sm:$0xff] %v1392
        %1425 = vst [vmem:[#allocation2 + $0x2f0] sm:$0xff] %v1393
        %1426 = vst [vmem:[#allocation2 + $0x2f8] sm:$0xff] %v1394
        %1427 = vrot.lane.b32.xlu0 %v335, 1
        %v1428 = vpop.permute.xlu0 %1427
        %1429 = vrot.lane.b32.xlu0 %v336, 1
        %v1430 = vpop.permute.xlu0 %1429
        %1431 = vrot.lane.b32.xlu0 %v337, 1
        %v1432 = vpop.permute.xlu0 %1431
        %1433 = vrot.lane.b32.xlu0 %v338, 1
        %v1434 = vpop.permute.xlu0 %1433
        %1435 = vrot.lane.b32.xlu0 %v339, 1
        %v1436 = vpop.permute.xlu0 %1435
        %1437 = vrot.lane.b32.xlu0 %v340, 1
        %v1438 = vpop.permute.xlu0 %1437
        %1439 = vrot.lane.b32.xlu0 %v341, 1
        %v1440 = vpop.permute.xlu0 %1439
        %1441 = vrot.lane.b32.xlu0 %v342, 1
        %v1442 = vpop.permute.xlu0 %1441
        %1443 = vrot.lane.b32.xlu0 %v343, 1
        %v1444 = vpop.permute.xlu0 %1443
        %1445 = vrot.lane.b32.xlu0 %v344, 1
        %v1446 = vpop.permute.xlu0 %1445
        %1447 = vrot.lane.b32.xlu0 %v345, 1
        %v1448 = vpop.permute.xlu0 %1447
        %1449 = vrot.lane.b32.xlu0 %v346, 1
        %v1450 = vpop.permute.xlu0 %1449
        %1451 = vrot.lane.b32.xlu0 %v347, 1
        %v1452 = vpop.permute.xlu0 %1451
        %1453 = vrot.lane.b32.xlu0 %v348, 1
        %v1454 = vpop.permute.xlu0 %1453
        %1455 = vrot.lane.b32.xlu0 %v349, 1
        %v1456 = vpop.permute.xlu0 %1455
        %1457 = vrot.lane.b32.xlu0 %v350, 1
        %v1458 = vpop.permute.xlu0 %1457
        %1459 = vrot.lane.b32.xlu0 %v351, 1
        %v1460 = vpop.permute.xlu0 %1459
        %1461 = vrot.lane.b32.xlu0 %v352, 1
        %v1462 = vpop.permute.xlu0 %1461
        %1463 = vrot.lane.b32.xlu0 %v353, 1
        %v1464 = vpop.permute.xlu0 %1463
        %1465 = vrot.lane.b32.xlu0 %v354, 1
        %v1466 = vpop.permute.xlu0 %1465
        %1467 = vrot.lane.b32.xlu0 %v355, 1
        %v1468 = vpop.permute.xlu0 %1467
        %1469 = vrot.lane.b32.xlu0 %v356, 1
        %v1470 = vpop.permute.xlu0 %1469
        %1471 = vrot.lane.b32.xlu0 %v357, 1
        %v1472 = vpop.permute.xlu0 %1471
        %1473 = vrot.lane.b32.xlu0 %v358, 1
        %v1474 = vpop.permute.xlu0 %1473
        %1475 = vrot.lane.b32.xlu0 %v359, 1
        %v1476 = vpop.permute.xlu0 %1475
        %1477 = vrot.lane.b32.xlu0 %v360, 1
        %v1478 = vpop.permute.xlu0 %1477
        %1479 = vrot.lane.b32.xlu0 %v361, 1
        %v1480 = vpop.permute.xlu0 %1479
        %1481 = vrot.lane.b32.xlu0 %v362, 1
        %v1482 = vpop.permute.xlu0 %1481
        %1483 = vrot.lane.b32.xlu0 %v363, 1
        %v1484 = vpop.permute.xlu0 %1483
        %1485 = vrot.lane.b32.xlu0 %v364, 1
        %v1486 = vpop.permute.xlu0 %1485
        %1487 = vrot.lane.b32.xlu0 %v365, 1
        %v1488 = vpop.permute.xlu0 %1487
        %1489 = vrot.lane.b32.xlu0 %v366, 1
        %v1490 = vpop.permute.xlu0 %1489
        %vm1491 = vcmp.lt.s32.totalorder %v368, 1
        %v1492 = vsel %vm1491, %v1488, %v1490
        %v1493 = vsel %vm1491, %v1486, %v1488
        %v1494 = vsel %vm1491, %v1484, %v1486
        %v1495 = vsel %vm1491, %v1482, %v1484
        %v1496 = vsel %vm1491, %v1480, %v1482
        %v1497 = vsel %vm1491, %v1478, %v1480
        %v1498 = vsel %vm1491, %v1476, %v1478
        %v1499 = vsel %vm1491, %v1474, %v1476
        %v1500 = vsel %vm1491, %v1472, %v1474
        %v1501 = vsel %vm1491, %v1470, %v1472
        %v1502 = vsel %vm1491, %v1468, %v1470
        %v1503 = vsel %vm1491, %v1466, %v1468
        %v1504 = vsel %vm1491, %v1464, %v1466
        %v1505 = vsel %vm1491, %v1462, %v1464
        %v1506 = vsel %vm1491, %v1460, %v1462
        %v1507 = vsel %vm1491, %v1458, %v1460
        %v1508 = vsel %vm1491, %v1456, %v1458
        %v1509 = vsel %vm1491, %v1454, %v1456
        %v1510 = vsel %vm1491, %v1452, %v1454
        %v1511 = vsel %vm1491, %v1450, %v1452
        %v1512 = vsel %vm1491, %v1448, %v1450
        %v1513 = vsel %vm1491, %v1446, %v1448
        %v1514 = vsel %vm1491, %v1444, %v1446
        %v1515 = vsel %vm1491, %v1442, %v1444
        %v1516 = vsel %vm1491, %v1440, %v1442
        %v1517 = vsel %vm1491, %v1438, %v1440
        %v1518 = vsel %vm1491, %v1436, %v1438
        %v1519 = vsel %vm1491, %v1434, %v1436
        %v1520 = vsel %vm1491, %v1432, %v1434
        %v1521 = vsel %vm1491, %v1430, %v1432
        %v1522 = vsel %vm1491, %v1428, %v1430
        %v1523 = vsel %vm1491, %v1490, %v1428
        %v1524 = vsel %vm560, 1, 0
        %v1525 = vsel %vm561, 1, 0
        %v1526 = vsel %vm562, 1, 0
        %v1527 = vsel %vm563, 1, 0
        %v1528 = vsel %vm564, 1, 0
        %v1529 = vsel %vm565, 1, 0
        %v1530 = vsel %vm566, 1, 0
        %v1531 = vsel %vm567, 1, 0
        %v1532 = vsel %vm568, 1, 0
        %v1533 = vsel %vm569, 1, 0
        %v1534 = vsel %vm570, 1, 0
        %v1535 = vsel %vm571, 1, 0
        %v1536 = vsel %vm572, 1, 0
        %v1537 = vsel %vm573, 1, 0
        %v1538 = vsel %vm574, 1, 0
        %v1539 = vsel %vm575, 1, 0
        %v1540 = vsel %vm576, 1, 0
        %v1541 = vsel %vm577, 1, 0
        %v1542 = vsel %vm578, 1, 0
        %v1543 = vsel %vm579, 1, 0
        %v1544 = vsel %vm580, 1, 0
        %v1545 = vsel %vm581, 1, 0
        %v1546 = vsel %vm582, 1, 0
        %v1547 = vsel %vm583, 1, 0
        %v1548 = vsel %vm584, 1, 0
        %v1549 = vsel %vm585, 1, 0
        %v1550 = vsel %vm586, 1, 0
        %v1551 = vsel %vm587, 1, 0
        %v1552 = vsel %vm588, 1, 0
        %v1553 = vsel %vm589, 1, 0
        %v1554 = vsel %vm590, 1, 0
        %v1555 = vsel %vm591, 1, 0
        %vm1556 = vcmp.eq.s32.totalorder %v1524, 1
        %vm1557 = vcmp.eq.s32.totalorder %v1525, 1
        %vm1558 = vcmp.eq.s32.totalorder %v1526, 1
        %vm1559 = vcmp.eq.s32.totalorder %v1527, 1
        %vm1560 = vcmp.eq.s32.totalorder %v1528, 1
        %vm1561 = vcmp.eq.s32.totalorder %v1529, 1
        %vm1562 = vcmp.eq.s32.totalorder %v1530, 1
        %vm1563 = vcmp.eq.s32.totalorder %v1531, 1
        %vm1564 = vcmp.eq.s32.totalorder %v1532, 1
        %vm1565 = vcmp.eq.s32.totalorder %v1533, 1
        %vm1566 = vcmp.eq.s32.totalorder %v1534, 1
        %vm1567 = vcmp.eq.s32.totalorder %v1535, 1
        %vm1568 = vcmp.eq.s32.totalorder %v1536, 1
        %vm1569 = vcmp.eq.s32.totalorder %v1537, 1
        %vm1570 = vcmp.eq.s32.totalorder %v1538, 1
        %vm1571 = vcmp.eq.s32.totalorder %v1539, 1
        %vm1572 = vcmp.eq.s32.totalorder %v1540, 1
        %vm1573 = vcmp.eq.s32.totalorder %v1541, 1
        %vm1574 = vcmp.eq.s32.totalorder %v1542, 1
        %vm1575 = vcmp.eq.s32.totalorder %v1543, 1
        %vm1576 = vcmp.eq.s32.totalorder %v1544, 1
        %vm1577 = vcmp.eq.s32.totalorder %v1545, 1
        %vm1578 = vcmp.eq.s32.totalorder %v1546, 1
        %vm1579 = vcmp.eq.s32.totalorder %v1547, 1
        %vm1580 = vcmp.eq.s32.totalorder %v1548, 1
        %vm1581 = vcmp.eq.s32.totalorder %v1549, 1
        %vm1582 = vcmp.eq.s32.totalorder %v1550, 1
        %vm1583 = vcmp.eq.s32.totalorder %v1551, 1
        %vm1584 = vcmp.eq.s32.totalorder %v1552, 1
        %vm1585 = vcmp.eq.s32.totalorder %v1553, 1
        %vm1586 = vcmp.eq.s32.totalorder %v1554, 1
        %vm1587 = vcmp.eq.s32.totalorder %v1555, 1
        %v1588 = vsel %vm1556, %v1523, 0.0
        %v1589 = vsel %vm1557, %v1522, 0.0
        %v1590 = vsel %vm1558, %v1521, 0.0
        %v1591 = vsel %vm1559, %v1520, 0.0
        %v1592 = vsel %vm1560, %v1519, 0.0
        %v1593 = vsel %vm1561, %v1518, 0.0
        %v1594 = vsel %vm1562, %v1517, 0.0
        %v1595 = vsel %vm1563, %v1516, 0.0
        %v1596 = vsel %vm1564, %v1515, 0.0
        %v1597 = vsel %vm1565, %v1514, 0.0
        %v1598 = vsel %vm1566, %v1513, 0.0
        %v1599 = vsel %vm1567, %v1512, 0.0
        %v1600 = vsel %vm1568, %v1511, 0.0
        %v1601 = vsel %vm1569, %v1510, 0.0
        %v1602 = vsel %vm1570, %v1509, 0.0
        %v1603 = vsel %vm1571, %v1508, 0.0
        %v1604 = vsel %vm1572, %v1507, 0.0
        %v1605 = vsel %vm1573, %v1506, 0.0
        %v1606 = vsel %vm1574, %v1505, 0.0
        %v1607 = vsel %vm1575, %v1504, 0.0
        %v1608 = vsel %vm1576, %v1503, 0.0
        %v1609 = vsel %vm1577, %v1502, 0.0
        %v1610 = vsel %vm1578, %v1501, 0.0
        %v1611 = vsel %vm1579, %v1500, 0.0
        %v1612 = vsel %vm1580, %v1499, 0.0
        %v1613 = vsel %vm1581, %v1498, 0.0
        %v1614 = vsel %vm1582, %v1497, 0.0
        %v1615 = vsel %vm1583, %v1496, 0.0
        %v1616 = vsel %vm1584, %v1495, 0.0
        %v1617 = vsel %vm1585, %v1494, 0.0
        %v1618 = vsel %vm1586, %v1493, 0.0
        %v1619 = vsel %vm1587, %v1492, 0.0
        %1620 = vst [vmem:[#allocation2 + $0x300] sm:$0xff] %v1588
        %1621 = vst [vmem:[#allocation2 + $0x308] sm:$0xff] %v1589
        %1622 = vst [vmem:[#allocation2 + $0x310] sm:$0xff] %v1590
        %1623 = vst [vmem:[#allocation2 + $0x318] sm:$0xff] %v1591
        %1624 = vst [vmem:[#allocation2 + $0x320] sm:$0xff] %v1592
        %1625 = vst [vmem:[#allocation2 + $0x328] sm:$0xff] %v1593
        %1626 = vst [vmem:[#allocation2 + $0x330] sm:$0xff] %v1594
        %1627 = vst [vmem:[#allocation2 + $0x338] sm:$0xff] %v1595
        %1628 = vst [vmem:[#allocation2 + $0x340] sm:$0xff] %v1596
        %1629 = vst [vmem:[#allocation2 + $0x348] sm:$0xff] %v1597
        %1630 = vst [vmem:[#allocation2 + $0x350] sm:$0xff] %v1598
        %1631 = vst [vmem:[#allocation2 + $0x358] sm:$0xff] %v1599
        %1632 = vst [vmem:[#allocation2 + $0x360] sm:$0xff] %v1600
        %1633 = vst [vmem:[#allocation2 + $0x368] sm:$0xff] %v1601
        %1634 = vst [vmem:[#allocation2 + $0x370] sm:$0xff] %v1602
        %1635 = vst [vmem:[#allocation2 + $0x378] sm:$0xff] %v1603
        %1636 = vst [vmem:[#allocation2 + $0x380] sm:$0xff] %v1604
        %1637 = vst [vmem:[#allocation2 + $0x388] sm:$0xff] %v1605
        %1638 = vst [vmem:[#allocation2 + $0x390] sm:$0xff] %v1606
        %1639 = vst [vmem:[#allocation2 + $0x398] sm:$0xff] %v1607
        %1640 = vst [vmem:[#allocation2 + $0x3a0] sm:$0xff] %v1608
        %1641 = vst [vmem:[#allocation2 + $0x3a8] sm:$0xff] %v1609
        %1642 = vst [vmem:[#allocation2 + $0x3b0] sm:$0xff] %v1610
        %1643 = vst [vmem:[#allocation2 + $0x3b8] sm:$0xff] %v1611
        %1644 = vst [vmem:[#allocation2 + $0x3c0] sm:$0xff] %v1612
        %1645 = vst [vmem:[#allocation2 + $0x3c8] sm:$0xff] %v1613
        %1646 = vst [vmem:[#allocation2 + $0x3d0] sm:$0xff] %v1614
        %1647 = vst [vmem:[#allocation2 + $0x3d8] sm:$0xff] %v1615
        %1648 = vst [vmem:[#allocation2 + $0x3e0] sm:$0xff] %v1616
        %1649 = vst [vmem:[#allocation2 + $0x3e8] sm:$0xff] %v1617
        %1650 = vst [vmem:[#allocation2 + $0x3f0] sm:$0xff] %v1618
        %1651 = vst [vmem:[#allocation2 + $0x3f8] sm:$0xff] %v1619
        %1652 = vst [vmem:[#allocation2 + $0x400] sm:$0xff] %v335
        %1653 = vst [vmem:[#allocation2 + $0x408] sm:$0xff] %v336
        %1654 = vst [vmem:[#allocation2 + $0x410] sm:$0xff] %v337
        %1655 = vst [vmem:[#allocation2 + $0x418] sm:$0xff] %v338
        %1656 = vst [vmem:[#allocation2 + $0x420] sm:$0xff] %v339
        %1657 = vst [vmem:[#allocation2 + $0x428] sm:$0xff] %v340
        %1658 = vst [vmem:[#allocation2 + $0x430] sm:$0xff] %v341
        %1659 = vst [vmem:[#allocation2 + $0x438] sm:$0xff] %v342
        %1660 = vst [vmem:[#allocation2 + $0x440] sm:$0xff] %v343
        %1661 = vst [vmem:[#allocation2 + $0x448] sm:$0xff] %v344
        %1662 = vst [vmem:[#allocation2 + $0x450] sm:$0xff] %v345
        %1663 = vst [vmem:[#allocation2 + $0x458] sm:$0xff] %v346
        %1664 = vst [vmem:[#allocation2 + $0x460] sm:$0xff] %v347
        %1665 = vst [vmem:[#allocation2 + $0x468] sm:$0xff] %v348
        %1666 = vst [vmem:[#allocation2 + $0x470] sm:$0xff] %v349
        %1667 = vst [vmem:[#allocation2 + $0x478] sm:$0xff] %v350
        %1668 = vst [vmem:[#allocation2 + $0x480] sm:$0xff] %v351
        %1669 = vst [vmem:[#allocation2 + $0x488] sm:$0xff] %v352
        %1670 = vst [vmem:[#allocation2 + $0x490] sm:$0xff] %v353
        %1671 = vst [vmem:[#allocation2 + $0x498] sm:$0xff] %v354
        %1672 = vst [vmem:[#allocation2 + $0x4a0] sm:$0xff] %v355
        %1673 = vst [vmem:[#allocation2 + $0x4a8] sm:$0xff] %v356
        %1674 = vst [vmem:[#allocation2 + $0x4b0] sm:$0xff] %v357
        %1675 = vst [vmem:[#allocation2 + $0x4b8] sm:$0xff] %v358
        %1676 = vst [vmem:[#allocation2 + $0x4c0] sm:$0xff] %v359
        %1677 = vst [vmem:[#allocation2 + $0x4c8] sm:$0xff] %v360
        %1678 = vst [vmem:[#allocation2 + $0x4d0] sm:$0xff] %v361
        %1679 = vst [vmem:[#allocation2 + $0x4d8] sm:$0xff] %v362
        %1680 = vst [vmem:[#allocation2 + $0x4e0] sm:$0xff] %v363
        %1681 = vst [vmem:[#allocation2 + $0x4e8] sm:$0xff] %v364
        %1682 = vst [vmem:[#allocation2 + $0x4f0] sm:$0xff] %v365
        %1683 = vst [vmem:[#allocation2 + $0x4f8] sm:$0xff] %v366
        %1684 = vrot.lane.b32.xlu0 %v335, 127
        %v1685 = vpop.permute.xlu0 %1684
        %1686 = vrot.lane.b32.xlu0 %v336, 127
        %v1687 = vpop.permute.xlu0 %1686
        %1688 = vrot.lane.b32.xlu0 %v337, 127
        %v1689 = vpop.permute.xlu0 %1688
        %1690 = vrot.lane.b32.xlu0 %v338, 127
        %v1691 = vpop.permute.xlu0 %1690
        %1692 = vrot.lane.b32.xlu0 %v339, 127
        %v1693 = vpop.permute.xlu0 %1692
        %1694 = vrot.lane.b32.xlu0 %v340, 127
        %v1695 = vpop.permute.xlu0 %1694
        %1696 = vrot.lane.b32.xlu0 %v341, 127
        %v1697 = vpop.permute.xlu0 %1696
        %1698 = vrot.lane.b32.xlu0 %v342, 127
        %v1699 = vpop.permute.xlu0 %1698
        %1700 = vrot.lane.b32.xlu0 %v343, 127
        %v1701 = vpop.permute.xlu0 %1700
        %1702 = vrot.lane.b32.xlu0 %v344, 127
        %v1703 = vpop.permute.xlu0 %1702
        %1704 = vrot.lane.b32.xlu0 %v345, 127
        %v1705 = vpop.permute.xlu0 %1704
        %1706 = vrot.lane.b32.xlu0 %v346, 127
        %v1707 = vpop.permute.xlu0 %1706
        %1708 = vrot.lane.b32.xlu0 %v347, 127
        %v1709 = vpop.permute.xlu0 %1708
        %1710 = vrot.lane.b32.xlu0 %v348, 127
        %v1711 = vpop.permute.xlu0 %1710
        %1712 = vrot.lane.b32.xlu0 %v349, 127
        %v1713 = vpop.permute.xlu0 %1712
        %1714 = vrot.lane.b32.xlu0 %v350, 127
        %v1715 = vpop.permute.xlu0 %1714
        %1716 = vrot.lane.b32.xlu0 %v351, 127
        %v1717 = vpop.permute.xlu0 %1716
        %1718 = vrot.lane.b32.xlu0 %v352, 127
        %v1719 = vpop.permute.xlu0 %1718
        %1720 = vrot.lane.b32.xlu0 %v353, 127
        %v1721 = vpop.permute.xlu0 %1720
        %1722 = vrot.lane.b32.xlu0 %v354, 127
        %v1723 = vpop.permute.xlu0 %1722
        %1724 = vrot.lane.b32.xlu0 %v355, 127
        %v1725 = vpop.permute.xlu0 %1724
        %1726 = vrot.lane.b32.xlu0 %v356, 127
        %v1727 = vpop.permute.xlu0 %1726
        %1728 = vrot.lane.b32.xlu0 %v357, 127
        %v1729 = vpop.permute.xlu0 %1728
        %1730 = vrot.lane.b32.xlu0 %v358, 127
        %v1731 = vpop.permute.xlu0 %1730
        %1732 = vrot.lane.b32.xlu0 %v359, 127
        %v1733 = vpop.permute.xlu0 %1732
        %1734 = vrot.lane.b32.xlu0 %v360, 127
        %v1735 = vpop.permute.xlu0 %1734
        %1736 = vrot.lane.b32.xlu0 %v361, 127
        %v1737 = vpop.permute.xlu0 %1736
        %1738 = vrot.lane.b32.xlu0 %v362, 127
        %v1739 = vpop.permute.xlu0 %1738
        %1740 = vrot.lane.b32.xlu0 %v363, 127
        %v1741 = vpop.permute.xlu0 %1740
        %1742 = vrot.lane.b32.xlu0 %v364, 127
        %v1743 = vpop.permute.xlu0 %1742
        %1744 = vrot.lane.b32.xlu0 %v365, 127
        %v1745 = vpop.permute.xlu0 %1744
        %1746 = vrot.lane.b32.xlu0 %v366, 127
        %v1747 = vpop.permute.xlu0 %1746
        %vm1748 = vcmp.lt.s32.totalorder %v368, 127
        %v1749 = vsel %vm1748, %v1745, %v1747
        %v1750 = vsel %vm1748, %v1743, %v1745
        %v1751 = vsel %vm1748, %v1741, %v1743
        %v1752 = vsel %vm1748, %v1739, %v1741
        %v1753 = vsel %vm1748, %v1737, %v1739
        %v1754 = vsel %vm1748, %v1735, %v1737
        %v1755 = vsel %vm1748, %v1733, %v1735
        %v1756 = vsel %vm1748, %v1731, %v1733
        %v1757 = vsel %vm1748, %v1729, %v1731
        %v1758 = vsel %vm1748, %v1727, %v1729
        %v1759 = vsel %vm1748, %v1725, %v1727
        %v1760 = vsel %vm1748, %v1723, %v1725
        %v1761 = vsel %vm1748, %v1721, %v1723
        %v1762 = vsel %vm1748, %v1719, %v1721
        %v1763 = vsel %vm1748, %v1717, %v1719
        %v1764 = vsel %vm1748, %v1715, %v1717
        %v1765 = vsel %vm1748, %v1713, %v1715
        %v1766 = vsel %vm1748, %v1711, %v1713
        %v1767 = vsel %vm1748, %v1709, %v1711
        %v1768 = vsel %vm1748, %v1707, %v1709
        %v1769 = vsel %vm1748, %v1705, %v1707
        %v1770 = vsel %vm1748, %v1703, %v1705
        %v1771 = vsel %vm1748, %v1701, %v1703
        %v1772 = vsel %vm1748, %v1699, %v1701
        %v1773 = vsel %vm1748, %v1697, %v1699
        %v1774 = vsel %vm1748, %v1695, %v1697
        %v1775 = vsel %vm1748, %v1693, %v1695
        %v1776 = vsel %vm1748, %v1691, %v1693
        %v1777 = vsel %vm1748, %v1689, %v1691
        %v1778 = vsel %vm1748, %v1687, %v1689
        %v1779 = vsel %vm1748, %v1685, %v1687
        %v1780 = vsel %vm1748, %v1747, %v1685
        %v1781 = vsel %vm592, 1, 0
        %v1782 = vsel %vm593, 1, 0
        %v1783 = vsel %vm594, 1, 0
        %v1784 = vsel %vm595, 1, 0
        %v1785 = vsel %vm596, 1, 0
        %v1786 = vsel %vm597, 1, 0
        %v1787 = vsel %vm598, 1, 0
        %v1788 = vsel %vm599, 1, 0
        %v1789 = vsel %vm600, 1, 0
        %v1790 = vsel %vm601, 1, 0
        %v1791 = vsel %vm602, 1, 0
        %v1792 = vsel %vm603, 1, 0
        %v1793 = vsel %vm604, 1, 0
        %v1794 = vsel %vm605, 1, 0
        %v1795 = vsel %vm606, 1, 0
        %v1796 = vsel %vm607, 1, 0
        %v1797 = vsel %vm608, 1, 0
        %v1798 = vsel %vm609, 1, 0
        %v1799 = vsel %vm610, 1, 0
        %v1800 = vsel %vm611, 1, 0
        %v1801 = vsel %vm612, 1, 0
        %v1802 = vsel %vm613, 1, 0
        %v1803 = vsel %vm614, 1, 0
        %v1804 = vsel %vm615, 1, 0
        %v1805 = vsel %vm616, 1, 0
        %v1806 = vsel %vm617, 1, 0
        %v1807 = vsel %vm618, 1, 0
        %v1808 = vsel %vm619, 1, 0
        %v1809 = vsel %vm620, 1, 0
        %v1810 = vsel %vm621, 1, 0
        %v1811 = vsel %vm622, 1, 0
        %v1812 = vsel %vm623, 1, 0
        %vm1813 = vcmp.eq.s32.totalorder %v1781, 1
        %vm1814 = vcmp.eq.s32.totalorder %v1782, 1
        %vm1815 = vcmp.eq.s32.totalorder %v1783, 1
        %vm1816 = vcmp.eq.s32.totalorder %v1784, 1
        %vm1817 = vcmp.eq.s32.totalorder %v1785, 1
        %vm1818 = vcmp.eq.s32.totalorder %v1786, 1
        %vm1819 = vcmp.eq.s32.totalorder %v1787, 1
        %vm1820 = vcmp.eq.s32.totalorder %v1788, 1
        %vm1821 = vcmp.eq.s32.totalorder %v1789, 1
        %vm1822 = vcmp.eq.s32.totalorder %v1790, 1
        %vm1823 = vcmp.eq.s32.totalorder %v1791, 1
        %vm1824 = vcmp.eq.s32.totalorder %v1792, 1
        %vm1825 = vcmp.eq.s32.totalorder %v1793, 1
        %vm1826 = vcmp.eq.s32.totalorder %v1794, 1
        %vm1827 = vcmp.eq.s32.totalorder %v1795, 1
        %vm1828 = vcmp.eq.s32.totalorder %v1796, 1
        %vm1829 = vcmp.eq.s32.totalorder %v1797, 1
        %vm1830 = vcmp.eq.s32.totalorder %v1798, 1
        %vm1831 = vcmp.eq.s32.totalorder %v1799, 1
        %vm1832 = vcmp.eq.s32.totalorder %v1800, 1
        %vm1833 = vcmp.eq.s32.totalorder %v1801, 1
        %vm1834 = vcmp.eq.s32.totalorder %v1802, 1
        %vm1835 = vcmp.eq.s32.totalorder %v1803, 1
        %vm1836 = vcmp.eq.s32.totalorder %v1804, 1
        %vm1837 = vcmp.eq.s32.totalorder %v1805, 1
        %vm1838 = vcmp.eq.s32.totalorder %v1806, 1
        %vm1839 = vcmp.eq.s32.totalorder %v1807, 1
        %vm1840 = vcmp.eq.s32.totalorder %v1808, 1
        %vm1841 = vcmp.eq.s32.totalorder %v1809, 1
        %vm1842 = vcmp.eq.s32.totalorder %v1810, 1
        %vm1843 = vcmp.eq.s32.totalorder %v1811, 1
        %vm1844 = vcmp.eq.s32.totalorder %v1812, 1
        %v1845 = vsel %vm1813, %v1779, 0.0
        %v1846 = vsel %vm1814, %v1778, 0.0
        %v1847 = vsel %vm1815, %v1777, 0.0
        %v1848 = vsel %vm1816, %v1776, 0.0
        %v1849 = vsel %vm1817, %v1775, 0.0
        %v1850 = vsel %vm1818, %v1774, 0.0
        %v1851 = vsel %vm1819, %v1773, 0.0
        %v1852 = vsel %vm1820, %v1772, 0.0
        %v1853 = vsel %vm1821, %v1771, 0.0
        %v1854 = vsel %vm1822, %v1770, 0.0
        %v1855 = vsel %vm1823, %v1769, 0.0
        %v1856 = vsel %vm1824, %v1768, 0.0
        %v1857 = vsel %vm1825, %v1767, 0.0
        %v1858 = vsel %vm1826, %v1766, 0.0
        %v1859 = vsel %vm1827, %v1765, 0.0
        %v1860 = vsel %vm1828, %v1764, 0.0
        %v1861 = vsel %vm1829, %v1763, 0.0
        %v1862 = vsel %vm1830, %v1762, 0.0
        %v1863 = vsel %vm1831, %v1761, 0.0
        %v1864 = vsel %vm1832, %v1760, 0.0
        %v1865 = vsel %vm1833, %v1759, 0.0
        %v1866 = vsel %vm1834, %v1758, 0.0
        %v1867 = vsel %vm1835, %v1757, 0.0
        %v1868 = vsel %vm1836, %v1756, 0.0
        %v1869 = vsel %vm1837, %v1755, 0.0
        %v1870 = vsel %vm1838, %v1754, 0.0
        %v1871 = vsel %vm1839, %v1753, 0.0
        %v1872 = vsel %vm1840, %v1752, 0.0
        %v1873 = vsel %vm1841, %v1751, 0.0
        %v1874 = vsel %vm1842, %v1750, 0.0
        %v1875 = vsel %vm1843, %v1749, 0.0
        %v1876 = vsel %vm1844, %v1780, 0.0
        %1877 = vst [vmem:[#allocation2 + $0x500] sm:$0xff] %v1845
        %1878 = vst [vmem:[#allocation2 + $0x508] sm:$0xff] %v1846
        %1879 = vst [vmem:[#allocation2 + $0x510] sm:$0xff] %v1847
        %1880 = vst [vmem:[#allocation2 + $0x518] sm:$0xff] %v1848
        %1881 = vst [vmem:[#allocation2 + $0x520] sm:$0xff] %v1849
        %1882 = vst [vmem:[#allocation2 + $0x528] sm:$0xff] %v1850
        %1883 = vst [vmem:[#allocation2 + $0x530] sm:$0xff] %v1851
        %1884 = vst [vmem:[#allocation2 + $0x538] sm:$0xff] %v1852
        %1885 = vst [vmem:[#allocation2 + $0x540] sm:$0xff] %v1853
        %1886 = vst [vmem:[#allocation2 + $0x548] sm:$0xff] %v1854
        %1887 = vst [vmem:[#allocation2 + $0x550] sm:$0xff] %v1855
        %1888 = vst [vmem:[#allocation2 + $0x558] sm:$0xff] %v1856
        %1889 = vst [vmem:[#allocation2 + $0x560] sm:$0xff] %v1857
        %1890 = vst [vmem:[#allocation2 + $0x568] sm:$0xff] %v1858
        %1891 = vst [vmem:[#allocation2 + $0x570] sm:$0xff] %v1859
        %1892 = vst [vmem:[#allocation2 + $0x578] sm:$0xff] %v1860
        %1893 = vst [vmem:[#allocation2 + $0x580] sm:$0xff] %v1861
        %1894 = vst [vmem:[#allocation2 + $0x588] sm:$0xff] %v1862
        %1895 = vst [vmem:[#allocation2 + $0x590] sm:$0xff] %v1863
        %1896 = vst [vmem:[#allocation2 + $0x598] sm:$0xff] %v1864
        %1897 = vst [vmem:[#allocation2 + $0x5a0] sm:$0xff] %v1865
        %1898 = vst [vmem:[#allocation2 + $0x5a8] sm:$0xff] %v1866
        %1899 = vst [vmem:[#allocation2 + $0x5b0] sm:$0xff] %v1867
        %1900 = vst [vmem:[#allocation2 + $0x5b8] sm:$0xff] %v1868
        %1901 = vst [vmem:[#allocation2 + $0x5c0] sm:$0xff] %v1869
        %1902 = vst [vmem:[#allocation2 + $0x5c8] sm:$0xff] %v1870
        %1903 = vst [vmem:[#allocation2 + $0x5d0] sm:$0xff] %v1871
        %1904 = vst [vmem:[#allocation2 + $0x5d8] sm:$0xff] %v1872
        %1905 = vst [vmem:[#allocation2 + $0x5e0] sm:$0xff] %v1873
        %1906 = vst [vmem:[#allocation2 + $0x5e8] sm:$0xff] %v1874
        %1907 = vst [vmem:[#allocation2 + $0x5f0] sm:$0xff] %v1875
        %1908 = vst [vmem:[#allocation2 + $0x5f8] sm:$0xff] %v1876
        %1909 = vrot.lane.b32.xlu0 %v335, 97
        %v1910 = vpop.permute.xlu0 %1909
        %1911 = vrot.lane.b32.xlu0 %v336, 97
        %v1912 = vpop.permute.xlu0 %1911
        %1913 = vrot.lane.b32.xlu0 %v337, 97
        %v1914 = vpop.permute.xlu0 %1913
        %1915 = vrot.lane.b32.xlu0 %v338, 97
        %v1916 = vpop.permute.xlu0 %1915
        %1917 = vrot.lane.b32.xlu0 %v339, 97
        %v1918 = vpop.permute.xlu0 %1917
        %1919 = vrot.lane.b32.xlu0 %v340, 97
        %v1920 = vpop.permute.xlu0 %1919
        %1921 = vrot.lane.b32.xlu0 %v341, 97
        %v1922 = vpop.permute.xlu0 %1921
        %1923 = vrot.lane.b32.xlu0 %v342, 97
        %v1924 = vpop.permute.xlu0 %1923
        %1925 = vrot.lane.b32.xlu0 %v343, 97
        %v1926 = vpop.permute.xlu0 %1925
        %1927 = vrot.lane.b32.xlu0 %v344, 97
        %v1928 = vpop.permute.xlu0 %1927
        %1929 = vrot.lane.b32.xlu0 %v345, 97
        %v1930 = vpop.permute.xlu0 %1929
        %1931 = vrot.lane.b32.xlu0 %v346, 97
        %v1932 = vpop.permute.xlu0 %1931
        %1933 = vrot.lane.b32.xlu0 %v347, 97
        %v1934 = vpop.permute.xlu0 %1933
        %1935 = vrot.lane.b32.xlu0 %v348, 97
        %v1936 = vpop.permute.xlu0 %1935
        %1937 = vrot.lane.b32.xlu0 %v349, 97
        %v1938 = vpop.permute.xlu0 %1937
        %1939 = vrot.lane.b32.xlu0 %v350, 97
        %v1940 = vpop.permute.xlu0 %1939
        %1941 = vrot.lane.b32.xlu0 %v351, 97
        %v1942 = vpop.permute.xlu0 %1941
        %1943 = vrot.lane.b32.xlu0 %v352, 97
        %v1944 = vpop.permute.xlu0 %1943
        %1945 = vrot.lane.b32.xlu0 %v353, 97
        %v1946 = vpop.permute.xlu0 %1945
        %1947 = vrot.lane.b32.xlu0 %v354, 97
        %v1948 = vpop.permute.xlu0 %1947
        %1949 = vrot.lane.b32.xlu0 %v355, 97
        %v1950 = vpop.permute.xlu0 %1949
        %1951 = vrot.lane.b32.xlu0 %v356, 97
        %v1952 = vpop.permute.xlu0 %1951
        %1953 = vrot.lane.b32.xlu0 %v357, 97
        %v1954 = vpop.permute.xlu0 %1953
        %1955 = vrot.lane.b32.xlu0 %v358, 97
        %v1956 = vpop.permute.xlu0 %1955
        %1957 = vrot.lane.b32.xlu0 %v359, 97
        %v1958 = vpop.permute.xlu0 %1957
        %1959 = vrot.lane.b32.xlu0 %v360, 97
        %v1960 = vpop.permute.xlu0 %1959
        %1961 = vrot.lane.b32.xlu0 %v361, 97
        %v1962 = vpop.permute.xlu0 %1961
        %1963 = vrot.lane.b32.xlu0 %v362, 97
        %v1964 = vpop.permute.xlu0 %1963
        %1965 = vrot.lane.b32.xlu0 %v363, 97
        %v1966 = vpop.permute.xlu0 %1965
        %1967 = vrot.lane.b32.xlu0 %v364, 97
        %v1968 = vpop.permute.xlu0 %1967
        %1969 = vrot.lane.b32.xlu0 %v365, 97
        %v1970 = vpop.permute.xlu0 %1969
        %1971 = vrot.lane.b32.xlu0 %v366, 97
        %v1972 = vpop.permute.xlu0 %1971
        %vm1973 = vcmp.lt.s32.totalorder %v368, 97
        %v1974 = vsel %vm1973, %v1970, %v1972
        %v1975 = vsel %vm1973, %v1968, %v1970
        %v1976 = vsel %vm1973, %v1966, %v1968
        %v1977 = vsel %vm1973, %v1964, %v1966
        %v1978 = vsel %vm1973, %v1962, %v1964
        %v1979 = vsel %vm1973, %v1960, %v1962
        %v1980 = vsel %vm1973, %v1958, %v1960
        %v1981 = vsel %vm1973, %v1956, %v1958
        %v1982 = vsel %vm1973, %v1954, %v1956
        %v1983 = vsel %vm1973, %v1952, %v1954
        %v1984 = vsel %vm1973, %v1950, %v1952
        %v1985 = vsel %vm1973, %v1948, %v1950
        %v1986 = vsel %vm1973, %v1946, %v1948
        %v1987 = vsel %vm1973, %v1944, %v1946
        %v1988 = vsel %vm1973, %v1942, %v1944
        %v1989 = vsel %vm1973, %v1940, %v1942
        %v1990 = vsel %vm1973, %v1938, %v1940
        %v1991 = vsel %vm1973, %v1936, %v1938
        %v1992 = vsel %vm1973, %v1934, %v1936
        %v1993 = vsel %vm1973, %v1932, %v1934
        %v1994 = vsel %vm1973, %v1930, %v1932
        %v1995 = vsel %vm1973, %v1928, %v1930
        %v1996 = vsel %vm1973, %v1926, %v1928
        %v1997 = vsel %vm1973, %v1924, %v1926
        %v1998 = vsel %vm1973, %v1922, %v1924
        %v1999 = vsel %vm1973, %v1920, %v1922
        %v2000 = vsel %vm1973, %v1918, %v1920
        %v2001 = vsel %vm1973, %v1916, %v1918
        %v2002 = vsel %vm1973, %v1914, %v1916
        %v2003 = vsel %vm1973, %v1912, %v1914
        %v2004 = vsel %vm1973, %v1910, %v1912
        %v2005 = vsel %vm1973, %v1972, %v1910
        %v2006 = vsel %vm688, 1, 0
        %v2007 = vsel %vm689, 1, 0
        %v2008 = vsel %vm690, 1, 0
        %v2009 = vsel %vm691, 1, 0
        %v2010 = vsel %vm692, 1, 0
        %v2011 = vsel %vm693, 1, 0
        %v2012 = vsel %vm694, 1, 0
        %v2013 = vsel %vm695, 1, 0
        %v2014 = vsel %vm696, 1, 0
        %v2015 = vsel %vm697, 1, 0
        %v2016 = vsel %vm698, 1, 0
        %v2017 = vsel %vm699, 1, 0
        %v2018 = vsel %vm700, 1, 0
        %v2019 = vsel %vm701, 1, 0
        %v2020 = vsel %vm702, 1, 0
        %v2021 = vsel %vm703, 1, 0
        %v2022 = vsel %vm704, 1, 0
        %v2023 = vsel %vm705, 1, 0
        %v2024 = vsel %vm706, 1, 0
        %v2025 = vsel %vm707, 1, 0
        %v2026 = vsel %vm708, 1, 0
        %v2027 = vsel %vm709, 1, 0
        %v2028 = vsel %vm710, 1, 0
        %v2029 = vsel %vm711, 1, 0
        %v2030 = vsel %vm712, 1, 0
        %v2031 = vsel %vm713, 1, 0
        %v2032 = vsel %vm714, 1, 0
        %v2033 = vsel %vm715, 1, 0
        %v2034 = vsel %vm716, 1, 0
        %v2035 = vsel %vm717, 1, 0
        %v2036 = vsel %vm718, 1, 0
        %v2037 = vsel %vm719, 1, 0
        %vm2038 = vcmp.eq.s32.totalorder %v2006, 1
        %vm2039 = vcmp.eq.s32.totalorder %v2007, 1
        %vm2040 = vcmp.eq.s32.totalorder %v2008, 1
        %vm2041 = vcmp.eq.s32.totalorder %v2009, 1
        %vm2042 = vcmp.eq.s32.totalorder %v2010, 1
        %vm2043 = vcmp.eq.s32.totalorder %v2011, 1
        %vm2044 = vcmp.eq.s32.totalorder %v2012, 1
        %vm2045 = vcmp.eq.s32.totalorder %v2013, 1
        %vm2046 = vcmp.eq.s32.totalorder %v2014, 1
        %vm2047 = vcmp.eq.s32.totalorder %v2015, 1
        %vm2048 = vcmp.eq.s32.totalorder %v2016, 1
        %vm2049 = vcmp.eq.s32.totalorder %v2017, 1
        %vm2050 = vcmp.eq.s32.totalorder %v2018, 1
        %vm2051 = vcmp.eq.s32.totalorder %v2019, 1
        %vm2052 = vcmp.eq.s32.totalorder %v2020, 1
        %vm2053 = vcmp.eq.s32.totalorder %v2021, 1
        %vm2054 = vcmp.eq.s32.totalorder %v2022, 1
        %vm2055 = vcmp.eq.s32.totalorder %v2023, 1
        %vm2056 = vcmp.eq.s32.totalorder %v2024, 1
        %vm2057 = vcmp.eq.s32.totalorder %v2025, 1
        %vm2058 = vcmp.eq.s32.totalorder %v2026, 1
        %vm2059 = vcmp.eq.s32.totalorder %v2027, 1
        %vm2060 = vcmp.eq.s32.totalorder %v2028, 1
        %vm2061 = vcmp.eq.s32.totalorder %v2029, 1
        %vm2062 = vcmp.eq.s32.totalorder %v2030, 1
        %vm2063 = vcmp.eq.s32.totalorder %v2031, 1
        %vm2064 = vcmp.eq.s32.totalorder %v2032, 1
        %vm2065 = vcmp.eq.s32.totalorder %v2033, 1
        %vm2066 = vcmp.eq.s32.totalorder %v2034, 1
        %vm2067 = vcmp.eq.s32.totalorder %v2035, 1
        %vm2068 = vcmp.eq.s32.totalorder %v2036, 1
        %vm2069 = vcmp.eq.s32.totalorder %v2037, 1
        %v2070 = vsel %vm2038, %v2004, 0.0
        %v2071 = vsel %vm2039, %v2003, 0.0
        %v2072 = vsel %vm2040, %v2002, 0.0
        %v2073 = vsel %vm2041, %v2001, 0.0
        %v2074 = vsel %vm2042, %v2000, 0.0
        %v2075 = vsel %vm2043, %v1999, 0.0
        %v2076 = vsel %vm2044, %v1998, 0.0
        %v2077 = vsel %vm2045, %v1997, 0.0
        %v2078 = vsel %vm2046, %v1996, 0.0
        %v2079 = vsel %vm2047, %v1995, 0.0
        %v2080 = vsel %vm2048, %v1994, 0.0
        %v2081 = vsel %vm2049, %v1993, 0.0
        %v2082 = vsel %vm2050, %v1992, 0.0
        %v2083 = vsel %vm2051, %v1991, 0.0
        %v2084 = vsel %vm2052, %v1990, 0.0
        %v2085 = vsel %vm2053, %v1989, 0.0
        %v2086 = vsel %vm2054, %v1988, 0.0
        %v2087 = vsel %vm2055, %v1987, 0.0
        %v2088 = vsel %vm2056, %v1986, 0.0
        %v2089 = vsel %vm2057, %v1985, 0.0
        %v2090 = vsel %vm2058, %v1984, 0.0
        %v2091 = vsel %vm2059, %v1983, 0.0
        %v2092 = vsel %vm2060, %v1982, 0.0
        %v2093 = vsel %vm2061, %v1981, 0.0
        %v2094 = vsel %vm2062, %v1980, 0.0
        %v2095 = vsel %vm2063, %v1979, 0.0
        %v2096 = vsel %vm2064, %v1978, 0.0
        %v2097 = vsel %vm2065, %v1977, 0.0
        %v2098 = vsel %vm2066, %v1976, 0.0
        %v2099 = vsel %vm2067, %v1975, 0.0
        %v2100 = vsel %vm2068, %v1974, 0.0
        %v2101 = vsel %vm2069, %v2005, 0.0
        %2102 = vst [vmem:[#allocation2 + $0x600] sm:$0xff] %v2070
        %2103 = vst [vmem:[#allocation2 + $0x608] sm:$0xff] %v2071
        %2104 = vst [vmem:[#allocation2 + $0x610] sm:$0xff] %v2072
        %2105 = vst [vmem:[#allocation2 + $0x618] sm:$0xff] %v2073
        %2106 = vst [vmem:[#allocation2 + $0x620] sm:$0xff] %v2074
        %2107 = vst [vmem:[#allocation2 + $0x628] sm:$0xff] %v2075
        %2108 = vst [vmem:[#allocation2 + $0x630] sm:$0xff] %v2076
        %2109 = vst [vmem:[#allocation2 + $0x638] sm:$0xff] %v2077
        %2110 = vst [vmem:[#allocation2 + $0x640] sm:$0xff] %v2078
        %2111 = vst [vmem:[#allocation2 + $0x648] sm:$0xff] %v2079
        %2112 = vst [vmem:[#allocation2 + $0x650] sm:$0xff] %v2080
        %2113 = vst [vmem:[#allocation2 + $0x658] sm:$0xff] %v2081
        %2114 = vst [vmem:[#allocation2 + $0x660] sm:$0xff] %v2082
        %2115 = vst [vmem:[#allocation2 + $0x668] sm:$0xff] %v2083
        %2116 = vst [vmem:[#allocation2 + $0x670] sm:$0xff] %v2084
        %2117 = vst [vmem:[#allocation2 + $0x678] sm:$0xff] %v2085
        %2118 = vst [vmem:[#allocation2 + $0x680] sm:$0xff] %v2086
        %2119 = vst [vmem:[#allocation2 + $0x688] sm:$0xff] %v2087
        %2120 = vst [vmem:[#allocation2 + $0x690] sm:$0xff] %v2088
        %2121 = vst [vmem:[#allocation2 + $0x698] sm:$0xff] %v2089
        %2122 = vst [vmem:[#allocation2 + $0x6a0] sm:$0xff] %v2090
        %2123 = vst [vmem:[#allocation2 + $0x6a8] sm:$0xff] %v2091
        %2124 = vst [vmem:[#allocation2 + $0x6b0] sm:$0xff] %v2092
        %2125 = vst [vmem:[#allocation2 + $0x6b8] sm:$0xff] %v2093
        %2126 = vst [vmem:[#allocation2 + $0x6c0] sm:$0xff] %v2094
        %2127 = vst [vmem:[#allocation2 + $0x6c8] sm:$0xff] %v2095
        %2128 = vst [vmem:[#allocation2 + $0x6d0] sm:$0xff] %v2096
        %2129 = vst [vmem:[#allocation2 + $0x6d8] sm:$0xff] %v2097
        %2130 = vst [vmem:[#allocation2 + $0x6e0] sm:$0xff] %v2098
        %2131 = vst [vmem:[#allocation2 + $0x6e8] sm:$0xff] %v2099
        %2132 = vst [vmem:[#allocation2 + $0x6f0] sm:$0xff] %v2100
        %2133 = vst [vmem:[#allocation2 + $0x6f8] sm:$0xff] %v2101
        %2134 = vrot.lane.b32.xlu0 %v335, 96
        %v2135 = vpop.permute.xlu0 %2134
        %2136 = vrot.lane.b32.xlu0 %v336, 96
        %v2137 = vpop.permute.xlu0 %2136
        %2138 = vrot.lane.b32.xlu0 %v337, 96
        %v2139 = vpop.permute.xlu0 %2138
        %2140 = vrot.lane.b32.xlu0 %v338, 96
        %v2141 = vpop.permute.xlu0 %2140
        %2142 = vrot.lane.b32.xlu0 %v339, 96
        %v2143 = vpop.permute.xlu0 %2142
        %2144 = vrot.lane.b32.xlu0 %v340, 96
        %v2145 = vpop.permute.xlu0 %2144
        %2146 = vrot.lane.b32.xlu0 %v341, 96
        %v2147 = vpop.permute.xlu0 %2146
        %2148 = vrot.lane.b32.xlu0 %v342, 96
        %v2149 = vpop.permute.xlu0 %2148
        %2150 = vrot.lane.b32.xlu0 %v343, 96
        %v2151 = vpop.permute.xlu0 %2150
        %2152 = vrot.lane.b32.xlu0 %v344, 96
        %v2153 = vpop.permute.xlu0 %2152
        %2154 = vrot.lane.b32.xlu0 %v345, 96
        %v2155 = vpop.permute.xlu0 %2154
        %2156 = vrot.lane.b32.xlu0 %v346, 96
        %v2157 = vpop.permute.xlu0 %2156
        %2158 = vrot.lane.b32.xlu0 %v347, 96
        %v2159 = vpop.permute.xlu0 %2158
        %2160 = vrot.lane.b32.xlu0 %v348, 96
        %v2161 = vpop.permute.xlu0 %2160
        %2162 = vrot.lane.b32.xlu0 %v349, 96
        %v2163 = vpop.permute.xlu0 %2162
        %2164 = vrot.lane.b32.xlu0 %v350, 96
        %v2165 = vpop.permute.xlu0 %2164
        %2166 = vrot.lane.b32.xlu0 %v351, 96
        %v2167 = vpop.permute.xlu0 %2166
        %2168 = vrot.lane.b32.xlu0 %v352, 96
        %v2169 = vpop.permute.xlu0 %2168
        %2170 = vrot.lane.b32.xlu0 %v353, 96
        %v2171 = vpop.permute.xlu0 %2170
        %2172 = vrot.lane.b32.xlu0 %v354, 96
        %v2173 = vpop.permute.xlu0 %2172
        %2174 = vrot.lane.b32.xlu0 %v355, 96
        %v2175 = vpop.permute.xlu0 %2174
        %2176 = vrot.lane.b32.xlu0 %v356, 96
        %v2177 = vpop.permute.xlu0 %2176
        %2178 = vrot.lane.b32.xlu0 %v357, 96
        %v2179 = vpop.permute.xlu0 %2178
        %2180 = vrot.lane.b32.xlu0 %v358, 96
        %v2181 = vpop.permute.xlu0 %2180
        %2182 = vrot.lane.b32.xlu0 %v359, 96
        %v2183 = vpop.permute.xlu0 %2182
        %2184 = vrot.lane.b32.xlu0 %v360, 96
        %v2185 = vpop.permute.xlu0 %2184
        %2186 = vrot.lane.b32.xlu0 %v361, 96
        %v2187 = vpop.permute.xlu0 %2186
        %2188 = vrot.lane.b32.xlu0 %v362, 96
        %v2189 = vpop.permute.xlu0 %2188
        %2190 = vrot.lane.b32.xlu0 %v363, 96
        %v2191 = vpop.permute.xlu0 %2190
        %2192 = vrot.lane.b32.xlu0 %v364, 96
        %v2193 = vpop.permute.xlu0 %2192
        %2194 = vrot.lane.b32.xlu0 %v365, 96
        %v2195 = vpop.permute.xlu0 %2194
        %2196 = vrot.lane.b32.xlu0 %v366, 96
        %v2197 = vpop.permute.xlu0 %2196
        %vm2198 = vcmp.lt.s32.totalorder %v368, 96
        %v2199 = vsel %vm2198, %v2195, %v2197
        %v2200 = vsel %vm2198, %v2193, %v2195
        %v2201 = vsel %vm2198, %v2191, %v2193
        %v2202 = vsel %vm2198, %v2189, %v2191
        %v2203 = vsel %vm2198, %v2187, %v2189
        %v2204 = vsel %vm2198, %v2185, %v2187
        %v2205 = vsel %vm2198, %v2183, %v2185
        %v2206 = vsel %vm2198, %v2181, %v2183
        %v2207 = vsel %vm2198, %v2179, %v2181
        %v2208 = vsel %vm2198, %v2177, %v2179
        %v2209 = vsel %vm2198, %v2175, %v2177
        %v2210 = vsel %vm2198, %v2173, %v2175
        %v2211 = vsel %vm2198, %v2171, %v2173
        %v2212 = vsel %vm2198, %v2169, %v2171
        %v2213 = vsel %vm2198, %v2167, %v2169
        %v2214 = vsel %vm2198, %v2165, %v2167
        %v2215 = vsel %vm2198, %v2163, %v2165
        %v2216 = vsel %vm2198, %v2161, %v2163
        %v2217 = vsel %vm2198, %v2159, %v2161
        %v2218 = vsel %vm2198, %v2157, %v2159
        %v2219 = vsel %vm2198, %v2155, %v2157
        %v2220 = vsel %vm2198, %v2153, %v2155
        %v2221 = vsel %vm2198, %v2151, %v2153
        %v2222 = vsel %vm2198, %v2149, %v2151
        %v2223 = vsel %vm2198, %v2147, %v2149
        %v2224 = vsel %vm2198, %v2145, %v2147
        %v2225 = vsel %vm2198, %v2143, %v2145
        %v2226 = vsel %vm2198, %v2141, %v2143
        %v2227 = vsel %vm2198, %v2139, %v2141
        %v2228 = vsel %vm2198, %v2137, %v2139
        %v2229 = vsel %vm2198, %v2135, %v2137
        %v2230 = vsel %vm2198, %v2197, %v2135
        %v2231 = vsel %vm528, 1, 0
        %v2232 = vsel %vm529, 1, 0
        %v2233 = vsel %vm530, 1, 0
        %v2234 = vsel %vm531, 1, 0
        %v2235 = vsel %vm532, 1, 0
        %v2236 = vsel %vm533, 1, 0
        %v2237 = vsel %vm534, 1, 0
        %v2238 = vsel %vm535, 1, 0
        %v2239 = vsel %vm536, 1, 0
        %v2240 = vsel %vm537, 1, 0
        %v2241 = vsel %vm538, 1, 0
        %v2242 = vsel %vm539, 1, 0
        %v2243 = vsel %vm540, 1, 0
        %v2244 = vsel %vm541, 1, 0
        %v2245 = vsel %vm542, 1, 0
        %v2246 = vsel %vm543, 1, 0
        %v2247 = vsel %vm544, 1, 0
        %v2248 = vsel %vm545, 1, 0
        %v2249 = vsel %vm546, 1, 0
        %v2250 = vsel %vm547, 1, 0
        %v2251 = vsel %vm548, 1, 0
        %v2252 = vsel %vm549, 1, 0
        %v2253 = vsel %vm550, 1, 0
        %v2254 = vsel %vm551, 1, 0
        %v2255 = vsel %vm552, 1, 0
        %v2256 = vsel %vm553, 1, 0
        %v2257 = vsel %vm554, 1, 0
        %v2258 = vsel %vm555, 1, 0
        %v2259 = vsel %vm556, 1, 0
        %v2260 = vsel %vm557, 1, 0
        %v2261 = vsel %vm558, 1, 0
        %v2262 = vsel %vm559, 1, 0
        %vm2263 = vcmp.eq.s32.totalorder %v2231, 1
        %vm2264 = vcmp.eq.s32.totalorder %v2232, 1
        %vm2265 = vcmp.eq.s32.totalorder %v2233, 1
        %vm2266 = vcmp.eq.s32.totalorder %v2234, 1
        %vm2267 = vcmp.eq.s32.totalorder %v2235, 1
        %vm2268 = vcmp.eq.s32.totalorder %v2236, 1
        %vm2269 = vcmp.eq.s32.totalorder %v2237, 1
        %vm2270 = vcmp.eq.s32.totalorder %v2238, 1
        %vm2271 = vcmp.eq.s32.totalorder %v2239, 1
        %vm2272 = vcmp.eq.s32.totalorder %v2240, 1
        %vm2273 = vcmp.eq.s32.totalorder %v2241, 1
        %vm2274 = vcmp.eq.s32.totalorder %v2242, 1
        %vm2275 = vcmp.eq.s32.totalorder %v2243, 1
        %vm2276 = vcmp.eq.s32.totalorder %v2244, 1
        %vm2277 = vcmp.eq.s32.totalorder %v2245, 1
        %vm2278 = vcmp.eq.s32.totalorder %v2246, 1
        %vm2279 = vcmp.eq.s32.totalorder %v2247, 1
        %vm2280 = vcmp.eq.s32.totalorder %v2248, 1
        %vm2281 = vcmp.eq.s32.totalorder %v2249, 1
        %vm2282 = vcmp.eq.s32.totalorder %v2250, 1
        %vm2283 = vcmp.eq.s32.totalorder %v2251, 1
        %vm2284 = vcmp.eq.s32.totalorder %v2252, 1
        %vm2285 = vcmp.eq.s32.totalorder %v2253, 1
        %vm2286 = vcmp.eq.s32.totalorder %v2254, 1
        %vm2287 = vcmp.eq.s32.totalorder %v2255, 1
        %vm2288 = vcmp.eq.s32.totalorder %v2256, 1
        %vm2289 = vcmp.eq.s32.totalorder %v2257, 1
        %vm2290 = vcmp.eq.s32.totalorder %v2258, 1
        %vm2291 = vcmp.eq.s32.totalorder %v2259, 1
        %vm2292 = vcmp.eq.s32.totalorder %v2260, 1
        %vm2293 = vcmp.eq.s32.totalorder %v2261, 1
        %vm2294 = vcmp.eq.s32.totalorder %v2262, 1
        %v2295 = vsel %vm2263, %v2229, 0.0
        %v2296 = vsel %vm2264, %v2228, 0.0
        %v2297 = vsel %vm2265, %v2227, 0.0
        %v2298 = vsel %vm2266, %v2226, 0.0
        %v2299 = vsel %vm2267, %v2225, 0.0
        %v2300 = vsel %vm2268, %v2224, 0.0
        %v2301 = vsel %vm2269, %v2223, 0.0
        %v2302 = vsel %vm2270, %v2222, 0.0
        %v2303 = vsel %vm2271, %v2221, 0.0
        %v2304 = vsel %vm2272, %v2220, 0.0
        %v2305 = vsel %vm2273, %v2219, 0.0
        %v2306 = vsel %vm2274, %v2218, 0.0
        %v2307 = vsel %vm2275, %v2217, 0.0
        %v2308 = vsel %vm2276, %v2216, 0.0
        %v2309 = vsel %vm2277, %v2215, 0.0
        %v2310 = vsel %vm2278, %v2214, 0.0
        %v2311 = vsel %vm2279, %v2213, 0.0
        %v2312 = vsel %vm2280, %v2212, 0.0
        %v2313 = vsel %vm2281, %v2211, 0.0
        %v2314 = vsel %vm2282, %v2210, 0.0
        %v2315 = vsel %vm2283, %v2209, 0.0
        %v2316 = vsel %vm2284, %v2208, 0.0
        %v2317 = vsel %vm2285, %v2207, 0.0
        %v2318 = vsel %vm2286, %v2206, 0.0
        %v2319 = vsel %vm2287, %v2205, 0.0
        %v2320 = vsel %vm2288, %v2204, 0.0
        %v2321 = vsel %vm2289, %v2203, 0.0
        %v2322 = vsel %vm2290, %v2202, 0.0
        %v2323 = vsel %vm2291, %v2201, 0.0
        %v2324 = vsel %vm2292, %v2200, 0.0
        %v2325 = vsel %vm2293, %v2199, 0.0
        %v2326 = vsel %vm2294, %v2230, 0.0
        %2327 = vst [vmem:[#allocation2 + $0x700] sm:$0xff] %v2295
        %2328 = vst [vmem:[#allocation2 + $0x708] sm:$0xff] %v2296
        %2329 = vst [vmem:[#allocation2 + $0x710] sm:$0xff] %v2297
        %2330 = vst [vmem:[#allocation2 + $0x718] sm:$0xff] %v2298
        %2331 = vst [vmem:[#allocation2 + $0x720] sm:$0xff] %v2299
        %2332 = vst [vmem:[#allocation2 + $0x728] sm:$0xff] %v2300
        %2333 = vst [vmem:[#allocation2 + $0x730] sm:$0xff] %v2301
        %2334 = vst [vmem:[#allocation2 + $0x738] sm:$0xff] %v2302
        %2335 = vst [vmem:[#allocation2 + $0x740] sm:$0xff] %v2303
        %2336 = vst [vmem:[#allocation2 + $0x748] sm:$0xff] %v2304
        %2337 = vst [vmem:[#allocation2 + $0x750] sm:$0xff] %v2305
        %2338 = vst [vmem:[#allocation2 + $0x758] sm:$0xff] %v2306
        %2339 = vst [vmem:[#allocation2 + $0x760] sm:$0xff] %v2307
        %2340 = vst [vmem:[#allocation2 + $0x768] sm:$0xff] %v2308
        %2341 = vst [vmem:[#allocation2 + $0x770] sm:$0xff] %v2309
        %2342 = vst [vmem:[#allocation2 + $0x778] sm:$0xff] %v2310
        %2343 = vst [vmem:[#allocation2 + $0x780] sm:$0xff] %v2311
        %2344 = vst [vmem:[#allocation2 + $0x788] sm:$0xff] %v2312
        %2345 = vst [vmem:[#allocation2 + $0x790] sm:$0xff] %v2313
        %2346 = vst [vmem:[#allocation2 + $0x798] sm:$0xff] %v2314
        %2347 = vst [vmem:[#allocation2 + $0x7a0] sm:$0xff] %v2315
        %2348 = vst [vmem:[#allocation2 + $0x7a8] sm:$0xff] %v2316
        %2349 = vst [vmem:[#allocation2 + $0x7b0] sm:$0xff] %v2317
        %2350 = vst [vmem:[#allocation2 + $0x7b8] sm:$0xff] %v2318
        %2351 = vst [vmem:[#allocation2 + $0x7c0] sm:$0xff] %v2319
        %2352 = vst [vmem:[#allocation2 + $0x7c8] sm:$0xff] %v2320
        %2353 = vst [vmem:[#allocation2 + $0x7d0] sm:$0xff] %v2321
        %2354 = vst [vmem:[#allocation2 + $0x7d8] sm:$0xff] %v2322
        %2355 = vst [vmem:[#allocation2 + $0x7e0] sm:$0xff] %v2323
        %2356 = vst [vmem:[#allocation2 + $0x7e8] sm:$0xff] %v2324
        %2357 = vst [vmem:[#allocation2 + $0x7f0] sm:$0xff] %v2325
        %2358 = vst [vmem:[#allocation2 + $0x7f8] sm:$0xff] %v2326
        %2359 = vrot.lane.b32.xlu0 %v335, 95
        %v2360 = vpop.permute.xlu0 %2359
        %2361 = vrot.lane.b32.xlu0 %v336, 95
        %v2362 = vpop.permute.xlu0 %2361
        %2363 = vrot.lane.b32.xlu0 %v337, 95
        %v2364 = vpop.permute.xlu0 %2363
        %2365 = vrot.lane.b32.xlu0 %v338, 95
        %v2366 = vpop.permute.xlu0 %2365
        %2367 = vrot.lane.b32.xlu0 %v339, 95
        %v2368 = vpop.permute.xlu0 %2367
        %2369 = vrot.lane.b32.xlu0 %v340, 95
        %v2370 = vpop.permute.xlu0 %2369
        %2371 = vrot.lane.b32.xlu0 %v341, 95
        %v2372 = vpop.permute.xlu0 %2371
        %2373 = vrot.lane.b32.xlu0 %v342, 95
        %v2374 = vpop.permute.xlu0 %2373
        %2375 = vrot.lane.b32.xlu0 %v343, 95
        %v2376 = vpop.permute.xlu0 %2375
        %2377 = vrot.lane.b32.xlu0 %v344, 95
        %v2378 = vpop.permute.xlu0 %2377
        %2379 = vrot.lane.b32.xlu0 %v345, 95
        %v2380 = vpop.permute.xlu0 %2379
        %2381 = vrot.lane.b32.xlu0 %v346, 95
        %v2382 = vpop.permute.xlu0 %2381
        %2383 = vrot.lane.b32.xlu0 %v347, 95
        %v2384 = vpop.permute.xlu0 %2383
        %2385 = vrot.lane.b32.xlu0 %v348, 95
        %v2386 = vpop.permute.xlu0 %2385
        %2387 = vrot.lane.b32.xlu0 %v349, 95
        %v2388 = vpop.permute.xlu0 %2387
        %2389 = vrot.lane.b32.xlu0 %v350, 95
        %v2390 = vpop.permute.xlu0 %2389
        %2391 = vrot.lane.b32.xlu0 %v351, 95
        %v2392 = vpop.permute.xlu0 %2391
        %2393 = vrot.lane.b32.xlu0 %v352, 95
        %v2394 = vpop.permute.xlu0 %2393
        %2395 = vrot.lane.b32.xlu0 %v353, 95
        %v2396 = vpop.permute.xlu0 %2395
        %2397 = vrot.lane.b32.xlu0 %v354, 95
        %v2398 = vpop.permute.xlu0 %2397
        %2399 = vrot.lane.b32.xlu0 %v355, 95
        %v2400 = vpop.permute.xlu0 %2399
        %2401 = vrot.lane.b32.xlu0 %v356, 95
        %v2402 = vpop.permute.xlu0 %2401
        %2403 = vrot.lane.b32.xlu0 %v357, 95
        %v2404 = vpop.permute.xlu0 %2403
        %2405 = vrot.lane.b32.xlu0 %v358, 95
        %v2406 = vpop.permute.xlu0 %2405
        %2407 = vrot.lane.b32.xlu0 %v359, 95
        %v2408 = vpop.permute.xlu0 %2407
        %2409 = vrot.lane.b32.xlu0 %v360, 95
        %v2410 = vpop.permute.xlu0 %2409
        %2411 = vrot.lane.b32.xlu0 %v361, 95
        %v2412 = vpop.permute.xlu0 %2411
        %2413 = vrot.lane.b32.xlu0 %v362, 95
        %v2414 = vpop.permute.xlu0 %2413
        %2415 = vrot.lane.b32.xlu0 %v363, 95
        %v2416 = vpop.permute.xlu0 %2415
        %2417 = vrot.lane.b32.xlu0 %v364, 95
        %v2418 = vpop.permute.xlu0 %2417
        %2419 = vrot.lane.b32.xlu0 %v365, 95
        %v2420 = vpop.permute.xlu0 %2419
        %2421 = vrot.lane.b32.xlu0 %v366, 95
        %v2422 = vpop.permute.xlu0 %2421
        %vm2423 = vcmp.lt.s32.totalorder %v368, 95
        %v2424 = vsel %vm2423, %v2420, %v2422
        %v2425 = vsel %vm2423, %v2418, %v2420
        %v2426 = vsel %vm2423, %v2416, %v2418
        %v2427 = vsel %vm2423, %v2414, %v2416
        %v2428 = vsel %vm2423, %v2412, %v2414
        %v2429 = vsel %vm2423, %v2410, %v2412
        %v2430 = vsel %vm2423, %v2408, %v2410
        %v2431 = vsel %vm2423, %v2406, %v2408
        %v2432 = vsel %vm2423, %v2404, %v2406
        %v2433 = vsel %vm2423, %v2402, %v2404
        %v2434 = vsel %vm2423, %v2400, %v2402
        %v2435 = vsel %vm2423, %v2398, %v2400
        %v2436 = vsel %vm2423, %v2396, %v2398
        %v2437 = vsel %vm2423, %v2394, %v2396
        %v2438 = vsel %vm2423, %v2392, %v2394
        %v2439 = vsel %vm2423, %v2390, %v2392
        %v2440 = vsel %vm2423, %v2388, %v2390
        %v2441 = vsel %vm2423, %v2386, %v2388
        %v2442 = vsel %vm2423, %v2384, %v2386
        %v2443 = vsel %vm2423, %v2382, %v2384
        %v2444 = vsel %vm2423, %v2380, %v2382
        %v2445 = vsel %vm2423, %v2378, %v2380
        %v2446 = vsel %vm2423, %v2376, %v2378
        %v2447 = vsel %vm2423, %v2374, %v2376
        %v2448 = vsel %vm2423, %v2372, %v2374
        %v2449 = vsel %vm2423, %v2370, %v2372
        %v2450 = vsel %vm2423, %v2368, %v2370
        %v2451 = vsel %vm2423, %v2366, %v2368
        %v2452 = vsel %vm2423, %v2364, %v2366
        %v2453 = vsel %vm2423, %v2362, %v2364
        %v2454 = vsel %vm2423, %v2360, %v2362
        %v2455 = vsel %vm2423, %v2422, %v2360
        %v2456 = vsel %vm720, 1, 0
        %v2457 = vsel %vm721, 1, 0
        %v2458 = vsel %vm722, 1, 0
        %v2459 = vsel %vm723, 1, 0
        %v2460 = vsel %vm724, 1, 0
        %v2461 = vsel %vm725, 1, 0
        %v2462 = vsel %vm726, 1, 0
        %v2463 = vsel %vm727, 1, 0
        %v2464 = vsel %vm728, 1, 0
        %v2465 = vsel %vm729, 1, 0
        %v2466 = vsel %vm730, 1, 0
        %v2467 = vsel %vm731, 1, 0
        %v2468 = vsel %vm732, 1, 0
        %v2469 = vsel %vm733, 1, 0
        %v2470 = vsel %vm734, 1, 0
        %v2471 = vsel %vm735, 1, 0
        %v2472 = vsel %vm736, 1, 0
        %v2473 = vsel %vm737, 1, 0
        %v2474 = vsel %vm738, 1, 0
        %v2475 = vsel %vm739, 1, 0
        %v2476 = vsel %vm740, 1, 0
        %v2477 = vsel %vm741, 1, 0
        %v2478 = vsel %vm742, 1, 0
        %v2479 = vsel %vm743, 1, 0
        %v2480 = vsel %vm744, 1, 0
        %v2481 = vsel %vm745, 1, 0
        %v2482 = vsel %vm746, 1, 0
        %v2483 = vsel %vm747, 1, 0
        %v2484 = vsel %vm748, 1, 0
        %v2485 = vsel %vm749, 1, 0
        %v2486 = vsel %vm750, 1, 0
        %v2487 = vsel %vm751, 1, 0
        %vm2488 = vcmp.eq.s32.totalorder %v2456, 1
        %vm2489 = vcmp.eq.s32.totalorder %v2457, 1
        %vm2490 = vcmp.eq.s32.totalorder %v2458, 1
        %vm2491 = vcmp.eq.s32.totalorder %v2459, 1
        %vm2492 = vcmp.eq.s32.totalorder %v2460, 1
        %vm2493 = vcmp.eq.s32.totalorder %v2461, 1
        %vm2494 = vcmp.eq.s32.totalorder %v2462, 1
        %vm2495 = vcmp.eq.s32.totalorder %v2463, 1
        %vm2496 = vcmp.eq.s32.totalorder %v2464, 1
        %vm2497 = vcmp.eq.s32.totalorder %v2465, 1
        %vm2498 = vcmp.eq.s32.totalorder %v2466, 1
        %vm2499 = vcmp.eq.s32.totalorder %v2467, 1
        %vm2500 = vcmp.eq.s32.totalorder %v2468, 1
        %vm2501 = vcmp.eq.s32.totalorder %v2469, 1
        %vm2502 = vcmp.eq.s32.totalorder %v2470, 1
        %vm2503 = vcmp.eq.s32.totalorder %v2471, 1
        %vm2504 = vcmp.eq.s32.totalorder %v2472, 1
        %vm2505 = vcmp.eq.s32.totalorder %v2473, 1
        %vm2506 = vcmp.eq.s32.totalorder %v2474, 1
        %vm2507 = vcmp.eq.s32.totalorder %v2475, 1
        %vm2508 = vcmp.eq.s32.totalorder %v2476, 1
        %vm2509 = vcmp.eq.s32.totalorder %v2477, 1
        %vm2510 = vcmp.eq.s32.totalorder %v2478, 1
        %vm2511 = vcmp.eq.s32.totalorder %v2479, 1
        %vm2512 = vcmp.eq.s32.totalorder %v2480, 1
        %vm2513 = vcmp.eq.s32.totalorder %v2481, 1
        %vm2514 = vcmp.eq.s32.totalorder %v2482, 1
        %vm2515 = vcmp.eq.s32.totalorder %v2483, 1
        %vm2516 = vcmp.eq.s32.totalorder %v2484, 1
        %vm2517 = vcmp.eq.s32.totalorder %v2485, 1
        %vm2518 = vcmp.eq.s32.totalorder %v2486, 1
        %vm2519 = vcmp.eq.s32.totalorder %v2487, 1
        %v2520 = vsel %vm2488, %v2454, 0.0
        %v2521 = vsel %vm2489, %v2453, 0.0
        %v2522 = vsel %vm2490, %v2452, 0.0
        %v2523 = vsel %vm2491, %v2451, 0.0
        %v2524 = vsel %vm2492, %v2450, 0.0
        %v2525 = vsel %vm2493, %v2449, 0.0
        %v2526 = vsel %vm2494, %v2448, 0.0
        %v2527 = vsel %vm2495, %v2447, 0.0
        %v2528 = vsel %vm2496, %v2446, 0.0
        %v2529 = vsel %vm2497, %v2445, 0.0
        %v2530 = vsel %vm2498, %v2444, 0.0
        %v2531 = vsel %vm2499, %v2443, 0.0
        %v2532 = vsel %vm2500, %v2442, 0.0
        %v2533 = vsel %vm2501, %v2441, 0.0
        %v2534 = vsel %vm2502, %v2440, 0.0
        %v2535 = vsel %vm2503, %v2439, 0.0
        %v2536 = vsel %vm2504, %v2438, 0.0
        %v2537 = vsel %vm2505, %v2437, 0.0
        %v2538 = vsel %vm2506, %v2436, 0.0
        %v2539 = vsel %vm2507, %v2435, 0.0
        %v2540 = vsel %vm2508, %v2434, 0.0
        %v2541 = vsel %vm2509, %v2433, 0.0
        %v2542 = vsel %vm2510, %v2432, 0.0
        %v2543 = vsel %vm2511, %v2431, 0.0
        %v2544 = vsel %vm2512, %v2430, 0.0
        %v2545 = vsel %vm2513, %v2429, 0.0
        %v2546 = vsel %vm2514, %v2428, 0.0
        %v2547 = vsel %vm2515, %v2427, 0.0
        %v2548 = vsel %vm2516, %v2426, 0.0
        %v2549 = vsel %vm2517, %v2425, 0.0
        %v2550 = vsel %vm2518, %v2424, 0.0
        %v2551 = vsel %vm2519, %v2455, 0.0
        %2552 = vst [vmem:[#allocation2 + $0x800] sm:$0xff] %v2520
        %2553 = vst [vmem:[#allocation2 + $0x808] sm:$0xff] %v2521
        %2554 = vst [vmem:[#allocation2 + $0x810] sm:$0xff] %v2522
        %2555 = vst [vmem:[#allocation2 + $0x818] sm:$0xff] %v2523
        %2556 = vst [vmem:[#allocation2 + $0x820] sm:$0xff] %v2524
        %2557 = vst [vmem:[#allocation2 + $0x828] sm:$0xff] %v2525
        %2558 = vst [vmem:[#allocation2 + $0x830] sm:$0xff] %v2526
        %2559 = vst [vmem:[#allocation2 + $0x838] sm:$0xff] %v2527
        %2560 = vst [vmem:[#allocation2 + $0x840] sm:$0xff] %v2528
        %2561 = vst [vmem:[#allocation2 + $0x848] sm:$0xff] %v2529
        %2562 = vst [vmem:[#allocation2 + $0x850] sm:$0xff] %v2530
        %2563 = vst [vmem:[#allocation2 + $0x858] sm:$0xff] %v2531
        %2564 = vst [vmem:[#allocation2 + $0x860] sm:$0xff] %v2532
        %2565 = vst [vmem:[#allocation2 + $0x868] sm:$0xff] %v2533
        %2566 = vst [vmem:[#allocation2 + $0x870] sm:$0xff] %v2534
        %2567 = vst [vmem:[#allocation2 + $0x878] sm:$0xff] %v2535
        %2568 = vst [vmem:[#allocation2 + $0x880] sm:$0xff] %v2536
        %2569 = vst [vmem:[#allocation2 + $0x888] sm:$0xff] %v2537
        %2570 = vst [vmem:[#allocation2 + $0x890] sm:$0xff] %v2538
        %2571 = vst [vmem:[#allocation2 + $0x898] sm:$0xff] %v2539
        %2572 = vst [vmem:[#allocation2 + $0x8a0] sm:$0xff] %v2540
        %2573 = vst [vmem:[#allocation2 + $0x8a8] sm:$0xff] %v2541
        %2574 = vst [vmem:[#allocation2 + $0x8b0] sm:$0xff] %v2542
        %2575 = vst [vmem:[#allocation2 + $0x8b8] sm:$0xff] %v2543
        %2576 = vst [vmem:[#allocation2 + $0x8c0] sm:$0xff] %v2544
        %2577 = vst [vmem:[#allocation2 + $0x8c8] sm:$0xff] %v2545
        %2578 = vst [vmem:[#allocation2 + $0x8d0] sm:$0xff] %v2546
        %2579 = vst [vmem:[#allocation2 + $0x8d8] sm:$0xff] %v2547
        %2580 = vst [vmem:[#allocation2 + $0x8e0] sm:$0xff] %v2548
        %2581 = vst [vmem:[#allocation2 + $0x8e8] sm:$0xff] %v2549
        %2582 = vst [vmem:[#allocation2 + $0x8f0] sm:$0xff] %v2550
        %2583 = vst [vmem:[#allocation2 + $0x8f8] sm:$0xff] %v2551
        %v2584 = vld [vmem:[%s1] sm:$0xff]
        %v2585 = vld [vmem:[%s1 + $0x8] sm:$0xff]
        %v2586 = vld [vmem:[%s1 + $0x10] sm:$0xff]
        %v2587 = vld [vmem:[%s1 + $0x18] sm:$0xff]
        %v2588 = vld [vmem:[#allocation2] sm:$0xff]
        %v2589 = vld [vmem:[#allocation2 + $0x8] sm:$0xff]
        %v2590 = vld [vmem:[#allocation2 + $0x10] sm:$0xff]
        %v2591 = vld [vmem:[#allocation2 + $0x18] sm:$0xff]
        %v2592 = vld [vmem:[#allocation2 + $0x20] sm:$0xff]
        %v2593 = vld [vmem:[#allocation2 + $0x28] sm:$0xff]
        %v2594 = vld [vmem:[#allocation2 + $0x30] sm:$0xff]
        %v2595 = vld [vmem:[#allocation2 + $0x38] sm:$0xff]
        %v2596 = vld [vmem:[#allocation2 + $0x40] sm:$0xff]
        %v2597 = vld [vmem:[#allocation2 + $0x48] sm:$0xff]
        %v2598 = vld [vmem:[#allocation2 + $0x50] sm:$0xff]
        %v2599 = vld [vmem:[#allocation2 + $0x58] sm:$0xff]
        %v2600 = vld [vmem:[#allocation2 + $0x60] sm:$0xff]
        %v2601 = vld [vmem:[#allocation2 + $0x68] sm:$0xff]
        %v2602 = vld [vmem:[#allocation2 + $0x70] sm:$0xff]
        %v2603 = vld [vmem:[#allocation2 + $0x78] sm:$0xff]
        %v2604 = vld [vmem:[#allocation2 + $0x80] sm:$0xff]
        %v2605 = vld [vmem:[#allocation2 + $0x88] sm:$0xff]
        %v2606 = vld [vmem:[#allocation2 + $0x90] sm:$0xff]
        %v2607 = vld [vmem:[#allocation2 + $0x98] sm:$0xff]
        %v2608 = vld [vmem:[#allocation2 + $0xa0] sm:$0xff]
        %v2609 = vld [vmem:[#allocation2 + $0xa8] sm:$0xff]
        %v2610 = vld [vmem:[#allocation2 + $0xb0] sm:$0xff]
        %v2611 = vld [vmem:[#allocation2 + $0xb8] sm:$0xff]
        %v2612 = vld [vmem:[#allocation2 + $0xc0] sm:$0xff]
        %v2613 = vld [vmem:[#allocation2 + $0xc8] sm:$0xff]
        %v2614 = vld [vmem:[#allocation2 + $0xd0] sm:$0xff]
        %v2615 = vld [vmem:[#allocation2 + $0xd8] sm:$0xff]
        %v2616 = vld [vmem:[#allocation2 + $0xe0] sm:$0xff]
        %v2617 = vld [vmem:[#allocation2 + $0xe8] sm:$0xff]
        %v2618 = vld [vmem:[#allocation2 + $0xf0] sm:$0xff]
        %v2619 = vld [vmem:[#allocation2 + $0xf8] sm:$0xff]
        %v2620 = vld [vmem:[#allocation2 + $0x100] sm:$0xff]
        %v2621 = vld [vmem:[#allocation2 + $0x108] sm:$0xff]
        %v2622 = vld [vmem:[#allocation2 + $0x110] sm:$0xff]
        %v2623 = vld [vmem:[#allocation2 + $0x118] sm:$0xff]
        %v2624 = vld [vmem:[#allocation2 + $0x120] sm:$0xff]
        %v2625 = vld [vmem:[#allocation2 + $0x128] sm:$0xff]
        %v2626 = vld [vmem:[#allocation2 + $0x130] sm:$0xff]
        %v2627 = vld [vmem:[#allocation2 + $0x138] sm:$0xff]
        %v2628 = vld [vmem:[#allocation2 + $0x140] sm:$0xff]
        %v2629 = vld [vmem:[#allocation2 + $0x148] sm:$0xff]
        %v2630 = vld [vmem:[#allocation2 + $0x150] sm:$0xff]
        %v2631 = vld [vmem:[#allocation2 + $0x158] sm:$0xff]
        %v2632 = vld [vmem:[#allocation2 + $0x160] sm:$0xff]
        %v2633 = vld [vmem:[#allocation2 + $0x168] sm:$0xff]
        %v2634 = vld [vmem:[#allocation2 + $0x170] sm:$0xff]
        %v2635 = vld [vmem:[#allocation2 + $0x178] sm:$0xff]
        %v2636 = vld [vmem:[#allocation2 + $0x180] sm:$0xff]
        %v2637 = vld [vmem:[#allocation2 + $0x188] sm:$0xff]
        %v2638 = vld [vmem:[#allocation2 + $0x190] sm:$0xff]
        %v2639 = vld [vmem:[#allocation2 + $0x198] sm:$0xff]
        %v2640 = vld [vmem:[#allocation2 + $0x1a0] sm:$0xff]
        %v2641 = vld [vmem:[#allocation2 + $0x1a8] sm:$0xff]
        %v2642 = vld [vmem:[#allocation2 + $0x1b0] sm:$0xff]
        %v2643 = vld [vmem:[#allocation2 + $0x1b8] sm:$0xff]
        %v2644 = vld [vmem:[#allocation2 + $0x1c0] sm:$0xff]
        %v2645 = vld [vmem:[#allocation2 + $0x1c8] sm:$0xff]
        %v2646 = vld [vmem:[#allocation2 + $0x1d0] sm:$0xff]
        %v2647 = vld [vmem:[#allocation2 + $0x1d8] sm:$0xff]
        %v2648 = vld [vmem:[#allocation2 + $0x1e0] sm:$0xff]
        %v2649 = vld [vmem:[#allocation2 + $0x1e8] sm:$0xff]
        %v2650 = vld [vmem:[#allocation2 + $0x1f0] sm:$0xff]
        %v2651 = vld [vmem:[#allocation2 + $0x1f8] sm:$0xff]
        %v2652 = vld [vmem:[#allocation2 + $0x200] sm:$0xff]
        %v2653 = vld [vmem:[#allocation2 + $0x208] sm:$0xff]
        %v2654 = vld [vmem:[#allocation2 + $0x210] sm:$0xff]
        %v2655 = vld [vmem:[#allocation2 + $0x218] sm:$0xff]
        %v2656 = vld [vmem:[#allocation2 + $0x220] sm:$0xff]
        %v2657 = vld [vmem:[#allocation2 + $0x228] sm:$0xff]
        %v2658 = vld [vmem:[#allocation2 + $0x230] sm:$0xff]
        %v2659 = vld [vmem:[#allocation2 + $0x238] sm:$0xff]
        %v2660 = vld [vmem:[#allocation2 + $0x240] sm:$0xff]
        %v2661 = vld [vmem:[#allocation2 + $0x248] sm:$0xff]
        %v2662 = vld [vmem:[#allocation2 + $0x250] sm:$0xff]
        %v2663 = vld [vmem:[#allocation2 + $0x258] sm:$0xff]
        %v2664 = vld [vmem:[#allocation2 + $0x260] sm:$0xff]
        %v2665 = vld [vmem:[#allocation2 + $0x268] sm:$0xff]
        %v2666 = vld [vmem:[#allocation2 + $0x270] sm:$0xff]
        %v2667 = vld [vmem:[#allocation2 + $0x278] sm:$0xff]
        %v2668 = vld [vmem:[#allocation2 + $0x280] sm:$0xff]
        %v2669 = vld [vmem:[#allocation2 + $0x288] sm:$0xff]
        %v2670 = vld [vmem:[#allocation2 + $0x290] sm:$0xff]
        %v2671 = vld [vmem:[#allocation2 + $0x298] sm:$0xff]
        %v2672 = vld [vmem:[#allocation2 + $0x2a0] sm:$0xff]
        %v2673 = vld [vmem:[#allocation2 + $0x2a8] sm:$0xff]
        %v2674 = vld [vmem:[#allocation2 + $0x2b0] sm:$0xff]
        %v2675 = vld [vmem:[#allocation2 + $0x2b8] sm:$0xff]
        %v2676 = vld [vmem:[#allocation2 + $0x2c0] sm:$0xff]
        %v2677 = vld [vmem:[#allocation2 + $0x2c8] sm:$0xff]
        %v2678 = vld [vmem:[#allocation2 + $0x2d0] sm:$0xff]
        %v2679 = vld [vmem:[#allocation2 + $0x2d8] sm:$0xff]
        %v2680 = vld [vmem:[#allocation2 + $0x2e0] sm:$0xff]
        %v2681 = vld [vmem:[#allocation2 + $0x2e8] sm:$0xff]
        %v2682 = vld [vmem:[#allocation2 + $0x2f0] sm:$0xff]
        %v2683 = vld [vmem:[#allocation2 + $0x2f8] sm:$0xff]
        %v2684 = vld [vmem:[#allocation2 + $0x300] sm:$0xff]
        %v2685 = vld [vmem:[#allocation2 + $0x308] sm:$0xff]
        %v2686 = vld [vmem:[#allocation2 + $0x310] sm:$0xff]
        %v2687 = vld [vmem:[#allocation2 + $0x318] sm:$0xff]
        %v2688 = vld [vmem:[#allocation2 + $0x320] sm:$0xff]
        %v2689 = vld [vmem:[#allocation2 + $0x328] sm:$0xff]
        %v2690 = vld [vmem:[#allocation2 + $0x330] sm:$0xff]
        %v2691 = vld [vmem:[#allocation2 + $0x338] sm:$0xff]
        %v2692 = vld [vmem:[#allocation2 + $0x340] sm:$0xff]
        %v2693 = vld [vmem:[#allocation2 + $0x348] sm:$0xff]
        %v2694 = vld [vmem:[#allocation2 + $0x350] sm:$0xff]
        %v2695 = vld [vmem:[#allocation2 + $0x358] sm:$0xff]
        %v2696 = vld [vmem:[#allocation2 + $0x360] sm:$0xff]
        %v2697 = vld [vmem:[#allocation2 + $0x368] sm:$0xff]
        %v2698 = vld [vmem:[#allocation2 + $0x370] sm:$0xff]
        %v2699 = vld [vmem:[#allocation2 + $0x378] sm:$0xff]
        %v2700 = vld [vmem:[#allocation2 + $0x380] sm:$0xff]
        %v2701 = vld [vmem:[#allocation2 + $0x388] sm:$0xff]
        %v2702 = vld [vmem:[#allocation2 + $0x390] sm:$0xff]
        %v2703 = vld [vmem:[#allocation2 + $0x398] sm:$0xff]
        %v2704 = vld [vmem:[#allocation2 + $0x3a0] sm:$0xff]
        %v2705 = vld [vmem:[#allocation2 + $0x3a8] sm:$0xff]
        %v2706 = vld [vmem:[#allocation2 + $0x3b0] sm:$0xff]
        %v2707 = vld [vmem:[#allocation2 + $0x3b8] sm:$0xff]
        %v2708 = vld [vmem:[#allocation2 + $0x3c0] sm:$0xff]
        %v2709 = vld [vmem:[#allocation2 + $0x3c8] sm:$0xff]
        %v2710 = vld [vmem:[#allocation2 + $0x3d0] sm:$0xff]
        %v2711 = vld [vmem:[#allocation2 + $0x3d8] sm:$0xff]
        %v2712 = vld [vmem:[#allocation2 + $0x3e0] sm:$0xff]
        %v2713 = vld [vmem:[#allocation2 + $0x3e8] sm:$0xff]
        %v2714 = vld [vmem:[#allocation2 + $0x3f0] sm:$0xff]
        %v2715 = vld [vmem:[#allocation2 + $0x3f8] sm:$0xff]
        %v2716 = vld [vmem:[#allocation2 + $0x400] sm:$0xff]
        %v2717 = vld [vmem:[#allocation2 + $0x408] sm:$0xff]
        %v2718 = vld [vmem:[#allocation2 + $0x410] sm:$0xff]
        %v2719 = vld [vmem:[#allocation2 + $0x418] sm:$0xff]
        %v2720 = vld [vmem:[#allocation2 + $0x420] sm:$0xff]
        %v2721 = vld [vmem:[#allocation2 + $0x428] sm:$0xff]
        %v2722 = vld [vmem:[#allocation2 + $0x430] sm:$0xff]
        %v2723 = vld [vmem:[#allocation2 + $0x438] sm:$0xff]
        %v2724 = vld [vmem:[#allocation2 + $0x440] sm:$0xff]
        %v2725 = vld [vmem:[#allocation2 + $0x448] sm:$0xff]
        %v2726 = vld [vmem:[#allocation2 + $0x450] sm:$0xff]
        %v2727 = vld [vmem:[#allocation2 + $0x458] sm:$0xff]
        %v2728 = vld [vmem:[#allocation2 + $0x460] sm:$0xff]
        %v2729 = vld [vmem:[#allocation2 + $0x468] sm:$0xff]
        %v2730 = vld [vmem:[#allocation2 + $0x470] sm:$0xff]
        %v2731 = vld [vmem:[#allocation2 + $0x478] sm:$0xff]
        %v2732 = vld [vmem:[#allocation2 + $0x480] sm:$0xff]
        %v2733 = vld [vmem:[#allocation2 + $0x488] sm:$0xff]
        %v2734 = vld [vmem:[#allocation2 + $0x490] sm:$0xff]
        %v2735 = vld [vmem:[#allocation2 + $0x498] sm:$0xff]
        %v2736 = vld [vmem:[#allocation2 + $0x4a0] sm:$0xff]
        %v2737 = vld [vmem:[#allocation2 + $0x4a8] sm:$0xff]
        %v2738 = vld [vmem:[#allocation2 + $0x4b0] sm:$0xff]
        %v2739 = vld [vmem:[#allocation2 + $0x4b8] sm:$0xff]
        %v2740 = vld [vmem:[#allocation2 + $0x4c0] sm:$0xff]
        %v2741 = vld [vmem:[#allocation2 + $0x4c8] sm:$0xff]
        %v2742 = vld [vmem:[#allocation2 + $0x4d0] sm:$0xff]
        %v2743 = vld [vmem:[#allocation2 + $0x4d8] sm:$0xff]
        %v2744 = vld [vmem:[#allocation2 + $0x4e0] sm:$0xff]
        %v2745 = vld [vmem:[#allocation2 + $0x4e8] sm:$0xff]
        %v2746 = vld [vmem:[#allocation2 + $0x4f0] sm:$0xff]
        %v2747 = vld [vmem:[#allocation2 + $0x4f8] sm:$0xff]
        %v2748 = vld [vmem:[#allocation2 + $0x500] sm:$0xff]
        %v2749 = vld [vmem:[#allocation2 + $0x508] sm:$0xff]
        %v2750 = vld [vmem:[#allocation2 + $0x510] sm:$0xff]
        %v2751 = vld [vmem:[#allocation2 + $0x518] sm:$0xff]
        %v2752 = vld [vmem:[#allocation2 + $0x520] sm:$0xff]
        %v2753 = vld [vmem:[#allocation2 + $0x528] sm:$0xff]
        %v2754 = vld [vmem:[#allocation2 + $0x530] sm:$0xff]
        %v2755 = vld [vmem:[#allocation2 + $0x538] sm:$0xff]
        %v2756 = vld [vmem:[#allocation2 + $0x540] sm:$0xff]
        %v2757 = vld [vmem:[#allocation2 + $0x548] sm:$0xff]
        %v2758 = vld [vmem:[#allocation2 + $0x550] sm:$0xff]
        %v2759 = vld [vmem:[#allocation2 + $0x558] sm:$0xff]
        %v2760 = vld [vmem:[#allocation2 + $0x560] sm:$0xff]
        %v2761 = vld [vmem:[#allocation2 + $0x568] sm:$0xff]
        %v2762 = vld [vmem:[#allocation2 + $0x570] sm:$0xff]
        %v2763 = vld [vmem:[#allocation2 + $0x578] sm:$0xff]
        %v2764 = vld [vmem:[#allocation2 + $0x580] sm:$0xff]
        %v2765 = vld [vmem:[#allocation2 + $0x588] sm:$0xff]
        %v2766 = vld [vmem:[#allocation2 + $0x590] sm:$0xff]
        %v2767 = vld [vmem:[#allocation2 + $0x598] sm:$0xff]
        %v2768 = vld [vmem:[#allocation2 + $0x5a0] sm:$0xff]
        %v2769 = vld [vmem:[#allocation2 + $0x5a8] sm:$0xff]
        %v2770 = vld [vmem:[#allocation2 + $0x5b0] sm:$0xff]
        %v2771 = vld [vmem:[#allocation2 + $0x5b8] sm:$0xff]
        %v2772 = vld [vmem:[#allocation2 + $0x5c0] sm:$0xff]
        %v2773 = vld [vmem:[#allocation2 + $0x5c8] sm:$0xff]
        %v2774 = vld [vmem:[#allocation2 + $0x5d0] sm:$0xff]
        %v2775 = vld [vmem:[#allocation2 + $0x5d8] sm:$0xff]
        %v2776 = vld [vmem:[#allocation2 + $0x5e0] sm:$0xff]
        %v2777 = vld [vmem:[#allocation2 + $0x5e8] sm:$0xff]
        %v2778 = vld [vmem:[#allocation2 + $0x5f0] sm:$0xff]
        %v2779 = vld [vmem:[#allocation2 + $0x5f8] sm:$0xff]
        %v2780 = vld [vmem:[#allocation2 + $0x600] sm:$0xff]
        %v2781 = vld [vmem:[#allocation2 + $0x608] sm:$0xff]
        %v2782 = vld [vmem:[#allocation2 + $0x610] sm:$0xff]
        %v2783 = vld [vmem:[#allocation2 + $0x618] sm:$0xff]
        %v2784 = vld [vmem:[#allocation2 + $0x620] sm:$0xff]
        %v2785 = vld [vmem:[#allocation2 + $0x628] sm:$0xff]
        %v2786 = vld [vmem:[#allocation2 + $0x630] sm:$0xff]
        %v2787 = vld [vmem:[#allocation2 + $0x638] sm:$0xff]
        %v2788 = vld [vmem:[#allocation2 + $0x640] sm:$0xff]
        %v2789 = vld [vmem:[#allocation2 + $0x648] sm:$0xff]
        %v2790 = vld [vmem:[#allocation2 + $0x650] sm:$0xff]
        %v2791 = vld [vmem:[#allocation2 + $0x658] sm:$0xff]
        %v2792 = vld [vmem:[#allocation2 + $0x660] sm:$0xff]
        %v2793 = vld [vmem:[#allocation2 + $0x668] sm:$0xff]
        %v2794 = vld [vmem:[#allocation2 + $0x670] sm:$0xff]
        %v2795 = vld [vmem:[#allocation2 + $0x678] sm:$0xff]
        %v2796 = vld [vmem:[#allocation2 + $0x680] sm:$0xff]
        %v2797 = vld [vmem:[#allocation2 + $0x688] sm:$0xff]
        %v2798 = vld [vmem:[#allocation2 + $0x690] sm:$0xff]
        %v2799 = vld [vmem:[#allocation2 + $0x698] sm:$0xff]
        %v2800 = vld [vmem:[#allocation2 + $0x6a0] sm:$0xff]
        %v2801 = vld [vmem:[#allocation2 + $0x6a8] sm:$0xff]
        %v2802 = vld [vmem:[#allocation2 + $0x6b0] sm:$0xff]
        %v2803 = vld [vmem:[#allocation2 + $0x6b8] sm:$0xff]
        %v2804 = vld [vmem:[#allocation2 + $0x6c0] sm:$0xff]
        %v2805 = vld [vmem:[#allocation2 + $0x6c8] sm:$0xff]
        %v2806 = vld [vmem:[#allocation2 + $0x6d0] sm:$0xff]
        %v2807 = vld [vmem:[#allocation2 + $0x6d8] sm:$0xff]
        %v2808 = vld [vmem:[#allocation2 + $0x6e0] sm:$0xff]
        %v2809 = vld [vmem:[#allocation2 + $0x6e8] sm:$0xff]
        %v2810 = vld [vmem:[#allocation2 + $0x6f0] sm:$0xff]
        %v2811 = vld [vmem:[#allocation2 + $0x6f8] sm:$0xff]
        %v2812 = vld [vmem:[#allocation2 + $0x700] sm:$0xff]
        %v2813 = vld [vmem:[#allocation2 + $0x708] sm:$0xff]
        %v2814 = vld [vmem:[#allocation2 + $0x710] sm:$0xff]
        %v2815 = vld [vmem:[#allocation2 + $0x718] sm:$0xff]
        %v2816 = vld [vmem:[#allocation2 + $0x720] sm:$0xff]
        %v2817 = vld [vmem:[#allocation2 + $0x728] sm:$0xff]
        %v2818 = vld [vmem:[#allocation2 + $0x730] sm:$0xff]
        %v2819 = vld [vmem:[#allocation2 + $0x738] sm:$0xff]
        %v2820 = vld [vmem:[#allocation2 + $0x740] sm:$0xff]
        %v2821 = vld [vmem:[#allocation2 + $0x748] sm:$0xff]
        %v2822 = vld [vmem:[#allocation2 + $0x750] sm:$0xff]
        %v2823 = vld [vmem:[#allocation2 + $0x758] sm:$0xff]
        %v2824 = vld [vmem:[#allocation2 + $0x760] sm:$0xff]
        %v2825 = vld [vmem:[#allocation2 + $0x768] sm:$0xff]
        %v2826 = vld [vmem:[#allocation2 + $0x770] sm:$0xff]
        %v2827 = vld [vmem:[#allocation2 + $0x778] sm:$0xff]
        %v2828 = vld [vmem:[#allocation2 + $0x780] sm:$0xff]
        %v2829 = vld [vmem:[#allocation2 + $0x788] sm:$0xff]
        %v2830 = vld [vmem:[#allocation2 + $0x790] sm:$0xff]
        %v2831 = vld [vmem:[#allocation2 + $0x798] sm:$0xff]
        %v2832 = vld [vmem:[#allocation2 + $0x7a0] sm:$0xff]
        %v2833 = vld [vmem:[#allocation2 + $0x7a8] sm:$0xff]
        %v2834 = vld [vmem:[#allocation2 + $0x7b0] sm:$0xff]
        %v2835 = vld [vmem:[#allocation2 + $0x7b8] sm:$0xff]
        %v2836 = vld [vmem:[#allocation2 + $0x7c0] sm:$0xff]
        %v2837 = vld [vmem:[#allocation2 + $0x7c8] sm:$0xff]
        %v2838 = vld [vmem:[#allocation2 + $0x7d0] sm:$0xff]
        %v2839 = vld [vmem:[#allocation2 + $0x7d8] sm:$0xff]
        %v2840 = vld [vmem:[#allocation2 + $0x7e0] sm:$0xff]
        %v2841 = vld [vmem:[#allocation2 + $0x7e8] sm:$0xff]
        %v2842 = vld [vmem:[#allocation2 + $0x7f0] sm:$0xff]
        %v2843 = vld [vmem:[#allocation2 + $0x7f8] sm:$0xff]
        %v2844 = vld [vmem:[#allocation2 + $0x800] sm:$0xff]
        %v2845 = vld [vmem:[#allocation2 + $0x808] sm:$0xff]
        %v2846 = vld [vmem:[#allocation2 + $0x810] sm:$0xff]
        %v2847 = vld [vmem:[#allocation2 + $0x818] sm:$0xff]
        %v2848 = vld [vmem:[#allocation2 + $0x820] sm:$0xff]
        %v2849 = vld [vmem:[#allocation2 + $0x828] sm:$0xff]
        %v2850 = vld [vmem:[#allocation2 + $0x830] sm:$0xff]
        %v2851 = vld [vmem:[#allocation2 + $0x838] sm:$0xff]
        %v2852 = vld [vmem:[#allocation2 + $0x840] sm:$0xff]
        %v2853 = vld [vmem:[#allocation2 + $0x848] sm:$0xff]
        %v2854 = vld [vmem:[#allocation2 + $0x850] sm:$0xff]
        %v2855 = vld [vmem:[#allocation2 + $0x858] sm:$0xff]
        %v2856 = vld [vmem:[#allocation2 + $0x860] sm:$0xff]
        %v2857 = vld [vmem:[#allocation2 + $0x868] sm:$0xff]
        %v2858 = vld [vmem:[#allocation2 + $0x870] sm:$0xff]
        %v2859 = vld [vmem:[#allocation2 + $0x878] sm:$0xff]
        %v2860 = vld [vmem:[#allocation2 + $0x880] sm:$0xff]
        %v2861 = vld [vmem:[#allocation2 + $0x888] sm:$0xff]
        %v2862 = vld [vmem:[#allocation2 + $0x890] sm:$0xff]
        %v2863 = vld [vmem:[#allocation2 + $0x898] sm:$0xff]
        %v2864 = vld [vmem:[#allocation2 + $0x8a0] sm:$0xff]
        %v2865 = vld [vmem:[#allocation2 + $0x8a8] sm:$0xff]
        %v2866 = vld [vmem:[#allocation2 + $0x8b0] sm:$0xff]
        %v2867 = vld [vmem:[#allocation2 + $0x8b8] sm:$0xff]
        %v2868 = vld [vmem:[#allocation2 + $0x8c0] sm:$0xff]
        %v2869 = vld [vmem:[#allocation2 + $0x8c8] sm:$0xff]
        %v2870 = vld [vmem:[#allocation2 + $0x8d0] sm:$0xff]
        %v2871 = vld [vmem:[#allocation2 + $0x8d8] sm:$0xff]
        %v2872 = vld [vmem:[#allocation2 + $0x8e0] sm:$0xff]
        %v2873 = vld [vmem:[#allocation2 + $0x8e8] sm:$0xff]
        %v2874 = vld [vmem:[#allocation2 + $0x8f0] sm:$0xff]
        %v2875 = vld [vmem:[#allocation2 + $0x8f8] sm:$0xff]
        %v2876 = vld [vmem:[%s2] sm:$0xff]
        %v2877 = vld [vmem:[%s2 + $0x8] sm:$0xff]
        %v2878 = vld [vmem:[%s2 + $0x10] sm:$0xff]
        %v2879 = vld [vmem:[%s2 + $0x18] sm:$0xff]
        %2881 = vset.pattern.permute.xlu0 0
        %2882 = vperm.xlu0 %2881, %v2876
        %v2883 = vpop.permute.xlu0 %2882
        %2886 = vset.pattern.permute.xlu0 0
        %2887 = vperm.xlu0 %2886, %v2877
        %v2888 = vpop.permute.xlu0 %2887
        %2891 = vset.pattern.permute.xlu0 0
        %2892 = vperm.xlu0 %2891, %v2878
        %v2893 = vpop.permute.xlu0 %2892
        %2896 = vset.pattern.permute.xlu0 0
        %2897 = vperm.xlu0 %2896, %v2879
        %v2898 = vpop.permute.xlu0 %2897
        %vm2900 = vcmask 588800
        %v2902 = vsel %vm2900, %v2584, 0
        %v2905 = vsel %vm2900, %v2585, 0
        %v2908 = vsel %vm2900, %v2586, 0
        %v2911 = vsel %vm2900, %v2587, 0
        %2913 = vmatpush.msra.mxu0 0.0
        %2914 = vmatpush.msra.mxu0 0.0
        %2915 = vmatpush.msra.mxu0 0.0
        %2916 = vmatpush.msra.mxu0 0.0
        %2917 = vmatpush.msra.mxu0 0.0
        %2918 = vmatpush.msra.mxu0 0.0
        %2919 = vmatpush.msra.mxu0 0.0
        %2920 = vmatpush.msra.mxu0 %v2844
        %2921 = vmatpush.msra.mxu0 %v2812
        %2922 = vmatpush.msra.mxu0 %v2780
        %2923 = vmatpush.msra.mxu0 %v2748
        %2924 = vmatpush.msra.mxu0 %v2716
        %2925 = vmatpush.msra.mxu0 %v2684
        %2926 = vmatpush.msra.mxu0 %v2652
        %2927 = vmatpush.msra.mxu0 %v2620
        %2928 = vmatpush.msra.mxu0 %v2588
        %2929 = vmatmul.f32.gmra.mxu0 %v2902
        %v2930 = vpop.f32.mrf.mxu0
        %v2931 = vadd.f32 %v2883, %v2930
        %2932 = vmatmul.f32.gmra.mxu0 %v2905
        %v2933 = vpop.f32.mrf.mxu0
        %v2934 = vadd.f32 %v2888, %v2933
        %2935 = vmatmul.f32.gmra.mxu0 %v2908
        %v2936 = vpop.f32.mrf.mxu0
        %v2937 = vadd.f32 %v2893, %v2936
        %2938 = vmatmul.f32.gmra.mxu0 %v2911
        %v2939 = vpop.f32.mrf.mxu0
        %v2940 = vadd.f32 %v2898, %v2939
        %2941 = vdwg.mxu0
        %2942 = vmatpush.msra.mxu0 0.0
        %2943 = vmatpush.msra.mxu0 0.0
        %2944 = vmatpush.msra.mxu0 0.0
        %2945 = vmatpush.msra.mxu0 0.0
        %2946 = vmatpush.msra.mxu0 0.0
        %2947 = vmatpush.msra.mxu0 0.0
        %2948 = vmatpush.msra.mxu0 0.0
        %2949 = vmatpush.msra.mxu0 %v2845
        %2950 = vmatpush.msra.mxu0 %v2813
        %2951 = vmatpush.msra.mxu0 %v2781
        %2952 = vmatpush.msra.mxu0 %v2749
        %2953 = vmatpush.msra.mxu0 %v2717
        %2954 = vmatpush.msra.mxu0 %v2685
        %2955 = vmatpush.msra.mxu0 %v2653
        %2956 = vmatpush.msra.mxu0 %v2621
        %2957 = vmatpush.msra.mxu0 %v2589
        %2958 = vmatmul.f32.gmra.mxu0 %v2902
        %v2959 = vpop.f32.mrf.mxu0
        %v2960 = vadd.f32 %v2883, %v2959
        %2961 = vmatmul.f32.gmra.mxu0 %v2905
        %v2962 = vpop.f32.mrf.mxu0
        %v2963 = vadd.f32 %v2888, %v2962
        %2964 = vmatmul.f32.gmra.mxu0 %v2908
        %v2965 = vpop.f32.mrf.mxu0
        %v2966 = vadd.f32 %v2893, %v2965
        %2967 = vmatmul.f32.gmra.mxu0 %v2911
        %v2968 = vpop.f32.mrf.mxu0
        %v2969 = vadd.f32 %v2898, %v2968
        %2970 = vdwg.mxu0
        %2971 = vmatpush.msra.mxu0 0.0
        %2972 = vmatpush.msra.mxu0 0.0
        %2973 = vmatpush.msra.mxu0 0.0
        %2974 = vmatpush.msra.mxu0 0.0
        %2975 = vmatpush.msra.mxu0 0.0
        %2976 = vmatpush.msra.mxu0 0.0
        %2977 = vmatpush.msra.mxu0 0.0
        %2978 = vmatpush.msra.mxu0 %v2846
        %2979 = vmatpush.msra.mxu0 %v2814
        %2980 = vmatpush.msra.mxu0 %v2782
        %2981 = vmatpush.msra.mxu0 %v2750
        %2982 = vmatpush.msra.mxu0 %v2718
        %2983 = vmatpush.msra.mxu0 %v2686
        %2984 = vmatpush.msra.mxu0 %v2654
        %2985 = vmatpush.msra.mxu0 %v2622
        %2986 = vmatpush.msra.mxu0 %v2590
        %2987 = vmatmul.f32.gmra.mxu0 %v2902
        %v2988 = vpop.f32.mrf.mxu0
        %v2989 = vadd.f32 %v2883, %v2988
        %2990 = vmatmul.f32.gmra.mxu0 %v2905
        %v2991 = vpop.f32.mrf.mxu0
        %v2992 = vadd.f32 %v2888, %v2991
        %2993 = vmatmul.f32.gmra.mxu0 %v2908
        %v2994 = vpop.f32.mrf.mxu0
        %v2995 = vadd.f32 %v2893, %v2994
        %2996 = vmatmul.f32.gmra.mxu0 %v2911
        %v2997 = vpop.f32.mrf.mxu0
        %v2998 = vadd.f32 %v2898, %v2997
        %2999 = vdwg.mxu0
        %3000 = vmatpush.msra.mxu0 0.0
        %3001 = vmatpush.msra.mxu0 0.0
        %3002 = vmatpush.msra.mxu0 0.0
        %3003 = vmatpush.msra.mxu0 0.0
        %3004 = vmatpush.msra.mxu0 0.0
        %3005 = vmatpush.msra.mxu0 0.0
        %3006 = vmatpush.msra.mxu0 0.0
        %3007 = vmatpush.msra.mxu0 %v2847
        %3008 = vmatpush.msra.mxu0 %v2815
        %3009 = vmatpush.msra.mxu0 %v2783
        %3010 = vmatpush.msra.mxu0 %v2751
        %3011 = vmatpush.msra.mxu0 %v2719
        %3012 = vmatpush.msra.mxu0 %v2687
        %3013 = vmatpush.msra.mxu0 %v2655
        %3014 = vmatpush.msra.mxu0 %v2623
        %3015 = vmatpush.msra.mxu0 %v2591
        %3016 = vmatmul.f32.gmra.mxu0 %v2902
        %v3017 = vpop.f32.mrf.mxu0
        %v3018 = vadd.f32 %v2883, %v3017
        %3019 = vmatmul.f32.gmra.mxu0 %v2905
        %v3020 = vpop.f32.mrf.mxu0
        %v3021 = vadd.f32 %v2888, %v3020
        %3022 = vmatmul.f32.gmra.mxu0 %v2908
        %v3023 = vpop.f32.mrf.mxu0
        %v3024 = vadd.f32 %v2893, %v3023
        %3025 = vmatmul.f32.gmra.mxu0 %v2911
        %v3026 = vpop.f32.mrf.mxu0
        %v3027 = vadd.f32 %v2898, %v3026
        %3028 = vdwg.mxu0
        %3029 = vmatpush.msra.mxu0 0.0
        %3030 = vmatpush.msra.mxu0 0.0
        %3031 = vmatpush.msra.mxu0 0.0
        %3032 = vmatpush.msra.mxu0 0.0
        %3033 = vmatpush.msra.mxu0 0.0
        %3034 = vmatpush.msra.mxu0 0.0
        %3035 = vmatpush.msra.mxu0 0.0
        %3036 = vmatpush.msra.mxu0 %v2848
        %3037 = vmatpush.msra.mxu0 %v2816
        %3038 = vmatpush.msra.mxu0 %v2784
        %3039 = vmatpush.msra.mxu0 %v2752
        %3040 = vmatpush.msra.mxu0 %v2720
        %3041 = vmatpush.msra.mxu0 %v2688
        %3042 = vmatpush.msra.mxu0 %v2656
        %3043 = vmatpush.msra.mxu0 %v2624
        %3044 = vmatpush.msra.mxu0 %v2592
        %3045 = vmatmul.f32.gmra.mxu0 %v2902
        %v3046 = vpop.f32.mrf.mxu0
        %v3047 = vadd.f32 %v2883, %v3046
        %3048 = vmatmul.f32.gmra.mxu0 %v2905
        %v3049 = vpop.f32.mrf.mxu0
        %v3050 = vadd.f32 %v2888, %v3049
        %3051 = vmatmul.f32.gmra.mxu0 %v2908
        %v3052 = vpop.f32.mrf.mxu0
        %v3053 = vadd.f32 %v2893, %v3052
        %3054 = vmatmul.f32.gmra.mxu0 %v2911
        %v3055 = vpop.f32.mrf.mxu0
        %v3056 = vadd.f32 %v2898, %v3055
        %3057 = vdwg.mxu0
        %3058 = vmatpush.msra.mxu0 0.0
        %3059 = vmatpush.msra.mxu0 0.0
        %3060 = vmatpush.msra.mxu0 0.0
        %3061 = vmatpush.msra.mxu0 0.0
        %3062 = vmatpush.msra.mxu0 0.0
        %3063 = vmatpush.msra.mxu0 0.0
        %3064 = vmatpush.msra.mxu0 0.0
        %3065 = vmatpush.msra.mxu0 %v2849
        %3066 = vmatpush.msra.mxu0 %v2817
        %3067 = vmatpush.msra.mxu0 %v2785
        %3068 = vmatpush.msra.mxu0 %v2753
        %3069 = vmatpush.msra.mxu0 %v2721
        %3070 = vmatpush.msra.mxu0 %v2689
        %3071 = vmatpush.msra.mxu0 %v2657
        %3072 = vmatpush.msra.mxu0 %v2625
        %3073 = vmatpush.msra.mxu0 %v2593
        %3074 = vmatmul.f32.gmra.mxu0 %v2902
        %v3075 = vpop.f32.mrf.mxu0
        %v3076 = vadd.f32 %v2883, %v3075
        %3077 = vmatmul.f32.gmra.mxu0 %v2905
        %v3078 = vpop.f32.mrf.mxu0
        %v3079 = vadd.f32 %v2888, %v3078
        %3080 = vmatmul.f32.gmra.mxu0 %v2908
        %v3081 = vpop.f32.mrf.mxu0
        %v3082 = vadd.f32 %v2893, %v3081
        %3083 = vmatmul.f32.gmra.mxu0 %v2911
        %v3084 = vpop.f32.mrf.mxu0
        %v3085 = vadd.f32 %v2898, %v3084
        %3086 = vdwg.mxu0
        %3087 = vmatpush.msra.mxu0 0.0
        %3088 = vmatpush.msra.mxu0 0.0
        %3089 = vmatpush.msra.mxu0 0.0
        %3090 = vmatpush.msra.mxu0 0.0
        %3091 = vmatpush.msra.mxu0 0.0
        %3092 = vmatpush.msra.mxu0 0.0
        %3093 = vmatpush.msra.mxu0 0.0
        %3094 = vmatpush.msra.mxu0 %v2850
        %3095 = vmatpush.msra.mxu0 %v2818
        %3096 = vmatpush.msra.mxu0 %v2786
        %3097 = vmatpush.msra.mxu0 %v2754
        %3098 = vmatpush.msra.mxu0 %v2722
        %3099 = vmatpush.msra.mxu0 %v2690
        %3100 = vmatpush.msra.mxu0 %v2658
        %3101 = vmatpush.msra.mxu0 %v2626
        %3102 = vmatpush.msra.mxu0 %v2594
        %3103 = vmatmul.f32.gmra.mxu0 %v2902
        %v3104 = vpop.f32.mrf.mxu0
        %v3105 = vadd.f32 %v2883, %v3104
        %3106 = vmatmul.f32.gmra.mxu0 %v2905
        %v3107 = vpop.f32.mrf.mxu0
        %v3108 = vadd.f32 %v2888, %v3107
        %3109 = vmatmul.f32.gmra.mxu0 %v2908
        %v3110 = vpop.f32.mrf.mxu0
        %v3111 = vadd.f32 %v2893, %v3110
        %3112 = vmatmul.f32.gmra.mxu0 %v2911
        %v3113 = vpop.f32.mrf.mxu0
        %v3114 = vadd.f32 %v2898, %v3113
        %3115 = vdwg.mxu0
        %3116 = vmatpush.msra.mxu0 0.0
        %3117 = vmatpush.msra.mxu0 0.0
        %3118 = vmatpush.msra.mxu0 0.0
        %3119 = vmatpush.msra.mxu0 0.0
        %3120 = vmatpush.msra.mxu0 0.0
        %3121 = vmatpush.msra.mxu0 0.0
        %3122 = vmatpush.msra.mxu0 0.0
        %3123 = vmatpush.msra.mxu0 %v2851
        %3124 = vmatpush.msra.mxu0 %v2819
        %3125 = vmatpush.msra.mxu0 %v2787
        %3126 = vmatpush.msra.mxu0 %v2755
        %3127 = vmatpush.msra.mxu0 %v2723
        %3128 = vmatpush.msra.mxu0 %v2691
        %3129 = vmatpush.msra.mxu0 %v2659
        %3130 = vmatpush.msra.mxu0 %v2627
        %3131 = vmatpush.msra.mxu0 %v2595
        %3132 = vmatmul.f32.gmra.mxu0 %v2902
        %v3133 = vpop.f32.mrf.mxu0
        %v3134 = vadd.f32 %v2883, %v3133
        %3135 = vmatmul.f32.gmra.mxu0 %v2905
        %v3136 = vpop.f32.mrf.mxu0
        %v3137 = vadd.f32 %v2888, %v3136
        %3138 = vmatmul.f32.gmra.mxu0 %v2908
        %v3139 = vpop.f32.mrf.mxu0
        %v3140 = vadd.f32 %v2893, %v3139
        %3141 = vmatmul.f32.gmra.mxu0 %v2911
        %v3142 = vpop.f32.mrf.mxu0
        %v3143 = vadd.f32 %v2898, %v3142
        %3144 = vdwg.mxu0
        %3145 = vmatpush.msra.mxu0 0.0
        %3146 = vmatpush.msra.mxu0 0.0
        %3147 = vmatpush.msra.mxu0 0.0
        %3148 = vmatpush.msra.mxu0 0.0
        %3149 = vmatpush.msra.mxu0 0.0
        %3150 = vmatpush.msra.mxu0 0.0
        %3151 = vmatpush.msra.mxu0 0.0
        %3152 = vmatpush.msra.mxu0 %v2852
        %3153 = vmatpush.msra.mxu0 %v2820
        %3154 = vmatpush.msra.mxu0 %v2788
        %3155 = vmatpush.msra.mxu0 %v2756
        %3156 = vmatpush.msra.mxu0 %v2724
        %3157 = vmatpush.msra.mxu0 %v2692
        %3158 = vmatpush.msra.mxu0 %v2660
        %3159 = vmatpush.msra.mxu0 %v2628
        %3160 = vmatpush.msra.mxu0 %v2596
        %3161 = vmatmul.f32.gmra.mxu0 %v2902
        %v3162 = vpop.f32.mrf.mxu0
        %v3163 = vadd.f32 %v2883, %v3162
        %3164 = vmatmul.f32.gmra.mxu0 %v2905
        %v3165 = vpop.f32.mrf.mxu0
        %v3166 = vadd.f32 %v2888, %v3165
        %3167 = vmatmul.f32.gmra.mxu0 %v2908
        %v3168 = vpop.f32.mrf.mxu0
        %v3169 = vadd.f32 %v2893, %v3168
        %3170 = vmatmul.f32.gmra.mxu0 %v2911
        %v3171 = vpop.f32.mrf.mxu0
        %v3172 = vadd.f32 %v2898, %v3171
        %3173 = vdwg.mxu0
        %3174 = vmatpush.msra.mxu0 0.0
        %3175 = vmatpush.msra.mxu0 0.0
        %3176 = vmatpush.msra.mxu0 0.0
        %3177 = vmatpush.msra.mxu0 0.0
        %3178 = vmatpush.msra.mxu0 0.0
        %3179 = vmatpush.msra.mxu0 0.0
        %3180 = vmatpush.msra.mxu0 0.0
        %3181 = vmatpush.msra.mxu0 %v2853
        %3182 = vmatpush.msra.mxu0 %v2821
        %3183 = vmatpush.msra.mxu0 %v2789
        %3184 = vmatpush.msra.mxu0 %v2757
        %3185 = vmatpush.msra.mxu0 %v2725
        %3186 = vmatpush.msra.mxu0 %v2693
        %3187 = vmatpush.msra.mxu0 %v2661
        %3188 = vmatpush.msra.mxu0 %v2629
        %3189 = vmatpush.msra.mxu0 %v2597
        %3190 = vmatmul.f32.gmra.mxu0 %v2902
        %v3191 = vpop.f32.mrf.mxu0
        %v3192 = vadd.f32 %v2883, %v3191
        %3193 = vmatmul.f32.gmra.mxu0 %v2905
        %v3194 = vpop.f32.mrf.mxu0
        %v3195 = vadd.f32 %v2888, %v3194
        %3196 = vmatmul.f32.gmra.mxu0 %v2908
        %v3197 = vpop.f32.mrf.mxu0
        %v3198 = vadd.f32 %v2893, %v3197
        %3199 = vmatmul.f32.gmra.mxu0 %v2911
        %v3200 = vpop.f32.mrf.mxu0
        %v3201 = vadd.f32 %v2898, %v3200
        %3202 = vdwg.mxu0
        %3203 = vmatpush.msra.mxu0 0.0
        %3204 = vmatpush.msra.mxu0 0.0
        %3205 = vmatpush.msra.mxu0 0.0
        %3206 = vmatpush.msra.mxu0 0.0
        %3207 = vmatpush.msra.mxu0 0.0
        %3208 = vmatpush.msra.mxu0 0.0
        %3209 = vmatpush.msra.mxu0 0.0
        %3210 = vmatpush.msra.mxu0 %v2854
        %3211 = vmatpush.msra.mxu0 %v2822
        %3212 = vmatpush.msra.mxu0 %v2790
        %3213 = vmatpush.msra.mxu0 %v2758
        %3214 = vmatpush.msra.mxu0 %v2726
        %3215 = vmatpush.msra.mxu0 %v2694
        %3216 = vmatpush.msra.mxu0 %v2662
        %3217 = vmatpush.msra.mxu0 %v2630
        %3218 = vmatpush.msra.mxu0 %v2598
        %3219 = vmatmul.f32.gmra.mxu0 %v2902
        %v3220 = vpop.f32.mrf.mxu0
        %v3221 = vadd.f32 %v2883, %v3220
        %3222 = vmatmul.f32.gmra.mxu0 %v2905
        %v3223 = vpop.f32.mrf.mxu0
        %v3224 = vadd.f32 %v2888, %v3223
        %3225 = vmatmul.f32.gmra.mxu0 %v2908
        %v3226 = vpop.f32.mrf.mxu0
        %v3227 = vadd.f32 %v2893, %v3226
        %3228 = vmatmul.f32.gmra.mxu0 %v2911
        %v3229 = vpop.f32.mrf.mxu0
        %v3230 = vadd.f32 %v2898, %v3229
        %3231 = vdwg.mxu0
        %3232 = vmatpush.msra.mxu0 0.0
        %3233 = vmatpush.msra.mxu0 0.0
        %3234 = vmatpush.msra.mxu0 0.0
        %3235 = vmatpush.msra.mxu0 0.0
        %3236 = vmatpush.msra.mxu0 0.0
        %3237 = vmatpush.msra.mxu0 0.0
        %3238 = vmatpush.msra.mxu0 0.0
        %3239 = vmatpush.msra.mxu0 %v2855
        %3240 = vmatpush.msra.mxu0 %v2823
        %3241 = vmatpush.msra.mxu0 %v2791
        %3242 = vmatpush.msra.mxu0 %v2759
        %3243 = vmatpush.msra.mxu0 %v2727
        %3244 = vmatpush.msra.mxu0 %v2695
        %3245 = vmatpush.msra.mxu0 %v2663
        %3246 = vmatpush.msra.mxu0 %v2631
        %3247 = vmatpush.msra.mxu0 %v2599
        %3248 = vmatmul.f32.gmra.mxu0 %v2902
        %v3249 = vpop.f32.mrf.mxu0
        %v3250 = vadd.f32 %v2883, %v3249
        %3251 = vmatmul.f32.gmra.mxu0 %v2905
        %v3252 = vpop.f32.mrf.mxu0
        %v3253 = vadd.f32 %v2888, %v3252
        %3254 = vmatmul.f32.gmra.mxu0 %v2908
        %v3255 = vpop.f32.mrf.mxu0
        %v3256 = vadd.f32 %v2893, %v3255
        %3257 = vmatmul.f32.gmra.mxu0 %v2911
        %v3258 = vpop.f32.mrf.mxu0
        %v3259 = vadd.f32 %v2898, %v3258
        %3260 = vdwg.mxu0
        %3261 = vmatpush.msra.mxu0 0.0
        %3262 = vmatpush.msra.mxu0 0.0
        %3263 = vmatpush.msra.mxu0 0.0
        %3264 = vmatpush.msra.mxu0 0.0
        %3265 = vmatpush.msra.mxu0 0.0
        %3266 = vmatpush.msra.mxu0 0.0
        %3267 = vmatpush.msra.mxu0 0.0
        %3268 = vmatpush.msra.mxu0 %v2856
        %3269 = vmatpush.msra.mxu0 %v2824
        %3270 = vmatpush.msra.mxu0 %v2792
        %3271 = vmatpush.msra.mxu0 %v2760
        %3272 = vmatpush.msra.mxu0 %v2728
        %3273 = vmatpush.msra.mxu0 %v2696
        %3274 = vmatpush.msra.mxu0 %v2664
        %3275 = vmatpush.msra.mxu0 %v2632
        %3276 = vmatpush.msra.mxu0 %v2600
        %3277 = vmatmul.f32.gmra.mxu0 %v2902
        %v3278 = vpop.f32.mrf.mxu0
        %v3279 = vadd.f32 %v2883, %v3278
        %3280 = vmatmul.f32.gmra.mxu0 %v2905
        %v3281 = vpop.f32.mrf.mxu0
        %v3282 = vadd.f32 %v2888, %v3281
        %3283 = vmatmul.f32.gmra.mxu0 %v2908
        %v3284 = vpop.f32.mrf.mxu0
        %v3285 = vadd.f32 %v2893, %v3284
        %3286 = vmatmul.f32.gmra.mxu0 %v2911
        %v3287 = vpop.f32.mrf.mxu0
        %v3288 = vadd.f32 %v2898, %v3287
        %3289 = vdwg.mxu0
        %3290 = vmatpush.msra.mxu0 0.0
        %3291 = vmatpush.msra.mxu0 0.0
        %3292 = vmatpush.msra.mxu0 0.0
        %3293 = vmatpush.msra.mxu0 0.0
        %3294 = vmatpush.msra.mxu0 0.0
        %3295 = vmatpush.msra.mxu0 0.0
        %3296 = vmatpush.msra.mxu0 0.0
        %3297 = vmatpush.msra.mxu0 %v2857
        %3298 = vmatpush.msra.mxu0 %v2825
        %3299 = vmatpush.msra.mxu0 %v2793
        %3300 = vmatpush.msra.mxu0 %v2761
        %3301 = vmatpush.msra.mxu0 %v2729
        %3302 = vmatpush.msra.mxu0 %v2697
        %3303 = vmatpush.msra.mxu0 %v2665
        %3304 = vmatpush.msra.mxu0 %v2633
        %3305 = vmatpush.msra.mxu0 %v2601
        %3306 = vmatmul.f32.gmra.mxu0 %v2902
        %v3307 = vpop.f32.mrf.mxu0
        %v3308 = vadd.f32 %v2883, %v3307
        %3309 = vmatmul.f32.gmra.mxu0 %v2905
        %v3310 = vpop.f32.mrf.mxu0
        %v3311 = vadd.f32 %v2888, %v3310
        %3312 = vmatmul.f32.gmra.mxu0 %v2908
        %v3313 = vpop.f32.mrf.mxu0
        %v3314 = vadd.f32 %v2893, %v3313
        %3315 = vmatmul.f32.gmra.mxu0 %v2911
        %v3316 = vpop.f32.mrf.mxu0
        %v3317 = vadd.f32 %v2898, %v3316
        %3318 = vdwg.mxu0
        %3319 = vmatpush.msra.mxu0 0.0
        %3320 = vmatpush.msra.mxu0 0.0
        %3321 = vmatpush.msra.mxu0 0.0
        %3322 = vmatpush.msra.mxu0 0.0
        %3323 = vmatpush.msra.mxu0 0.0
        %3324 = vmatpush.msra.mxu0 0.0
        %3325 = vmatpush.msra.mxu0 0.0
        %3326 = vmatpush.msra.mxu0 %v2858
        %3327 = vmatpush.msra.mxu0 %v2826
        %3328 = vmatpush.msra.mxu0 %v2794
        %3329 = vmatpush.msra.mxu0 %v2762
        %3330 = vmatpush.msra.mxu0 %v2730
        %3331 = vmatpush.msra.mxu0 %v2698
        %3332 = vmatpush.msra.mxu0 %v2666
        %3333 = vmatpush.msra.mxu0 %v2634
        %3334 = vmatpush.msra.mxu0 %v2602
        %3335 = vmatmul.f32.gmra.mxu0 %v2902
        %v3336 = vpop.f32.mrf.mxu0
        %v3337 = vadd.f32 %v2883, %v3336
        %3338 = vmatmul.f32.gmra.mxu0 %v2905
        %v3339 = vpop.f32.mrf.mxu0
        %v3340 = vadd.f32 %v2888, %v3339
        %3341 = vmatmul.f32.gmra.mxu0 %v2908
        %v3342 = vpop.f32.mrf.mxu0
        %v3343 = vadd.f32 %v2893, %v3342
        %3344 = vmatmul.f32.gmra.mxu0 %v2911
        %v3345 = vpop.f32.mrf.mxu0
        %v3346 = vadd.f32 %v2898, %v3345
        %3347 = vdwg.mxu0
        %3348 = vmatpush.msra.mxu0 0.0
        %3349 = vmatpush.msra.mxu0 0.0
        %3350 = vmatpush.msra.mxu0 0.0
        %3351 = vmatpush.msra.mxu0 0.0
        %3352 = vmatpush.msra.mxu0 0.0
        %3353 = vmatpush.msra.mxu0 0.0
        %3354 = vmatpush.msra.mxu0 0.0
        %3355 = vmatpush.msra.mxu0 %v2859
        %3356 = vmatpush.msra.mxu0 %v2827
        %3357 = vmatpush.msra.mxu0 %v2795
        %3358 = vmatpush.msra.mxu0 %v2763
        %3359 = vmatpush.msra.mxu0 %v2731
        %3360 = vmatpush.msra.mxu0 %v2699
        %3361 = vmatpush.msra.mxu0 %v2667
        %3362 = vmatpush.msra.mxu0 %v2635
        %3363 = vmatpush.msra.mxu0 %v2603
        %3364 = vmatmul.f32.gmra.mxu0 %v2902
        %v3365 = vpop.f32.mrf.mxu0
        %v3366 = vadd.f32 %v2883, %v3365
        %3367 = vmatmul.f32.gmra.mxu0 %v2905
        %v3368 = vpop.f32.mrf.mxu0
        %v3369 = vadd.f32 %v2888, %v3368
        %3370 = vmatmul.f32.gmra.mxu0 %v2908
        %v3371 = vpop.f32.mrf.mxu0
        %v3372 = vadd.f32 %v2893, %v3371
        %3373 = vmatmul.f32.gmra.mxu0 %v2911
        %v3374 = vpop.f32.mrf.mxu0
        %v3375 = vadd.f32 %v2898, %v3374
        %3376 = vdwg.mxu0
        %3377 = vmatpush.msra.mxu0 0.0
        %3378 = vmatpush.msra.mxu0 0.0
        %3379 = vmatpush.msra.mxu0 0.0
        %3380 = vmatpush.msra.mxu0 0.0
        %3381 = vmatpush.msra.mxu0 0.0
        %3382 = vmatpush.msra.mxu0 0.0
        %3383 = vmatpush.msra.mxu0 0.0
        %3384 = vmatpush.msra.mxu0 %v2860
        %3385 = vmatpush.msra.mxu0 %v2828
        %3386 = vmatpush.msra.mxu0 %v2796
        %3387 = vmatpush.msra.mxu0 %v2764
        %3388 = vmatpush.msra.mxu0 %v2732
        %3389 = vmatpush.msra.mxu0 %v2700
        %3390 = vmatpush.msra.mxu0 %v2668
        %3391 = vmatpush.msra.mxu0 %v2636
        %3392 = vmatpush.msra.mxu0 %v2604
        %3393 = vmatmul.f32.gmra.mxu0 %v2902
        %v3394 = vpop.f32.mrf.mxu0
        %v3395 = vadd.f32 %v2883, %v3394
        %3396 = vmatmul.f32.gmra.mxu0 %v2905
        %v3397 = vpop.f32.mrf.mxu0
        %v3398 = vadd.f32 %v2888, %v3397
        %3399 = vmatmul.f32.gmra.mxu0 %v2908
        %v3400 = vpop.f32.mrf.mxu0
        %v3401 = vadd.f32 %v2893, %v3400
        %3402 = vmatmul.f32.gmra.mxu0 %v2911
        %v3403 = vpop.f32.mrf.mxu0
        %v3404 = vadd.f32 %v2898, %v3403
        %3405 = vdwg.mxu0
        %3406 = vmatpush.msra.mxu0 0.0
        %3407 = vmatpush.msra.mxu0 0.0
        %3408 = vmatpush.msra.mxu0 0.0
        %3409 = vmatpush.msra.mxu0 0.0
        %3410 = vmatpush.msra.mxu0 0.0
        %3411 = vmatpush.msra.mxu0 0.0
        %3412 = vmatpush.msra.mxu0 0.0
        %3413 = vmatpush.msra.mxu0 %v2861
        %3414 = vmatpush.msra.mxu0 %v2829
        %3415 = vmatpush.msra.mxu0 %v2797
        %3416 = vmatpush.msra.mxu0 %v2765
        %3417 = vmatpush.msra.mxu0 %v2733
        %3418 = vmatpush.msra.mxu0 %v2701
        %3419 = vmatpush.msra.mxu0 %v2669
        %3420 = vmatpush.msra.mxu0 %v2637
        %3421 = vmatpush.msra.mxu0 %v2605
        %3422 = vmatmul.f32.gmra.mxu0 %v2902
        %v3423 = vpop.f32.mrf.mxu0
        %v3424 = vadd.f32 %v2883, %v3423
        %3425 = vmatmul.f32.gmra.mxu0 %v2905
        %v3426 = vpop.f32.mrf.mxu0
        %v3427 = vadd.f32 %v2888, %v3426
        %3428 = vmatmul.f32.gmra.mxu0 %v2908
        %v3429 = vpop.f32.mrf.mxu0
        %v3430 = vadd.f32 %v2893, %v3429
        %3431 = vmatmul.f32.gmra.mxu0 %v2911
        %v3432 = vpop.f32.mrf.mxu0
        %v3433 = vadd.f32 %v2898, %v3432
        %3434 = vdwg.mxu0
        %3435 = vmatpush.msra.mxu0 0.0
        %3436 = vmatpush.msra.mxu0 0.0
        %3437 = vmatpush.msra.mxu0 0.0
        %3438 = vmatpush.msra.mxu0 0.0
        %3439 = vmatpush.msra.mxu0 0.0
        %3440 = vmatpush.msra.mxu0 0.0
        %3441 = vmatpush.msra.mxu0 0.0
        %3442 = vmatpush.msra.mxu0 %v2862
        %3443 = vmatpush.msra.mxu0 %v2830
        %3444 = vmatpush.msra.mxu0 %v2798
        %3445 = vmatpush.msra.mxu0 %v2766
        %3446 = vmatpush.msra.mxu0 %v2734
        %3447 = vmatpush.msra.mxu0 %v2702
        %3448 = vmatpush.msra.mxu0 %v2670
        %3449 = vmatpush.msra.mxu0 %v2638
        %3450 = vmatpush.msra.mxu0 %v2606
        %3451 = vmatmul.f32.gmra.mxu0 %v2902
        %v3452 = vpop.f32.mrf.mxu0
        %v3453 = vadd.f32 %v2883, %v3452
        %3454 = vmatmul.f32.gmra.mxu0 %v2905
        %v3455 = vpop.f32.mrf.mxu0
        %v3456 = vadd.f32 %v2888, %v3455
        %3457 = vmatmul.f32.gmra.mxu0 %v2908
        %v3458 = vpop.f32.mrf.mxu0
        %v3459 = vadd.f32 %v2893, %v3458
        %3460 = vmatmul.f32.gmra.mxu0 %v2911
        %v3461 = vpop.f32.mrf.mxu0
        %v3462 = vadd.f32 %v2898, %v3461
        %3463 = vdwg.mxu0
        %3464 = vmatpush.msra.mxu0 0.0
        %3465 = vmatpush.msra.mxu0 0.0
        %3466 = vmatpush.msra.mxu0 0.0
        %3467 = vmatpush.msra.mxu0 0.0
        %3468 = vmatpush.msra.mxu0 0.0
        %3469 = vmatpush.msra.mxu0 0.0
        %3470 = vmatpush.msra.mxu0 0.0
        %3471 = vmatpush.msra.mxu0 %v2863
        %3472 = vmatpush.msra.mxu0 %v2831
        %3473 = vmatpush.msra.mxu0 %v2799
        %3474 = vmatpush.msra.mxu0 %v2767
        %3475 = vmatpush.msra.mxu0 %v2735
        %3476 = vmatpush.msra.mxu0 %v2703
        %3477 = vmatpush.msra.mxu0 %v2671
        %3478 = vmatpush.msra.mxu0 %v2639
        %3479 = vmatpush.msra.mxu0 %v2607
        %3480 = vmatmul.f32.gmra.mxu0 %v2902
        %v3481 = vpop.f32.mrf.mxu0
        %v3482 = vadd.f32 %v2883, %v3481
        %3483 = vmatmul.f32.gmra.mxu0 %v2905
        %v3484 = vpop.f32.mrf.mxu0
        %v3485 = vadd.f32 %v2888, %v3484
        %3486 = vmatmul.f32.gmra.mxu0 %v2908
        %v3487 = vpop.f32.mrf.mxu0
        %v3488 = vadd.f32 %v2893, %v3487
        %3489 = vmatmul.f32.gmra.mxu0 %v2911
        %v3490 = vpop.f32.mrf.mxu0
        %v3491 = vadd.f32 %v2898, %v3490
        %3492 = vdwg.mxu0
        %3493 = vmatpush.msra.mxu0 0.0
        %3494 = vmatpush.msra.mxu0 0.0
        %3495 = vmatpush.msra.mxu0 0.0
        %3496 = vmatpush.msra.mxu0 0.0
        %3497 = vmatpush.msra.mxu0 0.0
        %3498 = vmatpush.msra.mxu0 0.0
        %3499 = vmatpush.msra.mxu0 0.0
        %3500 = vmatpush.msra.mxu0 %v2864
        %3501 = vmatpush.msra.mxu0 %v2832
        %3502 = vmatpush.msra.mxu0 %v2800
        %3503 = vmatpush.msra.mxu0 %v2768
        %3504 = vmatpush.msra.mxu0 %v2736
        %3505 = vmatpush.msra.mxu0 %v2704
        %3506 = vmatpush.msra.mxu0 %v2672
        %3507 = vmatpush.msra.mxu0 %v2640
        %3508 = vmatpush.msra.mxu0 %v2608
        %3509 = vmatmul.f32.gmra.mxu0 %v2902
        %v3510 = vpop.f32.mrf.mxu0
        %v3511 = vadd.f32 %v2883, %v3510
        %3512 = vmatmul.f32.gmra.mxu0 %v2905
        %v3513 = vpop.f32.mrf.mxu0
        %v3514 = vadd.f32 %v2888, %v3513
        %3515 = vmatmul.f32.gmra.mxu0 %v2908
        %v3516 = vpop.f32.mrf.mxu0
        %v3517 = vadd.f32 %v2893, %v3516
        %3518 = vmatmul.f32.gmra.mxu0 %v2911
        %v3519 = vpop.f32.mrf.mxu0
        %v3520 = vadd.f32 %v2898, %v3519
        %3521 = vdwg.mxu0
        %3522 = vmatpush.msra.mxu0 0.0
        %3523 = vmatpush.msra.mxu0 0.0
        %3524 = vmatpush.msra.mxu0 0.0
        %3525 = vmatpush.msra.mxu0 0.0
        %3526 = vmatpush.msra.mxu0 0.0
        %3527 = vmatpush.msra.mxu0 0.0
        %3528 = vmatpush.msra.mxu0 0.0
        %3529 = vmatpush.msra.mxu0 %v2865
        %3530 = vmatpush.msra.mxu0 %v2833
        %3531 = vmatpush.msra.mxu0 %v2801
        %3532 = vmatpush.msra.mxu0 %v2769
        %3533 = vmatpush.msra.mxu0 %v2737
        %3534 = vmatpush.msra.mxu0 %v2705
        %3535 = vmatpush.msra.mxu0 %v2673
        %3536 = vmatpush.msra.mxu0 %v2641
        %3537 = vmatpush.msra.mxu0 %v2609
        %3538 = vmatmul.f32.gmra.mxu0 %v2902
        %v3539 = vpop.f32.mrf.mxu0
        %v3540 = vadd.f32 %v2883, %v3539
        %3541 = vmatmul.f32.gmra.mxu0 %v2905
        %v3542 = vpop.f32.mrf.mxu0
        %v3543 = vadd.f32 %v2888, %v3542
        %3544 = vmatmul.f32.gmra.mxu0 %v2908
        %v3545 = vpop.f32.mrf.mxu0
        %v3546 = vadd.f32 %v2893, %v3545
        %3547 = vmatmul.f32.gmra.mxu0 %v2911
        %v3548 = vpop.f32.mrf.mxu0
        %v3549 = vadd.f32 %v2898, %v3548
        %3550 = vdwg.mxu0
        %3551 = vmatpush.msra.mxu0 0.0
        %3552 = vmatpush.msra.mxu0 0.0
        %3553 = vmatpush.msra.mxu0 0.0
        %3554 = vmatpush.msra.mxu0 0.0
        %3555 = vmatpush.msra.mxu0 0.0
        %3556 = vmatpush.msra.mxu0 0.0
        %3557 = vmatpush.msra.mxu0 0.0
        %3558 = vmatpush.msra.mxu0 %v2866
        %3559 = vmatpush.msra.mxu0 %v2834
        %3560 = vmatpush.msra.mxu0 %v2802
        %3561 = vmatpush.msra.mxu0 %v2770
        %3562 = vmatpush.msra.mxu0 %v2738
        %3563 = vmatpush.msra.mxu0 %v2706
        %3564 = vmatpush.msra.mxu0 %v2674
        %3565 = vmatpush.msra.mxu0 %v2642
        %3566 = vmatpush.msra.mxu0 %v2610
        %3567 = vmatmul.f32.gmra.mxu0 %v2902
        %v3568 = vpop.f32.mrf.mxu0
        %v3569 = vadd.f32 %v2883, %v3568
        %3570 = vmatmul.f32.gmra.mxu0 %v2905
        %v3571 = vpop.f32.mrf.mxu0
        %v3572 = vadd.f32 %v2888, %v3571
        %3573 = vmatmul.f32.gmra.mxu0 %v2908
        %v3574 = vpop.f32.mrf.mxu0
        %v3575 = vadd.f32 %v2893, %v3574
        %3576 = vmatmul.f32.gmra.mxu0 %v2911
        %v3577 = vpop.f32.mrf.mxu0
        %v3578 = vadd.f32 %v2898, %v3577
        %3579 = vdwg.mxu0
        %3580 = vmatpush.msra.mxu0 0.0
        %3581 = vmatpush.msra.mxu0 0.0
        %3582 = vmatpush.msra.mxu0 0.0
        %3583 = vmatpush.msra.mxu0 0.0
        %3584 = vmatpush.msra.mxu0 0.0
        %3585 = vmatpush.msra.mxu0 0.0
        %3586 = vmatpush.msra.mxu0 0.0
        %3587 = vmatpush.msra.mxu0 %v2867
        %3588 = vmatpush.msra.mxu0 %v2835
        %3589 = vmatpush.msra.mxu0 %v2803
        %3590 = vmatpush.msra.mxu0 %v2771
        %3591 = vmatpush.msra.mxu0 %v2739
        %3592 = vmatpush.msra.mxu0 %v2707
        %3593 = vmatpush.msra.mxu0 %v2675
        %3594 = vmatpush.msra.mxu0 %v2643
        %3595 = vmatpush.msra.mxu0 %v2611
        %3596 = vmatmul.f32.gmra.mxu0 %v2902
        %v3597 = vpop.f32.mrf.mxu0
        %v3598 = vadd.f32 %v2883, %v3597
        %3599 = vmatmul.f32.gmra.mxu0 %v2905
        %v3600 = vpop.f32.mrf.mxu0
        %v3601 = vadd.f32 %v2888, %v3600
        %3602 = vmatmul.f32.gmra.mxu0 %v2908
        %v3603 = vpop.f32.mrf.mxu0
        %v3604 = vadd.f32 %v2893, %v3603
        %3605 = vmatmul.f32.gmra.mxu0 %v2911
        %v3606 = vpop.f32.mrf.mxu0
        %v3607 = vadd.f32 %v2898, %v3606
        %3608 = vdwg.mxu0
        %3609 = vmatpush.msra.mxu0 0.0
        %3610 = vmatpush.msra.mxu0 0.0
        %3611 = vmatpush.msra.mxu0 0.0
        %3612 = vmatpush.msra.mxu0 0.0
        %3613 = vmatpush.msra.mxu0 0.0
        %3614 = vmatpush.msra.mxu0 0.0
        %3615 = vmatpush.msra.mxu0 0.0
        %3616 = vmatpush.msra.mxu0 %v2868
        %3617 = vmatpush.msra.mxu0 %v2836
        %3618 = vmatpush.msra.mxu0 %v2804
        %3619 = vmatpush.msra.mxu0 %v2772
        %3620 = vmatpush.msra.mxu0 %v2740
        %3621 = vmatpush.msra.mxu0 %v2708
        %3622 = vmatpush.msra.mxu0 %v2676
        %3623 = vmatpush.msra.mxu0 %v2644
        %3624 = vmatpush.msra.mxu0 %v2612
        %3625 = vmatmul.f32.gmra.mxu0 %v2902
        %v3626 = vpop.f32.mrf.mxu0
        %v3627 = vadd.f32 %v2883, %v3626
        %3628 = vmatmul.f32.gmra.mxu0 %v2905
        %v3629 = vpop.f32.mrf.mxu0
        %v3630 = vadd.f32 %v2888, %v3629
        %3631 = vmatmul.f32.gmra.mxu0 %v2908
        %v3632 = vpop.f32.mrf.mxu0
        %v3633 = vadd.f32 %v2893, %v3632
        %3634 = vmatmul.f32.gmra.mxu0 %v2911
        %v3635 = vpop.f32.mrf.mxu0
        %v3636 = vadd.f32 %v2898, %v3635
        %3637 = vdwg.mxu0
        %3638 = vmatpush.msra.mxu0 0.0
        %3639 = vmatpush.msra.mxu0 0.0
        %3640 = vmatpush.msra.mxu0 0.0
        %3641 = vmatpush.msra.mxu0 0.0
        %3642 = vmatpush.msra.mxu0 0.0
        %3643 = vmatpush.msra.mxu0 0.0
        %3644 = vmatpush.msra.mxu0 0.0
        %3645 = vmatpush.msra.mxu0 %v2869
        %3646 = vmatpush.msra.mxu0 %v2837
        %3647 = vmatpush.msra.mxu0 %v2805
        %3648 = vmatpush.msra.mxu0 %v2773
        %3649 = vmatpush.msra.mxu0 %v2741
        %3650 = vmatpush.msra.mxu0 %v2709
        %3651 = vmatpush.msra.mxu0 %v2677
        %3652 = vmatpush.msra.mxu0 %v2645
        %3653 = vmatpush.msra.mxu0 %v2613
        %3654 = vmatmul.f32.gmra.mxu0 %v2902
        %v3655 = vpop.f32.mrf.mxu0
        %v3656 = vadd.f32 %v2883, %v3655
        %3657 = vmatmul.f32.gmra.mxu0 %v2905
        %v3658 = vpop.f32.mrf.mxu0
        %v3659 = vadd.f32 %v2888, %v3658
        %3660 = vmatmul.f32.gmra.mxu0 %v2908
        %v3661 = vpop.f32.mrf.mxu0
        %v3662 = vadd.f32 %v2893, %v3661
        %3663 = vmatmul.f32.gmra.mxu0 %v2911
        %v3664 = vpop.f32.mrf.mxu0
        %v3665 = vadd.f32 %v2898, %v3664
        %3666 = vdwg.mxu0
        %3667 = vmatpush.msra.mxu0 0.0
        %3668 = vmatpush.msra.mxu0 0.0
        %3669 = vmatpush.msra.mxu0 0.0
        %3670 = vmatpush.msra.mxu0 0.0
        %3671 = vmatpush.msra.mxu0 0.0
        %3672 = vmatpush.msra.mxu0 0.0
        %3673 = vmatpush.msra.mxu0 0.0
        %3674 = vmatpush.msra.mxu0 %v2870
        %3675 = vmatpush.msra.mxu0 %v2838
        %3676 = vmatpush.msra.mxu0 %v2806
        %3677 = vmatpush.msra.mxu0 %v2774
        %3678 = vmatpush.msra.mxu0 %v2742
        %3679 = vmatpush.msra.mxu0 %v2710
        %3680 = vmatpush.msra.mxu0 %v2678
        %3681 = vmatpush.msra.mxu0 %v2646
        %3682 = vmatpush.msra.mxu0 %v2614
        %3683 = vmatmul.f32.gmra.mxu0 %v2902
        %v3684 = vpop.f32.mrf.mxu0
        %v3685 = vadd.f32 %v2883, %v3684
        %3686 = vmatmul.f32.gmra.mxu0 %v2905
        %v3687 = vpop.f32.mrf.mxu0
        %v3688 = vadd.f32 %v2888, %v3687
        %3689 = vmatmul.f32.gmra.mxu0 %v2908
        %v3690 = vpop.f32.mrf.mxu0
        %v3691 = vadd.f32 %v2893, %v3690
        %3692 = vmatmul.f32.gmra.mxu0 %v2911
        %v3693 = vpop.f32.mrf.mxu0
        %v3694 = vadd.f32 %v2898, %v3693
        %3695 = vdwg.mxu0
        %3696 = vmatpush.msra.mxu0 0.0
        %3697 = vmatpush.msra.mxu0 0.0
        %3698 = vmatpush.msra.mxu0 0.0
        %3699 = vmatpush.msra.mxu0 0.0
        %3700 = vmatpush.msra.mxu0 0.0
        %3701 = vmatpush.msra.mxu0 0.0
        %3702 = vmatpush.msra.mxu0 0.0
        %3703 = vmatpush.msra.mxu0 %v2871
        %3704 = vmatpush.msra.mxu0 %v2839
        %3705 = vmatpush.msra.mxu0 %v2807
        %3706 = vmatpush.msra.mxu0 %v2775
        %3707 = vmatpush.msra.mxu0 %v2743
        %3708 = vmatpush.msra.mxu0 %v2711
        %3709 = vmatpush.msra.mxu0 %v2679
        %3710 = vmatpush.msra.mxu0 %v2647
        %3711 = vmatpush.msra.mxu0 %v2615
        %3712 = vmatmul.f32.gmra.mxu0 %v2902
        %v3713 = vpop.f32.mrf.mxu0
        %v3714 = vadd.f32 %v2883, %v3713
        %3715 = vmatmul.f32.gmra.mxu0 %v2905
        %v3716 = vpop.f32.mrf.mxu0
        %v3717 = vadd.f32 %v2888, %v3716
        %3718 = vmatmul.f32.gmra.mxu0 %v2908
        %v3719 = vpop.f32.mrf.mxu0
        %v3720 = vadd.f32 %v2893, %v3719
        %3721 = vmatmul.f32.gmra.mxu0 %v2911
        %v3722 = vpop.f32.mrf.mxu0
        %v3723 = vadd.f32 %v2898, %v3722
        %3724 = vdwg.mxu0
        %3725 = vmatpush.msra.mxu0 0.0
        %3726 = vmatpush.msra.mxu0 0.0
        %3727 = vmatpush.msra.mxu0 0.0
        %3728 = vmatpush.msra.mxu0 0.0
        %3729 = vmatpush.msra.mxu0 0.0
        %3730 = vmatpush.msra.mxu0 0.0
        %3731 = vmatpush.msra.mxu0 0.0
        %3732 = vmatpush.msra.mxu0 %v2872
        %3733 = vmatpush.msra.mxu0 %v2840
        %3734 = vmatpush.msra.mxu0 %v2808
        %3735 = vmatpush.msra.mxu0 %v2776
        %3736 = vmatpush.msra.mxu0 %v2744
        %3737 = vmatpush.msra.mxu0 %v2712
        %3738 = vmatpush.msra.mxu0 %v2680
        %3739 = vmatpush.msra.mxu0 %v2648
        %3740 = vmatpush.msra.mxu0 %v2616
        %3741 = vmatmul.f32.gmra.mxu0 %v2902
        %v3742 = vpop.f32.mrf.mxu0
        %v3743 = vadd.f32 %v2883, %v3742
        %3744 = vmatmul.f32.gmra.mxu0 %v2905
        %v3745 = vpop.f32.mrf.mxu0
        %v3746 = vadd.f32 %v2888, %v3745
        %3747 = vmatmul.f32.gmra.mxu0 %v2908
        %v3748 = vpop.f32.mrf.mxu0
        %v3749 = vadd.f32 %v2893, %v3748
        %3750 = vmatmul.f32.gmra.mxu0 %v2911
        %v3751 = vpop.f32.mrf.mxu0
        %v3752 = vadd.f32 %v2898, %v3751
        %3753 = vdwg.mxu0
        %3754 = vmatpush.msra.mxu0 0.0
        %3755 = vmatpush.msra.mxu0 0.0
        %3756 = vmatpush.msra.mxu0 0.0
        %3757 = vmatpush.msra.mxu0 0.0
        %3758 = vmatpush.msra.mxu0 0.0
        %3759 = vmatpush.msra.mxu0 0.0
        %3760 = vmatpush.msra.mxu0 0.0
        %3761 = vmatpush.msra.mxu0 %v2873
        %3762 = vmatpush.msra.mxu0 %v2841
        %3763 = vmatpush.msra.mxu0 %v2809
        %3764 = vmatpush.msra.mxu0 %v2777
        %3765 = vmatpush.msra.mxu0 %v2745
        %3766 = vmatpush.msra.mxu0 %v2713
        %3767 = vmatpush.msra.mxu0 %v2681
        %3768 = vmatpush.msra.mxu0 %v2649
        %3769 = vmatpush.msra.mxu0 %v2617
        %3770 = vmatmul.f32.gmra.mxu0 %v2902
        %v3771 = vpop.f32.mrf.mxu0
        %v3772 = vadd.f32 %v2883, %v3771
        %3773 = vmatmul.f32.gmra.mxu0 %v2905
        %v3774 = vpop.f32.mrf.mxu0
        %v3775 = vadd.f32 %v2888, %v3774
        %3776 = vmatmul.f32.gmra.mxu0 %v2908
        %v3777 = vpop.f32.mrf.mxu0
        %v3778 = vadd.f32 %v2893, %v3777
        %3779 = vmatmul.f32.gmra.mxu0 %v2911
        %v3780 = vpop.f32.mrf.mxu0
        %v3781 = vadd.f32 %v2898, %v3780
        %3782 = vdwg.mxu0
        %3783 = vmatpush.msra.mxu0 0.0
        %3784 = vmatpush.msra.mxu0 0.0
        %3785 = vmatpush.msra.mxu0 0.0
        %3786 = vmatpush.msra.mxu0 0.0
        %3787 = vmatpush.msra.mxu0 0.0
        %3788 = vmatpush.msra.mxu0 0.0
        %3789 = vmatpush.msra.mxu0 0.0
        %3790 = vmatpush.msra.mxu0 %v2874
        %3791 = vmatpush.msra.mxu0 %v2842
        %3792 = vmatpush.msra.mxu0 %v2810
        %3793 = vmatpush.msra.mxu0 %v2778
        %3794 = vmatpush.msra.mxu0 %v2746
        %3795 = vmatpush.msra.mxu0 %v2714
        %3796 = vmatpush.msra.mxu0 %v2682
        %3797 = vmatpush.msra.mxu0 %v2650
        %3798 = vmatpush.msra.mxu0 %v2618
        %3799 = vmatmul.f32.gmra.mxu0 %v2902
        %v3800 = vpop.f32.mrf.mxu0
        %v3801 = vadd.f32 %v2883, %v3800
        %3802 = vmatmul.f32.gmra.mxu0 %v2905
        %v3803 = vpop.f32.mrf.mxu0
        %v3804 = vadd.f32 %v2888, %v3803
        %3805 = vmatmul.f32.gmra.mxu0 %v2908
        %v3806 = vpop.f32.mrf.mxu0
        %v3807 = vadd.f32 %v2893, %v3806
        %3808 = vmatmul.f32.gmra.mxu0 %v2911
        %v3809 = vpop.f32.mrf.mxu0
        %v3810 = vadd.f32 %v2898, %v3809
        %3811 = vdwg.mxu0
        %3812 = vmatpush.msra.mxu0 0.0
        %3813 = vmatpush.msra.mxu0 0.0
        %3814 = vmatpush.msra.mxu0 0.0
        %3815 = vmatpush.msra.mxu0 0.0
        %3816 = vmatpush.msra.mxu0 0.0
        %3817 = vmatpush.msra.mxu0 0.0
        %3818 = vmatpush.msra.mxu0 0.0
        %3819 = vmatpush.msra.mxu0 %v2875
        %3820 = vmatpush.msra.mxu0 %v2843
        %3821 = vmatpush.msra.mxu0 %v2811
        %3822 = vmatpush.msra.mxu0 %v2779
        %3823 = vmatpush.msra.mxu0 %v2747
        %3824 = vmatpush.msra.mxu0 %v2715
        %3825 = vmatpush.msra.mxu0 %v2683
        %3826 = vmatpush.msra.mxu0 %v2651
        %3827 = vmatpush.msra.mxu0 %v2619
        %3828 = vmatmul.f32.gmra.mxu0 %v2902
        %v3829 = vpop.f32.mrf.mxu0
        %v3830 = vadd.f32 %v2883, %v3829
        %3831 = vmatmul.f32.gmra.mxu0 %v2905
        %v3832 = vpop.f32.mrf.mxu0
        %v3833 = vadd.f32 %v2888, %v3832
        %3834 = vmatmul.f32.gmra.mxu0 %v2908
        %v3835 = vpop.f32.mrf.mxu0
        %v3836 = vadd.f32 %v2893, %v3835
        %3837 = vmatmul.f32.gmra.mxu0 %v2911
        %v3838 = vpop.f32.mrf.mxu0
        %v3839 = vadd.f32 %v2898, %v3838
        %3840 = vdwg.mxu0
        %v3841 = vtanh.pop %v2931
        %v3842 = vtanh.pop %v2960
        %v3843 = vtanh.pop %v2989
        %v3844 = vtanh.pop %v3018
        %v3845 = vtanh.pop %v3047
        %v3846 = vtanh.pop %v3076
        %v3847 = vtanh.pop %v3105
        %v3848 = vtanh.pop %v3134
        %v3849 = vtanh.pop %v3163
        %v3850 = vtanh.pop %v3192
        %v3851 = vtanh.pop %v3221
        %v3852 = vtanh.pop %v3250
        %v3853 = vtanh.pop %v3279
        %v3854 = vtanh.pop %v3308
        %v3855 = vtanh.pop %v3337
        %v3856 = vtanh.pop %v3366
        %v3857 = vtanh.pop %v3395
        %v3858 = vtanh.pop %v3424
        %v3859 = vtanh.pop %v3453
        %v3860 = vtanh.pop %v3482
        %v3861 = vtanh.pop %v3511
        %v3862 = vtanh.pop %v3540
        %v3863 = vtanh.pop %v3569
        %v3864 = vtanh.pop %v3598
        %v3865 = vtanh.pop %v3627
        %v3866 = vtanh.pop %v3656
        %v3867 = vtanh.pop %v3685
        %v3868 = vtanh.pop %v3714
        %v3869 = vtanh.pop %v3743
        %v3870 = vtanh.pop %v3772
        %v3871 = vtanh.pop %v3801
        %v3872 = vtanh.pop %v3830
        %v3873 = vtanh.pop %v2934
        %v3874 = vtanh.pop %v2963
        %v3875 = vtanh.pop %v2992
        %v3876 = vtanh.pop %v3021
        %v3877 = vtanh.pop %v3050
        %v3878 = vtanh.pop %v3079
        %v3879 = vtanh.pop %v3108
        %v3880 = vtanh.pop %v3137
        %v3881 = vtanh.pop %v3166
        %v3882 = vtanh.pop %v3195
        %v3883 = vtanh.pop %v3224
        %v3884 = vtanh.pop %v3253
        %v3885 = vtanh.pop %v3282
        %v3886 = vtanh.pop %v3311
        %v3887 = vtanh.pop %v3340
        %v3888 = vtanh.pop %v3369
        %v3889 = vtanh.pop %v3398
        %v3890 = vtanh.pop %v3427
        %v3891 = vtanh.pop %v3456
        %v3892 = vtanh.pop %v3485
        %v3893 = vtanh.pop %v3514
        %v3894 = vtanh.pop %v3543
        %v3895 = vtanh.pop %v3572
        %v3896 = vtanh.pop %v3601
        %v3897 = vtanh.pop %v3630
        %v3898 = vtanh.pop %v3659
        %v3899 = vtanh.pop %v3688
        %v3900 = vtanh.pop %v3717
        %v3901 = vtanh.pop %v3746
        %v3902 = vtanh.pop %v3775
        %v3903 = vtanh.pop %v3804
        %v3904 = vtanh.pop %v3833
        %v3905 = vtanh.pop %v2937
        %v3906 = vtanh.pop %v2966
        %v3907 = vtanh.pop %v2995
        %v3908 = vtanh.pop %v3024
        %v3909 = vtanh.pop %v3053
        %v3910 = vtanh.pop %v3082
        %v3911 = vtanh.pop %v3111
        %v3912 = vtanh.pop %v3140
        %v3913 = vtanh.pop %v3169
        %v3914 = vtanh.pop %v3198
        %v3915 = vtanh.pop %v3227
        %v3916 = vtanh.pop %v3256
        %v3917 = vtanh.pop %v3285
        %v3918 = vtanh.pop %v3314
        %v3919 = vtanh.pop %v3343
        %v3920 = vtanh.pop %v3372
        %v3921 = vtanh.pop %v3401
        %v3922 = vtanh.pop %v3430
        %v3923 = vtanh.pop %v3459
        %v3924 = vtanh.pop %v3488
        %v3925 = vtanh.pop %v3517
        %v3926 = vtanh.pop %v3546
        %v3927 = vtanh.pop %v3575
        %v3928 = vtanh.pop %v3604
        %v3929 = vtanh.pop %v3633
        %v3930 = vtanh.pop %v3662
        %v3931 = vtanh.pop %v3691
        %v3932 = vtanh.pop %v3720
        %v3933 = vtanh.pop %v3749
        %v3934 = vtanh.pop %v3778
        %v3935 = vtanh.pop %v3807
        %v3936 = vtanh.pop %v3836
        %v3937 = vtanh.pop %v2940
        %v3938 = vtanh.pop %v2969
        %v3939 = vtanh.pop %v2998
        %v3940 = vtanh.pop %v3027
        %v3941 = vtanh.pop %v3056
        %v3942 = vtanh.pop %v3085
        %v3943 = vtanh.pop %v3114
        %v3944 = vtanh.pop %v3143
        %v3945 = vtanh.pop %v3172
        %v3946 = vtanh.pop %v3201
        %v3947 = vtanh.pop %v3230
        %v3948 = vtanh.pop %v3259
        %v3949 = vtanh.pop %v3288
        %v3950 = vtanh.pop %v3317
        %v3951 = vtanh.pop %v3346
        %v3952 = vtanh.pop %v3375
        %v3953 = vtanh.pop %v3404
        %v3954 = vtanh.pop %v3433
        %v3955 = vtanh.pop %v3462
        %v3956 = vtanh.pop %v3491
        %v3957 = vtanh.pop %v3520
        %v3958 = vtanh.pop %v3549
        %v3959 = vtanh.pop %v3578
        %v3960 = vtanh.pop %v3607
        %v3961 = vtanh.pop %v3636
        %v3962 = vtanh.pop %v3665
        %v3963 = vtanh.pop %v3694
        %v3964 = vtanh.pop %v3723
        %v3965 = vtanh.pop %v3752
        %v3966 = vtanh.pop %v3781
        %v3967 = vtanh.pop %v3810
        %v3968 = vtanh.pop %v3839
        %v3969 = vld [vmem:[%s3] sm:$0xff]
        %v3970 = vld [vmem:[%s3 + $0x8] sm:$0x1]
        %vm3971 = vcmask 261120
        %v3973 = vsel %vm3971, %v3969, 0
        %v3976 = vsel %vm3971, %v3970, 0
        %3978 = vmatpush.msra.mxu0 0.0
        %3979 = vmatpush.msra.mxu0 0.0
        %3980 = vmatpush.msra.mxu0 0.0
        %3981 = vmatpush.msra.mxu0 0.0
        %3982 = vmatpush.msra.mxu0 0.0
        %3983 = vmatpush.msra.mxu0 0.0
        %3984 = vmatpush.msra.mxu0 0.0
        %3985 = vmatpush.msra.mxu0 0.0
        %3986 = vmatpush.msra.mxu0 0.0
        %3987 = vmatpush.msra.mxu0 0.0
        %3988 = vmatpush.msra.mxu0 0.0
        %3989 = vmatpush.msra.mxu0 0.0
        %3990 = vmatpush.msra.mxu0 %v3937
        %3991 = vmatpush.msra.mxu0 %v3905
        %3992 = vmatpush.msra.mxu0 %v3873
        %3993 = vmatpush.msra.mxu0 %v3841
        %3994 = vmatmul.f32.gmra.mxu0 %v3973
        %v3995 = vpop.f32.mrf.mxu0
        %v3996 = vadd.f32 0.0, %v3995
        %3997 = vmatmul.f32.gmra.mxu0 %v3976
        %v3998 = vpop.f32.mrf.mxu0
        %v3999 = vadd.f32 0.0, %v3998
        %4000 = vdwg.mxu0
        %4001 = vmatpush.msra.mxu0 0.0
        %4002 = vmatpush.msra.mxu0 0.0
        %4003 = vmatpush.msra.mxu0 0.0
        %4004 = vmatpush.msra.mxu0 0.0
        %4005 = vmatpush.msra.mxu0 0.0
        %4006 = vmatpush.msra.mxu0 0.0
        %4007 = vmatpush.msra.mxu0 0.0
        %4008 = vmatpush.msra.mxu0 0.0
        %4009 = vmatpush.msra.mxu0 0.0
        %4010 = vmatpush.msra.mxu0 0.0
        %4011 = vmatpush.msra.mxu0 0.0
        %4012 = vmatpush.msra.mxu0 0.0
        %4013 = vmatpush.msra.mxu0 %v3938
        %4014 = vmatpush.msra.mxu0 %v3906
        %4015 = vmatpush.msra.mxu0 %v3874
        %4016 = vmatpush.msra.mxu0 %v3842
        %4017 = vmatmul.f32.gmra.mxu0 %v3973
        %v4018 = vpop.f32.mrf.mxu0
        %v4019 = vadd.f32 0.0, %v4018
        %4020 = vmatmul.f32.gmra.mxu0 %v3976
        %v4021 = vpop.f32.mrf.mxu0
        %v4022 = vadd.f32 0.0, %v4021
        %4023 = vdwg.mxu0
        %4024 = vmatpush.msra.mxu0 0.0
        %4025 = vmatpush.msra.mxu0 0.0
        %4026 = vmatpush.msra.mxu0 0.0
        %4027 = vmatpush.msra.mxu0 0.0
        %4028 = vmatpush.msra.mxu0 0.0
        %4029 = vmatpush.msra.mxu0 0.0
        %4030 = vmatpush.msra.mxu0 0.0
        %4031 = vmatpush.msra.mxu0 0.0
        %4032 = vmatpush.msra.mxu0 0.0
        %4033 = vmatpush.msra.mxu0 0.0
        %4034 = vmatpush.msra.mxu0 0.0
        %4035 = vmatpush.msra.mxu0 0.0
        %4036 = vmatpush.msra.mxu0 %v3939
        %4037 = vmatpush.msra.mxu0 %v3907
        %4038 = vmatpush.msra.mxu0 %v3875
        %4039 = vmatpush.msra.mxu0 %v3843
        %4040 = vmatmul.f32.gmra.mxu0 %v3973
        %v4041 = vpop.f32.mrf.mxu0
        %v4042 = vadd.f32 0.0, %v4041
        %4043 = vmatmul.f32.gmra.mxu0 %v3976
        %v4044 = vpop.f32.mrf.mxu0
        %v4045 = vadd.f32 0.0, %v4044
        %4046 = vdwg.mxu0
        %4047 = vmatpush.msra.mxu0 0.0
        %4048 = vmatpush.msra.mxu0 0.0
        %4049 = vmatpush.msra.mxu0 0.0
        %4050 = vmatpush.msra.mxu0 0.0
        %4051 = vmatpush.msra.mxu0 0.0
        %4052 = vmatpush.msra.mxu0 0.0
        %4053 = vmatpush.msra.mxu0 0.0
        %4054 = vmatpush.msra.mxu0 0.0
        %4055 = vmatpush.msra.mxu0 0.0
        %4056 = vmatpush.msra.mxu0 0.0
        %4057 = vmatpush.msra.mxu0 0.0
        %4058 = vmatpush.msra.mxu0 0.0
        %4059 = vmatpush.msra.mxu0 %v3940
        %4060 = vmatpush.msra.mxu0 %v3908
        %4061 = vmatpush.msra.mxu0 %v3876
        %4062 = vmatpush.msra.mxu0 %v3844
        %4063 = vmatmul.f32.gmra.mxu0 %v3973
        %v4064 = vpop.f32.mrf.mxu0
        %v4065 = vadd.f32 0.0, %v4064
        %4066 = vmatmul.f32.gmra.mxu0 %v3976
        %v4067 = vpop.f32.mrf.mxu0
        %v4068 = vadd.f32 0.0, %v4067
        %4069 = vdwg.mxu0
        %4070 = vmatpush.msra.mxu0 0.0
        %4071 = vmatpush.msra.mxu0 0.0
        %4072 = vmatpush.msra.mxu0 0.0
        %4073 = vmatpush.msra.mxu0 0.0
        %4074 = vmatpush.msra.mxu0 0.0
        %4075 = vmatpush.msra.mxu0 0.0
        %4076 = vmatpush.msra.mxu0 0.0
        %4077 = vmatpush.msra.mxu0 0.0
        %4078 = vmatpush.msra.mxu0 0.0
        %4079 = vmatpush.msra.mxu0 0.0
        %4080 = vmatpush.msra.mxu0 0.0
        %4081 = vmatpush.msra.mxu0 0.0
        %4082 = vmatpush.msra.mxu0 %v3941
        %4083 = vmatpush.msra.mxu0 %v3909
        %4084 = vmatpush.msra.mxu0 %v3877
        %4085 = vmatpush.msra.mxu0 %v3845
        %4086 = vmatmul.f32.gmra.mxu0 %v3973
        %v4087 = vpop.f32.mrf.mxu0
        %v4088 = vadd.f32 0.0, %v4087
        %4089 = vmatmul.f32.gmra.mxu0 %v3976
        %v4090 = vpop.f32.mrf.mxu0
        %v4091 = vadd.f32 0.0, %v4090
        %4092 = vdwg.mxu0
        %4093 = vmatpush.msra.mxu0 0.0
        %4094 = vmatpush.msra.mxu0 0.0
        %4095 = vmatpush.msra.mxu0 0.0
        %4096 = vmatpush.msra.mxu0 0.0
        %4097 = vmatpush.msra.mxu0 0.0
        %4098 = vmatpush.msra.mxu0 0.0
        %4099 = vmatpush.msra.mxu0 0.0
        %4100 = vmatpush.msra.mxu0 0.0
        %4101 = vmatpush.msra.mxu0 0.0
        %4102 = vmatpush.msra.mxu0 0.0
        %4103 = vmatpush.msra.mxu0 0.0
        %4104 = vmatpush.msra.mxu0 0.0
        %4105 = vmatpush.msra.mxu0 %v3942
        %4106 = vmatpush.msra.mxu0 %v3910
        %4107 = vmatpush.msra.mxu0 %v3878
        %4108 = vmatpush.msra.mxu0 %v3846
        %4109 = vmatmul.f32.gmra.mxu0 %v3973
        %v4110 = vpop.f32.mrf.mxu0
        %v4111 = vadd.f32 0.0, %v4110
        %4112 = vmatmul.f32.gmra.mxu0 %v3976
        %v4113 = vpop.f32.mrf.mxu0
        %v4114 = vadd.f32 0.0, %v4113
        %4115 = vdwg.mxu0
        %4116 = vmatpush.msra.mxu0 0.0
        %4117 = vmatpush.msra.mxu0 0.0
        %4118 = vmatpush.msra.mxu0 0.0
        %4119 = vmatpush.msra.mxu0 0.0
        %4120 = vmatpush.msra.mxu0 0.0
        %4121 = vmatpush.msra.mxu0 0.0
        %4122 = vmatpush.msra.mxu0 0.0
        %4123 = vmatpush.msra.mxu0 0.0
        %4124 = vmatpush.msra.mxu0 0.0
        %4125 = vmatpush.msra.mxu0 0.0
        %4126 = vmatpush.msra.mxu0 0.0
        %4127 = vmatpush.msra.mxu0 0.0
        %4128 = vmatpush.msra.mxu0 %v3943
        %4129 = vmatpush.msra.mxu0 %v3911
        %4130 = vmatpush.msra.mxu0 %v3879
        %4131 = vmatpush.msra.mxu0 %v3847
        %4132 = vmatmul.f32.gmra.mxu0 %v3973
        %v4133 = vpop.f32.mrf.mxu0
        %v4134 = vadd.f32 0.0, %v4133
        %4135 = vmatmul.f32.gmra.mxu0 %v3976
        %v4136 = vpop.f32.mrf.mxu0
        %v4137 = vadd.f32 0.0, %v4136
        %4138 = vdwg.mxu0
        %4139 = vmatpush.msra.mxu0 0.0
        %4140 = vmatpush.msra.mxu0 0.0
        %4141 = vmatpush.msra.mxu0 0.0
        %4142 = vmatpush.msra.mxu0 0.0
        %4143 = vmatpush.msra.mxu0 0.0
        %4144 = vmatpush.msra.mxu0 0.0
        %4145 = vmatpush.msra.mxu0 0.0
        %4146 = vmatpush.msra.mxu0 0.0
        %4147 = vmatpush.msra.mxu0 0.0
        %4148 = vmatpush.msra.mxu0 0.0
        %4149 = vmatpush.msra.mxu0 0.0
        %4150 = vmatpush.msra.mxu0 0.0
        %4151 = vmatpush.msra.mxu0 %v3944
        %4152 = vmatpush.msra.mxu0 %v3912
        %4153 = vmatpush.msra.mxu0 %v3880
        %4154 = vmatpush.msra.mxu0 %v3848
        %4155 = vmatmul.f32.gmra.mxu0 %v3973
        %v4156 = vpop.f32.mrf.mxu0
        %v4157 = vadd.f32 0.0, %v4156
        %4158 = vmatmul.f32.gmra.mxu0 %v3976
        %v4159 = vpop.f32.mrf.mxu0
        %v4160 = vadd.f32 0.0, %v4159
        %4161 = vdwg.mxu0
        %4162 = vmatpush.msra.mxu0 0.0
        %4163 = vmatpush.msra.mxu0 0.0
        %4164 = vmatpush.msra.mxu0 0.0
        %4165 = vmatpush.msra.mxu0 0.0
        %4166 = vmatpush.msra.mxu0 0.0
        %4167 = vmatpush.msra.mxu0 0.0
        %4168 = vmatpush.msra.mxu0 0.0
        %4169 = vmatpush.msra.mxu0 0.0
        %4170 = vmatpush.msra.mxu0 0.0
        %4171 = vmatpush.msra.mxu0 0.0
        %4172 = vmatpush.msra.mxu0 0.0
        %4173 = vmatpush.msra.mxu0 0.0
        %4174 = vmatpush.msra.mxu0 %v3945
        %4175 = vmatpush.msra.mxu0 %v3913
        %4176 = vmatpush.msra.mxu0 %v3881
        %4177 = vmatpush.msra.mxu0 %v3849
        %4178 = vmatmul.f32.gmra.mxu0 %v3973
        %v4179 = vpop.f32.mrf.mxu0
        %v4180 = vadd.f32 0.0, %v4179
        %4181 = vmatmul.f32.gmra.mxu0 %v3976
        %v4182 = vpop.f32.mrf.mxu0
        %v4183 = vadd.f32 0.0, %v4182
        %4184 = vdwg.mxu0
        %4185 = vmatpush.msra.mxu0 0.0
        %4186 = vmatpush.msra.mxu0 0.0
        %4187 = vmatpush.msra.mxu0 0.0
        %4188 = vmatpush.msra.mxu0 0.0
        %4189 = vmatpush.msra.mxu0 0.0
        %4190 = vmatpush.msra.mxu0 0.0
        %4191 = vmatpush.msra.mxu0 0.0
        %4192 = vmatpush.msra.mxu0 0.0
        %4193 = vmatpush.msra.mxu0 0.0
        %4194 = vmatpush.msra.mxu0 0.0
        %4195 = vmatpush.msra.mxu0 0.0
        %4196 = vmatpush.msra.mxu0 0.0
        %4197 = vmatpush.msra.mxu0 %v3946
        %4198 = vmatpush.msra.mxu0 %v3914
        %4199 = vmatpush.msra.mxu0 %v3882
        %4200 = vmatpush.msra.mxu0 %v3850
        %4201 = vmatmul.f32.gmra.mxu0 %v3973
        %v4202 = vpop.f32.mrf.mxu0
        %v4203 = vadd.f32 0.0, %v4202
        %4204 = vmatmul.f32.gmra.mxu0 %v3976
        %v4205 = vpop.f32.mrf.mxu0
        %v4206 = vadd.f32 0.0, %v4205
        %4207 = vdwg.mxu0
        %4208 = vmatpush.msra.mxu0 0.0
        %4209 = vmatpush.msra.mxu0 0.0
        %4210 = vmatpush.msra.mxu0 0.0
        %4211 = vmatpush.msra.mxu0 0.0
        %4212 = vmatpush.msra.mxu0 0.0
        %4213 = vmatpush.msra.mxu0 0.0
        %4214 = vmatpush.msra.mxu0 0.0
        %4215 = vmatpush.msra.mxu0 0.0
        %4216 = vmatpush.msra.mxu0 0.0
        %4217 = vmatpush.msra.mxu0 0.0
        %4218 = vmatpush.msra.mxu0 0.0
        %4219 = vmatpush.msra.mxu0 0.0
        %4220 = vmatpush.msra.mxu0 %v3947
        %4221 = vmatpush.msra.mxu0 %v3915
        %4222 = vmatpush.msra.mxu0 %v3883
        %4223 = vmatpush.msra.mxu0 %v3851
        %4224 = vmatmul.f32.gmra.mxu0 %v3973
        %v4225 = vpop.f32.mrf.mxu0
        %v4226 = vadd.f32 0.0, %v4225
        %4227 = vmatmul.f32.gmra.mxu0 %v3976
        %v4228 = vpop.f32.mrf.mxu0
        %v4229 = vadd.f32 0.0, %v4228
        %4230 = vdwg.mxu0
        %4231 = vmatpush.msra.mxu0 0.0
        %4232 = vmatpush.msra.mxu0 0.0
        %4233 = vmatpush.msra.mxu0 0.0
        %4234 = vmatpush.msra.mxu0 0.0
        %4235 = vmatpush.msra.mxu0 0.0
        %4236 = vmatpush.msra.mxu0 0.0
        %4237 = vmatpush.msra.mxu0 0.0
        %4238 = vmatpush.msra.mxu0 0.0
        %4239 = vmatpush.msra.mxu0 0.0
        %4240 = vmatpush.msra.mxu0 0.0
        %4241 = vmatpush.msra.mxu0 0.0
        %4242 = vmatpush.msra.mxu0 0.0
        %4243 = vmatpush.msra.mxu0 %v3948
        %4244 = vmatpush.msra.mxu0 %v3916
        %4245 = vmatpush.msra.mxu0 %v3884
        %4246 = vmatpush.msra.mxu0 %v3852
        %4247 = vmatmul.f32.gmra.mxu0 %v3973
        %v4248 = vpop.f32.mrf.mxu0
        %v4249 = vadd.f32 0.0, %v4248
        %4250 = vmatmul.f32.gmra.mxu0 %v3976
        %v4251 = vpop.f32.mrf.mxu0
        %v4252 = vadd.f32 0.0, %v4251
        %4253 = vdwg.mxu0
        %4254 = vmatpush.msra.mxu0 0.0
        %4255 = vmatpush.msra.mxu0 0.0
        %4256 = vmatpush.msra.mxu0 0.0
        %4257 = vmatpush.msra.mxu0 0.0
        %4258 = vmatpush.msra.mxu0 0.0
        %4259 = vmatpush.msra.mxu0 0.0
        %4260 = vmatpush.msra.mxu0 0.0
        %4261 = vmatpush.msra.mxu0 0.0
        %4262 = vmatpush.msra.mxu0 0.0
        %4263 = vmatpush.msra.mxu0 0.0
        %4264 = vmatpush.msra.mxu0 0.0
        %4265 = vmatpush.msra.mxu0 0.0
        %4266 = vmatpush.msra.mxu0 %v3949
        %4267 = vmatpush.msra.mxu0 %v3917
        %4268 = vmatpush.msra.mxu0 %v3885
        %4269 = vmatpush.msra.mxu0 %v3853
        %4270 = vmatmul.f32.gmra.mxu0 %v3973
        %v4271 = vpop.f32.mrf.mxu0
        %v4272 = vadd.f32 0.0, %v4271
        %4273 = vmatmul.f32.gmra.mxu0 %v3976
        %v4274 = vpop.f32.mrf.mxu0
        %v4275 = vadd.f32 0.0, %v4274
        %4276 = vdwg.mxu0
        %4277 = vmatpush.msra.mxu0 0.0
        %4278 = vmatpush.msra.mxu0 0.0
        %4279 = vmatpush.msra.mxu0 0.0
        %4280 = vmatpush.msra.mxu0 0.0
        %4281 = vmatpush.msra.mxu0 0.0
        %4282 = vmatpush.msra.mxu0 0.0
        %4283 = vmatpush.msra.mxu0 0.0
        %4284 = vmatpush.msra.mxu0 0.0
        %4285 = vmatpush.msra.mxu0 0.0
        %4286 = vmatpush.msra.mxu0 0.0
        %4287 = vmatpush.msra.mxu0 0.0
        %4288 = vmatpush.msra.mxu0 0.0
        %4289 = vmatpush.msra.mxu0 %v3950
        %4290 = vmatpush.msra.mxu0 %v3918
        %4291 = vmatpush.msra.mxu0 %v3886
        %4292 = vmatpush.msra.mxu0 %v3854
        %4293 = vmatmul.f32.gmra.mxu0 %v3973
        %v4294 = vpop.f32.mrf.mxu0
        %v4295 = vadd.f32 0.0, %v4294
        %4296 = vmatmul.f32.gmra.mxu0 %v3976
        %v4297 = vpop.f32.mrf.mxu0
        %v4298 = vadd.f32 0.0, %v4297
        %4299 = vdwg.mxu0
        %4300 = vmatpush.msra.mxu0 0.0
        %4301 = vmatpush.msra.mxu0 0.0
        %4302 = vmatpush.msra.mxu0 0.0
        %4303 = vmatpush.msra.mxu0 0.0
        %4304 = vmatpush.msra.mxu0 0.0
        %4305 = vmatpush.msra.mxu0 0.0
        %4306 = vmatpush.msra.mxu0 0.0
        %4307 = vmatpush.msra.mxu0 0.0
        %4308 = vmatpush.msra.mxu0 0.0
        %4309 = vmatpush.msra.mxu0 0.0
        %4310 = vmatpush.msra.mxu0 0.0
        %4311 = vmatpush.msra.mxu0 0.0
        %4312 = vmatpush.msra.mxu0 %v3951
        %4313 = vmatpush.msra.mxu0 %v3919
        %4314 = vmatpush.msra.mxu0 %v3887
        %4315 = vmatpush.msra.mxu0 %v3855
        %4316 = vmatmul.f32.gmra.mxu0 %v3973
        %v4317 = vpop.f32.mrf.mxu0
        %v4318 = vadd.f32 0.0, %v4317
        %4319 = vmatmul.f32.gmra.mxu0 %v3976
        %v4320 = vpop.f32.mrf.mxu0
        %v4321 = vadd.f32 0.0, %v4320
        %4322 = vdwg.mxu0
        %4323 = vmatpush.msra.mxu0 0.0
        %4324 = vmatpush.msra.mxu0 0.0
        %4325 = vmatpush.msra.mxu0 0.0
        %4326 = vmatpush.msra.mxu0 0.0
        %4327 = vmatpush.msra.mxu0 0.0
        %4328 = vmatpush.msra.mxu0 0.0
        %4329 = vmatpush.msra.mxu0 0.0
        %4330 = vmatpush.msra.mxu0 0.0
        %4331 = vmatpush.msra.mxu0 0.0
        %4332 = vmatpush.msra.mxu0 0.0
        %4333 = vmatpush.msra.mxu0 0.0
        %4334 = vmatpush.msra.mxu0 0.0
        %4335 = vmatpush.msra.mxu0 %v3952
        %4336 = vmatpush.msra.mxu0 %v3920
        %4337 = vmatpush.msra.mxu0 %v3888
        %4338 = vmatpush.msra.mxu0 %v3856
        %4339 = vmatmul.f32.gmra.mxu0 %v3973
        %v4340 = vpop.f32.mrf.mxu0
        %v4341 = vadd.f32 0.0, %v4340
        %4342 = vmatmul.f32.gmra.mxu0 %v3976
        %v4343 = vpop.f32.mrf.mxu0
        %v4344 = vadd.f32 0.0, %v4343
        %4345 = vdwg.mxu0
        %4346 = vmatpush.msra.mxu0 0.0
        %4347 = vmatpush.msra.mxu0 0.0
        %4348 = vmatpush.msra.mxu0 0.0
        %4349 = vmatpush.msra.mxu0 0.0
        %4350 = vmatpush.msra.mxu0 0.0
        %4351 = vmatpush.msra.mxu0 0.0
        %4352 = vmatpush.msra.mxu0 0.0
        %4353 = vmatpush.msra.mxu0 0.0
        %4354 = vmatpush.msra.mxu0 0.0
        %4355 = vmatpush.msra.mxu0 0.0
        %4356 = vmatpush.msra.mxu0 0.0
        %4357 = vmatpush.msra.mxu0 0.0
        %4358 = vmatpush.msra.mxu0 %v3953
        %4359 = vmatpush.msra.mxu0 %v3921
        %4360 = vmatpush.msra.mxu0 %v3889
        %4361 = vmatpush.msra.mxu0 %v3857
        %4362 = vmatmul.f32.gmra.mxu0 %v3973
        %v4363 = vpop.f32.mrf.mxu0
        %v4364 = vadd.f32 0.0, %v4363
        %4365 = vmatmul.f32.gmra.mxu0 %v3976
        %v4366 = vpop.f32.mrf.mxu0
        %v4367 = vadd.f32 0.0, %v4366
        %4368 = vdwg.mxu0
        %4369 = vmatpush.msra.mxu0 0.0
        %4370 = vmatpush.msra.mxu0 0.0
        %4371 = vmatpush.msra.mxu0 0.0
        %4372 = vmatpush.msra.mxu0 0.0
        %4373 = vmatpush.msra.mxu0 0.0
        %4374 = vmatpush.msra.mxu0 0.0
        %4375 = vmatpush.msra.mxu0 0.0
        %4376 = vmatpush.msra.mxu0 0.0
        %4377 = vmatpush.msra.mxu0 0.0
        %4378 = vmatpush.msra.mxu0 0.0
        %4379 = vmatpush.msra.mxu0 0.0
        %4380 = vmatpush.msra.mxu0 0.0
        %4381 = vmatpush.msra.mxu0 %v3954
        %4382 = vmatpush.msra.mxu0 %v3922
        %4383 = vmatpush.msra.mxu0 %v3890
        %4384 = vmatpush.msra.mxu0 %v3858
        %4385 = vmatmul.f32.gmra.mxu0 %v3973
        %v4386 = vpop.f32.mrf.mxu0
        %v4387 = vadd.f32 0.0, %v4386
        %4388 = vmatmul.f32.gmra.mxu0 %v3976
        %v4389 = vpop.f32.mrf.mxu0
        %v4390 = vadd.f32 0.0, %v4389
        %4391 = vdwg.mxu0
        %4392 = vmatpush.msra.mxu0 0.0
        %4393 = vmatpush.msra.mxu0 0.0
        %4394 = vmatpush.msra.mxu0 0.0
        %4395 = vmatpush.msra.mxu0 0.0
        %4396 = vmatpush.msra.mxu0 0.0
        %4397 = vmatpush.msra.mxu0 0.0
        %4398 = vmatpush.msra.mxu0 0.0
        %4399 = vmatpush.msra.mxu0 0.0
        %4400 = vmatpush.msra.mxu0 0.0
        %4401 = vmatpush.msra.mxu0 0.0
        %4402 = vmatpush.msra.mxu0 0.0
        %4403 = vmatpush.msra.mxu0 0.0
        %4404 = vmatpush.msra.mxu0 %v3955
        %4405 = vmatpush.msra.mxu0 %v3923
        %4406 = vmatpush.msra.mxu0 %v3891
        %4407 = vmatpush.msra.mxu0 %v3859
        %4408 = vmatmul.f32.gmra.mxu0 %v3973
        %v4409 = vpop.f32.mrf.mxu0
        %v4410 = vadd.f32 0.0, %v4409
        %4411 = vmatmul.f32.gmra.mxu0 %v3976
        %v4412 = vpop.f32.mrf.mxu0
        %v4413 = vadd.f32 0.0, %v4412
        %4414 = vdwg.mxu0
        %4415 = vmatpush.msra.mxu0 0.0
        %4416 = vmatpush.msra.mxu0 0.0
        %4417 = vmatpush.msra.mxu0 0.0
        %4418 = vmatpush.msra.mxu0 0.0
        %4419 = vmatpush.msra.mxu0 0.0
        %4420 = vmatpush.msra.mxu0 0.0
        %4421 = vmatpush.msra.mxu0 0.0
        %4422 = vmatpush.msra.mxu0 0.0
        %4423 = vmatpush.msra.mxu0 0.0
        %4424 = vmatpush.msra.mxu0 0.0
        %4425 = vmatpush.msra.mxu0 0.0
        %4426 = vmatpush.msra.mxu0 0.0
        %4427 = vmatpush.msra.mxu0 %v3956
        %4428 = vmatpush.msra.mxu0 %v3924
        %4429 = vmatpush.msra.mxu0 %v3892
        %4430 = vmatpush.msra.mxu0 %v3860
        %4431 = vmatmul.f32.gmra.mxu0 %v3973
        %v4432 = vpop.f32.mrf.mxu0
        %v4433 = vadd.f32 0.0, %v4432
        %4434 = vmatmul.f32.gmra.mxu0 %v3976
        %v4435 = vpop.f32.mrf.mxu0
        %v4436 = vadd.f32 0.0, %v4435
        %4437 = vdwg.mxu0
        %4438 = vmatpush.msra.mxu0 0.0
        %4439 = vmatpush.msra.mxu0 0.0
        %4440 = vmatpush.msra.mxu0 0.0
        %4441 = vmatpush.msra.mxu0 0.0
        %4442 = vmatpush.msra.mxu0 0.0
        %4443 = vmatpush.msra.mxu0 0.0
        %4444 = vmatpush.msra.mxu0 0.0
        %4445 = vmatpush.msra.mxu0 0.0
        %4446 = vmatpush.msra.mxu0 0.0
        %4447 = vmatpush.msra.mxu0 0.0
        %4448 = vmatpush.msra.mxu0 0.0
        %4449 = vmatpush.msra.mxu0 0.0
        %4450 = vmatpush.msra.mxu0 %v3957
        %4451 = vmatpush.msra.mxu0 %v3925
        %4452 = vmatpush.msra.mxu0 %v3893
        %4453 = vmatpush.msra.mxu0 %v3861
        %4454 = vmatmul.f32.gmra.mxu0 %v3973
        %v4455 = vpop.f32.mrf.mxu0
        %v4456 = vadd.f32 0.0, %v4455
        %4457 = vmatmul.f32.gmra.mxu0 %v3976
        %v4458 = vpop.f32.mrf.mxu0
        %v4459 = vadd.f32 0.0, %v4458
        %4460 = vdwg.mxu0
        %4461 = vmatpush.msra.mxu0 0.0
        %4462 = vmatpush.msra.mxu0 0.0
        %4463 = vmatpush.msra.mxu0 0.0
        %4464 = vmatpush.msra.mxu0 0.0
        %4465 = vmatpush.msra.mxu0 0.0
        %4466 = vmatpush.msra.mxu0 0.0
        %4467 = vmatpush.msra.mxu0 0.0
        %4468 = vmatpush.msra.mxu0 0.0
        %4469 = vmatpush.msra.mxu0 0.0
        %4470 = vmatpush.msra.mxu0 0.0
        %4471 = vmatpush.msra.mxu0 0.0
        %4472 = vmatpush.msra.mxu0 0.0
        %4473 = vmatpush.msra.mxu0 %v3958
        %4474 = vmatpush.msra.mxu0 %v3926
        %4475 = vmatpush.msra.mxu0 %v3894
        %4476 = vmatpush.msra.mxu0 %v3862
        %4477 = vmatmul.f32.gmra.mxu0 %v3973
        %v4478 = vpop.f32.mrf.mxu0
        %v4479 = vadd.f32 0.0, %v4478
        %4480 = vmatmul.f32.gmra.mxu0 %v3976
        %v4481 = vpop.f32.mrf.mxu0
        %v4482 = vadd.f32 0.0, %v4481
        %4483 = vdwg.mxu0
        %4484 = vmatpush.msra.mxu0 0.0
        %4485 = vmatpush.msra.mxu0 0.0
        %4486 = vmatpush.msra.mxu0 0.0
        %4487 = vmatpush.msra.mxu0 0.0
        %4488 = vmatpush.msra.mxu0 0.0
        %4489 = vmatpush.msra.mxu0 0.0
        %4490 = vmatpush.msra.mxu0 0.0
        %4491 = vmatpush.msra.mxu0 0.0
        %4492 = vmatpush.msra.mxu0 0.0
        %4493 = vmatpush.msra.mxu0 0.0
        %4494 = vmatpush.msra.mxu0 0.0
        %4495 = vmatpush.msra.mxu0 0.0
        %4496 = vmatpush.msra.mxu0 %v3959
        %4497 = vmatpush.msra.mxu0 %v3927
        %4498 = vmatpush.msra.mxu0 %v3895
        %4499 = vmatpush.msra.mxu0 %v3863
        %4500 = vmatmul.f32.gmra.mxu0 %v3973
        %v4501 = vpop.f32.mrf.mxu0
        %v4502 = vadd.f32 0.0, %v4501
        %4503 = vmatmul.f32.gmra.mxu0 %v3976
        %v4504 = vpop.f32.mrf.mxu0
        %v4505 = vadd.f32 0.0, %v4504
        %4506 = vdwg.mxu0
        %4507 = vmatpush.msra.mxu0 0.0
        %4508 = vmatpush.msra.mxu0 0.0
        %4509 = vmatpush.msra.mxu0 0.0
        %4510 = vmatpush.msra.mxu0 0.0
        %4511 = vmatpush.msra.mxu0 0.0
        %4512 = vmatpush.msra.mxu0 0.0
        %4513 = vmatpush.msra.mxu0 0.0
        %4514 = vmatpush.msra.mxu0 0.0
        %4515 = vmatpush.msra.mxu0 0.0
        %4516 = vmatpush.msra.mxu0 0.0
        %4517 = vmatpush.msra.mxu0 0.0
        %4518 = vmatpush.msra.mxu0 0.0
        %4519 = vmatpush.msra.mxu0 %v3960
        %4520 = vmatpush.msra.mxu0 %v3928
        %4521 = vmatpush.msra.mxu0 %v3896
        %4522 = vmatpush.msra.mxu0 %v3864
        %4523 = vmatmul.f32.gmra.mxu0 %v3973
        %v4524 = vpop.f32.mrf.mxu0
        %v4525 = vadd.f32 0.0, %v4524
        %4526 = vmatmul.f32.gmra.mxu0 %v3976
        %v4527 = vpop.f32.mrf.mxu0
        %v4528 = vadd.f32 0.0, %v4527
        %4529 = vdwg.mxu0
        %4530 = vmatpush.msra.mxu0 0.0
        %4531 = vmatpush.msra.mxu0 0.0
        %4532 = vmatpush.msra.mxu0 0.0
        %4533 = vmatpush.msra.mxu0 0.0
        %4534 = vmatpush.msra.mxu0 0.0
        %4535 = vmatpush.msra.mxu0 0.0
        %4536 = vmatpush.msra.mxu0 0.0
        %4537 = vmatpush.msra.mxu0 0.0
        %4538 = vmatpush.msra.mxu0 0.0
        %4539 = vmatpush.msra.mxu0 0.0
        %4540 = vmatpush.msra.mxu0 0.0
        %4541 = vmatpush.msra.mxu0 0.0
        %4542 = vmatpush.msra.mxu0 %v3961
        %4543 = vmatpush.msra.mxu0 %v3929
        %4544 = vmatpush.msra.mxu0 %v3897
        %4545 = vmatpush.msra.mxu0 %v3865
        %4546 = vmatmul.f32.gmra.mxu0 %v3973
        %v4547 = vpop.f32.mrf.mxu0
        %v4548 = vadd.f32 0.0, %v4547
        %4549 = vmatmul.f32.gmra.mxu0 %v3976
        %v4550 = vpop.f32.mrf.mxu0
        %v4551 = vadd.f32 0.0, %v4550
        %4552 = vdwg.mxu0
        %4553 = vmatpush.msra.mxu0 0.0
        %4554 = vmatpush.msra.mxu0 0.0
        %4555 = vmatpush.msra.mxu0 0.0
        %4556 = vmatpush.msra.mxu0 0.0
        %4557 = vmatpush.msra.mxu0 0.0
        %4558 = vmatpush.msra.mxu0 0.0
        %4559 = vmatpush.msra.mxu0 0.0
        %4560 = vmatpush.msra.mxu0 0.0
        %4561 = vmatpush.msra.mxu0 0.0
        %4562 = vmatpush.msra.mxu0 0.0
        %4563 = vmatpush.msra.mxu0 0.0
        %4564 = vmatpush.msra.mxu0 0.0
        %4565 = vmatpush.msra.mxu0 %v3962
        %4566 = vmatpush.msra.mxu0 %v3930
        %4567 = vmatpush.msra.mxu0 %v3898
        %4568 = vmatpush.msra.mxu0 %v3866
        %4569 = vmatmul.f32.gmra.mxu0 %v3973
        %v4570 = vpop.f32.mrf.mxu0
        %v4571 = vadd.f32 0.0, %v4570
        %4572 = vmatmul.f32.gmra.mxu0 %v3976
        %v4573 = vpop.f32.mrf.mxu0
        %v4574 = vadd.f32 0.0, %v4573
        %4575 = vdwg.mxu0
        %4576 = vmatpush.msra.mxu0 0.0
        %4577 = vmatpush.msra.mxu0 0.0
        %4578 = vmatpush.msra.mxu0 0.0
        %4579 = vmatpush.msra.mxu0 0.0
        %4580 = vmatpush.msra.mxu0 0.0
        %4581 = vmatpush.msra.mxu0 0.0
        %4582 = vmatpush.msra.mxu0 0.0
        %4583 = vmatpush.msra.mxu0 0.0
        %4584 = vmatpush.msra.mxu0 0.0
        %4585 = vmatpush.msra.mxu0 0.0
        %4586 = vmatpush.msra.mxu0 0.0
        %4587 = vmatpush.msra.mxu0 0.0
        %4588 = vmatpush.msra.mxu0 %v3963
        %4589 = vmatpush.msra.mxu0 %v3931
        %4590 = vmatpush.msra.mxu0 %v3899
        %4591 = vmatpush.msra.mxu0 %v3867
        %4592 = vmatmul.f32.gmra.mxu0 %v3973
        %v4593 = vpop.f32.mrf.mxu0
        %v4594 = vadd.f32 0.0, %v4593
        %4595 = vmatmul.f32.gmra.mxu0 %v3976
        %v4596 = vpop.f32.mrf.mxu0
        %v4597 = vadd.f32 0.0, %v4596
        %4598 = vdwg.mxu0
        %4599 = vmatpush.msra.mxu0 0.0
        %4600 = vmatpush.msra.mxu0 0.0
        %4601 = vmatpush.msra.mxu0 0.0
        %4602 = vmatpush.msra.mxu0 0.0
        %4603 = vmatpush.msra.mxu0 0.0
        %4604 = vmatpush.msra.mxu0 0.0
        %4605 = vmatpush.msra.mxu0 0.0
        %4606 = vmatpush.msra.mxu0 0.0
        %4607 = vmatpush.msra.mxu0 0.0
        %4608 = vmatpush.msra.mxu0 0.0
        %4609 = vmatpush.msra.mxu0 0.0
        %4610 = vmatpush.msra.mxu0 0.0
        %4611 = vmatpush.msra.mxu0 %v3964
        %4612 = vmatpush.msra.mxu0 %v3932
        %4613 = vmatpush.msra.mxu0 %v3900
        %4614 = vmatpush.msra.mxu0 %v3868
        %4615 = vmatmul.f32.gmra.mxu0 %v3973
        %v4616 = vpop.f32.mrf.mxu0
        %v4617 = vadd.f32 0.0, %v4616
        %4618 = vmatmul.f32.gmra.mxu0 %v3976
        %v4619 = vpop.f32.mrf.mxu0
        %v4620 = vadd.f32 0.0, %v4619
        %4621 = vdwg.mxu0
        %4622 = vmatpush.msra.mxu0 0.0
        %4623 = vmatpush.msra.mxu0 0.0
        %4624 = vmatpush.msra.mxu0 0.0
        %4625 = vmatpush.msra.mxu0 0.0
        %4626 = vmatpush.msra.mxu0 0.0
        %4627 = vmatpush.msra.mxu0 0.0
        %4628 = vmatpush.msra.mxu0 0.0
        %4629 = vmatpush.msra.mxu0 0.0
        %4630 = vmatpush.msra.mxu0 0.0
        %4631 = vmatpush.msra.mxu0 0.0
        %4632 = vmatpush.msra.mxu0 0.0
        %4633 = vmatpush.msra.mxu0 0.0
        %4634 = vmatpush.msra.mxu0 %v3965
        %4635 = vmatpush.msra.mxu0 %v3933
        %4636 = vmatpush.msra.mxu0 %v3901
        %4637 = vmatpush.msra.mxu0 %v3869
        %4638 = vmatmul.f32.gmra.mxu0 %v3973
        %v4639 = vpop.f32.mrf.mxu0
        %v4640 = vadd.f32 0.0, %v4639
        %4641 = vmatmul.f32.gmra.mxu0 %v3976
        %v4642 = vpop.f32.mrf.mxu0
        %v4643 = vadd.f32 0.0, %v4642
        %4644 = vdwg.mxu0
        %4645 = vmatpush.msra.mxu0 0.0
        %4646 = vmatpush.msra.mxu0 0.0
        %4647 = vmatpush.msra.mxu0 0.0
        %4648 = vmatpush.msra.mxu0 0.0
        %4649 = vmatpush.msra.mxu0 0.0
        %4650 = vmatpush.msra.mxu0 0.0
        %4651 = vmatpush.msra.mxu0 0.0
        %4652 = vmatpush.msra.mxu0 0.0
        %4653 = vmatpush.msra.mxu0 0.0
        %4654 = vmatpush.msra.mxu0 0.0
        %4655 = vmatpush.msra.mxu0 0.0
        %4656 = vmatpush.msra.mxu0 0.0
        %4657 = vmatpush.msra.mxu0 %v3966
        %4658 = vmatpush.msra.mxu0 %v3934
        %4659 = vmatpush.msra.mxu0 %v3902
        %4660 = vmatpush.msra.mxu0 %v3870
        %4661 = vmatmul.f32.gmra.mxu0 %v3973
        %v4662 = vpop.f32.mrf.mxu0
        %v4663 = vadd.f32 0.0, %v4662
        %4664 = vmatmul.f32.gmra.mxu0 %v3976
        %v4665 = vpop.f32.mrf.mxu0
        %v4666 = vadd.f32 0.0, %v4665
        %4667 = vdwg.mxu0
        %4668 = vmatpush.msra.mxu0 0.0
        %4669 = vmatpush.msra.mxu0 0.0
        %4670 = vmatpush.msra.mxu0 0.0
        %4671 = vmatpush.msra.mxu0 0.0
        %4672 = vmatpush.msra.mxu0 0.0
        %4673 = vmatpush.msra.mxu0 0.0
        %4674 = vmatpush.msra.mxu0 0.0
        %4675 = vmatpush.msra.mxu0 0.0
        %4676 = vmatpush.msra.mxu0 0.0
        %4677 = vmatpush.msra.mxu0 0.0
        %4678 = vmatpush.msra.mxu0 0.0
        %4679 = vmatpush.msra.mxu0 0.0
        %4680 = vmatpush.msra.mxu0 %v3967
        %4681 = vmatpush.msra.mxu0 %v3935
        %4682 = vmatpush.msra.mxu0 %v3903
        %4683 = vmatpush.msra.mxu0 %v3871
        %4684 = vmatmul.f32.gmra.mxu0 %v3973
        %v4685 = vpop.f32.mrf.mxu0
        %v4686 = vadd.f32 0.0, %v4685
        %4687 = vmatmul.f32.gmra.mxu0 %v3976
        %v4688 = vpop.f32.mrf.mxu0
        %v4689 = vadd.f32 0.0, %v4688
        %4690 = vdwg.mxu0
        %4691 = vmatpush.msra.mxu0 0.0
        %4692 = vmatpush.msra.mxu0 0.0
        %4693 = vmatpush.msra.mxu0 0.0
        %4694 = vmatpush.msra.mxu0 0.0
        %4695 = vmatpush.msra.mxu0 0.0
        %4696 = vmatpush.msra.mxu0 0.0
        %4697 = vmatpush.msra.mxu0 0.0
        %4698 = vmatpush.msra.mxu0 0.0
        %4699 = vmatpush.msra.mxu0 0.0
        %4700 = vmatpush.msra.mxu0 0.0
        %4701 = vmatpush.msra.mxu0 0.0
        %4702 = vmatpush.msra.mxu0 0.0
        %4703 = vmatpush.msra.mxu0 %v3968
        %4704 = vmatpush.msra.mxu0 %v3936
        %4705 = vmatpush.msra.mxu0 %v3904
        %4706 = vmatpush.msra.mxu0 %v3872
        %4707 = vmatmul.f32.gmra.mxu0 %v3973
        %v4708 = vpop.f32.mrf.mxu0
        %v4709 = vadd.f32 0.0, %v4708
        %4710 = vmatmul.f32.gmra.mxu0 %v3976
        %v4711 = vpop.f32.mrf.mxu0
        %v4712 = vadd.f32 0.0, %v4711
        %4713 = vdwg.mxu0
        %4714 = vrot.lane.b32.xlu0 %v3996, 33
        %v4715 = vpop.permute.xlu0 %4714
        %4716 = vrot.lane.b32.xlu0 %v4019, 33
        %v4717 = vpop.permute.xlu0 %4716
        %4718 = vrot.lane.b32.xlu0 %v4042, 33
        %v4719 = vpop.permute.xlu0 %4718
        %4720 = vrot.lane.b32.xlu0 %v4065, 33
        %v4721 = vpop.permute.xlu0 %4720
        %4722 = vrot.lane.b32.xlu0 %v4088, 33
        %v4723 = vpop.permute.xlu0 %4722
        %4724 = vrot.lane.b32.xlu0 %v4111, 33
        %v4725 = vpop.permute.xlu0 %4724
        %4726 = vrot.lane.b32.xlu0 %v4134, 33
        %v4727 = vpop.permute.xlu0 %4726
        %4728 = vrot.lane.b32.xlu0 %v4157, 33
        %v4729 = vpop.permute.xlu0 %4728
        %4730 = vrot.lane.b32.xlu0 %v4180, 33
        %v4731 = vpop.permute.xlu0 %4730
        %4732 = vrot.lane.b32.xlu0 %v4203, 33
        %v4733 = vpop.permute.xlu0 %4732
        %4734 = vrot.lane.b32.xlu0 %v4226, 33
        %v4735 = vpop.permute.xlu0 %4734
        %4736 = vrot.lane.b32.xlu0 %v4249, 33
        %v4737 = vpop.permute.xlu0 %4736
        %4738 = vrot.lane.b32.xlu0 %v4272, 33
        %v4739 = vpop.permute.xlu0 %4738
        %4740 = vrot.lane.b32.xlu0 %v4295, 33
        %v4741 = vpop.permute.xlu0 %4740
        %4742 = vrot.lane.b32.xlu0 %v4318, 33
        %v4743 = vpop.permute.xlu0 %4742
        %4744 = vrot.lane.b32.xlu0 %v4341, 33
        %v4745 = vpop.permute.xlu0 %4744
        %4746 = vrot.lane.b32.xlu0 %v4364, 33
        %v4747 = vpop.permute.xlu0 %4746
        %4748 = vrot.lane.b32.xlu0 %v4387, 33
        %v4749 = vpop.permute.xlu0 %4748
        %4750 = vrot.lane.b32.xlu0 %v4410, 33
        %v4751 = vpop.permute.xlu0 %4750
        %4752 = vrot.lane.b32.xlu0 %v4433, 33
        %v4753 = vpop.permute.xlu0 %4752
        %4754 = vrot.lane.b32.xlu0 %v4456, 33
        %v4755 = vpop.permute.xlu0 %4754
        %4756 = vrot.lane.b32.xlu0 %v4479, 33
        %v4757 = vpop.permute.xlu0 %4756
        %4758 = vrot.lane.b32.xlu0 %v4502, 33
        %v4759 = vpop.permute.xlu0 %4758
        %4760 = vrot.lane.b32.xlu0 %v4525, 33
        %v4761 = vpop.permute.xlu0 %4760
        %4762 = vrot.lane.b32.xlu0 %v4548, 33
        %v4763 = vpop.permute.xlu0 %4762
        %4764 = vrot.lane.b32.xlu0 %v4571, 33
        %v4765 = vpop.permute.xlu0 %4764
        %4766 = vrot.lane.b32.xlu0 %v4594, 33
        %v4767 = vpop.permute.xlu0 %4766
        %4768 = vrot.lane.b32.xlu0 %v4617, 33
        %v4769 = vpop.permute.xlu0 %4768
        %4770 = vrot.lane.b32.xlu0 %v4640, 33
        %v4771 = vpop.permute.xlu0 %4770
        %4772 = vrot.lane.b32.xlu0 %v4663, 33
        %v4773 = vpop.permute.xlu0 %4772
        %4774 = vrot.lane.b32.xlu0 %v4686, 33
        %v4775 = vpop.permute.xlu0 %4774
        %4776 = vrot.lane.b32.xlu0 %v4709, 33
        %v4777 = vpop.permute.xlu0 %4776
        %v4778 = vsel %vm816, %v4775, %v4777
        %v4779 = vsel %vm816, %v4773, %v4775
        %v4780 = vsel %vm816, %v4771, %v4773
        %v4781 = vsel %vm816, %v4769, %v4771
        %v4782 = vsel %vm816, %v4767, %v4769
        %v4783 = vsel %vm816, %v4765, %v4767
        %v4784 = vsel %vm816, %v4763, %v4765
        %v4785 = vsel %vm816, %v4761, %v4763
        %v4786 = vsel %vm816, %v4759, %v4761
        %v4787 = vsel %vm816, %v4757, %v4759
        %v4788 = vsel %vm816, %v4755, %v4757
        %v4789 = vsel %vm816, %v4753, %v4755
        %v4790 = vsel %vm816, %v4751, %v4753
        %v4791 = vsel %vm816, %v4749, %v4751
        %v4792 = vsel %vm816, %v4747, %v4749
        %v4793 = vsel %vm816, %v4745, %v4747
        %v4794 = vsel %vm816, %v4743, %v4745
        %v4795 = vsel %vm816, %v4741, %v4743
        %v4796 = vsel %vm816, %v4739, %v4741
        %v4797 = vsel %vm816, %v4737, %v4739
        %v4798 = vsel %vm816, %v4735, %v4737
        %v4799 = vsel %vm816, %v4733, %v4735
        %v4800 = vsel %vm816, %v4731, %v4733
        %v4801 = vsel %vm816, %v4729, %v4731
        %v4802 = vsel %vm816, %v4727, %v4729
        %v4803 = vsel %vm816, %v4725, %v4727
        %v4804 = vsel %vm816, %v4723, %v4725
        %v4805 = vsel %vm816, %v4721, %v4723
        %v4806 = vsel %vm816, %v4719, %v4721
        %v4807 = vsel %vm816, %v4717, %v4719
        %v4808 = vsel %vm816, %v4715, %v4717
        %v4809 = vsel %vm816, %v4777, %v4715
        %v4810 = vsel %vm624, %v4809, 0.0
        %v4811 = vsel %vm625, %v4808, 0.0
        %v4812 = vsel %vm626, %v4807, 0.0
        %v4813 = vsel %vm627, %v4806, 0.0
        %v4814 = vsel %vm628, %v4805, 0.0
        %v4815 = vsel %vm629, %v4804, 0.0
        %v4816 = vsel %vm630, %v4803, 0.0
        %v4817 = vsel %vm631, %v4802, 0.0
        %v4818 = vsel %vm632, %v4801, 0.0
        %v4819 = vsel %vm633, %v4800, 0.0
        %v4820 = vsel %vm634, %v4799, 0.0
        %v4821 = vsel %vm635, %v4798, 0.0
        %v4822 = vsel %vm636, %v4797, 0.0
        %v4823 = vsel %vm637, %v4796, 0.0
        %v4824 = vsel %vm638, %v4795, 0.0
        %v4825 = vsel %vm639, %v4794, 0.0
        %v4826 = vsel %vm640, %v4793, 0.0
        %v4827 = vsel %vm641, %v4792, 0.0
        %v4828 = vsel %vm642, %v4791, 0.0
        %v4829 = vsel %vm643, %v4790, 0.0
        %v4830 = vsel %vm644, %v4789, 0.0
        %v4831 = vsel %vm645, %v4788, 0.0
        %v4832 = vsel %vm646, %v4787, 0.0
        %v4833 = vsel %vm647, %v4786, 0.0
        %v4834 = vsel %vm648, %v4785, 0.0
        %v4835 = vsel %vm649, %v4784, 0.0
        %v4836 = vsel %vm650, %v4783, 0.0
        %v4837 = vsel %vm651, %v4782, 0.0
        %v4838 = vsel %vm652, %v4781, 0.0
        %v4839 = vsel %vm653, %v4780, 0.0
        %v4840 = vsel %vm654, %v4779, 0.0
        %v4841 = vsel %vm655, %v4778, 0.0
        %v4874 = vrot.slane %v3996, 1
        %v4875 = vrot.slane %v4019, 1
        %v4876 = vrot.slane %v4042, 1
        %v4877 = vrot.slane %v4065, 1
        %v4878 = vrot.slane %v4088, 1
        %v4879 = vrot.slane %v4111, 1
        %v4880 = vrot.slane %v4134, 1
        %v4881 = vrot.slane %v4157, 1
        %v4882 = vrot.slane %v4180, 1
        %v4883 = vrot.slane %v4203, 1
        %v4884 = vrot.slane %v4226, 1
        %v4885 = vrot.slane %v4249, 1
        %v4886 = vrot.slane %v4272, 1
        %v4887 = vrot.slane %v4295, 1
        %v4888 = vrot.slane %v4318, 1
        %v4889 = vrot.slane %v4341, 1
        %v4890 = vrot.slane %v4364, 1
        %v4891 = vrot.slane %v4387, 1
        %v4892 = vrot.slane %v4410, 1
        %v4893 = vrot.slane %v4433, 1
        %v4894 = vrot.slane %v4456, 1
        %v4895 = vrot.slane %v4479, 1
        %v4896 = vrot.slane %v4502, 1
        %v4897 = vrot.slane %v4525, 1
        %v4898 = vrot.slane %v4548, 1
        %v4899 = vrot.slane %v4571, 1
        %v4900 = vrot.slane %v4594, 1
        %v4901 = vrot.slane %v4617, 1
        %v4902 = vrot.slane %v4640, 1
        %v4903 = vrot.slane %v4663, 1
        %v4904 = vrot.slane %v4686, 1
        %v4905 = vrot.slane %v4709, 1
        %4938 = vrot.lane.b32.xlu0 %v4874, 32
        %v4939 = vpop.permute.xlu0 %4938
        %4940 = vrot.lane.b32.xlu0 %v4875, 32
        %v4941 = vpop.permute.xlu0 %4940
        %4942 = vrot.lane.b32.xlu0 %v4876, 32
        %v4943 = vpop.permute.xlu0 %4942
        %4944 = vrot.lane.b32.xlu0 %v4877, 32
        %v4945 = vpop.permute.xlu0 %4944
        %4946 = vrot.lane.b32.xlu0 %v4878, 32
        %v4947 = vpop.permute.xlu0 %4946
        %4948 = vrot.lane.b32.xlu0 %v4879, 32
        %v4949 = vpop.permute.xlu0 %4948
        %4950 = vrot.lane.b32.xlu0 %v4880, 32
        %v4951 = vpop.permute.xlu0 %4950
        %4952 = vrot.lane.b32.xlu0 %v4881, 32
        %v4953 = vpop.permute.xlu0 %4952
        %4954 = vrot.lane.b32.xlu0 %v4882, 32
        %v4955 = vpop.permute.xlu0 %4954
        %4956 = vrot.lane.b32.xlu0 %v4883, 32
        %v4957 = vpop.permute.xlu0 %4956
        %4958 = vrot.lane.b32.xlu0 %v4884, 32
        %v4959 = vpop.permute.xlu0 %4958
        %4960 = vrot.lane.b32.xlu0 %v4885, 32
        %v4961 = vpop.permute.xlu0 %4960
        %4962 = vrot.lane.b32.xlu0 %v4886, 32
        %v4963 = vpop.permute.xlu0 %4962
        %4964 = vrot.lane.b32.xlu0 %v4887, 32
        %v4965 = vpop.permute.xlu0 %4964
        %4966 = vrot.lane.b32.xlu0 %v4888, 32
        %v4967 = vpop.permute.xlu0 %4966
        %4968 = vrot.lane.b32.xlu0 %v4889, 32
        %v4969 = vpop.permute.xlu0 %4968
        %4970 = vrot.lane.b32.xlu0 %v4890, 32
        %v4971 = vpop.permute.xlu0 %4970
        %4972 = vrot.lane.b32.xlu0 %v4891, 32
        %v4973 = vpop.permute.xlu0 %4972
        %4974 = vrot.lane.b32.xlu0 %v4892, 32
        %v4975 = vpop.permute.xlu0 %4974
        %4976 = vrot.lane.b32.xlu0 %v4893, 32
        %v4977 = vpop.permute.xlu0 %4976
        %4978 = vrot.lane.b32.xlu0 %v4894, 32
        %v4979 = vpop.permute.xlu0 %4978
        %4980 = vrot.lane.b32.xlu0 %v4895, 32
        %v4981 = vpop.permute.xlu0 %4980
        %4982 = vrot.lane.b32.xlu0 %v4896, 32
        %v4983 = vpop.permute.xlu0 %4982
        %4984 = vrot.lane.b32.xlu0 %v4897, 32
        %v4985 = vpop.permute.xlu0 %4984
        %4986 = vrot.lane.b32.xlu0 %v4898, 32
        %v4987 = vpop.permute.xlu0 %4986
        %4988 = vrot.lane.b32.xlu0 %v4899, 32
        %v4989 = vpop.permute.xlu0 %4988
        %4990 = vrot.lane.b32.xlu0 %v4900, 32
        %v4991 = vpop.permute.xlu0 %4990
        %4992 = vrot.lane.b32.xlu0 %v4901, 32
        %v4993 = vpop.permute.xlu0 %4992
        %4994 = vrot.lane.b32.xlu0 %v4902, 32
        %v4995 = vpop.permute.xlu0 %4994
        %4996 = vrot.lane.b32.xlu0 %v4903, 32
        %v4997 = vpop.permute.xlu0 %4996
        %4998 = vrot.lane.b32.xlu0 %v4904, 32
        %v4999 = vpop.permute.xlu0 %4998
        %5000 = vrot.lane.b32.xlu0 %v4905, 32
        %v5001 = vpop.permute.xlu0 %5000
        %v5002 = vsel %vm1041, %v4999, %v5001
        %v5003 = vsel %vm1041, %v4997, %v4999
        %v5004 = vsel %vm1041, %v4995, %v4997
        %v5005 = vsel %vm1041, %v4993, %v4995
        %v5006 = vsel %vm1041, %v4991, %v4993
        %v5007 = vsel %vm1041, %v4989, %v4991
        %v5008 = vsel %vm1041, %v4987, %v4989
        %v5009 = vsel %vm1041, %v4985, %v4987
        %v5010 = vsel %vm1041, %v4983, %v4985
        %v5011 = vsel %vm1041, %v4981, %v4983
        %v5012 = vsel %vm1041, %v4979, %v4981
        %v5013 = vsel %vm1041, %v4977, %v4979
        %v5014 = vsel %vm1041, %v4975, %v4977
        %v5015 = vsel %vm1041, %v4973, %v4975
        %v5016 = vsel %vm1041, %v4971, %v4973
        %v5017 = vsel %vm1041, %v4969, %v4971
        %v5018 = vsel %vm1041, %v4967, %v4969
        %v5019 = vsel %vm1041, %v4965, %v4967
        %v5020 = vsel %vm1041, %v4963, %v4965
        %v5021 = vsel %vm1041, %v4961, %v4963
        %v5022 = vsel %vm1041, %v4959, %v4961
        %v5023 = vsel %vm1041, %v4957, %v4959
        %v5024 = vsel %vm1041, %v4955, %v4957
        %v5025 = vsel %vm1041, %v4953, %v4955
        %v5026 = vsel %vm1041, %v4951, %v4953
        %v5027 = vsel %vm1041, %v4949, %v4951
        %v5028 = vsel %vm1041, %v4947, %v4949
        %v5029 = vsel %vm1041, %v4945, %v4947
        %v5030 = vsel %vm1041, %v4943, %v4945
        %v5031 = vsel %vm1041, %v4941, %v4943
        %v5032 = vsel %vm1041, %v4939, %v4941
        %v5033 = vsel %vm1041, %v5001, %v4939
        %v5034 = vsel %vm496, %v5033, 0.0
        %v5035 = vsel %vm497, %v5032, 0.0
        %v5036 = vsel %vm498, %v5031, 0.0
        %v5037 = vsel %vm499, %v5030, 0.0
        %v5038 = vsel %vm500, %v5029, 0.0
        %v5039 = vsel %vm501, %v5028, 0.0
        %v5040 = vsel %vm502, %v5027, 0.0
        %v5041 = vsel %vm503, %v5026, 0.0
        %v5042 = vsel %vm504, %v5025, 0.0
        %v5043 = vsel %vm505, %v5024, 0.0
        %v5044 = vsel %vm506, %v5023, 0.0
        %v5045 = vsel %vm507, %v5022, 0.0
        %v5046 = vsel %vm508, %v5021, 0.0
        %v5047 = vsel %vm509, %v5020, 0.0
        %v5048 = vsel %vm510, %v5019, 0.0
        %v5049 = vsel %vm511, %v5018, 0.0
        %v5050 = vsel %vm512, %v5017, 0.0
        %v5051 = vsel %vm513, %v5016, 0.0
        %v5052 = vsel %vm514, %v5015, 0.0
        %v5053 = vsel %vm515, %v5014, 0.0
        %v5054 = vsel %vm516, %v5013, 0.0
        %v5055 = vsel %vm517, %v5012, 0.0
        %v5056 = vsel %vm518, %v5011, 0.0
        %v5057 = vsel %vm519, %v5010, 0.0
        %v5058 = vsel %vm520, %v5009, 0.0
        %v5059 = vsel %vm521, %v5008, 0.0
        %v5060 = vsel %vm522, %v5007, 0.0
        %v5061 = vsel %vm523, %v5006, 0.0
        %v5062 = vsel %vm524, %v5005, 0.0
        %v5063 = vsel %vm525, %v5004, 0.0
        %v5064 = vsel %vm526, %v5003, 0.0
        %v5065 = vsel %vm527, %v5002, 0.0
        %v5066 = vadd.f32 %v4810, %v5034
        %v5067 = vadd.f32 %v4811, %v5035
        %v5068 = vadd.f32 %v4812, %v5036
        %v5069 = vadd.f32 %v4813, %v5037
        %v5070 = vadd.f32 %v4814, %v5038
        %v5071 = vadd.f32 %v4815, %v5039
        %v5072 = vadd.f32 %v4816, %v5040
        %v5073 = vadd.f32 %v4817, %v5041
        %v5074 = vadd.f32 %v4818, %v5042
        %v5075 = vadd.f32 %v4819, %v5043
        %v5076 = vadd.f32 %v4820, %v5044
        %v5077 = vadd.f32 %v4821, %v5045
        %v5078 = vadd.f32 %v4822, %v5046
        %v5079 = vadd.f32 %v4823, %v5047
        %v5080 = vadd.f32 %v4824, %v5048
        %v5081 = vadd.f32 %v4825, %v5049
        %v5082 = vadd.f32 %v4826, %v5050
        %v5083 = vadd.f32 %v4827, %v5051
        %v5084 = vadd.f32 %v4828, %v5052
        %v5085 = vadd.f32 %v4829, %v5053
        %v5086 = vadd.f32 %v4830, %v5054
        %v5087 = vadd.f32 %v4831, %v5055
        %v5088 = vadd.f32 %v4832, %v5056
        %v5089 = vadd.f32 %v4833, %v5057
        %v5090 = vadd.f32 %v4834, %v5058
        %v5091 = vadd.f32 %v4835, %v5059
        %v5092 = vadd.f32 %v4836, %v5060
        %v5093 = vadd.f32 %v4837, %v5061
        %v5094 = vadd.f32 %v4838, %v5062
        %v5095 = vadd.f32 %v4839, %v5063
        %v5096 = vadd.f32 %v4840, %v5064
        %v5097 = vadd.f32 %v4841, %v5065
        %v5098 = vrot.slane %v3996, 2
        %v5099 = vrot.slane %v4019, 2
        %v5100 = vrot.slane %v4042, 2
        %v5101 = vrot.slane %v4065, 2
        %v5102 = vrot.slane %v4088, 2
        %v5103 = vrot.slane %v4111, 2
        %v5104 = vrot.slane %v4134, 2
        %v5105 = vrot.slane %v4157, 2
        %v5106 = vrot.slane %v4180, 2
        %v5107 = vrot.slane %v4203, 2
        %v5108 = vrot.slane %v4226, 2
        %v5109 = vrot.slane %v4249, 2
        %v5110 = vrot.slane %v4272, 2
        %v5111 = vrot.slane %v4295, 2
        %v5112 = vrot.slane %v4318, 2
        %v5113 = vrot.slane %v4341, 2
        %v5114 = vrot.slane %v4364, 2
        %v5115 = vrot.slane %v4387, 2
        %v5116 = vrot.slane %v4410, 2
        %v5117 = vrot.slane %v4433, 2
        %v5118 = vrot.slane %v4456, 2
        %v5119 = vrot.slane %v4479, 2
        %v5120 = vrot.slane %v4502, 2
        %v5121 = vrot.slane %v4525, 2
        %v5122 = vrot.slane %v4548, 2
        %v5123 = vrot.slane %v4571, 2
        %v5124 = vrot.slane %v4594, 2
        %v5125 = vrot.slane %v4617, 2
        %v5126 = vrot.slane %v4640, 2
        %v5127 = vrot.slane %v4663, 2
        %v5128 = vrot.slane %v4686, 2
        %v5129 = vrot.slane %v4709, 2
        %5162 = vrot.lane.b32.xlu0 %v5098, 31
        %v5163 = vpop.permute.xlu0 %5162
        %5164 = vrot.lane.b32.xlu0 %v5099, 31
        %v5165 = vpop.permute.xlu0 %5164
        %5166 = vrot.lane.b32.xlu0 %v5100, 31
        %v5167 = vpop.permute.xlu0 %5166
        %5168 = vrot.lane.b32.xlu0 %v5101, 31
        %v5169 = vpop.permute.xlu0 %5168
        %5170 = vrot.lane.b32.xlu0 %v5102, 31
        %v5171 = vpop.permute.xlu0 %5170
        %5172 = vrot.lane.b32.xlu0 %v5103, 31
        %v5173 = vpop.permute.xlu0 %5172
        %5174 = vrot.lane.b32.xlu0 %v5104, 31
        %v5175 = vpop.permute.xlu0 %5174
        %5176 = vrot.lane.b32.xlu0 %v5105, 31
        %v5177 = vpop.permute.xlu0 %5176
        %5178 = vrot.lane.b32.xlu0 %v5106, 31
        %v5179 = vpop.permute.xlu0 %5178
        %5180 = vrot.lane.b32.xlu0 %v5107, 31
        %v5181 = vpop.permute.xlu0 %5180
        %5182 = vrot.lane.b32.xlu0 %v5108, 31
        %v5183 = vpop.permute.xlu0 %5182
        %5184 = vrot.lane.b32.xlu0 %v5109, 31
        %v5185 = vpop.permute.xlu0 %5184
        %5186 = vrot.lane.b32.xlu0 %v5110, 31
        %v5187 = vpop.permute.xlu0 %5186
        %5188 = vrot.lane.b32.xlu0 %v5111, 31
        %v5189 = vpop.permute.xlu0 %5188
        %5190 = vrot.lane.b32.xlu0 %v5112, 31
        %v5191 = vpop.permute.xlu0 %5190
        %5192 = vrot.lane.b32.xlu0 %v5113, 31
        %v5193 = vpop.permute.xlu0 %5192
        %5194 = vrot.lane.b32.xlu0 %v5114, 31
        %v5195 = vpop.permute.xlu0 %5194
        %5196 = vrot.lane.b32.xlu0 %v5115, 31
        %v5197 = vpop.permute.xlu0 %5196
        %5198 = vrot.lane.b32.xlu0 %v5116, 31
        %v5199 = vpop.permute.xlu0 %5198
        %5200 = vrot.lane.b32.xlu0 %v5117, 31
        %v5201 = vpop.permute.xlu0 %5200
        %5202 = vrot.lane.b32.xlu0 %v5118, 31
        %v5203 = vpop.permute.xlu0 %5202
        %5204 = vrot.lane.b32.xlu0 %v5119, 31
        %v5205 = vpop.permute.xlu0 %5204
        %5206 = vrot.lane.b32.xlu0 %v5120, 31
        %v5207 = vpop.permute.xlu0 %5206
        %5208 = vrot.lane.b32.xlu0 %v5121, 31
        %v5209 = vpop.permute.xlu0 %5208
        %5210 = vrot.lane.b32.xlu0 %v5122, 31
        %v5211 = vpop.permute.xlu0 %5210
        %5212 = vrot.lane.b32.xlu0 %v5123, 31
        %v5213 = vpop.permute.xlu0 %5212
        %5214 = vrot.lane.b32.xlu0 %v5124, 31
        %v5215 = vpop.permute.xlu0 %5214
        %5216 = vrot.lane.b32.xlu0 %v5125, 31
        %v5217 = vpop.permute.xlu0 %5216
        %5218 = vrot.lane.b32.xlu0 %v5126, 31
        %v5219 = vpop.permute.xlu0 %5218
        %5220 = vrot.lane.b32.xlu0 %v5127, 31
        %v5221 = vpop.permute.xlu0 %5220
        %5222 = vrot.lane.b32.xlu0 %v5128, 31
        %v5223 = vpop.permute.xlu0 %5222
        %5224 = vrot.lane.b32.xlu0 %v5129, 31
        %v5225 = vpop.permute.xlu0 %5224
        %v5226 = vsel %vm1266, %v5223, %v5225
        %v5227 = vsel %vm1266, %v5221, %v5223
        %v5228 = vsel %vm1266, %v5219, %v5221
        %v5229 = vsel %vm1266, %v5217, %v5219
        %v5230 = vsel %vm1266, %v5215, %v5217
        %v5231 = vsel %vm1266, %v5213, %v5215
        %v5232 = vsel %vm1266, %v5211, %v5213
        %v5233 = vsel %vm1266, %v5209, %v5211
        %v5234 = vsel %vm1266, %v5207, %v5209
        %v5235 = vsel %vm1266, %v5205, %v5207
        %v5236 = vsel %vm1266, %v5203, %v5205
        %v5237 = vsel %vm1266, %v5201, %v5203
        %v5238 = vsel %vm1266, %v5199, %v5201
        %v5239 = vsel %vm1266, %v5197, %v5199
        %v5240 = vsel %vm1266, %v5195, %v5197
        %v5241 = vsel %vm1266, %v5193, %v5195
        %v5242 = vsel %vm1266, %v5191, %v5193
        %v5243 = vsel %vm1266, %v5189, %v5191
        %v5244 = vsel %vm1266, %v5187, %v5189
        %v5245 = vsel %vm1266, %v5185, %v5187
        %v5246 = vsel %vm1266, %v5183, %v5185
        %v5247 = vsel %vm1266, %v5181, %v5183
        %v5248 = vsel %vm1266, %v5179, %v5181
        %v5249 = vsel %vm1266, %v5177, %v5179
        %v5250 = vsel %vm1266, %v5175, %v5177
        %v5251 = vsel %vm1266, %v5173, %v5175
        %v5252 = vsel %vm1266, %v5171, %v5173
        %v5253 = vsel %vm1266, %v5169, %v5171
        %v5254 = vsel %vm1266, %v5167, %v5169
        %v5255 = vsel %vm1266, %v5165, %v5167
        %v5256 = vsel %vm1266, %v5163, %v5165
        %v5257 = vsel %vm1266, %v5225, %v5163
        %v5258 = vsel %vm656, %v5257, 0.0
        %v5259 = vsel %vm657, %v5256, 0.0
        %v5260 = vsel %vm658, %v5255, 0.0
        %v5261 = vsel %vm659, %v5254, 0.0
        %v5262 = vsel %vm660, %v5253, 0.0
        %v5263 = vsel %vm661, %v5252, 0.0
        %v5264 = vsel %vm662, %v5251, 0.0
        %v5265 = vsel %vm663, %v5250, 0.0
        %v5266 = vsel %vm664, %v5249, 0.0
        %v5267 = vsel %vm665, %v5248, 0.0
        %v5268 = vsel %vm666, %v5247, 0.0
        %v5269 = vsel %vm667, %v5246, 0.0
        %v5270 = vsel %vm668, %v5245, 0.0
        %v5271 = vsel %vm669, %v5244, 0.0
        %v5272 = vsel %vm670, %v5243, 0.0
        %v5273 = vsel %vm671, %v5242, 0.0
        %v5274 = vsel %vm672, %v5241, 0.0
        %v5275 = vsel %vm673, %v5240, 0.0
        %v5276 = vsel %vm674, %v5239, 0.0
        %v5277 = vsel %vm675, %v5238, 0.0
        %v5278 = vsel %vm676, %v5237, 0.0
        %v5279 = vsel %vm677, %v5236, 0.0
        %v5280 = vsel %vm678, %v5235, 0.0
        %v5281 = vsel %vm679, %v5234, 0.0
        %v5282 = vsel %vm680, %v5233, 0.0
        %v5283 = vsel %vm681, %v5232, 0.0
        %v5284 = vsel %vm682, %v5231, 0.0
        %v5285 = vsel %vm683, %v5230, 0.0
        %v5286 = vsel %vm684, %v5229, 0.0
        %v5287 = vsel %vm685, %v5228, 0.0
        %v5288 = vsel %vm686, %v5227, 0.0
        %v5289 = vsel %vm687, %v5226, 0.0
        %v5290 = vadd.f32 %v5066, %v5258
        %v5291 = vadd.f32 %v5067, %v5259
        %v5292 = vadd.f32 %v5068, %v5260
        %v5293 = vadd.f32 %v5069, %v5261
        %v5294 = vadd.f32 %v5070, %v5262
        %v5295 = vadd.f32 %v5071, %v5263
        %v5296 = vadd.f32 %v5072, %v5264
        %v5297 = vadd.f32 %v5073, %v5265
        %v5298 = vadd.f32 %v5074, %v5266
        %v5299 = vadd.f32 %v5075, %v5267
        %v5300 = vadd.f32 %v5076, %v5268
        %v5301 = vadd.f32 %v5077, %v5269
        %v5302 = vadd.f32 %v5078, %v5270
        %v5303 = vadd.f32 %v5079, %v5271
        %v5304 = vadd.f32 %v5080, %v5272
        %v5305 = vadd.f32 %v5081, %v5273
        %v5306 = vadd.f32 %v5082, %v5274
        %v5307 = vadd.f32 %v5083, %v5275
        %v5308 = vadd.f32 %v5084, %v5276
        %v5309 = vadd.f32 %v5085, %v5277
        %v5310 = vadd.f32 %v5086, %v5278
        %v5311 = vadd.f32 %v5087, %v5279
        %v5312 = vadd.f32 %v5088, %v5280
        %v5313 = vadd.f32 %v5089, %v5281
        %v5314 = vadd.f32 %v5090, %v5282
        %v5315 = vadd.f32 %v5091, %v5283
        %v5316 = vadd.f32 %v5092, %v5284
        %v5317 = vadd.f32 %v5093, %v5285
        %v5318 = vadd.f32 %v5094, %v5286
        %v5319 = vadd.f32 %v5095, %v5287
        %v5320 = vadd.f32 %v5096, %v5288
        %v5321 = vadd.f32 %v5097, %v5289
        %v5322 = vrot.slane %v3996, 3
        %v5323 = vrot.slane %v4019, 3
        %v5324 = vrot.slane %v4042, 3
        %v5325 = vrot.slane %v4065, 3
        %v5326 = vrot.slane %v4088, 3
        %v5327 = vrot.slane %v4111, 3
        %v5328 = vrot.slane %v4134, 3
        %v5329 = vrot.slane %v4157, 3
        %v5330 = vrot.slane %v4180, 3
        %v5331 = vrot.slane %v4203, 3
        %v5332 = vrot.slane %v4226, 3
        %v5333 = vrot.slane %v4249, 3
        %v5334 = vrot.slane %v4272, 3
        %v5335 = vrot.slane %v4295, 3
        %v5336 = vrot.slane %v4318, 3
        %v5337 = vrot.slane %v4341, 3
        %v5338 = vrot.slane %v4364, 3
        %v5339 = vrot.slane %v4387, 3
        %v5340 = vrot.slane %v4410, 3
        %v5341 = vrot.slane %v4433, 3
        %v5342 = vrot.slane %v4456, 3
        %v5343 = vrot.slane %v4479, 3
        %v5344 = vrot.slane %v4502, 3
        %v5345 = vrot.slane %v4525, 3
        %v5346 = vrot.slane %v4548, 3
        %v5347 = vrot.slane %v4571, 3
        %v5348 = vrot.slane %v4594, 3
        %v5349 = vrot.slane %v4617, 3
        %v5350 = vrot.slane %v4640, 3
        %v5351 = vrot.slane %v4663, 3
        %v5352 = vrot.slane %v4686, 3
        %v5353 = vrot.slane %v4709, 3
        %5386 = vrot.lane.b32.xlu0 %v5322, 1
        %v5387 = vpop.permute.xlu0 %5386
        %5388 = vrot.lane.b32.xlu0 %v5323, 1
        %v5389 = vpop.permute.xlu0 %5388
        %5390 = vrot.lane.b32.xlu0 %v5324, 1
        %v5391 = vpop.permute.xlu0 %5390
        %5392 = vrot.lane.b32.xlu0 %v5325, 1
        %v5393 = vpop.permute.xlu0 %5392
        %5394 = vrot.lane.b32.xlu0 %v5326, 1
        %v5395 = vpop.permute.xlu0 %5394
        %5396 = vrot.lane.b32.xlu0 %v5327, 1
        %v5397 = vpop.permute.xlu0 %5396
        %5398 = vrot.lane.b32.xlu0 %v5328, 1
        %v5399 = vpop.permute.xlu0 %5398
        %5400 = vrot.lane.b32.xlu0 %v5329, 1
        %v5401 = vpop.permute.xlu0 %5400
        %5402 = vrot.lane.b32.xlu0 %v5330, 1
        %v5403 = vpop.permute.xlu0 %5402
        %5404 = vrot.lane.b32.xlu0 %v5331, 1
        %v5405 = vpop.permute.xlu0 %5404
        %5406 = vrot.lane.b32.xlu0 %v5332, 1
        %v5407 = vpop.permute.xlu0 %5406
        %5408 = vrot.lane.b32.xlu0 %v5333, 1
        %v5409 = vpop.permute.xlu0 %5408
        %5410 = vrot.lane.b32.xlu0 %v5334, 1
        %v5411 = vpop.permute.xlu0 %5410
        %5412 = vrot.lane.b32.xlu0 %v5335, 1
        %v5413 = vpop.permute.xlu0 %5412
        %5414 = vrot.lane.b32.xlu0 %v5336, 1
        %v5415 = vpop.permute.xlu0 %5414
        %5416 = vrot.lane.b32.xlu0 %v5337, 1
        %v5417 = vpop.permute.xlu0 %5416
        %5418 = vrot.lane.b32.xlu0 %v5338, 1
        %v5419 = vpop.permute.xlu0 %5418
        %5420 = vrot.lane.b32.xlu0 %v5339, 1
        %v5421 = vpop.permute.xlu0 %5420
        %5422 = vrot.lane.b32.xlu0 %v5340, 1
        %v5423 = vpop.permute.xlu0 %5422
        %5424 = vrot.lane.b32.xlu0 %v5341, 1
        %v5425 = vpop.permute.xlu0 %5424
        %5426 = vrot.lane.b32.xlu0 %v5342, 1
        %v5427 = vpop.permute.xlu0 %5426
        %5428 = vrot.lane.b32.xlu0 %v5343, 1
        %v5429 = vpop.permute.xlu0 %5428
        %5430 = vrot.lane.b32.xlu0 %v5344, 1
        %v5431 = vpop.permute.xlu0 %5430
        %5432 = vrot.lane.b32.xlu0 %v5345, 1
        %v5433 = vpop.permute.xlu0 %5432
        %5434 = vrot.lane.b32.xlu0 %v5346, 1
        %v5435 = vpop.permute.xlu0 %5434
        %5436 = vrot.lane.b32.xlu0 %v5347, 1
        %v5437 = vpop.permute.xlu0 %5436
        %5438 = vrot.lane.b32.xlu0 %v5348, 1
        %v5439 = vpop.permute.xlu0 %5438
        %5440 = vrot.lane.b32.xlu0 %v5349, 1
        %v5441 = vpop.permute.xlu0 %5440
        %5442 = vrot.lane.b32.xlu0 %v5350, 1
        %v5443 = vpop.permute.xlu0 %5442
        %5444 = vrot.lane.b32.xlu0 %v5351, 1
        %v5445 = vpop.permute.xlu0 %5444
        %5446 = vrot.lane.b32.xlu0 %v5352, 1
        %v5447 = vpop.permute.xlu0 %5446
        %5448 = vrot.lane.b32.xlu0 %v5353, 1
        %v5449 = vpop.permute.xlu0 %5448
        %v5450 = vsel %vm1491, %v5447, %v5449
        %v5451 = vsel %vm1491, %v5445, %v5447
        %v5452 = vsel %vm1491, %v5443, %v5445
        %v5453 = vsel %vm1491, %v5441, %v5443
        %v5454 = vsel %vm1491, %v5439, %v5441
        %v5455 = vsel %vm1491, %v5437, %v5439
        %v5456 = vsel %vm1491, %v5435, %v5437
        %v5457 = vsel %vm1491, %v5433, %v5435
        %v5458 = vsel %vm1491, %v5431, %v5433
        %v5459 = vsel %vm1491, %v5429, %v5431
        %v5460 = vsel %vm1491, %v5427, %v5429
        %v5461 = vsel %vm1491, %v5425, %v5427
        %v5462 = vsel %vm1491, %v5423, %v5425
        %v5463 = vsel %vm1491, %v5421, %v5423
        %v5464 = vsel %vm1491, %v5419, %v5421
        %v5465 = vsel %vm1491, %v5417, %v5419
        %v5466 = vsel %vm1491, %v5415, %v5417
        %v5467 = vsel %vm1491, %v5413, %v5415
        %v5468 = vsel %vm1491, %v5411, %v5413
        %v5469 = vsel %vm1491, %v5409, %v5411
        %v5470 = vsel %vm1491, %v5407, %v5409
        %v5471 = vsel %vm1491, %v5405, %v5407
        %v5472 = vsel %vm1491, %v5403, %v5405
        %v5473 = vsel %vm1491, %v5401, %v5403
        %v5474 = vsel %vm1491, %v5399, %v5401
        %v5475 = vsel %vm1491, %v5397, %v5399
        %v5476 = vsel %vm1491, %v5395, %v5397
        %v5477 = vsel %vm1491, %v5393, %v5395
        %v5478 = vsel %vm1491, %v5391, %v5393
        %v5479 = vsel %vm1491, %v5389, %v5391
        %v5480 = vsel %vm1491, %v5387, %v5389
        %v5481 = vsel %vm1491, %v5449, %v5387
        %v5482 = vsel %vm560, %v5481, 0.0
        %v5483 = vsel %vm561, %v5480, 0.0
        %v5484 = vsel %vm562, %v5479, 0.0
        %v5485 = vsel %vm563, %v5478, 0.0
        %v5486 = vsel %vm564, %v5477, 0.0
        %v5487 = vsel %vm565, %v5476, 0.0
        %v5488 = vsel %vm566, %v5475, 0.0
        %v5489 = vsel %vm567, %v5474, 0.0
        %v5490 = vsel %vm568, %v5473, 0.0
        %v5491 = vsel %vm569, %v5472, 0.0
        %v5492 = vsel %vm570, %v5471, 0.0
        %v5493 = vsel %vm571, %v5470, 0.0
        %v5494 = vsel %vm572, %v5469, 0.0
        %v5495 = vsel %vm573, %v5468, 0.0
        %v5496 = vsel %vm574, %v5467, 0.0
        %v5497 = vsel %vm575, %v5466, 0.0
        %v5498 = vsel %vm576, %v5465, 0.0
        %v5499 = vsel %vm577, %v5464, 0.0
        %v5500 = vsel %vm578, %v5463, 0.0
        %v5501 = vsel %vm579, %v5462, 0.0
        %v5502 = vsel %vm580, %v5461, 0.0
        %v5503 = vsel %vm581, %v5460, 0.0
        %v5504 = vsel %vm582, %v5459, 0.0
        %v5505 = vsel %vm583, %v5458, 0.0
        %v5506 = vsel %vm584, %v5457, 0.0
        %v5507 = vsel %vm585, %v5456, 0.0
        %v5508 = vsel %vm586, %v5455, 0.0
        %v5509 = vsel %vm587, %v5454, 0.0
        %v5510 = vsel %vm588, %v5453, 0.0
        %v5511 = vsel %vm589, %v5452, 0.0
        %v5512 = vsel %vm590, %v5451, 0.0
        %v5513 = vsel %vm591, %v5450, 0.0
        %v5514 = vadd.f32 %v5290, %v5482
        %v5515 = vadd.f32 %v5291, %v5483
        %v5516 = vadd.f32 %v5292, %v5484
        %v5517 = vadd.f32 %v5293, %v5485
        %v5518 = vadd.f32 %v5294, %v5486
        %v5519 = vadd.f32 %v5295, %v5487
        %v5520 = vadd.f32 %v5296, %v5488
        %v5521 = vadd.f32 %v5297, %v5489
        %v5522 = vadd.f32 %v5298, %v5490
        %v5523 = vadd.f32 %v5299, %v5491
        %v5524 = vadd.f32 %v5300, %v5492
        %v5525 = vadd.f32 %v5301, %v5493
        %v5526 = vadd.f32 %v5302, %v5494
        %v5527 = vadd.f32 %v5303, %v5495
        %v5528 = vadd.f32 %v5304, %v5496
        %v5529 = vadd.f32 %v5305, %v5497
        %v5530 = vadd.f32 %v5306, %v5498
        %v5531 = vadd.f32 %v5307, %v5499
        %v5532 = vadd.f32 %v5308, %v5500
        %v5533 = vadd.f32 %v5309, %v5501
        %v5534 = vadd.f32 %v5310, %v5502
        %v5535 = vadd.f32 %v5311, %v5503
        %v5536 = vadd.f32 %v5312, %v5504
        %v5537 = vadd.f32 %v5313, %v5505
        %v5538 = vadd.f32 %v5314, %v5506
        %v5539 = vadd.f32 %v5315, %v5507
        %v5540 = vadd.f32 %v5316, %v5508
        %v5541 = vadd.f32 %v5317, %v5509
        %v5542 = vadd.f32 %v5318, %v5510
        %v5543 = vadd.f32 %v5319, %v5511
        %v5544 = vadd.f32 %v5320, %v5512
        %v5545 = vadd.f32 %v5321, %v5513
        %v5546 = vrot.slane %v3996, 4
        %v5547 = vrot.slane %v4019, 4
        %v5548 = vrot.slane %v4042, 4
        %v5549 = vrot.slane %v4065, 4
        %v5550 = vrot.slane %v4088, 4
        %v5551 = vrot.slane %v4111, 4
        %v5552 = vrot.slane %v4134, 4
        %v5553 = vrot.slane %v4157, 4
        %v5554 = vrot.slane %v4180, 4
        %v5555 = vrot.slane %v4203, 4
        %v5556 = vrot.slane %v4226, 4
        %v5557 = vrot.slane %v4249, 4
        %v5558 = vrot.slane %v4272, 4
        %v5559 = vrot.slane %v4295, 4
        %v5560 = vrot.slane %v4318, 4
        %v5561 = vrot.slane %v4341, 4
        %v5562 = vrot.slane %v4364, 4
        %v5563 = vrot.slane %v4387, 4
        %v5564 = vrot.slane %v4410, 4
        %v5565 = vrot.slane %v4433, 4
        %v5566 = vrot.slane %v4456, 4
        %v5567 = vrot.slane %v4479, 4
        %v5568 = vrot.slane %v4502, 4
        %v5569 = vrot.slane %v4525, 4
        %v5570 = vrot.slane %v4548, 4
        %v5571 = vrot.slane %v4571, 4
        %v5572 = vrot.slane %v4594, 4
        %v5573 = vrot.slane %v4617, 4
        %v5574 = vrot.slane %v4640, 4
        %v5575 = vrot.slane %v4663, 4
        %v5576 = vrot.slane %v4686, 4
        %v5577 = vrot.slane %v4709, 4
        %v5610 = vadd.f32 %v5514, %v5546
        %v5611 = vadd.f32 %v5515, %v5547
        %v5612 = vadd.f32 %v5516, %v5548
        %v5613 = vadd.f32 %v5517, %v5549
        %v5614 = vadd.f32 %v5518, %v5550
        %v5615 = vadd.f32 %v5519, %v5551
        %v5616 = vadd.f32 %v5520, %v5552
        %v5617 = vadd.f32 %v5521, %v5553
        %v5618 = vadd.f32 %v5522, %v5554
        %v5619 = vadd.f32 %v5523, %v5555
        %v5620 = vadd.f32 %v5524, %v5556
        %v5621 = vadd.f32 %v5525, %v5557
        %v5622 = vadd.f32 %v5526, %v5558
        %v5623 = vadd.f32 %v5527, %v5559
        %v5624 = vadd.f32 %v5528, %v5560
        %v5625 = vadd.f32 %v5529, %v5561
        %v5626 = vadd.f32 %v5530, %v5562
        %v5627 = vadd.f32 %v5531, %v5563
        %v5628 = vadd.f32 %v5532, %v5564
        %v5629 = vadd.f32 %v5533, %v5565
        %v5630 = vadd.f32 %v5534, %v5566
        %v5631 = vadd.f32 %v5535, %v5567
        %v5632 = vadd.f32 %v5536, %v5568
        %v5633 = vadd.f32 %v5537, %v5569
        %v5634 = vadd.f32 %v5538, %v5570
        %v5635 = vadd.f32 %v5539, %v5571
        %v5636 = vadd.f32 %v5540, %v5572
        %v5637 = vadd.f32 %v5541, %v5573
        %v5638 = vadd.f32 %v5542, %v5574
        %v5639 = vadd.f32 %v5543, %v5575
        %v5640 = vadd.f32 %v5544, %v5576
        %v5641 = vadd.f32 %v5545, %v5577
        %v5642 = vrot.slane %v3996, 5
        %v5643 = vrot.slane %v4019, 5
        %v5644 = vrot.slane %v4042, 5
        %v5645 = vrot.slane %v4065, 5
        %v5646 = vrot.slane %v4088, 5
        %v5647 = vrot.slane %v4111, 5
        %v5648 = vrot.slane %v4134, 5
        %v5649 = vrot.slane %v4157, 5
        %v5650 = vrot.slane %v4180, 5
        %v5651 = vrot.slane %v4203, 5
        %v5652 = vrot.slane %v4226, 5
        %v5653 = vrot.slane %v4249, 5
        %v5654 = vrot.slane %v4272, 5
        %v5655 = vrot.slane %v4295, 5
        %v5656 = vrot.slane %v4318, 5
        %v5657 = vrot.slane %v4341, 5
        %v5658 = vrot.slane %v4364, 5
        %v5659 = vrot.slane %v4387, 5
        %v5660 = vrot.slane %v4410, 5
        %v5661 = vrot.slane %v4433, 5
        %v5662 = vrot.slane %v4456, 5
        %v5663 = vrot.slane %v4479, 5
        %v5664 = vrot.slane %v4502, 5
        %v5665 = vrot.slane %v4525, 5
        %v5666 = vrot.slane %v4548, 5
        %v5667 = vrot.slane %v4571, 5
        %v5668 = vrot.slane %v4594, 5
        %v5669 = vrot.slane %v4617, 5
        %v5670 = vrot.slane %v4640, 5
        %v5671 = vrot.slane %v4663, 5
        %v5672 = vrot.slane %v4686, 5
        %v5673 = vrot.slane %v4709, 5
        %5706 = vrot.lane.b32.xlu0 %v5642, 127
        %v5707 = vpop.permute.xlu0 %5706
        %5708 = vrot.lane.b32.xlu0 %v5643, 127
        %v5709 = vpop.permute.xlu0 %5708
        %5710 = vrot.lane.b32.xlu0 %v5644, 127
        %v5711 = vpop.permute.xlu0 %5710
        %5712 = vrot.lane.b32.xlu0 %v5645, 127
        %v5713 = vpop.permute.xlu0 %5712
        %5714 = vrot.lane.b32.xlu0 %v5646, 127
        %v5715 = vpop.permute.xlu0 %5714
        %5716 = vrot.lane.b32.xlu0 %v5647, 127
        %v5717 = vpop.permute.xlu0 %5716
        %5718 = vrot.lane.b32.xlu0 %v5648, 127
        %v5719 = vpop.permute.xlu0 %5718
        %5720 = vrot.lane.b32.xlu0 %v5649, 127
        %v5721 = vpop.permute.xlu0 %5720
        %5722 = vrot.lane.b32.xlu0 %v5650, 127
        %v5723 = vpop.permute.xlu0 %5722
        %5724 = vrot.lane.b32.xlu0 %v5651, 127
        %v5725 = vpop.permute.xlu0 %5724
        %5726 = vrot.lane.b32.xlu0 %v5652, 127
        %v5727 = vpop.permute.xlu0 %5726
        %5728 = vrot.lane.b32.xlu0 %v5653, 127
        %v5729 = vpop.permute.xlu0 %5728
        %5730 = vrot.lane.b32.xlu0 %v5654, 127
        %v5731 = vpop.permute.xlu0 %5730
        %5732 = vrot.lane.b32.xlu0 %v5655, 127
        %v5733 = vpop.permute.xlu0 %5732
        %5734 = vrot.lane.b32.xlu0 %v5656, 127
        %v5735 = vpop.permute.xlu0 %5734
        %5736 = vrot.lane.b32.xlu0 %v5657, 127
        %v5737 = vpop.permute.xlu0 %5736
        %5738 = vrot.lane.b32.xlu0 %v5658, 127
        %v5739 = vpop.permute.xlu0 %5738
        %5740 = vrot.lane.b32.xlu0 %v5659, 127
        %v5741 = vpop.permute.xlu0 %5740
        %5742 = vrot.lane.b32.xlu0 %v5660, 127
        %v5743 = vpop.permute.xlu0 %5742
        %5744 = vrot.lane.b32.xlu0 %v5661, 127
        %v5745 = vpop.permute.xlu0 %5744
        %5746 = vrot.lane.b32.xlu0 %v5662, 127
        %v5747 = vpop.permute.xlu0 %5746
        %5748 = vrot.lane.b32.xlu0 %v5663, 127
        %v5749 = vpop.permute.xlu0 %5748
        %5750 = vrot.lane.b32.xlu0 %v5664, 127
        %v5751 = vpop.permute.xlu0 %5750
        %5752 = vrot.lane.b32.xlu0 %v5665, 127
        %v5753 = vpop.permute.xlu0 %5752
        %5754 = vrot.lane.b32.xlu0 %v5666, 127
        %v5755 = vpop.permute.xlu0 %5754
        %5756 = vrot.lane.b32.xlu0 %v5667, 127
        %v5757 = vpop.permute.xlu0 %5756
        %5758 = vrot.lane.b32.xlu0 %v5668, 127
        %v5759 = vpop.permute.xlu0 %5758
        %5760 = vrot.lane.b32.xlu0 %v5669, 127
        %v5761 = vpop.permute.xlu0 %5760
        %5762 = vrot.lane.b32.xlu0 %v5670, 127
        %v5763 = vpop.permute.xlu0 %5762
        %5764 = vrot.lane.b32.xlu0 %v5671, 127
        %v5765 = vpop.permute.xlu0 %5764
        %5766 = vrot.lane.b32.xlu0 %v5672, 127
        %v5767 = vpop.permute.xlu0 %5766
        %5768 = vrot.lane.b32.xlu0 %v5673, 127
        %v5769 = vpop.permute.xlu0 %5768
        %v5770 = vsel %vm1748, %v5767, %v5769
        %v5771 = vsel %vm1748, %v5765, %v5767
        %v5772 = vsel %vm1748, %v5763, %v5765
        %v5773 = vsel %vm1748, %v5761, %v5763
        %v5774 = vsel %vm1748, %v5759, %v5761
        %v5775 = vsel %vm1748, %v5757, %v5759
        %v5776 = vsel %vm1748, %v5755, %v5757
        %v5777 = vsel %vm1748, %v5753, %v5755
        %v5778 = vsel %vm1748, %v5751, %v5753
        %v5779 = vsel %vm1748, %v5749, %v5751
        %v5780 = vsel %vm1748, %v5747, %v5749
        %v5781 = vsel %vm1748, %v5745, %v5747
        %v5782 = vsel %vm1748, %v5743, %v5745
        %v5783 = vsel %vm1748, %v5741, %v5743
        %v5784 = vsel %vm1748, %v5739, %v5741
        %v5785 = vsel %vm1748, %v5737, %v5739
        %v5786 = vsel %vm1748, %v5735, %v5737
        %v5787 = vsel %vm1748, %v5733, %v5735
        %v5788 = vsel %vm1748, %v5731, %v5733
        %v5789 = vsel %vm1748, %v5729, %v5731
        %v5790 = vsel %vm1748, %v5727, %v5729
        %v5791 = vsel %vm1748, %v5725, %v5727
        %v5792 = vsel %vm1748, %v5723, %v5725
        %v5793 = vsel %vm1748, %v5721, %v5723
        %v5794 = vsel %vm1748, %v5719, %v5721
        %v5795 = vsel %vm1748, %v5717, %v5719
        %v5796 = vsel %vm1748, %v5715, %v5717
        %v5797 = vsel %vm1748, %v5713, %v5715
        %v5798 = vsel %vm1748, %v5711, %v5713
        %v5799 = vsel %vm1748, %v5709, %v5711
        %v5800 = vsel %vm1748, %v5707, %v5709
        %v5801 = vsel %vm1748, %v5769, %v5707
        %v5802 = vsel %vm592, %v5800, 0.0
        %v5803 = vsel %vm593, %v5799, 0.0
        %v5804 = vsel %vm594, %v5798, 0.0
        %v5805 = vsel %vm595, %v5797, 0.0
        %v5806 = vsel %vm596, %v5796, 0.0
        %v5807 = vsel %vm597, %v5795, 0.0
        %v5808 = vsel %vm598, %v5794, 0.0
        %v5809 = vsel %vm599, %v5793, 0.0
        %v5810 = vsel %vm600, %v5792, 0.0
        %v5811 = vsel %vm601, %v5791, 0.0
        %v5812 = vsel %vm602, %v5790, 0.0
        %v5813 = vsel %vm603, %v5789, 0.0
        %v5814 = vsel %vm604, %v5788, 0.0
        %v5815 = vsel %vm605, %v5787, 0.0
        %v5816 = vsel %vm606, %v5786, 0.0
        %v5817 = vsel %vm607, %v5785, 0.0
        %v5818 = vsel %vm608, %v5784, 0.0
        %v5819 = vsel %vm609, %v5783, 0.0
        %v5820 = vsel %vm610, %v5782, 0.0
        %v5821 = vsel %vm611, %v5781, 0.0
        %v5822 = vsel %vm612, %v5780, 0.0
        %v5823 = vsel %vm613, %v5779, 0.0
        %v5824 = vsel %vm614, %v5778, 0.0
        %v5825 = vsel %vm615, %v5777, 0.0
        %v5826 = vsel %vm616, %v5776, 0.0
        %v5827 = vsel %vm617, %v5775, 0.0
        %v5828 = vsel %vm618, %v5774, 0.0
        %v5829 = vsel %vm619, %v5773, 0.0
        %v5830 = vsel %vm620, %v5772, 0.0
        %v5831 = vsel %vm621, %v5771, 0.0
        %v5832 = vsel %vm622, %v5770, 0.0
        %v5833 = vsel %vm623, %v5801, 0.0
        %v5834 = vadd.f32 %v5610, %v5802
        %v5835 = vadd.f32 %v5611, %v5803
        %v5836 = vadd.f32 %v5612, %v5804
        %v5837 = vadd.f32 %v5613, %v5805
        %v5838 = vadd.f32 %v5614, %v5806
        %v5839 = vadd.f32 %v5615, %v5807
        %v5840 = vadd.f32 %v5616, %v5808
        %v5841 = vadd.f32 %v5617, %v5809
        %v5842 = vadd.f32 %v5618, %v5810
        %v5843 = vadd.f32 %v5619, %v5811
        %v5844 = vadd.f32 %v5620, %v5812
        %v5845 = vadd.f32 %v5621, %v5813
        %v5846 = vadd.f32 %v5622, %v5814
        %v5847 = vadd.f32 %v5623, %v5815
        %v5848 = vadd.f32 %v5624, %v5816
        %v5849 = vadd.f32 %v5625, %v5817
        %v5850 = vadd.f32 %v5626, %v5818
        %v5851 = vadd.f32 %v5627, %v5819
        %v5852 = vadd.f32 %v5628, %v5820
        %v5853 = vadd.f32 %v5629, %v5821
        %v5854 = vadd.f32 %v5630, %v5822
        %v5855 = vadd.f32 %v5631, %v5823
        %v5856 = vadd.f32 %v5632, %v5824
        %v5857 = vadd.f32 %v5633, %v5825
        %v5858 = vadd.f32 %v5634, %v5826
        %v5859 = vadd.f32 %v5635, %v5827
        %v5860 = vadd.f32 %v5636, %v5828
        %v5861 = vadd.f32 %v5637, %v5829
        %v5862 = vadd.f32 %v5638, %v5830
        %v5863 = vadd.f32 %v5639, %v5831
        %v5864 = vadd.f32 %v5640, %v5832
        %v5865 = vadd.f32 %v5641, %v5833
        %v5866 = vrot.slane %v3996, 6
        %v5867 = vrot.slane %v4019, 6
        %v5868 = vrot.slane %v4042, 6
        %v5869 = vrot.slane %v4065, 6
        %v5870 = vrot.slane %v4088, 6
        %v5871 = vrot.slane %v4111, 6
        %v5872 = vrot.slane %v4134, 6
        %v5873 = vrot.slane %v4157, 6
        %v5874 = vrot.slane %v4180, 6
        %v5875 = vrot.slane %v4203, 6
        %v5876 = vrot.slane %v4226, 6
        %v5877 = vrot.slane %v4249, 6
        %v5878 = vrot.slane %v4272, 6
        %v5879 = vrot.slane %v4295, 6
        %v5880 = vrot.slane %v4318, 6
        %v5881 = vrot.slane %v4341, 6
        %v5882 = vrot.slane %v4364, 6
        %v5883 = vrot.slane %v4387, 6
        %v5884 = vrot.slane %v4410, 6
        %v5885 = vrot.slane %v4433, 6
        %v5886 = vrot.slane %v4456, 6
        %v5887 = vrot.slane %v4479, 6
        %v5888 = vrot.slane %v4502, 6
        %v5889 = vrot.slane %v4525, 6
        %v5890 = vrot.slane %v4548, 6
        %v5891 = vrot.slane %v4571, 6
        %v5892 = vrot.slane %v4594, 6
        %v5893 = vrot.slane %v4617, 6
        %v5894 = vrot.slane %v4640, 6
        %v5895 = vrot.slane %v4663, 6
        %v5896 = vrot.slane %v4686, 6
        %v5897 = vrot.slane %v4709, 6
        %5930 = vrot.lane.b32.xlu0 %v5866, 97
        %v5931 = vpop.permute.xlu0 %5930
        %5932 = vrot.lane.b32.xlu0 %v5867, 97
        %v5933 = vpop.permute.xlu0 %5932
        %5934 = vrot.lane.b32.xlu0 %v5868, 97
        %v5935 = vpop.permute.xlu0 %5934
        %5936 = vrot.lane.b32.xlu0 %v5869, 97
        %v5937 = vpop.permute.xlu0 %5936
        %5938 = vrot.lane.b32.xlu0 %v5870, 97
        %v5939 = vpop.permute.xlu0 %5938
        %5940 = vrot.lane.b32.xlu0 %v5871, 97
        %v5941 = vpop.permute.xlu0 %5940
        %5942 = vrot.lane.b32.xlu0 %v5872, 97
        %v5943 = vpop.permute.xlu0 %5942
        %5944 = vrot.lane.b32.xlu0 %v5873, 97
        %v5945 = vpop.permute.xlu0 %5944
        %5946 = vrot.lane.b32.xlu0 %v5874, 97
        %v5947 = vpop.permute.xlu0 %5946
        %5948 = vrot.lane.b32.xlu0 %v5875, 97
        %v5949 = vpop.permute.xlu0 %5948
        %5950 = vrot.lane.b32.xlu0 %v5876, 97
        %v5951 = vpop.permute.xlu0 %5950
        %5952 = vrot.lane.b32.xlu0 %v5877, 97
        %v5953 = vpop.permute.xlu0 %5952
        %5954 = vrot.lane.b32.xlu0 %v5878, 97
        %v5955 = vpop.permute.xlu0 %5954
        %5956 = vrot.lane.b32.xlu0 %v5879, 97
        %v5957 = vpop.permute.xlu0 %5956
        %5958 = vrot.lane.b32.xlu0 %v5880, 97
        %v5959 = vpop.permute.xlu0 %5958
        %5960 = vrot.lane.b32.xlu0 %v5881, 97
        %v5961 = vpop.permute.xlu0 %5960
        %5962 = vrot.lane.b32.xlu0 %v5882, 97
        %v5963 = vpop.permute.xlu0 %5962
        %5964 = vrot.lane.b32.xlu0 %v5883, 97
        %v5965 = vpop.permute.xlu0 %5964
        %5966 = vrot.lane.b32.xlu0 %v5884, 97
        %v5967 = vpop.permute.xlu0 %5966
        %5968 = vrot.lane.b32.xlu0 %v5885, 97
        %v5969 = vpop.permute.xlu0 %5968
        %5970 = vrot.lane.b32.xlu0 %v5886, 97
        %v5971 = vpop.permute.xlu0 %5970
        %5972 = vrot.lane.b32.xlu0 %v5887, 97
        %v5973 = vpop.permute.xlu0 %5972
        %5974 = vrot.lane.b32.xlu0 %v5888, 97
        %v5975 = vpop.permute.xlu0 %5974
        %5976 = vrot.lane.b32.xlu0 %v5889, 97
        %v5977 = vpop.permute.xlu0 %5976
        %5978 = vrot.lane.b32.xlu0 %v5890, 97
        %v5979 = vpop.permute.xlu0 %5978
        %5980 = vrot.lane.b32.xlu0 %v5891, 97
        %v5981 = vpop.permute.xlu0 %5980
        %5982 = vrot.lane.b32.xlu0 %v5892, 97
        %v5983 = vpop.permute.xlu0 %5982
        %5984 = vrot.lane.b32.xlu0 %v5893, 97
        %v5985 = vpop.permute.xlu0 %5984
        %5986 = vrot.lane.b32.xlu0 %v5894, 97
        %v5987 = vpop.permute.xlu0 %5986
        %5988 = vrot.lane.b32.xlu0 %v5895, 97
        %v5989 = vpop.permute.xlu0 %5988
        %5990 = vrot.lane.b32.xlu0 %v5896, 97
        %v5991 = vpop.permute.xlu0 %5990
        %5992 = vrot.lane.b32.xlu0 %v5897, 97
        %v5993 = vpop.permute.xlu0 %5992
        %v5994 = vsel %vm1973, %v5991, %v5993
        %v5995 = vsel %vm1973, %v5989, %v5991
        %v5996 = vsel %vm1973, %v5987, %v5989
        %v5997 = vsel %vm1973, %v5985, %v5987
        %v5998 = vsel %vm1973, %v5983, %v5985
        %v5999 = vsel %vm1973, %v5981, %v5983
        %v6000 = vsel %vm1973, %v5979, %v5981
        %v6001 = vsel %vm1973, %v5977, %v5979
        %v6002 = vsel %vm1973, %v5975, %v5977
        %v6003 = vsel %vm1973, %v5973, %v5975
        %v6004 = vsel %vm1973, %v5971, %v5973
        %v6005 = vsel %vm1973, %v5969, %v5971
        %v6006 = vsel %vm1973, %v5967, %v5969
        %v6007 = vsel %vm1973, %v5965, %v5967
        %v6008 = vsel %vm1973, %v5963, %v5965
        %v6009 = vsel %vm1973, %v5961, %v5963
        %v6010 = vsel %vm1973, %v5959, %v5961
        %v6011 = vsel %vm1973, %v5957, %v5959
        %v6012 = vsel %vm1973, %v5955, %v5957
        %v6013 = vsel %vm1973, %v5953, %v5955
        %v6014 = vsel %vm1973, %v5951, %v5953
        %v6015 = vsel %vm1973, %v5949, %v5951
        %v6016 = vsel %vm1973, %v5947, %v5949
        %v6017 = vsel %vm1973, %v5945, %v5947
        %v6018 = vsel %vm1973, %v5943, %v5945
        %v6019 = vsel %vm1973, %v5941, %v5943
        %v6020 = vsel %vm1973, %v5939, %v5941
        %v6021 = vsel %vm1973, %v5937, %v5939
        %v6022 = vsel %vm1973, %v5935, %v5937
        %v6023 = vsel %vm1973, %v5933, %v5935
        %v6024 = vsel %vm1973, %v5931, %v5933
        %v6025 = vsel %vm1973, %v5993, %v5931
        %v6026 = vsel %vm688, %v6024, 0.0
        %v6027 = vsel %vm689, %v6023, 0.0
        %v6028 = vsel %vm690, %v6022, 0.0
        %v6029 = vsel %vm691, %v6021, 0.0
        %v6030 = vsel %vm692, %v6020, 0.0
        %v6031 = vsel %vm693, %v6019, 0.0
        %v6032 = vsel %vm694, %v6018, 0.0
        %v6033 = vsel %vm695, %v6017, 0.0
        %v6034 = vsel %vm696, %v6016, 0.0
        %v6035 = vsel %vm697, %v6015, 0.0
        %v6036 = vsel %vm698, %v6014, 0.0
        %v6037 = vsel %vm699, %v6013, 0.0
        %v6038 = vsel %vm700, %v6012, 0.0
        %v6039 = vsel %vm701, %v6011, 0.0
        %v6040 = vsel %vm702, %v6010, 0.0
        %v6041 = vsel %vm703, %v6009, 0.0
        %v6042 = vsel %vm704, %v6008, 0.0
        %v6043 = vsel %vm705, %v6007, 0.0
        %v6044 = vsel %vm706, %v6006, 0.0
        %v6045 = vsel %vm707, %v6005, 0.0
        %v6046 = vsel %vm708, %v6004, 0.0
        %v6047 = vsel %vm709, %v6003, 0.0
        %v6048 = vsel %vm710, %v6002, 0.0
        %v6049 = vsel %vm711, %v6001, 0.0
        %v6050 = vsel %vm712, %v6000, 0.0
        %v6051 = vsel %vm713, %v5999, 0.0
        %v6052 = vsel %vm714, %v5998, 0.0
        %v6053 = vsel %vm715, %v5997, 0.0
        %v6054 = vsel %vm716, %v5996, 0.0
        %v6055 = vsel %vm717, %v5995, 0.0
        %v6056 = vsel %vm718, %v5994, 0.0
        %v6057 = vsel %vm719, %v6025, 0.0
        %v6058 = vadd.f32 %v5834, %v6026
        %v6059 = vadd.f32 %v5835, %v6027
        %v6060 = vadd.f32 %v5836, %v6028
        %v6061 = vadd.f32 %v5837, %v6029
        %v6062 = vadd.f32 %v5838, %v6030
        %v6063 = vadd.f32 %v5839, %v6031
        %v6064 = vadd.f32 %v5840, %v6032
        %v6065 = vadd.f32 %v5841, %v6033
        %v6066 = vadd.f32 %v5842, %v6034
        %v6067 = vadd.f32 %v5843, %v6035
        %v6068 = vadd.f32 %v5844, %v6036
        %v6069 = vadd.f32 %v5845, %v6037
        %v6070 = vadd.f32 %v5846, %v6038
        %v6071 = vadd.f32 %v5847, %v6039
        %v6072 = vadd.f32 %v5848, %v6040
        %v6073 = vadd.f32 %v5849, %v6041
        %v6074 = vadd.f32 %v5850, %v6042
        %v6075 = vadd.f32 %v5851, %v6043
        %v6076 = vadd.f32 %v5852, %v6044
        %v6077 = vadd.f32 %v5853, %v6045
        %v6078 = vadd.f32 %v5854, %v6046
        %v6079 = vadd.f32 %v5855, %v6047
        %v6080 = vadd.f32 %v5856, %v6048
        %v6081 = vadd.f32 %v5857, %v6049
        %v6082 = vadd.f32 %v5858, %v6050
        %v6083 = vadd.f32 %v5859, %v6051
        %v6084 = vadd.f32 %v5860, %v6052
        %v6085 = vadd.f32 %v5861, %v6053
        %v6086 = vadd.f32 %v5862, %v6054
        %v6087 = vadd.f32 %v5863, %v6055
        %v6088 = vadd.f32 %v5864, %v6056
        %v6089 = vadd.f32 %v5865, %v6057
        %v6090 = vrot.slane %v3996, 7
        %v6091 = vrot.slane %v4019, 7
        %v6092 = vrot.slane %v4042, 7
        %v6093 = vrot.slane %v4065, 7
        %v6094 = vrot.slane %v4088, 7
        %v6095 = vrot.slane %v4111, 7
        %v6096 = vrot.slane %v4134, 7
        %v6097 = vrot.slane %v4157, 7
        %v6098 = vrot.slane %v4180, 7
        %v6099 = vrot.slane %v4203, 7
        %v6100 = vrot.slane %v4226, 7
        %v6101 = vrot.slane %v4249, 7
        %v6102 = vrot.slane %v4272, 7
        %v6103 = vrot.slane %v4295, 7
        %v6104 = vrot.slane %v4318, 7
        %v6105 = vrot.slane %v4341, 7
        %v6106 = vrot.slane %v4364, 7
        %v6107 = vrot.slane %v4387, 7
        %v6108 = vrot.slane %v4410, 7
        %v6109 = vrot.slane %v4433, 7
        %v6110 = vrot.slane %v4456, 7
        %v6111 = vrot.slane %v4479, 7
        %v6112 = vrot.slane %v4502, 7
        %v6113 = vrot.slane %v4525, 7
        %v6114 = vrot.slane %v4548, 7
        %v6115 = vrot.slane %v4571, 7
        %v6116 = vrot.slane %v4594, 7
        %v6117 = vrot.slane %v4617, 7
        %v6118 = vrot.slane %v4640, 7
        %v6119 = vrot.slane %v4663, 7
        %v6120 = vrot.slane %v4686, 7
        %v6121 = vrot.slane %v4709, 7
        %6154 = vrot.lane.b32.xlu0 %v6090, 96
        %v6155 = vpop.permute.xlu0 %6154
        %6156 = vrot.lane.b32.xlu0 %v6091, 96
        %v6157 = vpop.permute.xlu0 %6156
        %6158 = vrot.lane.b32.xlu0 %v6092, 96
        %v6159 = vpop.permute.xlu0 %6158
        %6160 = vrot.lane.b32.xlu0 %v6093, 96
        %v6161 = vpop.permute.xlu0 %6160
        %6162 = vrot.lane.b32.xlu0 %v6094, 96
        %v6163 = vpop.permute.xlu0 %6162
        %6164 = vrot.lane.b32.xlu0 %v6095, 96
        %v6165 = vpop.permute.xlu0 %6164
        %6166 = vrot.lane.b32.xlu0 %v6096, 96
        %v6167 = vpop.permute.xlu0 %6166
        %6168 = vrot.lane.b32.xlu0 %v6097, 96
        %v6169 = vpop.permute.xlu0 %6168
        %6170 = vrot.lane.b32.xlu0 %v6098, 96
        %v6171 = vpop.permute.xlu0 %6170
        %6172 = vrot.lane.b32.xlu0 %v6099, 96
        %v6173 = vpop.permute.xlu0 %6172
        %6174 = vrot.lane.b32.xlu0 %v6100, 96
        %v6175 = vpop.permute.xlu0 %6174
        %6176 = vrot.lane.b32.xlu0 %v6101, 96
        %v6177 = vpop.permute.xlu0 %6176
        %6178 = vrot.lane.b32.xlu0 %v6102, 96
        %v6179 = vpop.permute.xlu0 %6178
        %6180 = vrot.lane.b32.xlu0 %v6103, 96
        %v6181 = vpop.permute.xlu0 %6180
        %6182 = vrot.lane.b32.xlu0 %v6104, 96
        %v6183 = vpop.permute.xlu0 %6182
        %6184 = vrot.lane.b32.xlu0 %v6105, 96
        %v6185 = vpop.permute.xlu0 %6184
        %6186 = vrot.lane.b32.xlu0 %v6106, 96
        %v6187 = vpop.permute.xlu0 %6186
        %6188 = vrot.lane.b32.xlu0 %v6107, 96
        %v6189 = vpop.permute.xlu0 %6188
        %6190 = vrot.lane.b32.xlu0 %v6108, 96
        %v6191 = vpop.permute.xlu0 %6190
        %6192 = vrot.lane.b32.xlu0 %v6109, 96
        %v6193 = vpop.permute.xlu0 %6192
        %6194 = vrot.lane.b32.xlu0 %v6110, 96
        %v6195 = vpop.permute.xlu0 %6194
        %6196 = vrot.lane.b32.xlu0 %v6111, 96
        %v6197 = vpop.permute.xlu0 %6196
        %6198 = vrot.lane.b32.xlu0 %v6112, 96
        %v6199 = vpop.permute.xlu0 %6198
        %6200 = vrot.lane.b32.xlu0 %v6113, 96
        %v6201 = vpop.permute.xlu0 %6200
        %6202 = vrot.lane.b32.xlu0 %v6114, 96
        %v6203 = vpop.permute.xlu0 %6202
        %6204 = vrot.lane.b32.xlu0 %v6115, 96
        %v6205 = vpop.permute.xlu0 %6204
        %6206 = vrot.lane.b32.xlu0 %v6116, 96
        %v6207 = vpop.permute.xlu0 %6206
        %6208 = vrot.lane.b32.xlu0 %v6117, 96
        %v6209 = vpop.permute.xlu0 %6208
        %6210 = vrot.lane.b32.xlu0 %v6118, 96
        %v6211 = vpop.permute.xlu0 %6210
        %6212 = vrot.lane.b32.xlu0 %v6119, 96
        %v6213 = vpop.permute.xlu0 %6212
        %6214 = vrot.lane.b32.xlu0 %v6120, 96
        %v6215 = vpop.permute.xlu0 %6214
        %6216 = vrot.lane.b32.xlu0 %v6121, 96
        %v6217 = vpop.permute.xlu0 %6216
        %v6218 = vsel %vm2198, %v6215, %v6217
        %v6219 = vsel %vm2198, %v6213, %v6215
        %v6220 = vsel %vm2198, %v6211, %v6213
        %v6221 = vsel %vm2198, %v6209, %v6211
        %v6222 = vsel %vm2198, %v6207, %v6209
        %v6223 = vsel %vm2198, %v6205, %v6207
        %v6224 = vsel %vm2198, %v6203, %v6205
        %v6225 = vsel %vm2198, %v6201, %v6203
        %v6226 = vsel %vm2198, %v6199, %v6201
        %v6227 = vsel %vm2198, %v6197, %v6199
        %v6228 = vsel %vm2198, %v6195, %v6197
        %v6229 = vsel %vm2198, %v6193, %v6195
        %v6230 = vsel %vm2198, %v6191, %v6193
        %v6231 = vsel %vm2198, %v6189, %v6191
        %v6232 = vsel %vm2198, %v6187, %v6189
        %v6233 = vsel %vm2198, %v6185, %v6187
        %v6234 = vsel %vm2198, %v6183, %v6185
        %v6235 = vsel %vm2198, %v6181, %v6183
        %v6236 = vsel %vm2198, %v6179, %v6181
        %v6237 = vsel %vm2198, %v6177, %v6179
        %v6238 = vsel %vm2198, %v6175, %v6177
        %v6239 = vsel %vm2198, %v6173, %v6175
        %v6240 = vsel %vm2198, %v6171, %v6173
        %v6241 = vsel %vm2198, %v6169, %v6171
        %v6242 = vsel %vm2198, %v6167, %v6169
        %v6243 = vsel %vm2198, %v6165, %v6167
        %v6244 = vsel %vm2198, %v6163, %v6165
        %v6245 = vsel %vm2198, %v6161, %v6163
        %v6246 = vsel %vm2198, %v6159, %v6161
        %v6247 = vsel %vm2198, %v6157, %v6159
        %v6248 = vsel %vm2198, %v6155, %v6157
        %v6249 = vsel %vm2198, %v6217, %v6155
        %v6250 = vsel %vm528, %v6248, 0.0
        %v6251 = vsel %vm529, %v6247, 0.0
        %v6252 = vsel %vm530, %v6246, 0.0
        %v6253 = vsel %vm531, %v6245, 0.0
        %v6254 = vsel %vm532, %v6244, 0.0
        %v6255 = vsel %vm533, %v6243, 0.0
        %v6256 = vsel %vm534, %v6242, 0.0
        %v6257 = vsel %vm535, %v6241, 0.0
        %v6258 = vsel %vm536, %v6240, 0.0
        %v6259 = vsel %vm537, %v6239, 0.0
        %v6260 = vsel %vm538, %v6238, 0.0
        %v6261 = vsel %vm539, %v6237, 0.0
        %v6262 = vsel %vm540, %v6236, 0.0
        %v6263 = vsel %vm541, %v6235, 0.0
        %v6264 = vsel %vm542, %v6234, 0.0
        %v6265 = vsel %vm543, %v6233, 0.0
        %v6266 = vsel %vm544, %v6232, 0.0
        %v6267 = vsel %vm545, %v6231, 0.0
        %v6268 = vsel %vm546, %v6230, 0.0
        %v6269 = vsel %vm547, %v6229, 0.0
        %v6270 = vsel %vm548, %v6228, 0.0
        %v6271 = vsel %vm549, %v6227, 0.0
        %v6272 = vsel %vm550, %v6226, 0.0
        %v6273 = vsel %vm551, %v6225, 0.0
        %v6274 = vsel %vm552, %v6224, 0.0
        %v6275 = vsel %vm553, %v6223, 0.0
        %v6276 = vsel %vm554, %v6222, 0.0
        %v6277 = vsel %vm555, %v6221, 0.0
        %v6278 = vsel %vm556, %v6220, 0.0
        %v6279 = vsel %vm557, %v6219, 0.0
        %v6280 = vsel %vm558, %v6218, 0.0
        %v6281 = vsel %vm559, %v6249, 0.0
        %v6282 = vadd.f32 %v6058, %v6250
        %v6283 = vadd.f32 %v6059, %v6251
        %v6284 = vadd.f32 %v6060, %v6252
        %v6285 = vadd.f32 %v6061, %v6253
        %v6286 = vadd.f32 %v6062, %v6254
        %v6287 = vadd.f32 %v6063, %v6255
        %v6288 = vadd.f32 %v6064, %v6256
        %v6289 = vadd.f32 %v6065, %v6257
        %v6290 = vadd.f32 %v6066, %v6258
        %v6291 = vadd.f32 %v6067, %v6259
        %v6292 = vadd.f32 %v6068, %v6260
        %v6293 = vadd.f32 %v6069, %v6261
        %v6294 = vadd.f32 %v6070, %v6262
        %v6295 = vadd.f32 %v6071, %v6263
        %v6296 = vadd.f32 %v6072, %v6264
        %v6297 = vadd.f32 %v6073, %v6265
        %v6298 = vadd.f32 %v6074, %v6266
        %v6299 = vadd.f32 %v6075, %v6267
        %v6300 = vadd.f32 %v6076, %v6268
        %v6301 = vadd.f32 %v6077, %v6269
        %v6302 = vadd.f32 %v6078, %v6270
        %v6303 = vadd.f32 %v6079, %v6271
        %v6304 = vadd.f32 %v6080, %v6272
        %v6305 = vadd.f32 %v6081, %v6273
        %v6306 = vadd.f32 %v6082, %v6274
        %v6307 = vadd.f32 %v6083, %v6275
        %v6308 = vadd.f32 %v6084, %v6276
        %v6309 = vadd.f32 %v6085, %v6277
        %v6310 = vadd.f32 %v6086, %v6278
        %v6311 = vadd.f32 %v6087, %v6279
        %v6312 = vadd.f32 %v6088, %v6280
        %v6313 = vadd.f32 %v6089, %v6281
        %6314 = vrot.lane.b32.xlu0 %v3999, 95
        %v6315 = vpop.permute.xlu0 %6314
        %6316 = vrot.lane.b32.xlu0 %v4022, 95
        %v6317 = vpop.permute.xlu0 %6316
        %6318 = vrot.lane.b32.xlu0 %v4045, 95
        %v6319 = vpop.permute.xlu0 %6318
        %6320 = vrot.lane.b32.xlu0 %v4068, 95
        %v6321 = vpop.permute.xlu0 %6320
        %6322 = vrot.lane.b32.xlu0 %v4091, 95
        %v6323 = vpop.permute.xlu0 %6322
        %6324 = vrot.lane.b32.xlu0 %v4114, 95
        %v6325 = vpop.permute.xlu0 %6324
        %6326 = vrot.lane.b32.xlu0 %v4137, 95
        %v6327 = vpop.permute.xlu0 %6326
        %6328 = vrot.lane.b32.xlu0 %v4160, 95
        %v6329 = vpop.permute.xlu0 %6328
        %6330 = vrot.lane.b32.xlu0 %v4183, 95
        %v6331 = vpop.permute.xlu0 %6330
        %6332 = vrot.lane.b32.xlu0 %v4206, 95
        %v6333 = vpop.permute.xlu0 %6332
        %6334 = vrot.lane.b32.xlu0 %v4229, 95
        %v6335 = vpop.permute.xlu0 %6334
        %6336 = vrot.lane.b32.xlu0 %v4252, 95
        %v6337 = vpop.permute.xlu0 %6336
        %6338 = vrot.lane.b32.xlu0 %v4275, 95
        %v6339 = vpop.permute.xlu0 %6338
        %6340 = vrot.lane.b32.xlu0 %v4298, 95
        %v6341 = vpop.permute.xlu0 %6340
        %6342 = vrot.lane.b32.xlu0 %v4321, 95
        %v6343 = vpop.permute.xlu0 %6342
        %6344 = vrot.lane.b32.xlu0 %v4344, 95
        %v6345 = vpop.permute.xlu0 %6344
        %6346 = vrot.lane.b32.xlu0 %v4367, 95
        %v6347 = vpop.permute.xlu0 %6346
        %6348 = vrot.lane.b32.xlu0 %v4390, 95
        %v6349 = vpop.permute.xlu0 %6348
        %6350 = vrot.lane.b32.xlu0 %v4413, 95
        %v6351 = vpop.permute.xlu0 %6350
        %6352 = vrot.lane.b32.xlu0 %v4436, 95
        %v6353 = vpop.permute.xlu0 %6352
        %6354 = vrot.lane.b32.xlu0 %v4459, 95
        %v6355 = vpop.permute.xlu0 %6354
        %6356 = vrot.lane.b32.xlu0 %v4482, 95
        %v6357 = vpop.permute.xlu0 %6356
        %6358 = vrot.lane.b32.xlu0 %v4505, 95
        %v6359 = vpop.permute.xlu0 %6358
        %6360 = vrot.lane.b32.xlu0 %v4528, 95
        %v6361 = vpop.permute.xlu0 %6360
        %6362 = vrot.lane.b32.xlu0 %v4551, 95
        %v6363 = vpop.permute.xlu0 %6362
        %6364 = vrot.lane.b32.xlu0 %v4574, 95
        %v6365 = vpop.permute.xlu0 %6364
        %6366 = vrot.lane.b32.xlu0 %v4597, 95
        %v6367 = vpop.permute.xlu0 %6366
        %6368 = vrot.lane.b32.xlu0 %v4620, 95
        %v6369 = vpop.permute.xlu0 %6368
        %6370 = vrot.lane.b32.xlu0 %v4643, 95
        %v6371 = vpop.permute.xlu0 %6370
        %6372 = vrot.lane.b32.xlu0 %v4666, 95
        %v6373 = vpop.permute.xlu0 %6372
        %6374 = vrot.lane.b32.xlu0 %v4689, 95
        %v6375 = vpop.permute.xlu0 %6374
        %6376 = vrot.lane.b32.xlu0 %v4712, 95
        %v6377 = vpop.permute.xlu0 %6376
        %v6378 = vsel %vm2423, %v6375, %v6377
        %v6379 = vsel %vm2423, %v6373, %v6375
        %v6380 = vsel %vm2423, %v6371, %v6373
        %v6381 = vsel %vm2423, %v6369, %v6371
        %v6382 = vsel %vm2423, %v6367, %v6369
        %v6383 = vsel %vm2423, %v6365, %v6367
        %v6384 = vsel %vm2423, %v6363, %v6365
        %v6385 = vsel %vm2423, %v6361, %v6363
        %v6386 = vsel %vm2423, %v6359, %v6361
        %v6387 = vsel %vm2423, %v6357, %v6359
        %v6388 = vsel %vm2423, %v6355, %v6357
        %v6389 = vsel %vm2423, %v6353, %v6355
        %v6390 = vsel %vm2423, %v6351, %v6353
        %v6391 = vsel %vm2423, %v6349, %v6351
        %v6392 = vsel %vm2423, %v6347, %v6349
        %v6393 = vsel %vm2423, %v6345, %v6347
        %v6394 = vsel %vm2423, %v6343, %v6345
        %v6395 = vsel %vm2423, %v6341, %v6343
        %v6396 = vsel %vm2423, %v6339, %v6341
        %v6397 = vsel %vm2423, %v6337, %v6339
        %v6398 = vsel %vm2423, %v6335, %v6337
        %v6399 = vsel %vm2423, %v6333, %v6335
        %v6400 = vsel %vm2423, %v6331, %v6333
        %v6401 = vsel %vm2423, %v6329, %v6331
        %v6402 = vsel %vm2423, %v6327, %v6329
        %v6403 = vsel %vm2423, %v6325, %v6327
        %v6404 = vsel %vm2423, %v6323, %v6325
        %v6405 = vsel %vm2423, %v6321, %v6323
        %v6406 = vsel %vm2423, %v6319, %v6321
        %v6407 = vsel %vm2423, %v6317, %v6319
        %v6408 = vsel %vm2423, %v6315, %v6317
        %v6409 = vsel %vm2423, %v6377, %v6315
        %v6410 = vsel %vm720, %v6408, 0.0
        %v6411 = vsel %vm721, %v6407, 0.0
        %v6412 = vsel %vm722, %v6406, 0.0
        %v6413 = vsel %vm723, %v6405, 0.0
        %v6414 = vsel %vm724, %v6404, 0.0
        %v6415 = vsel %vm725, %v6403, 0.0
        %v6416 = vsel %vm726, %v6402, 0.0
        %v6417 = vsel %vm727, %v6401, 0.0
        %v6418 = vsel %vm728, %v6400, 0.0
        %v6419 = vsel %vm729, %v6399, 0.0
        %v6420 = vsel %vm730, %v6398, 0.0
        %v6421 = vsel %vm731, %v6397, 0.0
        %v6422 = vsel %vm732, %v6396, 0.0
        %v6423 = vsel %vm733, %v6395, 0.0
        %v6424 = vsel %vm734, %v6394, 0.0
        %v6425 = vsel %vm735, %v6393, 0.0
        %v6426 = vsel %vm736, %v6392, 0.0
        %v6427 = vsel %vm737, %v6391, 0.0
        %v6428 = vsel %vm738, %v6390, 0.0
        %v6429 = vsel %vm739, %v6389, 0.0
        %v6430 = vsel %vm740, %v6388, 0.0
        %v6431 = vsel %vm741, %v6387, 0.0
        %v6432 = vsel %vm742, %v6386, 0.0
        %v6433 = vsel %vm743, %v6385, 0.0
        %v6434 = vsel %vm744, %v6384, 0.0
        %v6435 = vsel %vm745, %v6383, 0.0
        %v6436 = vsel %vm746, %v6382, 0.0
        %v6437 = vsel %vm747, %v6381, 0.0
        %v6438 = vsel %vm748, %v6380, 0.0
        %v6439 = vsel %vm749, %v6379, 0.0
        %v6440 = vsel %vm750, %v6378, 0.0
        %v6441 = vsel %vm751, %v6409, 0.0
        %v6442 = vadd.f32 %v6282, %v6410
        %v6443 = vadd.f32 %v6283, %v6411
        %v6444 = vadd.f32 %v6284, %v6412
        %v6445 = vadd.f32 %v6285, %v6413
        %v6446 = vadd.f32 %v6286, %v6414
        %v6447 = vadd.f32 %v6287, %v6415
        %v6448 = vadd.f32 %v6288, %v6416
        %v6449 = vadd.f32 %v6289, %v6417
        %v6450 = vadd.f32 %v6290, %v6418
        %v6451 = vadd.f32 %v6291, %v6419
        %v6452 = vadd.f32 %v6292, %v6420
        %v6453 = vadd.f32 %v6293, %v6421
        %v6454 = vadd.f32 %v6294, %v6422
        %v6455 = vadd.f32 %v6295, %v6423
        %v6456 = vadd.f32 %v6296, %v6424
        %v6457 = vadd.f32 %v6297, %v6425
        %v6458 = vadd.f32 %v6298, %v6426
        %v6459 = vadd.f32 %v6299, %v6427
        %v6460 = vadd.f32 %v6300, %v6428
        %v6461 = vadd.f32 %v6301, %v6429
        %v6462 = vadd.f32 %v6302, %v6430
        %v6463 = vadd.f32 %v6303, %v6431
        %v6464 = vadd.f32 %v6304, %v6432
        %v6465 = vadd.f32 %v6305, %v6433
        %v6466 = vadd.f32 %v6306, %v6434
        %v6467 = vadd.f32 %v6307, %v6435
        %v6468 = vadd.f32 %v6308, %v6436
        %v6469 = vadd.f32 %v6309, %v6437
        %v6470 = vadd.f32 %v6310, %v6438
        %v6471 = vadd.f32 %v6311, %v6439
        %v6472 = vadd.f32 %v6312, %v6440
        %v6473 = vadd.f32 %v6313, %v6441
        %v6474 = vld [vmem:[#allocation3] sm:$0x1]
        %6476 = vset.pattern.permute.xlu0 0
        %6477 = vperm.xlu0 %6476, %v6474
        %v6478 = vpop.permute.xlu0 %6477
        %v6480 = vperm.slane %v6478, 0
        %v6481 = vadd.f32 %v6442, %v6480
        %v6482 = vadd.f32 %v6443, %v6480
        %v6483 = vadd.f32 %v6444, %v6480
        %v6484 = vadd.f32 %v6445, %v6480
        %v6485 = vadd.f32 %v6446, %v6480
        %v6486 = vadd.f32 %v6447, %v6480
        %v6487 = vadd.f32 %v6448, %v6480
        %v6488 = vadd.f32 %v6449, %v6480
        %v6489 = vadd.f32 %v6450, %v6480
        %v6490 = vadd.f32 %v6451, %v6480
        %v6491 = vadd.f32 %v6452, %v6480
        %v6492 = vadd.f32 %v6453, %v6480
        %v6493 = vadd.f32 %v6454, %v6480
        %v6494 = vadd.f32 %v6455, %v6480
        %v6495 = vadd.f32 %v6456, %v6480
        %v6496 = vadd.f32 %v6457, %v6480
        %v6497 = vadd.f32 %v6458, %v6480
        %v6498 = vadd.f32 %v6459, %v6480
        %v6499 = vadd.f32 %v6460, %v6480
        %v6500 = vadd.f32 %v6461, %v6480
        %v6501 = vadd.f32 %v6462, %v6480
        %v6502 = vadd.f32 %v6463, %v6480
        %v6503 = vadd.f32 %v6464, %v6480
        %v6504 = vadd.f32 %v6465, %v6480
        %v6505 = vadd.f32 %v6466, %v6480
        %v6506 = vadd.f32 %v6467, %v6480
        %v6507 = vadd.f32 %v6468, %v6480
        %v6508 = vadd.f32 %v6469, %v6480
        %v6509 = vadd.f32 %v6470, %v6480
        %v6510 = vadd.f32 %v6471, %v6480
        %v6511 = vadd.f32 %v6472, %v6480
        %v6512 = vadd.f32 %v6473, %v6480
        %v6513 = vtanh.pop %v6481
        %v6514 = vtanh.pop %v6482
        %v6515 = vtanh.pop %v6483
        %v6516 = vtanh.pop %v6484
        %v6517 = vtanh.pop %v6485
        %v6518 = vtanh.pop %v6486
        %v6519 = vtanh.pop %v6487
        %v6520 = vtanh.pop %v6488
        %v6521 = vtanh.pop %v6489
        %v6522 = vtanh.pop %v6490
        %v6523 = vtanh.pop %v6491
        %v6524 = vtanh.pop %v6492
        %v6525 = vtanh.pop %v6493
        %v6526 = vtanh.pop %v6494
        %v6527 = vtanh.pop %v6495
        %v6528 = vtanh.pop %v6496
        %v6529 = vtanh.pop %v6497
        %v6530 = vtanh.pop %v6498
        %v6531 = vtanh.pop %v6499
        %v6532 = vtanh.pop %v6500
        %v6533 = vtanh.pop %v6501
        %v6534 = vtanh.pop %v6502
        %v6535 = vtanh.pop %v6503
        %v6536 = vtanh.pop %v6504
        %v6537 = vtanh.pop %v6505
        %v6538 = vtanh.pop %v6506
        %v6539 = vtanh.pop %v6507
        %v6540 = vtanh.pop %v6508
        %v6541 = vtanh.pop %v6509
        %v6542 = vtanh.pop %v6510
        %v6543 = vtanh.pop %v6511
        %v6544 = vtanh.pop %v6512
        %v6553 = vrot.slane %v6521, 7
        %v6554 = vrot.slane %v6522, 7
        %v6555 = vrot.slane %v6523, 7
        %v6556 = vrot.slane %v6524, 7
        %v6557 = vrot.slane %v6525, 7
        %v6558 = vrot.slane %v6526, 7
        %v6559 = vrot.slane %v6527, 7
        %v6560 = vrot.slane %v6528, 7
        %v6577 = vrot.slane %v6529, 6
        %v6578 = vrot.slane %v6530, 6
        %v6579 = vrot.slane %v6531, 6
        %v6580 = vrot.slane %v6532, 6
        %v6581 = vrot.slane %v6533, 6
        %v6582 = vrot.slane %v6534, 6
        %v6583 = vrot.slane %v6535, 6
        %v6584 = vrot.slane %v6536, 6
        %v6601 = vrot.slane %v6537, 5
        %v6602 = vrot.slane %v6538, 5
        %v6603 = vrot.slane %v6539, 5
        %v6604 = vrot.slane %v6540, 5
        %v6605 = vrot.slane %v6541, 5
        %v6606 = vrot.slane %v6542, 5
        %v6607 = vrot.slane %v6543, 5
        %v6608 = vrot.slane %v6544, 5
        %vm6617 = vcmask 1040384
        %v6618 = vsel %vm6617, %v6513, %v6553
        %v6619 = vsel %vm6617, %v6514, %v6554
        %v6620 = vsel %vm6617, %v6515, %v6555
        %v6621 = vsel %vm6617, %v6516, %v6556
        %v6622 = vsel %vm6617, %v6517, %v6557
        %v6623 = vsel %vm6617, %v6518, %v6558
        %v6624 = vsel %vm6617, %v6519, %v6559
        %v6625 = vsel %vm6617, %v6520, %v6560
        %vm6626 = vcmask 1041408
        %v6627 = vsel %vm6626, %v6618, %v6577
        %v6628 = vsel %vm6626, %v6619, %v6578
        %v6629 = vsel %vm6626, %v6620, %v6579
        %v6630 = vsel %vm6626, %v6621, %v6580
        %v6631 = vsel %vm6626, %v6622, %v6581
        %v6632 = vsel %vm6626, %v6623, %v6582
        %v6633 = vsel %vm6626, %v6624, %v6583
        %v6634 = vsel %vm6626, %v6625, %v6584
        %vm6635 = vcmask 1042432
        %v6636 = vsel %vm6635, %v6627, %v6601
        %v6637 = vsel %vm6635, %v6628, %v6602
        %v6638 = vsel %vm6635, %v6629, %v6603
        %v6639 = vsel %vm6635, %v6630, %v6604
        %v6640 = vsel %vm6635, %v6631, %v6605
        %v6641 = vsel %vm6635, %v6632, %v6606
        %v6642 = vsel %vm6635, %v6633, %v6607
        %v6643 = vsel %vm6635, %v6634, %v6608
        %v6644 = vld [vmem:[%s5] sm:$0xff]
        %v6645 = vld [vmem:[%s5 + $0x8] sm:$0xff]
        %v6646 = vld [vmem:[%s5 + $0x10] sm:$0xff]
        %v6647 = vld [vmem:[%s5 + $0x18] sm:$0xff]
        %v6648 = vld [vmem:[%s5 + $0x20] sm:$0xff]
        %v6649 = vld [vmem:[%s5 + $0x28] sm:$0xff]
        %v6650 = vld [vmem:[%s5 + $0x30] sm:$0xff]
        %v6651 = vld [vmem:[%s5 + $0x38] sm:$0xff]
        %v6652 = vld [vmem:[%s5 + $0x40] sm:$0xff]
        %v6653 = vld [vmem:[%s5 + $0x48] sm:$0xff]
        %v6654 = vld [vmem:[%s5 + $0x50] sm:$0xff]
        %v6655 = vld [vmem:[%s5 + $0x58] sm:$0xff]
        %v6656 = vld [vmem:[%s5 + $0x60] sm:$0xff]
        %v6657 = vld [vmem:[%s5 + $0x68] sm:$0xff]
        %v6658 = vld [vmem:[%s5 + $0x70] sm:$0xff]
        %v6659 = vld [vmem:[%s5 + $0x78] sm:$0xff]
        %v6660 = vld [vmem:[%s5 + $0x80] sm:$0xff]
        %v6661 = vld [vmem:[%s5 + $0x88] sm:$0xff]
        %v6662 = vld [vmem:[%s5 + $0x90] sm:$0xff]
        %v6663 = vld [vmem:[%s5 + $0x98] sm:$0xff]
        %v6664 = vld [vmem:[%s5 + $0xa0] sm:$0xff]
        %v6665 = vld [vmem:[%s5 + $0xa8] sm:$0xff]
        %v6666 = vld [vmem:[%s5 + $0xb0] sm:$0xff]
        %v6667 = vld [vmem:[%s5 + $0xb8] sm:$0xff]
        %v6668 = vld [vmem:[%s5 + $0xc0] sm:$0xff]
        %v6669 = vld [vmem:[%s5 + $0xc8] sm:$0xff]
        %v6670 = vld [vmem:[%s5 + $0xd0] sm:$0xff]
        %v6671 = vld [vmem:[%s5 + $0xd8] sm:$0xff]
        %v6672 = vld [vmem:[%s5 + $0xe0] sm:$0xff]
        %v6673 = vld [vmem:[%s5 + $0xe8] sm:$0xff]
        %v6674 = vld [vmem:[%s5 + $0xf0] sm:$0xff]
        %v6675 = vld [vmem:[%s5 + $0xf8] sm:$0xff]
        %v6676 = vld [vmem:[%s5 + $0x100] sm:$0xff]
        %v6677 = vld [vmem:[%s5 + $0x108] sm:$0xff]
        %v6678 = vld [vmem:[%s5 + $0x110] sm:$0xff]
        %v6679 = vld [vmem:[%s5 + $0x118] sm:$0xff]
        %v6680 = vld [vmem:[%s5 + $0x120] sm:$0xff]
        %v6681 = vld [vmem:[%s5 + $0x128] sm:$0xff]
        %v6682 = vld [vmem:[%s5 + $0x130] sm:$0xff]
        %v6683 = vld [vmem:[%s5 + $0x138] sm:$0xff]
        %v6684 = vld [vmem:[%s5 + $0x140] sm:$0xff]
        %v6685 = vld [vmem:[%s5 + $0x148] sm:$0xff]
        %v6686 = vld [vmem:[%s5 + $0x150] sm:$0xff]
        %v6687 = vld [vmem:[%s5 + $0x158] sm:$0xff]
        %v6688 = vld [vmem:[%s5 + $0x160] sm:$0xff]
        %v6689 = vld [vmem:[%s5 + $0x168] sm:$0xff]
        %v6690 = vld [vmem:[%s5 + $0x170] sm:$0xff]
        %v6691 = vld [vmem:[%s5 + $0x178] sm:$0xff]
        %v6692 = vld [vmem:[%s5 + $0x180] sm:$0xff]
        %v6693 = vld [vmem:[%s5 + $0x188] sm:$0xff]
        %v6694 = vld [vmem:[%s5 + $0x190] sm:$0xff]
        %v6695 = vld [vmem:[%s5 + $0x198] sm:$0xff]
        %v6696 = vld [vmem:[%s5 + $0x1a0] sm:$0xff]
        %v6697 = vld [vmem:[%s5 + $0x1a8] sm:$0xff]
        %v6698 = vld [vmem:[%s5 + $0x1b0] sm:$0xff]
        %v6699 = vld [vmem:[%s5 + $0x1b8] sm:$0xff]
        %v6700 = vld [vmem:[%s5 + $0x1c0] sm:$0xff]
        %v6701 = vld [vmem:[%s5 + $0x1c8] sm:$0xff]
        %v6702 = vld [vmem:[%s5 + $0x1d0] sm:$0xff]
        %v6703 = vld [vmem:[%s5 + $0x1d8] sm:$0xff]
        %v6704 = vld [vmem:[%s5 + $0x1e0] sm:$0xff]
        %v6705 = vld [vmem:[%s5 + $0x1e8] sm:$0xff]
        %v6706 = vld [vmem:[%s5 + $0x1f0] sm:$0xff]
        %v6707 = vld [vmem:[%s5 + $0x1f8] sm:$0xff]
        %v6708 = vld [vmem:[%s5 + $0x200] sm:$0xff]
        %v6709 = vld [vmem:[%s5 + $0x208] sm:$0xff]
        %v6710 = vld [vmem:[%s5 + $0x210] sm:$0xff]
        %v6711 = vld [vmem:[%s5 + $0x218] sm:$0xff]
        %v6712 = vld [vmem:[%s5 + $0x220] sm:$0xff]
        %v6713 = vld [vmem:[%s5 + $0x228] sm:$0xff]
        %v6714 = vld [vmem:[%s5 + $0x230] sm:$0xff]
        %v6715 = vld [vmem:[%s5 + $0x238] sm:$0xff]
        %v6716 = vld [vmem:[%s5 + $0x240] sm:$0xff]
        %v6717 = vld [vmem:[%s5 + $0x248] sm:$0xff]
        %v6718 = vld [vmem:[%s5 + $0x250] sm:$0xff]
        %v6719 = vld [vmem:[%s5 + $0x258] sm:$0xff]
        %v6720 = vld [vmem:[%s5 + $0x260] sm:$0xff]
        %v6721 = vld [vmem:[%s5 + $0x268] sm:$0xff]
        %v6722 = vld [vmem:[%s5 + $0x270] sm:$0xff]
        %v6723 = vld [vmem:[%s5 + $0x278] sm:$0xff]
        %v6724 = vld [vmem:[%s5 + $0x280] sm:$0xff]
        %v6725 = vld [vmem:[%s5 + $0x288] sm:$0xff]
        %v6726 = vld [vmem:[%s5 + $0x290] sm:$0xff]
        %v6727 = vld [vmem:[%s5 + $0x298] sm:$0xff]
        %v6728 = vld [vmem:[%s5 + $0x2a0] sm:$0xff]
        %v6729 = vld [vmem:[%s5 + $0x2a8] sm:$0xff]
        %v6730 = vld [vmem:[%s5 + $0x2b0] sm:$0xff]
        %v6731 = vld [vmem:[%s5 + $0x2b8] sm:$0xff]
        %v6732 = vld [vmem:[%s5 + $0x2c0] sm:$0xff]
        %v6733 = vld [vmem:[%s5 + $0x2c8] sm:$0xff]
        %v6734 = vld [vmem:[%s5 + $0x2d0] sm:$0xff]
        %v6735 = vld [vmem:[%s5 + $0x2d8] sm:$0xff]
        %v6736 = vld [vmem:[%s5 + $0x2e0] sm:$0xff]
        %v6737 = vld [vmem:[%s5 + $0x2e8] sm:$0xff]
        %v6738 = vld [vmem:[%s5 + $0x2f0] sm:$0xff]
        %v6739 = vld [vmem:[%s5 + $0x2f8] sm:$0xff]
        %v6740 = vld [vmem:[%s5 + $0x300] sm:$0xff]
        %v6741 = vld [vmem:[%s5 + $0x308] sm:$0xff]
        %v6742 = vld [vmem:[%s5 + $0x310] sm:$0xff]
        %v6743 = vld [vmem:[%s5 + $0x318] sm:$0xff]
        %v6744 = vld [vmem:[%s5 + $0x320] sm:$0xff]
        %v6745 = vld [vmem:[%s5 + $0x328] sm:$0xff]
        %v6746 = vld [vmem:[%s5 + $0x330] sm:$0xff]
        %v6747 = vld [vmem:[%s5 + $0x338] sm:$0xff]
        %v6748 = vld [vmem:[%s5 + $0x340] sm:$0xff]
        %v6749 = vld [vmem:[%s5 + $0x348] sm:$0xff]
        %v6750 = vld [vmem:[%s5 + $0x350] sm:$0xff]
        %v6751 = vld [vmem:[%s5 + $0x358] sm:$0xff]
        %v6752 = vld [vmem:[%s5 + $0x360] sm:$0xff]
        %v6753 = vld [vmem:[%s5 + $0x368] sm:$0xff]
        %v6754 = vld [vmem:[%s5 + $0x370] sm:$0xff]
        %v6755 = vld [vmem:[%s5 + $0x378] sm:$0xff]
        %v6756 = vld [vmem:[%s5 + $0x380] sm:$0xff]
        %v6757 = vld [vmem:[%s5 + $0x388] sm:$0xff]
        %v6758 = vld [vmem:[%s5 + $0x390] sm:$0xff]
        %v6759 = vld [vmem:[%s5 + $0x398] sm:$0xff]
        %v6760 = vld [vmem:[%s5 + $0x3a0] sm:$0xff]
        %v6761 = vld [vmem:[%s5 + $0x3a8] sm:$0xff]
        %v6762 = vld [vmem:[%s5 + $0x3b0] sm:$0xff]
        %v6763 = vld [vmem:[%s5 + $0x3b8] sm:$0xff]
        %v6764 = vld [vmem:[%s5 + $0x3c0] sm:$0xff]
        %v6765 = vld [vmem:[%s5 + $0x3c8] sm:$0xff]
        %v6766 = vld [vmem:[%s5 + $0x3d0] sm:$0xff]
        %v6767 = vld [vmem:[%s5 + $0x3d8] sm:$0xff]
        %v6768 = vld [vmem:[%s5 + $0x3e0] sm:$0xff]
        %v6769 = vld [vmem:[%s5 + $0x3e8] sm:$0xff]
        %v6770 = vld [vmem:[%s5 + $0x3f0] sm:$0xff]
        %v6771 = vld [vmem:[%s5 + $0x3f8] sm:$0xff]
        %v6772 = vld [vmem:[%s6] sm:$0x1]
        %v6774 = vperm.slane %v6772, 0
        %6776 = vmatpush.msra.mxu0 %v6659
        %6777 = vmatpush.msra.mxu0 %v6658
        %6778 = vmatpush.msra.mxu0 %v6657
        %6779 = vmatpush.msra.mxu0 %v6656
        %6780 = vmatpush.msra.mxu0 %v6655
        %6781 = vmatpush.msra.mxu0 %v6654
        %6782 = vmatpush.msra.mxu0 %v6653
        %6783 = vmatpush.msra.mxu0 %v6652
        %6784 = vmatpush.msra.mxu0 %v6651
        %6785 = vmatpush.msra.mxu0 %v6650
        %6786 = vmatpush.msra.mxu0 %v6649
        %6787 = vmatpush.msra.mxu0 %v6648
        %6788 = vmatpush.msra.mxu0 %v6647
        %6789 = vmatpush.msra.mxu0 %v6646
        %6790 = vmatpush.msra.mxu0 %v6645
        %6791 = vmatpush.msra.mxu0 %v6644
        %6792 = vmatmul.f32.gmra.mxu0 %v6636
        %v6793 = vpop.f32.mrf.mxu0
        %v6794 = vadd.f32 %v6774, %v6793
        %6795 = vdwg.mxu0
        %6796 = vmatpush.msra.mxu0 %v6675
        %6797 = vmatpush.msra.mxu0 %v6674
        %6798 = vmatpush.msra.mxu0 %v6673
        %6799 = vmatpush.msra.mxu0 %v6672
        %6800 = vmatpush.msra.mxu0 %v6671
        %6801 = vmatpush.msra.mxu0 %v6670
        %6802 = vmatpush.msra.mxu0 %v6669
        %6803 = vmatpush.msra.mxu0 %v6668
        %6804 = vmatpush.msra.mxu0 %v6667
        %6805 = vmatpush.msra.mxu0 %v6666
        %6806 = vmatpush.msra.mxu0 %v6665
        %6807 = vmatpush.msra.mxu0 %v6664
        %6808 = vmatpush.msra.mxu0 %v6663
        %6809 = vmatpush.msra.mxu0 %v6662
        %6810 = vmatpush.msra.mxu0 %v6661
        %6811 = vmatpush.msra.mxu0 %v6660
        %6812 = vmatmul.f32.gmra.mxu0 %v6637
        %v6813 = vpop.f32.mrf.mxu0
        %v6814 = vadd.f32 %v6794, %v6813
        %6815 = vdwg.mxu0
        %6816 = vmatpush.msra.mxu0 %v6691
        %6817 = vmatpush.msra.mxu0 %v6690
        %6818 = vmatpush.msra.mxu0 %v6689
        %6819 = vmatpush.msra.mxu0 %v6688
        %6820 = vmatpush.msra.mxu0 %v6687
        %6821 = vmatpush.msra.mxu0 %v6686
        %6822 = vmatpush.msra.mxu0 %v6685
        %6823 = vmatpush.msra.mxu0 %v6684
        %6824 = vmatpush.msra.mxu0 %v6683
        %6825 = vmatpush.msra.mxu0 %v6682
        %6826 = vmatpush.msra.mxu0 %v6681
        %6827 = vmatpush.msra.mxu0 %v6680
        %6828 = vmatpush.msra.mxu0 %v6679
        %6829 = vmatpush.msra.mxu0 %v6678
        %6830 = vmatpush.msra.mxu0 %v6677
        %6831 = vmatpush.msra.mxu0 %v6676
        %6832 = vmatmul.f32.gmra.mxu0 %v6638
        %v6833 = vpop.f32.mrf.mxu0
        %v6834 = vadd.f32 %v6814, %v6833
        %6835 = vdwg.mxu0
        %6836 = vmatpush.msra.mxu0 %v6707
        %6837 = vmatpush.msra.mxu0 %v6706
        %6838 = vmatpush.msra.mxu0 %v6705
        %6839 = vmatpush.msra.mxu0 %v6704
        %6840 = vmatpush.msra.mxu0 %v6703
        %6841 = vmatpush.msra.mxu0 %v6702
        %6842 = vmatpush.msra.mxu0 %v6701
        %6843 = vmatpush.msra.mxu0 %v6700
        %6844 = vmatpush.msra.mxu0 %v6699
        %6845 = vmatpush.msra.mxu0 %v6698
        %6846 = vmatpush.msra.mxu0 %v6697
        %6847 = vmatpush.msra.mxu0 %v6696
        %6848 = vmatpush.msra.mxu0 %v6695
        %6849 = vmatpush.msra.mxu0 %v6694
        %6850 = vmatpush.msra.mxu0 %v6693
        %6851 = vmatpush.msra.mxu0 %v6692
        %6852 = vmatmul.f32.gmra.mxu0 %v6639
        %v6853 = vpop.f32.mrf.mxu0
        %v6854 = vadd.f32 %v6834, %v6853
        %6855 = vdwg.mxu0
        %6856 = vmatpush.msra.mxu0 %v6723
        %6857 = vmatpush.msra.mxu0 %v6722
        %6858 = vmatpush.msra.mxu0 %v6721
        %6859 = vmatpush.msra.mxu0 %v6720
        %6860 = vmatpush.msra.mxu0 %v6719
        %6861 = vmatpush.msra.mxu0 %v6718
        %6862 = vmatpush.msra.mxu0 %v6717
        %6863 = vmatpush.msra.mxu0 %v6716
        %6864 = vmatpush.msra.mxu0 %v6715
        %6865 = vmatpush.msra.mxu0 %v6714
        %6866 = vmatpush.msra.mxu0 %v6713
        %6867 = vmatpush.msra.mxu0 %v6712
        %6868 = vmatpush.msra.mxu0 %v6711
        %6869 = vmatpush.msra.mxu0 %v6710
        %6870 = vmatpush.msra.mxu0 %v6709
        %6871 = vmatpush.msra.mxu0 %v6708
        %6872 = vmatmul.f32.gmra.mxu0 %v6640
        %v6873 = vpop.f32.mrf.mxu0
        %v6874 = vadd.f32 %v6854, %v6873
        %6875 = vdwg.mxu0
        %6876 = vmatpush.msra.mxu0 %v6739
        %6877 = vmatpush.msra.mxu0 %v6738
        %6878 = vmatpush.msra.mxu0 %v6737
        %6879 = vmatpush.msra.mxu0 %v6736
        %6880 = vmatpush.msra.mxu0 %v6735
        %6881 = vmatpush.msra.mxu0 %v6734
        %6882 = vmatpush.msra.mxu0 %v6733
        %6883 = vmatpush.msra.mxu0 %v6732
        %6884 = vmatpush.msra.mxu0 %v6731
        %6885 = vmatpush.msra.mxu0 %v6730
        %6886 = vmatpush.msra.mxu0 %v6729
        %6887 = vmatpush.msra.mxu0 %v6728
        %6888 = vmatpush.msra.mxu0 %v6727
        %6889 = vmatpush.msra.mxu0 %v6726
        %6890 = vmatpush.msra.mxu0 %v6725
        %6891 = vmatpush.msra.mxu0 %v6724
        %6892 = vmatmul.f32.gmra.mxu0 %v6641
        %v6893 = vpop.f32.mrf.mxu0
        %v6894 = vadd.f32 %v6874, %v6893
        %6895 = vdwg.mxu0
        %6896 = vmatpush.msra.mxu0 %v6755
        %6897 = vmatpush.msra.mxu0 %v6754
        %6898 = vmatpush.msra.mxu0 %v6753
        %6899 = vmatpush.msra.mxu0 %v6752
        %6900 = vmatpush.msra.mxu0 %v6751
        %6901 = vmatpush.msra.mxu0 %v6750
        %6902 = vmatpush.msra.mxu0 %v6749
        %6903 = vmatpush.msra.mxu0 %v6748
        %6904 = vmatpush.msra.mxu0 %v6747
        %6905 = vmatpush.msra.mxu0 %v6746
        %6906 = vmatpush.msra.mxu0 %v6745
        %6907 = vmatpush.msra.mxu0 %v6744
        %6908 = vmatpush.msra.mxu0 %v6743
        %6909 = vmatpush.msra.mxu0 %v6742
        %6910 = vmatpush.msra.mxu0 %v6741
        %6911 = vmatpush.msra.mxu0 %v6740
        %6912 = vmatmul.f32.gmra.mxu0 %v6642
        %v6913 = vpop.f32.mrf.mxu0
        %v6914 = vadd.f32 %v6894, %v6913
        %6915 = vdwg.mxu0
        %6916 = vmatpush.msra.mxu0 %v6771
        %6917 = vmatpush.msra.mxu0 %v6770
        %6918 = vmatpush.msra.mxu0 %v6769
        %6919 = vmatpush.msra.mxu0 %v6768
        %6920 = vmatpush.msra.mxu0 %v6767
        %6921 = vmatpush.msra.mxu0 %v6766
        %6922 = vmatpush.msra.mxu0 %v6765
        %6923 = vmatpush.msra.mxu0 %v6764
        %6924 = vmatpush.msra.mxu0 %v6763
        %6925 = vmatpush.msra.mxu0 %v6762
        %6926 = vmatpush.msra.mxu0 %v6761
        %6927 = vmatpush.msra.mxu0 %v6760
        %6928 = vmatpush.msra.mxu0 %v6759
        %6929 = vmatpush.msra.mxu0 %v6758
        %6930 = vmatpush.msra.mxu0 %v6757
        %6931 = vmatpush.msra.mxu0 %v6756
        %6932 = vmatmul.f32.gmra.mxu0 %v6643
        %v6933 = vpop.f32.mrf.mxu0
        %v6934 = vadd.f32 %v6914, %v6933
        %6935 = vdwg.mxu0
        %v6936 = vtanh.pop %v6934
        %v6937 = vld [vmem:[%s7] sm:$0xff]
        %v6938 = vld [vmem:[%s7 + $0x8] sm:$0xff]
        %v6939 = vld [vmem:[%s7 + $0x10] sm:$0xff]
        %v6940 = vld [vmem:[%s7 + $0x18] sm:$0xff]
        %v6941 = vld [vmem:[%s8] sm:$0x1]
        %v6943 = vperm.slane %v6941, 0
        %v6946 = vsel %vm3971, %v6936, 0
        %6948 = vmatpush.msra.mxu0 0.0
        %6949 = vmatpush.msra.mxu0 0.0
        %6950 = vmatpush.msra.mxu0 0.0
        %6951 = vmatpush.msra.mxu0 0.0
        %6952 = vmatpush.msra.mxu0 0.0
        %6953 = vmatpush.msra.mxu0 0.0
        %6954 = vmatpush.msra.mxu0 0.0
        %6955 = vmatpush.msra.mxu0 0.0
        %6956 = vmatpush.msra.mxu0 0.0
        %6957 = vmatpush.msra.mxu0 0.0
        %6958 = vmatpush.msra.mxu0 0.0
        %6959 = vmatpush.msra.mxu0 0.0
        %6960 = vmatpush.msra.mxu0 %v6940
        %6961 = vmatpush.msra.mxu0 %v6939
        %6962 = vmatpush.msra.mxu0 %v6938
        %6963 = vmatpush.msra.mxu0 %v6937
        %6964 = vmatmul.f32.gmra.mxu0 %v6946
        %v6965 = vpop.f32.mrf.mxu0
        %v6966 = vadd.f32 %v6943, %v6965
        %6967 = vdwg.mxu0
        %vm6968 = vcmask 60416
        %6969 = vst.msk [vmem:[%s328] sm:$0xf] %vm6968, %v6966
        %s6970 = sand.u32 %s227, 1
        %s6971 = scalar_lea.sflag [#allocation5], %s6970
        %s6972 = sand.u32 %s227, 1
        %s6973 = smul.addr %s6972, 4
        %s6974 = scalar_lea.vmem [#allocation4], %s6973
        // Predicated region
        $region57: #{tpu_custom_call.1} parent=55 // pred_check
          %p6975 = pneg %p237
        $region58: #{tpu_custom_call.1} parent=55 // pred_check_branch
          %6977 = sbr.rel (%p6975) target = $region60
        $region59: #{tpu_custom_call.1} parent=55 // pred_region
          %6979 = vsyncadd %s6971, 0
          %s6980 = smul.addr %s25, 4
          %s6981 = scalar_lea.hbm %s9, %s6980
          %s6983 = sshll.u32 %s6974, 4
          %s6984 = int_to_ptr.vmem [resolvable:$true] %s6983
          %s6985 = sshll.u32 %s6981, 4
          %s6986 = int_to_ptr.hbm [resolvable:$true] %s6985
          %6988 = dma.vmem_to_hbm [thread:$0]  %s6984, 64, %s6986, %s6971
        $region60: #{tpu_custom_call.1} parent=55 // pred_fallthru
          _
      $region56: #{tpu_custom_call.1} parent=5 // pred_fallthru
        _
      %p6989 = scmp.le.s32.totalorder 2, %s20
      // Predicated region
      $region61: #{tpu_custom_call.1} parent=5 // pred_check
        %p6990 = pneg %p6989
      $region62: #{tpu_custom_call.1} parent=5 // pred_check_branch
        %6992 = sbr.rel (%p6990) target = $region64
      $region63: #{tpu_custom_call.1} parent=5 // pred_region
        %s6993 = ssub.s32 %s20, 2
        // Predicated region
        $region65: #{tpu_custom_call.1} parent=63 // pred_check
          %p6994 = pneg %p243
        $region66: #{tpu_custom_call.1} parent=63 // pred_check_branch
          %6996 = sbr.rel (%p6994) target = $region68
        $region67: #{tpu_custom_call.1} parent=63 // pred_region
          %s6997 = sand.u32 %s228, 1
          %s6998 = scalar_lea.sflag [#allocation5], %s6997
          %s6999 = sand.u32 %s228, 1
          %s7000 = smul.addr %s6999, 4
          %s7001 = scalar_lea.vmem [#allocation4], %s7000
          %7003 = dma.done %s6998, 64
        $region68: #{tpu_custom_call.1} parent=63 // pred_fallthru
          _
      $region64: #{tpu_custom_call.1} parent=5 // pred_fallthru
        _
    $region6: #{tpu_custom_call.1} parent=1 // loop_footer
      %s24 = sadd.s32 1, %s20
    $region7: #{tpu_custom_call.1} parent=1 // loop_footer_branch
      %19 = sbr.rel target = $region3
    $region8: #{tpu_custom_call.1} parent=1 // loop_exit
      _
    %7004 = vsyncpa [#allocation5], 1
    %s7005 = scalar_lea.sflag [#allocation5], 1
    %7006 = vsyncpa %s7005, 1

</llo_original>
